<compile_context>
chip_gen: v6e
topology: v6e:2x2x1
jax: 0.10.0
libtpu: 0.0.40
codegen_flags: <defaults>
</compile_context>

<pallas_src>
import math
from functools import partial

import jax
import jax.numpy as jnp
from jax import lax
from jax.experimental import pallas as pl
from jax.experimental.pallas import tpu as pltpu

BN_EPS = 1e-5
ROW_TILE = 512          # row tile for the fused conv-matmul kernels
EW_ROW_TILE = 1024      # row tile for the lane-dense elementwise kernels


# ----------------------------- Pallas kernels ------------------------------

def conv_mm_kernel(cols_ref, w_ref, b_ref, scale_ref, shift_ref,
                   y_ref, sum_ref, sq_ref, *, apply_in_affine, m_valid, bm):
    # y = [relu(cols*scale+shift)] @ w + b, plus per-channel sum / sumsq of y.
    x = cols_ref[...]
    if apply_in_affine:                       # folded upstream BN + ReLU
        x = jnp.maximum(x * scale_ref[...] + shift_ref[...], 0.0)
    y = jnp.dot(x, w_ref[...], preferred_element_type=jnp.float32) + b_ref[...]
    y_ref[...] = y

    @pl.when(pl.program_id(0) == 0)
    def _():
        sum_ref[...] = jnp.zeros_like(sum_ref)
        sq_ref[...] = jnp.zeros_like(sq_ref)

    if m_valid % bm:      # row padding present -> mask padded rows out of moments
        rid = pl.program_id(0) * bm + lax.broadcasted_iota(jnp.int32, (bm, 1), 0)
        msk = jnp.where(rid < m_valid, 1.0, 0.0)
        ym = y * msk
        sum_ref[...] += jnp.sum(ym, axis=0, keepdims=True)
        sq_ref[...] += jnp.sum(ym * y, axis=0, keepdims=True)
    else:
        sum_ref[...] += jnp.sum(y, axis=0, keepdims=True)
        sq_ref[...] += jnp.sum(y * y, axis=0, keepdims=True)


def affine_relu_kernel(x_ref, s_ref, t_ref, o_ref):
    # standalone folded-BN affine + ReLU (lane-dense layout)
    o_ref[...] = jnp.maximum(x_ref[...] * s_ref[...] + t_ref[...], 0.0)


def residual_out_kernel(r_ref, sr_ref, tr_ref, x_ref, sx_ref, tx_ref, o_ref,
                        *, affine_x):
    # out = relu( bn2(res) + [downsample_bn(x) | x] )   (lane-dense layout)
    r = r_ref[...] * sr_ref[...] + tr_ref[...]
    x = x_ref[...]
    if affine_x:
        x = x * sx_ref[...] + tx_ref[...]
    o_ref[...] = jnp.maximum(r + x, 0.0)


# ----------------------------- kernel wrappers ------------------------------

def conv_matmul(cols, w, b, in_affine=None):
    """Fused conv matmul: returns (y, per-channel sum of y, per-channel sumsq of y)."""
    m, k = cols.shape
    n = w.shape[1]
    if m <= ROW_TILE:
        bm, mp = m, m
    else:
        bm = ROW_TILE
        mp = ((m + bm - 1) // bm) * bm
    colsp = cols if mp == m else jnp.pad(cols, ((0, mp - m), (0, 0)))
    if in_affine is None:
        scale = jnp.zeros((1, k), jnp.float32)
        shift = jnp.zeros((1, k), jnp.float32)
        apply_aff = False
    else:
        scale = in_affine[0].reshape(1, k).astype(jnp.float32)
        shift = in_affine[1].reshape(1, k).astype(jnp.float32)
        apply_aff = True

    y, s, q = pl.pallas_call(
        partial(conv_mm_kernel, apply_in_affine=apply_aff, m_valid=m, bm=bm),
        out_shape=(jax.ShapeDtypeStruct((mp, n), jnp.float32),
                   jax.ShapeDtypeStruct((1, n), jnp.float32),
                   jax.ShapeDtypeStruct((1, n), jnp.float32)),
        grid=(mp // bm,),
        in_specs=[pl.BlockSpec((bm, k), lambda i: (i, 0)),
                  pl.BlockSpec((k, n), lambda i: (0, 0)),
                  pl.BlockSpec((1, n), lambda i: (0, 0)),
                  pl.BlockSpec((1, k), lambda i: (0, 0)),
                  pl.BlockSpec((1, k), lambda i: (0, 0))],
        out_specs=(pl.BlockSpec((bm, n), lambda i: (i, 0)),
                   pl.BlockSpec((1, n), lambda i: (0, 0)),
                   pl.BlockSpec((1, n), lambda i: (0, 0))),
        # sum/sq accumulate across the row axis -> must stay sequential
        # (do NOT flip to "parallel"; megacore would race the accumulators).
        compiler_params=pltpu.CompilerParams(
            dimension_semantics=("arbitrary",)),
    )(colsp, w, b.reshape(1, n), scale, shift)
    if mp != m:
        y = y[:m]
    return y, s[0], q[0]


def _lane_dense_factor(m, c):
    # group g rows so g*c is a multiple of 128 (lane-dense stores)
    g = (c * 128 // math.gcd(c, 128)) // c
    return g if (m % g == 0) else 1


def _row_tile(rows, max_tile):
    if rows <= max_tile:
        return rows, rows
    return max_tile, ((rows + max_tile - 1) // max_tile) * max_tile


def affine_relu(x2d, scale, shift):
    m, c = x2d.shape
    g = _lane_dense_factor(m, c)
    rows, width = m // g, g * c
    xd = x2d.reshape(rows, width)
    s = jnp.tile(scale, g).reshape(1, width)
    t = jnp.tile(shift, g).reshape(1, width)
    br, rp = _row_tile(rows, EW_ROW_TILE)
    if rp != rows:
        xd = jnp.pad(xd, ((0, rp - rows), (0, 0)))
    out = pl.pallas_call(
        affine_relu_kernel,
        out_shape=jax.ShapeDtypeStruct((rp, width), jnp.float32),
        grid=(rp // br,),
        in_specs=[pl.BlockSpec((br, width), lambda i: (i, 0)),
                  pl.BlockSpec((1, width), lambda i: (0, 0)),
                  pl.BlockSpec((1, width), lambda i: (0, 0))],
        out_specs=pl.BlockSpec((br, width), lambda i: (i, 0)),
        compiler_params=pltpu.CompilerParams(
            dimension_semantics=("parallel",)),
    )(xd, s, t)
    if rp != rows:
        out = out[:rows]
    return out.reshape(m, c)


def residual_add_relu(r2d, r_affine, x2d, x_affine=None):
    m, c = r2d.shape
    g = _lane_dense_factor(m, c)
    rows, width = m // g, g * c
    rd = r2d.reshape(rows, width)
    xd = x2d.reshape(rows, width)
    sr = jnp.tile(r_affine[0], g).reshape(1, width)
    tr = jnp.tile(r_affine[1], g).reshape(1, width)
    if x_affine is None:
        sx = jnp.zeros((1, width), jnp.float32)
        tx = jnp.zeros((1, width), jnp.float32)
        aff_x = False
    else:
        sx = jnp.tile(x_affine[0], g).reshape(1, width)
        tx = jnp.tile(x_affine[1], g).reshape(1, width)
        aff_x = True
    br, rp = _row_tile(rows, EW_ROW_TILE)
    if rp != rows:
        rd = jnp.pad(rd, ((0, rp - rows), (0, 0)))
        xd = jnp.pad(xd, ((0, rp - rows), (0, 0)))
    out = pl.pallas_call(
        partial(residual_out_kernel, affine_x=aff_x),
        out_shape=jax.ShapeDtypeStruct((rp, width), jnp.float32),
        grid=(rp // br,),
        in_specs=[pl.BlockSpec((br, width), lambda i: (i, 0)),
                  pl.BlockSpec((1, width), lambda i: (0, 0)),
                  pl.BlockSpec((1, width), lambda i: (0, 0)),
                  pl.BlockSpec((br, width), lambda i: (i, 0)),
                  pl.BlockSpec((1, width), lambda i: (0, 0)),
                  pl.BlockSpec((1, width), lambda i: (0, 0))],
        out_specs=pl.BlockSpec((br, width), lambda i: (i, 0)),
        compiler_params=pltpu.CompilerParams(
            dimension_semantics=("parallel",)),
    )(rd, sr, tr, xd, sx, tx)
    if rp != rows:
        out = out[:rows]
    return out.reshape(m, c)


def bn_affine_from_moments(s, q, count, gamma, beta):
    mean = s / count
    var = q / count - mean * mean          # biased variance (training-mode BN)
    scale = gamma * lax.rsqrt(var + BN_EPS)
    shift = beta - mean * scale
    return scale, shift


# ----------------------------- im2col glue (JAX) ----------------------------

def spatial_im2col(x, k, s, p):
    # x: (N, T, H, W, C); (1, k, k) conv with stride (1, s, s), padding (0, p, p)
    n, t, h, w, c = x.shape
    xp = jnp.pad(x, ((0, 0), (0, 0), (p, p), (p, p), (0, 0)))
    ho = (h + 2 * p - k) // s + 1
    wo = (w + 2 * p - k) // s + 1
    patches = []
    for kh in range(k):
        for kw in range(k):
            patches.append(xp[:, :, kh:kh + (ho - 1) * s + 1:s,
                              kw:kw + (wo - 1) * s + 1:s, :])
    pm = jnp.stack(patches, axis=4)                 # (N,T,Ho,Wo,k*k,C)
    return pm.reshape(n * t * ho * wo, k * k * c), (n, t, ho, wo)


def temporal_im2col(x, k, s, p):
    # x: (N, T, H, W, C); (k, 1, 1) conv with stride (s, 1, 1), padding (p, 0, 0)
    n, t, h, w, c = x.shape
    xp = jnp.pad(x, ((0, 0), (p, p), (0, 0), (0, 0), (0, 0)))
    to = (t + 2 * p - k) // s + 1
    patches = [xp[:, kt:kt + (to - 1) * s + 1:s, :, :, :] for kt in range(k)]
    pm = jnp.stack(patches, axis=4)                 # (N,To,H,W,k,C)
    return pm.reshape(n * to * h * w, k * c), (n, to, h, w)


# ----------------------------- module forward -------------------------------

def spatio_temporal_conv(x, p, in_affine=None):
    """R(2+1)D factored conv:
       [relu(affine(.)) = folded upstream BN]  -> (1,k,k) conv -> BN+ReLU
       -> (k,1,1) conv.
       Returns conv output plus (sum, sumsq, count) of it for the downstream BN."""
    k, s, pad = p["k"], p["stride"], p["pad"]

    # Folded upstream BN+ReLU: fuse into the spatial matmul only when that conv
    # has NO zero padding (padded entries must be post-ReLU zeros, not relu(shift)).
    if in_affine is not None and pad != 0:
        c_in = x.shape[-1]
        x = affine_relu(x.reshape(-1, c_in),
                        in_affine[0], in_affine[1]).reshape(x.shape)
        in_affine = None

    cols, (n, t, ho, wo) = spatial_im2col(x, k, s, pad)
    aff_s = None
    if in_affine is not None:
        aff_s = (jnp.tile(in_affine[0], k * k), jnp.tile(in_affine[1], k * k))
    y, ys, yq = conv_matmul(cols, p["w_spatial"], p["b_spatial"], aff_s)
    bn_aff = bn_affine_from_moments(ys, yq, cols.shape[0],
                                    p["bn_gamma"], p["bn_beta"])

    # internal BN + ReLU: fuse into the temporal matmul when it has no T padding
    if pad != 0:
        y = affine_relu(y, bn_aff[0], bn_aff[1])
        bn_aff = None
    y5 = y.reshape(n, t, ho, wo, -1)
    cols, (n, to, h2, w2) = temporal_im2col(y5, k, s, pad)
    aff_t = None
    if bn_aff is not None:
        aff_t = (jnp.tile(bn_aff[0], k), jnp.tile(bn_aff[1], k))
    z, zs, zq = conv_matmul(cols, p["w_temporal"], p["b_temporal"], aff_t)
    return z.reshape(n, to, h2, w2, -1), (zs, zq, cols.shape[0])


def res_block_fwd(x, p):
    # main branch: conv1 -> bn1+relu (folded downstream) -> conv2 -> bn2 (folded in epilogue)
    r1, mom1 = spatio_temporal_conv(x, p["conv1"])
    a1 = bn_affine_from_moments(mom1[0], mom1[1], mom1[2],
                                p["bn1_gamma"], p["bn1_beta"])
    r2, mom2 = spatio_temporal_conv(r1, p["conv2"], in_affine=a1)
    a2 = bn_affine_from_moments(mom2[0], mom2[1], mom2[2],
                                p["bn2_gamma"], p["bn2_beta"])
    shp = r2.shape
    c = shp[-1]
    if p["downsample"]:
        xd, momd = spatio_temporal_conv(x, p["downsampleconv"])
        ad = bn_affine_from_moments(momd[0], momd[1], momd[2],
                                    p["dbn_gamma"], p["dbn_beta"])
        out = residual_add_relu(r2.reshape(-1, c), a2, xd.reshape(-1, c), ad)
    else:
        out = residual_add_relu(r2.reshape(-1, c), a2, x.reshape(-1, c))
    return out.reshape(shp)


def res_layer_fwd(x, blocks):
    for p in blocks:
        x = res_block_fwd(x, p)
    return x


# ----------------------------- parameter init -------------------------------

def init_st_conv(key, cin, cout, k, stride, pad):
    intermed = int(math.floor(k * k * k * cin * cout /
                              (k * k * cin + k * cout)))
    k1, k2, k3, k4 = jax.random.split(key, 4)
    s_s = 1.0 / math.sqrt(k * k * cin)
    s_t = 1.0 / math.sqrt(k * intermed)
    return {
        "k": k, "stride": stride, "pad": pad,
        "w_spatial": jax.random.normal(k1, (k * k * cin, intermed), jnp.float32) * s_s,
        "b_spatial": jax.random.normal(k2, (intermed,), jnp.float32) * s_s,
        "bn_gamma": jnp.ones((intermed,), jnp.float32),
        "bn_beta": jnp.zeros((intermed,), jnp.float32),
        "w_temporal": jax.random.normal(k3, (k * intermed, cout), jnp.float32) * s_t,
        "b_temporal": jax.random.normal(k4, (cout,), jnp.float32) * s_t,
    }


def init_res_block(key, cin, cout, k, downsample):
    pad = k // 2
    keys = jax.random.split(key, 3)
    p = {
        "downsample": downsample,
        "conv1": init_st_conv(keys[0], cin, cout, k,
                              2 if downsample else 1, pad),
        "bn1_gamma": jnp.ones((cout,), jnp.float32),
        "bn1_beta": jnp.zeros((cout,), jnp.float32),
        "conv2": init_st_conv(keys[1], cout, cout, k, 1, pad),
        "bn2_gamma": jnp.ones((cout,), jnp.float32),
        "bn2_beta": jnp.zeros((cout,), jnp.float32),
    }
    if downsample:
        p["downsampleconv"] = init_st_conv(keys[2], cin, cout, 1, 2, 0)
        p["dbn_gamma"] = jnp.ones((cout,), jnp.float32)
        p["dbn_beta"] = jnp.zeros((cout,), jnp.float32)
    return p


def init_res_layer(key, in_channels, out_channels, k, layer_size, downsample):
    keys = jax.random.split(key, layer_size)
    blocks = [init_res_block(keys[0], in_channels, out_channels, k, downsample)]
    for i in range(1, layer_size):
        blocks.append(init_res_block(keys[i], out_channels, out_channels, k, False))
    return blocks


# ---------------------------------- main -------------------------------------

if __name__ == "__main__":
    key = jax.random.PRNGKey(0)
    kx, kp = jax.random.split(key)

    # SpatioTemporalResLayer(in=4, out=8, kernel_size=3, layer_size=2, downsample=True)
    N, C, T, H, W = 2, 4, 8, 16, 16
    x_ncdhw = jax.random.normal(kx, (N, C, T, H, W), jnp.float32)

    # layout: PyTorch NCDHW -> channels-last (N, T, H, W, C) for the kernels
    x = jnp.transpose(x_ncdhw, (0, 2, 3, 4, 1))

    params = init_res_layer(kp, in_channels=4, out_channels=8, k=3,
                            layer_size=2, downsample=True)

    fwd = jax.jit(lambda v: jnp.transpose(res_layer_fwd(v, params),
                                          (0, 4, 1, 2, 3)))   # back to NCDHW
    y_ncdhw = fwd(x)
    jax.block_until_ready(y_ncdhw)

    assert y_ncdhw.shape == (2, 8, 4, 8, 8)
    print("KERNEL_OK")
</pallas_src>

<mosaic_0001>
module attributes {stable_mosaic.version = 11 : i64} {
  func.func @conv_mm_kernel(%arg0: i32, %arg1: memref<512x36xf32, #tpu.memory_space<vmem>>, %arg2: memref<36x14xf32, #tpu.memory_space<vmem>>, %arg3: memref<1x14xf32, #tpu.memory_space<vmem>>, %arg4: memref<1x36xf32, #tpu.memory_space<vmem>>, %arg5: memref<1x36xf32, #tpu.memory_space<vmem>>, %arg6: memref<512x14xf32, #tpu.memory_space<vmem>>, %arg7: memref<1x14xf32, #tpu.memory_space<vmem>>, %arg8: memref<1x14xf32, #tpu.memory_space<vmem>>) attributes {dimension_semantics = [#tpu.dimension_semantics<arbitrary>], iteration_bounds = array<i64: 2>, scalar_prefetch = 0 : i64, scratch_operands = 0 : i64, tpu.core_type = #tpu.core_type<tc>, window_params = [{transform_indices = @transform_0, window_bounds = array<i64: 512, 36>}, {pipeline_mode = #tpu.pipeline_mode<synchronous>, transform_indices = @transform_1, window_bounds = array<i64: 36, 14>}, {pipeline_mode = #tpu.pipeline_mode<synchronous>, transform_indices = @transform_2, window_bounds = array<i64: 1, 14>}, {pipeline_mode = #tpu.pipeline_mode<synchronous>, transform_indices = @transform_3, window_bounds = array<i64: 1, 36>}, {pipeline_mode = #tpu.pipeline_mode<synchronous>, transform_indices = @transform_4, window_bounds = array<i64: 1, 36>}, {transform_indices = @transform_5, window_bounds = array<i64: 512, 14>}, {pipeline_mode = #tpu.pipeline_mode<synchronous>, transform_indices = @transform_6, window_bounds = array<i64: 1, 14>}, {pipeline_mode = #tpu.pipeline_mode<synchronous>, transform_indices = @transform_7, window_bounds = array<i64: 1, 14>}]} {
    %c0 = arith.constant 0 : index
    %c0_0 = arith.constant 0 : index
    %0 = vector.load %arg1[%c0, %c0_0] : memref<512x36xf32, #tpu.memory_space<vmem>>, vector<512x36xf32>
    %c0_1 = arith.constant 0 : index
    %c0_2 = arith.constant 0 : index
    %1 = vector.load %arg2[%c0_1, %c0_2] : memref<36x14xf32, #tpu.memory_space<vmem>>, vector<36x14xf32>
    %cst = arith.constant dense<0.000000e+00> : vector<512x14xf32>
    %2 = tpu.matmul %0, %1, %cst {dimension_numbers = #tpu.dot_dimension_numbers<[1], [0], [0], [1], [0, 0, 1, 1], [], []>} : vector<512x36xf32>, vector<36x14xf32>, vector<512x14xf32> -> vector<512x14xf32>
    %c0_3 = arith.constant 0 : index
    %c0_4 = arith.constant 0 : index
    %3 = vector.load %arg3[%c0_3, %c0_4] : memref<1x14xf32, #tpu.memory_space<vmem>>, vector<1x14xf32>
    %4 = vector.broadcast %3 : vector<1x14xf32> to vector<512x14xf32>
    %5 = arith.addf %2, %4 : vector<512x14xf32>
    %c0_5 = arith.constant 0 : index
    %c0_6 = arith.constant 0 : index
    %6 = vector.load %arg6[%c0_5, %c0_6] : memref<512x14xf32, #tpu.memory_space<vmem>>, vector<512x14xf32>
    tpu.vector_store %arg6[%c0_5, %c0_6], %5 {strides = array<i32>} : memref<512x14xf32, #tpu.memory_space<vmem>>, vector<512x14xf32>,
    %c0_i32 = arith.constant 0 : i32
    %7 = arith.cmpi eq, %arg0, %c0_i32 : i32
    %8 = arith.extui %7 : i1 to i32
    %c0_i32_7 = arith.constant 0 : i32
    %9 = arith.cmpi ne, %8, %c0_i32_7 : i32
    scf.if %9 {
      %cst_18 = arith.constant 0.000000e+00 : f32
      %21 = vector.broadcast %cst_18 : f32 to vector<1x14xf32>
      %c0_19 = arith.constant 0 : index
      %c0_20 = arith.constant 0 : index
      %22 = vector.load %arg7[%c0_19, %c0_20] : memref<1x14xf32, #tpu.memory_space<vmem>>, vector<1x14xf32>
      tpu.vector_store %arg7[%c0_19, %c0_20], %21 {strides = array<i32>} : memref<1x14xf32, #tpu.memory_space<vmem>>, vector<1x14xf32>,
      %cst_21 = arith.constant 0.000000e+00 : f32
      %23 = vector.broadcast %cst_21 : f32 to vector<1x14xf32>
      %c0_22 = arith.constant 0 : index
      %c0_23 = arith.constant 0 : index
      %24 = vector.load %arg8[%c0_22, %c0_23] : memref<1x14xf32, #tpu.memory_space<vmem>>, vector<1x14xf32>
      tpu.vector_store %arg8[%c0_22, %c0_23], %23 {strides = array<i32>} : memref<1x14xf32, #tpu.memory_space<vmem>>, vector<1x14xf32>,
    } else {
    }
    %c0_8 = arith.constant 0 : index
    %c0_9 = arith.constant 0 : index
    %10 = vector.load %arg7[%c0_8, %c0_9] : memref<1x14xf32, #tpu.memory_space<vmem>>, vector<1x14xf32>
    %cst_10 = arith.constant dense<0.000000e+00> : vector<14xf32>
    %11 = vector.multi_reduction <add>, %5, %cst_10 [0] : vector<512x14xf32> to vector<14xf32>
    %12 = vector.shape_cast %11 : vector<14xf32> to vector<1x14xf32>
    %13 = arith.addf %10, %12 : vector<1x14xf32>
    %c0_11 = arith.constant 0 : index
    %c0_12 = arith.constant 0 : index
    %14 = vector.load %arg7[%c0_11, %c0_12] : memref<1x14xf32, #tpu.memory_space<vmem>>, vector<1x14xf32>
    tpu.vector_store %arg7[%c0_11, %c0_12], %13 {strides = array<i32>} : memref<1x14xf32, #tpu.memory_space<vmem>>, vector<1x14xf32>,
    %c0_13 = arith.constant 0 : index
    %c0_14 = arith.constant 0 : index
    %15 = vector.load %arg8[%c0_13, %c0_14] : memref<1x14xf32, #tpu.memory_space<vmem>>, vector<1x14xf32>
    %16 = arith.mulf %5, %5 : vector<512x14xf32>
    %cst_15 = arith.constant dense<0.000000e+00> : vector<14xf32>
    %17 = vector.multi_reduction <add>, %16, %cst_15 [0] : vector<512x14xf32> to vector<14xf32>
    %18 = vector.shape_cast %17 : vector<14xf32> to vector<1x14xf32>
    %19 = arith.addf %15, %18 : vector<1x14xf32>
    %c0_16 = arith.constant 0 : index
    %c0_17 = arith.constant 0 : index
    %20 = vector.load %arg8[%c0_16, %c0_17] : memref<1x14xf32, #tpu.memory_space<vmem>>, vector<1x14xf32>
    tpu.vector_store %arg8[%c0_16, %c0_17], %19 {strides = array<i32>} : memref<1x14xf32, #tpu.memory_space<vmem>>, vector<1x14xf32>,
    return
  }
  func.func @transform_0(%arg0: i32) -> (i32, i32) {
    %c0_i32 = arith.constant 0 : i32
    %c0_i32_0 = arith.constant 0 : i32
    return %arg0, %c0_i32 : i32, i32
  }
  func.func @transform_1(%arg0: i32) -> (i32, i32) {
    %c0_i32 = arith.constant 0 : i32
    %c0_i32_0 = arith.constant 0 : i32
    %c0_i32_1 = arith.constant 0 : i32
    return %c0_i32, %c0_i32_0 : i32, i32
  }
  func.func @transform_2(%arg0: i32) -> (i32, i32) {
    %c0_i32 = arith.constant 0 : i32
    %c0_i32_0 = arith.constant 0 : i32
    %c0_i32_1 = arith.constant 0 : i32
    return %c0_i32, %c0_i32_0 : i32, i32
  }
  func.func @transform_3(%arg0: i32) -> (i32, i32) {
    %c0_i32 = arith.constant 0 : i32
    %c0_i32_0 = arith.constant 0 : i32
    %c0_i32_1 = arith.constant 0 : i32
    return %c0_i32, %c0_i32_0 : i32, i32
  }
  func.func @transform_4(%arg0: i32) -> (i32, i32) {
    %c0_i32 = arith.constant 0 : i32
    %c0_i32_0 = arith.constant 0 : i32
    %c0_i32_1 = arith.constant 0 : i32
    return %c0_i32, %c0_i32_0 : i32, i32
  }
  func.func @transform_5(%arg0: i32) -> (i32, i32) {
    %c0_i32 = arith.constant 0 : i32
    %c0_i32_0 = arith.constant 0 : i32
    return %arg0, %c0_i32 : i32, i32
  }
  func.func @transform_6(%arg0: i32) -> (i32, i32) {
    %c0_i32 = arith.constant 0 : i32
    %c0_i32_0 = arith.constant 0 : i32
    %c0_i32_1 = arith.constant 0 : i32
    return %c0_i32, %c0_i32_0 : i32, i32
  }
  func.func @transform_7(%arg0: i32) -> (i32, i32) {
    %c0_i32 = arith.constant 0 : i32
    %c0_i32_0 = arith.constant 0 : i32
    %c0_i32_1 = arith.constant 0 : i32
    return %c0_i32, %c0_i32_0 : i32, i32
  }
}

module attributes {stable_mosaic.version = 11 : i64} {
  func.func @affine_relu_kernel(%arg0: i32, %arg1: memref<16x896xf32, #tpu.memory_space<vmem>>, %arg2: memref<1x896xf32, #tpu.memory_space<vmem>>, %arg3: memref<1x896xf32, #tpu.memory_space<vmem>>, %arg4: memref<16x896xf32, #tpu.memory_space<vmem>>) attributes {dimension_semantics = [#tpu.dimension_semantics<parallel>], iteration_bounds = array<i64: 1>, scalar_prefetch = 0 : i64, scratch_operands = 0 : i64, tpu.core_type = #tpu.core_type<tc>, window_params = [{transform_indices = @transform_0, window_bounds = array<i64: 16, 896>}, {pipeline_mode = #tpu.pipeline_mode<synchronous>, transform_indices = @transform_1, window_bounds = array<i64: 1, 896>}, {pipeline_mode = #tpu.pipeline_mode<synchronous>, transform_indices = @transform_2, window_bounds = array<i64: 1, 896>}, {transform_indices = @transform_3, window_bounds = array<i64: 16, 896>}]} {
    %c0 = arith.constant 0 : index
    %c0_0 = arith.constant 0 : index
    %0 = vector.load %arg1[%c0, %c0_0] : memref<16x896xf32, #tpu.memory_space<vmem>>, vector<16x896xf32>
    %c0_1 = arith.constant 0 : index
    %c0_2 = arith.constant 0 : index
    %1 = vector.load %arg2[%c0_1, %c0_2] : memref<1x896xf32, #tpu.memory_space<vmem>>, vector<1x896xf32>
    %2 = vector.broadcast %1 : vector<1x896xf32> to vector<16x896xf32>
    %3 = arith.mulf %0, %2 : vector<16x896xf32>
    %c0_3 = arith.constant 0 : index
    %c0_4 = arith.constant 0 : index
    %4 = vector.load %arg3[%c0_3, %c0_4] : memref<1x896xf32, #tpu.memory_space<vmem>>, vector<1x896xf32>
    %5 = vector.broadcast %4 : vector<1x896xf32> to vector<16x896xf32>
    %6 = arith.addf %3, %5 : vector<16x896xf32>
    %cst = arith.constant 0.000000e+00 : f32
    %7 = vector.broadcast %cst : f32 to vector<16x896xf32>
    %8 = arith.maximumf %6, %7 : vector<16x896xf32>
    %c0_5 = arith.constant 0 : index
    %c0_6 = arith.constant 0 : index
    %9 = vector.load %arg4[%c0_5, %c0_6] : memref<16x896xf32, #tpu.memory_space<vmem>>, vector<16x896xf32>
    tpu.vector_store %arg4[%c0_5, %c0_6], %8 {strides = array<i32>} : memref<16x896xf32, #tpu.memory_space<vmem>>, vector<16x896xf32>,
    return
  }
  func.func @transform_0(%arg0: i32) -> (i32, i32) {
    %c0_i32 = arith.constant 0 : i32
    %c0_i32_0 = arith.constant 0 : i32
    return %arg0, %c0_i32 : i32, i32
  }
  func.func @transform_1(%arg0: i32) -> (i32, i32) {
    %c0_i32 = arith.constant 0 : i32
    %c0_i32_0 = arith.constant 0 : i32
    %c0_i32_1 = arith.constant 0 : i32
    return %c0_i32, %c0_i32_0 : i32, i32
  }
  func.func @transform_2(%arg0: i32) -> (i32, i32) {
    %c0_i32 = arith.constant 0 : i32
    %c0_i32_0 = arith.constant 0 : i32
    %c0_i32_1 = arith.constant 0 : i32
    return %c0_i32, %c0_i32_0 : i32, i32
  }
  func.func @transform_3(%arg0: i32) -> (i32, i32) {
    %c0_i32 = arith.constant 0 : i32
    %c0_i32_0 = arith.constant 0 : i32
    return %arg0, %c0_i32 : i32, i32
  }
}

module attributes {stable_mosaic.version = 11 : i64} {
  func.func @conv_mm_kernel(%arg0: i32, %arg1: memref<512x42xf32, #tpu.memory_space<vmem>>, %arg2: memref<42x8xf32, #tpu.memory_space<vmem>>, %arg3: memref<1x8xf32, #tpu.memory_space<vmem>>, %arg4: memref<1x42xf32, #tpu.memory_space<vmem>>, %arg5: memref<1x42xf32, #tpu.memory_space<vmem>>, %arg6: memref<512x8xf32, #tpu.memory_space<vmem>>, %arg7: memref<1x8xf32, #tpu.memory_space<vmem>>, %arg8: memref<1x8xf32, #tpu.memory_space<vmem>>) attributes {dimension_semantics = [#tpu.dimension_semantics<arbitrary>], iteration_bounds = array<i64: 1>, scalar_prefetch = 0 : i64, scratch_operands = 0 : i64, tpu.core_type = #tpu.core_type<tc>, window_params = [{transform_indices = @transform_0, window_bounds = array<i64: 512, 42>}, {pipeline_mode = #tpu.pipeline_mode<synchronous>, transform_indices = @transform_1, window_bounds = array<i64: 42, 8>}, {pipeline_mode = #tpu.pipeline_mode<synchronous>, transform_indices = @transform_2, window_bounds = array<i64: 1, 8>}, {pipeline_mode = #tpu.pipeline_mode<synchronous>, transform_indices = @transform_3, window_bounds = array<i64: 1, 42>}, {pipeline_mode = #tpu.pipeline_mode<synchronous>, transform_indices = @transform_4, window_bounds = array<i64: 1, 42>}, {transform_indices = @transform_5, window_bounds = array<i64: 512, 8>}, {pipeline_mode = #tpu.pipeline_mode<synchronous>, transform_indices = @transform_6, window_bounds = array<i64: 1, 8>}, {pipeline_mode = #tpu.pipeline_mode<synchronous>, transform_indices = @transform_7, window_bounds = array<i64: 1, 8>}]} {
    %c0 = arith.constant 0 : index
    %c0_0 = arith.constant 0 : index
    %0 = vector.load %arg1[%c0, %c0_0] : memref<512x42xf32, #tpu.memory_space<vmem>>, vector<512x42xf32>
    %c0_1 = arith.constant 0 : index
    %c0_2 = arith.constant 0 : index
    %1 = vector.load %arg2[%c0_1, %c0_2] : memref<42x8xf32, #tpu.memory_space<vmem>>, vector<42x8xf32>
    %cst = arith.constant dense<0.000000e+00> : vector<512x8xf32>
    %2 = tpu.matmul %0, %1, %cst {dimension_numbers = #tpu.dot_dimension_numbers<[1], [0], [0], [1], [0, 0, 1, 1], [], []>} : vector<512x42xf32>, vector<42x8xf32>, vector<512x8xf32> -> vector<512x8xf32>
    %c0_3 = arith.constant 0 : index
    %c0_4 = arith.constant 0 : index
    %3 = vector.load %arg3[%c0_3, %c0_4] : memref<1x8xf32, #tpu.memory_space<vmem>>, vector<1x8xf32>
    %4 = vector.broadcast %3 : vector<1x8xf32> to vector<512x8xf32>
    %5 = arith.addf %2, %4 : vector<512x8xf32>
    %c0_5 = arith.constant 0 : index
    %c0_6 = arith.constant 0 : index
    %6 = vector.load %arg6[%c0_5, %c0_6] : memref<512x8xf32, #tpu.memory_space<vmem>>, vector<512x8xf32>
    tpu.vector_store %arg6[%c0_5, %c0_6], %5 {strides = array<i32>} : memref<512x8xf32, #tpu.memory_space<vmem>>, vector<512x8xf32>,
    %c0_i32 = arith.constant 0 : i32
    %7 = arith.cmpi eq, %arg0, %c0_i32 : i32
    %8 = arith.extui %7 : i1 to i32
    %c0_i32_7 = arith.constant 0 : i32
    %9 = arith.cmpi ne, %8, %c0_i32_7 : i32
    scf.if %9 {
      %cst_18 = arith.constant 0.000000e+00 : f32
      %21 = vector.broadcast %cst_18 : f32 to vector<1x8xf32>
      %c0_19 = arith.constant 0 : index
      %c0_20 = arith.constant 0 : index
      %22 = vector.load %arg7[%c0_19, %c0_20] : memref<1x8xf32, #tpu.memory_space<vmem>>, vector<1x8xf32>
      tpu.vector_store %arg7[%c0_19, %c0_20], %21 {strides = array<i32>} : memref<1x8xf32, #tpu.memory_space<vmem>>, vector<1x8xf32>,
      %cst_21 = arith.constant 0.000000e+00 : f32
      %23 = vector.broadcast %cst_21 : f32 to vector<1x8xf32>
      %c0_22 = arith.constant 0 : index
      %c0_23 = arith.constant 0 : index
      %24 = vector.load %arg8[%c0_22, %c0_23] : memref<1x8xf32, #tpu.memory_space<vmem>>, vector<1x8xf32>
      tpu.vector_store %arg8[%c0_22, %c0_23], %23 {strides = array<i32>} : memref<1x8xf32, #tpu.memory_space<vmem>>, vector<1x8xf32>,
    } else {
    }
    %c0_8 = arith.constant 0 : index
    %c0_9 = arith.constant 0 : index
    %10 = vector.load %arg7[%c0_8, %c0_9] : memref<1x8xf32, #tpu.memory_space<vmem>>, vector<1x8xf32>
    %cst_10 = arith.constant dense<0.000000e+00> : vector<8xf32>
    %11 = vector.multi_reduction <add>, %5, %cst_10 [0] : vector<512x8xf32> to vector<8xf32>
    %12 = vector.shape_cast %11 : vector<8xf32> to vector<1x8xf32>
    %13 = arith.addf %10, %12 : vector<1x8xf32>
    %c0_11 = arith.constant 0 : index
    %c0_12 = arith.constant 0 : index
    %14 = vector.load %arg7[%c0_11, %c0_12] : memref<1x8xf32, #tpu.memory_space<vmem>>, vector<1x8xf32>
    tpu.vector_store %arg7[%c0_11, %c0_12], %13 {strides = array<i32>} : memref<1x8xf32, #tpu.memory_space<vmem>>, vector<1x8xf32>,
    %c0_13 = arith.constant 0 : index
    %c0_14 = arith.constant 0 : index
    %15 = vector.load %arg8[%c0_13, %c0_14] : memref<1x8xf32, #tpu.memory_space<vmem>>, vector<1x8xf32>
    %16 = arith.mulf %5, %5 : vector<512x8xf32>
    %cst_15 = arith.constant dense<0.000000e+00> : vector<8xf32>
    %17 = vector.multi_reduction <add>, %16, %cst_15 [0] : vector<512x8xf32> to vector<8xf32>
    %18 = vector.shape_cast %17 : vector<8xf32> to vector<1x8xf32>
    %19 = arith.addf %15, %18 : vector<1x8xf32>
    %c0_16 = arith.constant 0 : index
    %c0_17 = arith.constant 0 : index
    %20 = vector.load %arg8[%c0_16, %c0_17] : memref<1x8xf32, #tpu.memory_space<vmem>>, vector<1x8xf32>
    tpu.vector_store %arg8[%c0_16, %c0_17], %19 {strides = array<i32>} : memref<1x8xf32, #tpu.memory_space<vmem>>, vector<1x8xf32>,
    return
  }
  func.func @transform_0(%arg0: i32) -> (i32, i32) {
    %c0_i32 = arith.constant 0 : i32
    %c0_i32_0 = arith.constant 0 : i32
    return %arg0, %c0_i32 : i32, i32
  }
  func.func @transform_1(%arg0: i32) -> (i32, i32) {
    %c0_i32 = arith.constant 0 : i32
    %c0_i32_0 = arith.constant 0 : i32
    %c0_i32_1 = arith.constant 0 : i32
    return %c0_i32, %c0_i32_0 : i32, i32
  }
  func.func @transform_2(%arg0: i32) -> (i32, i32) {
    %c0_i32 = arith.constant 0 : i32
    %c0_i32_0 = arith.constant 0 : i32
    %c0_i32_1 = arith.constant 0 : i32
    return %c0_i32, %c0_i32_0 : i32, i32
  }
  func.func @transform_3(%arg0: i32) -> (i32, i32) {
    %c0_i32 = arith.constant 0 : i32
    %c0_i32_0 = arith.constant 0 : i32
    %c0_i32_1 = arith.constant 0 : i32
    return %c0_i32, %c0_i32_0 : i32, i32
  }
  func.func @transform_4(%arg0: i32) -> (i32, i32) {
    %c0_i32 = arith.constant 0 : i32
    %c0_i32_0 = arith.constant 0 : i32
    %c0_i32_1 = arith.constant 0 : i32
    return %c0_i32, %c0_i32_0 : i32, i32
  }
  func.func @transform_5(%arg0: i32) -> (i32, i32) {
    %c0_i32 = arith.constant 0 : i32
    %c0_i32_0 = arith.constant 0 : i32
    return %arg0, %c0_i32 : i32, i32
  }
  func.func @transform_6(%arg0: i32) -> (i32, i32) {
    %c0_i32 = arith.constant 0 : i32
    %c0_i32_0 = arith.constant 0 : i32
    %c0_i32_1 = arith.constant 0 : i32
    return %c0_i32, %c0_i32_0 : i32, i32
  }
  func.func @transform_7(%arg0: i32) -> (i32, i32) {
    %c0_i32 = arith.constant 0 : i32
    %c0_i32_0 = arith.constant 0 : i32
    %c0_i32_1 = arith.constant 0 : i32
    return %c0_i32, %c0_i32_0 : i32, i32
  }
}

module attributes {stable_mosaic.version = 11 : i64} {
  func.func @affine_relu_kernel(%arg0: i32, %arg1: memref<32x128xf32, #tpu.memory_space<vmem>>, %arg2: memref<1x128xf32, #tpu.memory_space<vmem>>, %arg3: memref<1x128xf32, #tpu.memory_space<vmem>>, %arg4: memref<32x128xf32, #tpu.memory_space<vmem>>) attributes {dimension_semantics = [#tpu.dimension_semantics<parallel>], iteration_bounds = array<i64: 1>, scalar_prefetch = 0 : i64, scratch_operands = 0 : i64, tpu.core_type = #tpu.core_type<tc>, window_params = [{transform_indices = @transform_0, window_bounds = array<i64: 32, 128>}, {pipeline_mode = #tpu.pipeline_mode<synchronous>, transform_indices = @transform_1, window_bounds = array<i64: 1, 128>}, {pipeline_mode = #tpu.pipeline_mode<synchronous>, transform_indices = @transform_2, window_bounds = array<i64: 1, 128>}, {transform_indices = @transform_3, window_bounds = array<i64: 32, 128>}]} {
    %c0 = arith.constant 0 : index
    %c0_0 = arith.constant 0 : index
    %0 = vector.load %arg1[%c0, %c0_0] : memref<32x128xf32, #tpu.memory_space<vmem>>, vector<32x128xf32>
    %c0_1 = arith.constant 0 : index
    %c0_2 = arith.constant 0 : index
    %1 = vector.load %arg2[%c0_1, %c0_2] : memref<1x128xf32, #tpu.memory_space<vmem>>, vector<1x128xf32>
    %2 = vector.broadcast %1 : vector<1x128xf32> to vector<32x128xf32>
    %3 = arith.mulf %0, %2 : vector<32x128xf32>
    %c0_3 = arith.constant 0 : index
    %c0_4 = arith.constant 0 : index
    %4 = vector.load %arg3[%c0_3, %c0_4] : memref<1x128xf32, #tpu.memory_space<vmem>>, vector<1x128xf32>
    %5 = vector.broadcast %4 : vector<1x128xf32> to vector<32x128xf32>
    %6 = arith.addf %3, %5 : vector<32x128xf32>
    %cst = arith.constant 0.000000e+00 : f32
    %7 = vector.broadcast %cst : f32 to vector<32x128xf32>
    %8 = arith.maximumf %6, %7 : vector<32x128xf32>
    %c0_5 = arith.constant 0 : index
    %c0_6 = arith.constant 0 : index
    %9 = vector.load %arg4[%c0_5, %c0_6] : memref<32x128xf32, #tpu.memory_space<vmem>>, vector<32x128xf32>
    tpu.vector_store %arg4[%c0_5, %c0_6], %8 {strides = array<i32>} : memref<32x128xf32, #tpu.memory_space<vmem>>, vector<32x128xf32>,
    return
  }
  func.func @transform_0(%arg0: i32) -> (i32, i32) {
    %c0_i32 = arith.constant 0 : i32
    %c0_i32_0 = arith.constant 0 : i32
    return %arg0, %c0_i32 : i32, i32
  }
  func.func @transform_1(%arg0: i32) -> (i32, i32) {
    %c0_i32 = arith.constant 0 : i32
    %c0_i32_0 = arith.constant 0 : i32
    %c0_i32_1 = arith.constant 0 : i32
    return %c0_i32, %c0_i32_0 : i32, i32
  }
  func.func @transform_2(%arg0: i32) -> (i32, i32) {
    %c0_i32 = arith.constant 0 : i32
    %c0_i32_0 = arith.constant 0 : i32
    %c0_i32_1 = arith.constant 0 : i32
    return %c0_i32, %c0_i32_0 : i32, i32
  }
  func.func @transform_3(%arg0: i32) -> (i32, i32) {
    %c0_i32 = arith.constant 0 : i32
    %c0_i32_0 = arith.constant 0 : i32
    return %arg0, %c0_i32 : i32, i32
  }
}

module attributes {stable_mosaic.version = 11 : i64} {
  func.func @conv_mm_kernel(%arg0: i32, %arg1: memref<512x72xf32, #tpu.memory_space<vmem>>, %arg2: memref<72x18xf32, #tpu.memory_space<vmem>>, %arg3: memref<1x18xf32, #tpu.memory_space<vmem>>, %arg4: memref<1x72xf32, #tpu.memory_space<vmem>>, %arg5: memref<1x72xf32, #tpu.memory_space<vmem>>, %arg6: memref<512x18xf32, #tpu.memory_space<vmem>>, %arg7: memref<1x18xf32, #tpu.memory_space<vmem>>, %arg8: memref<1x18xf32, #tpu.memory_space<vmem>>) attributes {dimension_semantics = [#tpu.dimension_semantics<arbitrary>], iteration_bounds = array<i64: 1>, scalar_prefetch = 0 : i64, scratch_operands = 0 : i64, tpu.core_type = #tpu.core_type<tc>, window_params = [{transform_indices = @transform_0, window_bounds = array<i64: 512, 72>}, {pipeline_mode = #tpu.pipeline_mode<synchronous>, transform_indices = @transform_1, window_bounds = array<i64: 72, 18>}, {pipeline_mode = #tpu.pipeline_mode<synchronous>, transform_indices = @transform_2, window_bounds = array<i64: 1, 18>}, {pipeline_mode = #tpu.pipeline_mode<synchronous>, transform_indices = @transform_3, window_bounds = array<i64: 1, 72>}, {pipeline_mode = #tpu.pipeline_mode<synchronous>, transform_indices = @transform_4, window_bounds = array<i64: 1, 72>}, {transform_indices = @transform_5, window_bounds = array<i64: 512, 18>}, {pipeline_mode = #tpu.pipeline_mode<synchronous>, transform_indices = @transform_6, window_bounds = array<i64: 1, 18>}, {pipeline_mode = #tpu.pipeline_mode<synchronous>, transform_indices = @transform_7, window_bounds = array<i64: 1, 18>}]} {
    %c0 = arith.constant 0 : index
    %c0_0 = arith.constant 0 : index
    %0 = vector.load %arg1[%c0, %c0_0] : memref<512x72xf32, #tpu.memory_space<vmem>>, vector<512x72xf32>
    %c0_1 = arith.constant 0 : index
    %c0_2 = arith.constant 0 : index
    %1 = vector.load %arg2[%c0_1, %c0_2] : memref<72x18xf32, #tpu.memory_space<vmem>>, vector<72x18xf32>
    %cst = arith.constant dense<0.000000e+00> : vector<512x18xf32>
    %2 = tpu.matmul %0, %1, %cst {dimension_numbers = #tpu.dot_dimension_numbers<[1], [0], [0], [1], [0, 0, 1, 1], [], []>} : vector<512x72xf32>, vector<72x18xf32>, vector<512x18xf32> -> vector<512x18xf32>
    %c0_3 = arith.constant 0 : index
    %c0_4 = arith.constant 0 : index
    %3 = vector.load %arg3[%c0_3, %c0_4] : memref<1x18xf32, #tpu.memory_space<vmem>>, vector<1x18xf32>
    %4 = vector.broadcast %3 : vector<1x18xf32> to vector<512x18xf32>
    %5 = arith.addf %2, %4 : vector<512x18xf32>
    %c0_5 = arith.constant 0 : index
    %c0_6 = arith.constant 0 : index
    %6 = vector.load %arg6[%c0_5, %c0_6] : memref<512x18xf32, #tpu.memory_space<vmem>>, vector<512x18xf32>
    tpu.vector_store %arg6[%c0_5, %c0_6], %5 {strides = array<i32>} : memref<512x18xf32, #tpu.memory_space<vmem>>, vector<512x18xf32>,
    %c0_i32 = arith.constant 0 : i32
    %7 = arith.cmpi eq, %arg0, %c0_i32 : i32
    %8 = arith.extui %7 : i1 to i32
    %c0_i32_7 = arith.constant 0 : i32
    %9 = arith.cmpi ne, %8, %c0_i32_7 : i32
    scf.if %9 {
      %cst_18 = arith.constant 0.000000e+00 : f32
      %21 = vector.broadcast %cst_18 : f32 to vector<1x18xf32>
      %c0_19 = arith.constant 0 : index
      %c0_20 = arith.constant 0 : index
      %22 = vector.load %arg7[%c0_19, %c0_20] : memref<1x18xf32, #tpu.memory_space<vmem>>, vector<1x18xf32>
      tpu.vector_store %arg7[%c0_19, %c0_20], %21 {strides = array<i32>} : memref<1x18xf32, #tpu.memory_space<vmem>>, vector<1x18xf32>,
      %cst_21 = arith.constant 0.000000e+00 : f32
      %23 = vector.broadcast %cst_21 : f32 to vector<1x18xf32>
      %c0_22 = arith.constant 0 : index
      %c0_23 = arith.constant 0 : index
      %24 = vector.load %arg8[%c0_22, %c0_23] : memref<1x18xf32, #tpu.memory_space<vmem>>, vector<1x18xf32>
      tpu.vector_store %arg8[%c0_22, %c0_23], %23 {strides = array<i32>} : memref<1x18xf32, #tpu.memory_space<vmem>>, vector<1x18xf32>,
    } else {
    }
    %c0_8 = arith.constant 0 : index
    %c0_9 = arith.constant 0 : index
    %10 = vector.load %arg7[%c0_8, %c0_9] : memref<1x18xf32, #tpu.memory_space<vmem>>, vector<1x18xf32>
    %cst_10 = arith.constant dense<0.000000e+00> : vector<18xf32>
    %11 = vector.multi_reduction <add>, %5, %cst_10 [0] : vector<512x18xf32> to vector<18xf32>
    %12 = vector.shape_cast %11 : vector<18xf32> to vector<1x18xf32>
    %13 = arith.addf %10, %12 : vector<1x18xf32>
    %c0_11 = arith.constant 0 : index
    %c0_12 = arith.constant 0 : index
    %14 = vector.load %arg7[%c0_11, %c0_12] : memref<1x18xf32, #tpu.memory_space<vmem>>, vector<1x18xf32>
    tpu.vector_store %arg7[%c0_11, %c0_12], %13 {strides = array<i32>} : memref<1x18xf32, #tpu.memory_space<vmem>>, vector<1x18xf32>,
    %c0_13 = arith.constant 0 : index
    %c0_14 = arith.constant 0 : index
    %15 = vector.load %arg8[%c0_13, %c0_14] : memref<1x18xf32, #tpu.memory_space<vmem>>, vector<1x18xf32>
    %16 = arith.mulf %5, %5 : vector<512x18xf32>
    %cst_15 = arith.constant dense<0.000000e+00> : vector<18xf32>
    %17 = vector.multi_reduction <add>, %16, %cst_15 [0] : vector<512x18xf32> to vector<18xf32>
    %18 = vector.shape_cast %17 : vector<18xf32> to vector<1x18xf32>
    %19 = arith.addf %15, %18 : vector<1x18xf32>
    %c0_16 = arith.constant 0 : index
    %c0_17 = arith.constant 0 : index
    %20 = vector.load %arg8[%c0_16, %c0_17] : memref<1x18xf32, #tpu.memory_space<vmem>>, vector<1x18xf32>
    tpu.vector_store %arg8[%c0_16, %c0_17], %19 {strides = array<i32>} : memref<1x18xf32, #tpu.memory_space<vmem>>, vector<1x18xf32>,
    return
  }
  func.func @transform_0(%arg0: i32) -> (i32, i32) {
    %c0_i32 = arith.constant 0 : i32
    %c0_i32_0 = arith.constant 0 : i32
    return %arg0, %c0_i32 : i32, i32
  }
  func.func @transform_1(%arg0: i32) -> (i32, i32) {
    %c0_i32 = arith.constant 0 : i32
    %c0_i32_0 = arith.constant 0 : i32
    %c0_i32_1 = arith.constant 0 : i32
    return %c0_i32, %c0_i32_0 : i32, i32
  }
  func.func @transform_2(%arg0: i32) -> (i32, i32) {
    %c0_i32 = arith.constant 0 : i32
    %c0_i32_0 = arith.constant 0 : i32
    %c0_i32_1 = arith.constant 0 : i32
    return %c0_i32, %c0_i32_0 : i32, i32
  }
  func.func @transform_3(%arg0: i32) -> (i32, i32) {
    %c0_i32 = arith.constant 0 : i32
    %c0_i32_0 = arith.constant 0 : i32
    %c0_i32_1 = arith.constant 0 : i32
    return %c0_i32, %c0_i32_0 : i32, i32
  }
  func.func @transform_4(%arg0: i32) -> (i32, i32) {
    %c0_i32 = arith.constant 0 : i32
    %c0_i32_0 = arith.constant 0 : i32
    %c0_i32_1 = arith.constant 0 : i32
    return %c0_i32, %c0_i32_0 : i32, i32
  }
  func.func @transform_5(%arg0: i32) -> (i32, i32) {
    %c0_i32 = arith.constant 0 : i32
    %c0_i32_0 = arith.constant 0 : i32
    return %arg0, %c0_i32 : i32, i32
  }
  func.func @transform_6(%arg0: i32) -> (i32, i32) {
    %c0_i32 = arith.constant 0 : i32
    %c0_i32_0 = arith.constant 0 : i32
    %c0_i32_1 = arith.constant 0 : i32
    return %c0_i32, %c0_i32_0 : i32, i32
  }
  func.func @transform_7(%arg0: i32) -> (i32, i32) {
    %c0_i32 = arith.constant 0 : i32
    %c0_i32_0 = arith.constant 0 : i32
    %c0_i32_1 = arith.constant 0 : i32
    return %c0_i32, %c0_i32_0 : i32, i32
  }
}

module attributes {stable_mosaic.version = 11 : i64} {
  func.func @affine_relu_kernel(%arg0: i32, %arg1: memref<8x1152xf32, #tpu.memory_space<vmem>>, %arg2: memref<1x1152xf32, #tpu.memory_space<vmem>>, %arg3: memref<1x1152xf32, #tpu.memory_space<vmem>>, %arg4: memref<8x1152xf32, #tpu.memory_space<vmem>>) attributes {dimension_semantics = [#tpu.dimension_semantics<parallel>], iteration_bounds = array<i64: 1>, scalar_prefetch = 0 : i64, scratch_operands = 0 : i64, tpu.core_type = #tpu.core_type<tc>, window_params = [{transform_indices = @transform_0, window_bounds = array<i64: 8, 1152>}, {pipeline_mode = #tpu.pipeline_mode<synchronous>, transform_indices = @transform_1, window_bounds = array<i64: 1, 1152>}, {pipeline_mode = #tpu.pipeline_mode<synchronous>, transform_indices = @transform_2, window_bounds = array<i64: 1, 1152>}, {transform_indices = @transform_3, window_bounds = array<i64: 8, 1152>}]} {
    %c0 = arith.constant 0 : index
    %c0_0 = arith.constant 0 : index
    %0 = vector.load %arg1[%c0, %c0_0] : memref<8x1152xf32, #tpu.memory_space<vmem>>, vector<8x1152xf32>
    %c0_1 = arith.constant 0 : index
    %c0_2 = arith.constant 0 : index
    %1 = vector.load %arg2[%c0_1, %c0_2] : memref<1x1152xf32, #tpu.memory_space<vmem>>, vector<1x1152xf32>
    %2 = vector.broadcast %1 : vector<1x1152xf32> to vector<8x1152xf32>
    %3 = arith.mulf %0, %2 : vector<8x1152xf32>
    %c0_3 = arith.constant 0 : index
    %c0_4 = arith.constant 0 : index
    %4 = vector.load %arg3[%c0_3, %c0_4] : memref<1x1152xf32, #tpu.memory_space<vmem>>, vector<1x1152xf32>
    %5 = vector.broadcast %4 : vector<1x1152xf32> to vector<8x1152xf32>
    %6 = arith.addf %3, %5 : vector<8x1152xf32>
    %cst = arith.constant 0.000000e+00 : f32
    %7 = vector.broadcast %cst : f32 to vector<8x1152xf32>
    %8 = arith.maximumf %6, %7 : vector<8x1152xf32>
    %c0_5 = arith.constant 0 : index
    %c0_6 = arith.constant 0 : index
    %9 = vector.load %arg4[%c0_5, %c0_6] : memref<8x1152xf32, #tpu.memory_space<vmem>>, vector<8x1152xf32>
    tpu.vector_store %arg4[%c0_5, %c0_6], %8 {strides = array<i32>} : memref<8x1152xf32, #tpu.memory_space<vmem>>, vector<8x1152xf32>,
    return
  }
  func.func @transform_0(%arg0: i32) -> (i32, i32) {
    %c0_i32 = arith.constant 0 : i32
    %c0_i32_0 = arith.constant 0 : i32
    return %arg0, %c0_i32 : i32, i32
  }
  func.func @transform_1(%arg0: i32) -> (i32, i32) {
    %c0_i32 = arith.constant 0 : i32
    %c0_i32_0 = arith.constant 0 : i32
    %c0_i32_1 = arith.constant 0 : i32
    return %c0_i32, %c0_i32_0 : i32, i32
  }
  func.func @transform_2(%arg0: i32) -> (i32, i32) {
    %c0_i32 = arith.constant 0 : i32
    %c0_i32_0 = arith.constant 0 : i32
    %c0_i32_1 = arith.constant 0 : i32
    return %c0_i32, %c0_i32_0 : i32, i32
  }
  func.func @transform_3(%arg0: i32) -> (i32, i32) {
    %c0_i32 = arith.constant 0 : i32
    %c0_i32_0 = arith.constant 0 : i32
    return %arg0, %c0_i32 : i32, i32
  }
}

module attributes {stable_mosaic.version = 11 : i64} {
  func.func @conv_mm_kernel(%arg0: i32, %arg1: memref<512x54xf32, #tpu.memory_space<vmem>>, %arg2: memref<54x8xf32, #tpu.memory_space<vmem>>, %arg3: memref<1x8xf32, #tpu.memory_space<vmem>>, %arg4: memref<1x54xf32, #tpu.memory_space<vmem>>, %arg5: memref<1x54xf32, #tpu.memory_space<vmem>>, %arg6: memref<512x8xf32, #tpu.memory_space<vmem>>, %arg7: memref<1x8xf32, #tpu.memory_space<vmem>>, %arg8: memref<1x8xf32, #tpu.memory_space<vmem>>) attributes {dimension_semantics = [#tpu.dimension_semantics<arbitrary>], iteration_bounds = array<i64: 1>, scalar_prefetch = 0 : i64, scratch_operands = 0 : i64, tpu.core_type = #tpu.core_type<tc>, window_params = [{transform_indices = @transform_0, window_bounds = array<i64: 512, 54>}, {pipeline_mode = #tpu.pipeline_mode<synchronous>, transform_indices = @transform_1, window_bounds = array<i64: 54, 8>}, {pipeline_mode = #tpu.pipeline_mode<synchronous>, transform_indices = @transform_2, window_bounds = array<i64: 1, 8>}, {pipeline_mode = #tpu.pipeline_mode<synchronous>, transform_indices = @transform_3, window_bounds = array<i64: 1, 54>}, {pipeline_mode = #tpu.pipeline_mode<synchronous>, transform_indices = @transform_4, window_bounds = array<i64: 1, 54>}, {transform_indices = @transform_5, window_bounds = array<i64: 512, 8>}, {pipeline_mode = #tpu.pipeline_mode<synchronous>, transform_indices = @transform_6, window_bounds = array<i64: 1, 8>}, {pipeline_mode = #tpu.pipeline_mode<synchronous>, transform_indices = @transform_7, window_bounds = array<i64: 1, 8>}]} {
    %c0 = arith.constant 0 : index
    %c0_0 = arith.constant 0 : index
    %0 = vector.load %arg1[%c0, %c0_0] : memref<512x54xf32, #tpu.memory_space<vmem>>, vector<512x54xf32>
    %c0_1 = arith.constant 0 : index
    %c0_2 = arith.constant 0 : index
    %1 = vector.load %arg2[%c0_1, %c0_2] : memref<54x8xf32, #tpu.memory_space<vmem>>, vector<54x8xf32>
    %cst = arith.constant dense<0.000000e+00> : vector<512x8xf32>
    %2 = tpu.matmul %0, %1, %cst {dimension_numbers = #tpu.dot_dimension_numbers<[1], [0], [0], [1], [0, 0, 1, 1], [], []>} : vector<512x54xf32>, vector<54x8xf32>, vector<512x8xf32> -> vector<512x8xf32>
    %c0_3 = arith.constant 0 : index
    %c0_4 = arith.constant 0 : index
    %3 = vector.load %arg3[%c0_3, %c0_4] : memref<1x8xf32, #tpu.memory_space<vmem>>, vector<1x8xf32>
    %4 = vector.broadcast %3 : vector<1x8xf32> to vector<512x8xf32>
    %5 = arith.addf %2, %4 : vector<512x8xf32>
    %c0_5 = arith.constant 0 : index
    %c0_6 = arith.constant 0 : index
    %6 = vector.load %arg6[%c0_5, %c0_6] : memref<512x8xf32, #tpu.memory_space<vmem>>, vector<512x8xf32>
    tpu.vector_store %arg6[%c0_5, %c0_6], %5 {strides = array<i32>} : memref<512x8xf32, #tpu.memory_space<vmem>>, vector<512x8xf32>,
    %c0_i32 = arith.constant 0 : i32
    %7 = arith.cmpi eq, %arg0, %c0_i32 : i32
    %8 = arith.extui %7 : i1 to i32
    %c0_i32_7 = arith.constant 0 : i32
    %9 = arith.cmpi ne, %8, %c0_i32_7 : i32
    scf.if %9 {
      %cst_18 = arith.constant 0.000000e+00 : f32
      %21 = vector.broadcast %cst_18 : f32 to vector<1x8xf32>
      %c0_19 = arith.constant 0 : index
      %c0_20 = arith.constant 0 : index
      %22 = vector.load %arg7[%c0_19, %c0_20] : memref<1x8xf32, #tpu.memory_space<vmem>>, vector<1x8xf32>
      tpu.vector_store %arg7[%c0_19, %c0_20], %21 {strides = array<i32>} : memref<1x8xf32, #tpu.memory_space<vmem>>, vector<1x8xf32>,
      %cst_21 = arith.constant 0.000000e+00 : f32
      %23 = vector.broadcast %cst_21 : f32 to vector<1x8xf32>
      %c0_22 = arith.constant 0 : index
      %c0_23 = arith.constant 0 : index
      %24 = vector.load %arg8[%c0_22, %c0_23] : memref<1x8xf32, #tpu.memory_space<vmem>>, vector<1x8xf32>
      tpu.vector_store %arg8[%c0_22, %c0_23], %23 {strides = array<i32>} : memref<1x8xf32, #tpu.memory_space<vmem>>, vector<1x8xf32>,
    } else {
    }
    %c0_8 = arith.constant 0 : index
    %c0_9 = arith.constant 0 : index
    %10 = vector.load %arg7[%c0_8, %c0_9] : memref<1x8xf32, #tpu.memory_space<vmem>>, vector<1x8xf32>
    %cst_10 = arith.constant dense<0.000000e+00> : vector<8xf32>
    %11 = vector.multi_reduction <add>, %5, %cst_10 [0] : vector<512x8xf32> to vector<8xf32>
    %12 = vector.shape_cast %11 : vector<8xf32> to vector<1x8xf32>
    %13 = arith.addf %10, %12 : vector<1x8xf32>
    %c0_11 = arith.constant 0 : index
    %c0_12 = arith.constant 0 : index
    %14 = vector.load %arg7[%c0_11, %c0_12] : memref<1x8xf32, #tpu.memory_space<vmem>>, vector<1x8xf32>
    tpu.vector_store %arg7[%c0_11, %c0_12], %13 {strides = array<i32>} : memref<1x8xf32, #tpu.memory_space<vmem>>, vector<1x8xf32>,
    %c0_13 = arith.constant 0 : index
    %c0_14 = arith.constant 0 : index
    %15 = vector.load %arg8[%c0_13, %c0_14] : memref<1x8xf32, #tpu.memory_space<vmem>>, vector<1x8xf32>
    %16 = arith.mulf %5, %5 : vector<512x8xf32>
    %cst_15 = arith.constant dense<0.000000e+00> : vector<8xf32>
    %17 = vector.multi_reduction <add>, %16, %cst_15 [0] : vector<512x8xf32> to vector<8xf32>
    %18 = vector.shape_cast %17 : vector<8xf32> to vector<1x8xf32>
    %19 = arith.addf %15, %18 : vector<1x8xf32>
    %c0_16 = arith.constant 0 : index
    %c0_17 = arith.constant 0 : index
    %20 = vector.load %arg8[%c0_16, %c0_17] : memref<1x8xf32, #tpu.memory_space<vmem>>, vector<1x8xf32>
    tpu.vector_store %arg8[%c0_16, %c0_17], %19 {strides = array<i32>} : memref<1x8xf32, #tpu.memory_space<vmem>>, vector<1x8xf32>,
    return
  }
  func.func @transform_0(%arg0: i32) -> (i32, i32) {
    %c0_i32 = arith.constant 0 : i32
    %c0_i32_0 = arith.constant 0 : i32
    return %arg0, %c0_i32 : i32, i32
  }
  func.func @transform_1(%arg0: i32) -> (i32, i32) {
    %c0_i32 = arith.constant 0 : i32
    %c0_i32_0 = arith.constant 0 : i32
    %c0_i32_1 = arith.constant 0 : i32
    return %c0_i32, %c0_i32_0 : i32, i32
  }
  func.func @transform_2(%arg0: i32) -> (i32, i32) {
    %c0_i32 = arith.constant 0 : i32
    %c0_i32_0 = arith.constant 0 : i32
    %c0_i32_1 = arith.constant 0 : i32
    return %c0_i32, %c0_i32_0 : i32, i32
  }
  func.func @transform_3(%arg0: i32) -> (i32, i32) {
    %c0_i32 = arith.constant 0 : i32
    %c0_i32_0 = arith.constant 0 : i32
    %c0_i32_1 = arith.constant 0 : i32
    return %c0_i32, %c0_i32_0 : i32, i32
  }
  func.func @transform_4(%arg0: i32) -> (i32, i32) {
    %c0_i32 = arith.constant 0 : i32
    %c0_i32_0 = arith.constant 0 : i32
    %c0_i32_1 = arith.constant 0 : i32
    return %c0_i32, %c0_i32_0 : i32, i32
  }
  func.func @transform_5(%arg0: i32) -> (i32, i32) {
    %c0_i32 = arith.constant 0 : i32
    %c0_i32_0 = arith.constant 0 : i32
    return %arg0, %c0_i32 : i32, i32
  }
  func.func @transform_6(%arg0: i32) -> (i32, i32) {
    %c0_i32 = arith.constant 0 : i32
    %c0_i32_0 = arith.constant 0 : i32
    %c0_i32_1 = arith.constant 0 : i32
    return %c0_i32, %c0_i32_0 : i32, i32
  }
  func.func @transform_7(%arg0: i32) -> (i32, i32) {
    %c0_i32 = arith.constant 0 : i32
    %c0_i32_0 = arith.constant 0 : i32
    %c0_i32_1 = arith.constant 0 : i32
    return %c0_i32, %c0_i32_0 : i32, i32
  }
}

module attributes {stable_mosaic.version = 11 : i64} {
  func.func @conv_mm_kernel(%arg0: i32, %arg1: memref<512x4xf32, #tpu.memory_space<vmem>>, %arg2: memref<4x2xf32, #tpu.memory_space<vmem>>, %arg3: memref<1x2xf32, #tpu.memory_space<vmem>>, %arg4: memref<1x4xf32, #tpu.memory_space<vmem>>, %arg5: memref<1x4xf32, #tpu.memory_space<vmem>>, %arg6: memref<512x2xf32, #tpu.memory_space<vmem>>, %arg7: memref<1x2xf32, #tpu.memory_space<vmem>>, %arg8: memref<1x2xf32, #tpu.memory_space<vmem>>) attributes {dimension_semantics = [#tpu.dimension_semantics<arbitrary>], iteration_bounds = array<i64: 2>, scalar_prefetch = 0 : i64, scratch_operands = 0 : i64, tpu.core_type = #tpu.core_type<tc>, window_params = [{transform_indices = @transform_0, window_bounds = array<i64: 512, 4>}, {pipeline_mode = #tpu.pipeline_mode<synchronous>, transform_indices = @transform_1, window_bounds = array<i64: 4, 2>}, {pipeline_mode = #tpu.pipeline_mode<synchronous>, transform_indices = @transform_2, window_bounds = array<i64: 1, 2>}, {pipeline_mode = #tpu.pipeline_mode<synchronous>, transform_indices = @transform_3, window_bounds = array<i64: 1, 4>}, {pipeline_mode = #tpu.pipeline_mode<synchronous>, transform_indices = @transform_4, window_bounds = array<i64: 1, 4>}, {transform_indices = @transform_5, window_bounds = array<i64: 512, 2>}, {pipeline_mode = #tpu.pipeline_mode<synchronous>, transform_indices = @transform_6, window_bounds = array<i64: 1, 2>}, {pipeline_mode = #tpu.pipeline_mode<synchronous>, transform_indices = @transform_7, window_bounds = array<i64: 1, 2>}]} {
    %c0 = arith.constant 0 : index
    %c0_0 = arith.constant 0 : index
    %0 = vector.load %arg1[%c0, %c0_0] : memref<512x4xf32, #tpu.memory_space<vmem>>, vector<512x4xf32>
    %c0_1 = arith.constant 0 : index
    %c0_2 = arith.constant 0 : index
    %1 = vector.load %arg2[%c0_1, %c0_2] : memref<4x2xf32, #tpu.memory_space<vmem>>, vector<4x2xf32>
    %cst = arith.constant dense<0.000000e+00> : vector<512x2xf32>
    %2 = tpu.matmul %0, %1, %cst {dimension_numbers = #tpu.dot_dimension_numbers<[1], [0], [0], [1], [0, 0, 1, 1], [], []>} : vector<512x4xf32>, vector<4x2xf32>, vector<512x2xf32> -> vector<512x2xf32>
    %c0_3 = arith.constant 0 : index
    %c0_4 = arith.constant 0 : index
    %3 = vector.load %arg3[%c0_3, %c0_4] : memref<1x2xf32, #tpu.memory_space<vmem>>, vector<1x2xf32>
    %4 = vector.broadcast %3 : vector<1x2xf32> to vector<512x2xf32>
    %5 = arith.addf %2, %4 : vector<512x2xf32>
    %c0_5 = arith.constant 0 : index
    %c0_6 = arith.constant 0 : index
    %6 = vector.load %arg6[%c0_5, %c0_6] : memref<512x2xf32, #tpu.memory_space<vmem>>, vector<512x2xf32>
    tpu.vector_store %arg6[%c0_5, %c0_6], %5 {strides = array<i32>} : memref<512x2xf32, #tpu.memory_space<vmem>>, vector<512x2xf32>,
    %c0_i32 = arith.constant 0 : i32
    %7 = arith.cmpi eq, %arg0, %c0_i32 : i32
    %8 = arith.extui %7 : i1 to i32
    %c0_i32_7 = arith.constant 0 : i32
    %9 = arith.cmpi ne, %8, %c0_i32_7 : i32
    scf.if %9 {
      %cst_18 = arith.constant 0.000000e+00 : f32
      %21 = vector.broadcast %cst_18 : f32 to vector<1x2xf32>
      %c0_19 = arith.constant 0 : index
      %c0_20 = arith.constant 0 : index
      %22 = vector.load %arg7[%c0_19, %c0_20] : memref<1x2xf32, #tpu.memory_space<vmem>>, vector<1x2xf32>
      tpu.vector_store %arg7[%c0_19, %c0_20], %21 {strides = array<i32>} : memref<1x2xf32, #tpu.memory_space<vmem>>, vector<1x2xf32>,
      %cst_21 = arith.constant 0.000000e+00 : f32
      %23 = vector.broadcast %cst_21 : f32 to vector<1x2xf32>
      %c0_22 = arith.constant 0 : index
      %c0_23 = arith.constant 0 : index
      %24 = vector.load %arg8[%c0_22, %c0_23] : memref<1x2xf32, #tpu.memory_space<vmem>>, vector<1x2xf32>
      tpu.vector_store %arg8[%c0_22, %c0_23], %23 {strides = array<i32>} : memref<1x2xf32, #tpu.memory_space<vmem>>, vector<1x2xf32>,
    } else {
    }
    %c0_8 = arith.constant 0 : index
    %c0_9 = arith.constant 0 : index
    %10 = vector.load %arg7[%c0_8, %c0_9] : memref<1x2xf32, #tpu.memory_space<vmem>>, vector<1x2xf32>
    %cst_10 = arith.constant dense<0.000000e+00> : vector<2xf32>
    %11 = vector.multi_reduction <add>, %5, %cst_10 [0] : vector<512x2xf32> to vector<2xf32>
    %12 = vector.shape_cast %11 : vector<2xf32> to vector<1x2xf32>
    %13 = arith.addf %10, %12 : vector<1x2xf32>
    %c0_11 = arith.constant 0 : index
    %c0_12 = arith.constant 0 : index
    %14 = vector.load %arg7[%c0_11, %c0_12] : memref<1x2xf32, #tpu.memory_space<vmem>>, vector<1x2xf32>
    tpu.vector_store %arg7[%c0_11, %c0_12], %13 {strides = array<i32>} : memref<1x2xf32, #tpu.memory_space<vmem>>, vector<1x2xf32>,
    %c0_13 = arith.constant 0 : index
    %c0_14 = arith.constant 0 : index
    %15 = vector.load %arg8[%c0_13, %c0_14] : memref<1x2xf32, #tpu.memory_space<vmem>>, vector<1x2xf32>
    %16 = arith.mulf %5, %5 : vector<512x2xf32>
    %cst_15 = arith.constant dense<0.000000e+00> : vector<2xf32>
    %17 = vector.multi_reduction <add>, %16, %cst_15 [0] : vector<512x2xf32> to vector<2xf32>
    %18 = vector.shape_cast %17 : vector<2xf32> to vector<1x2xf32>
    %19 = arith.addf %15, %18 : vector<1x2xf32>
    %c0_16 = arith.constant 0 : index
    %c0_17 = arith.constant 0 : index
    %20 = vector.load %arg8[%c0_16, %c0_17] : memref<1x2xf32, #tpu.memory_space<vmem>>, vector<1x2xf32>
    tpu.vector_store %arg8[%c0_16, %c0_17], %19 {strides = array<i32>} : memref<1x2xf32, #tpu.memory_space<vmem>>, vector<1x2xf32>,
    return
  }
  func.func @transform_0(%arg0: i32) -> (i32, i32) {
    %c0_i32 = arith.constant 0 : i32
    %c0_i32_0 = arith.constant 0 : i32
    return %arg0, %c0_i32 : i32, i32
  }
  func.func @transform_1(%arg0: i32) -> (i32, i32) {
    %c0_i32 = arith.constant 0 : i32
    %c0_i32_0 = arith.constant 0 : i32
    %c0_i32_1 = arith.constant 0 : i32
    return %c0_i32, %c0_i32_0 : i32, i32
  }
  func.func @transform_2(%arg0: i32) -> (i32, i32) {
    %c0_i32 = arith.constant 0 : i32
    %c0_i32_0 = arith.constant 0 : i32
    %c0_i32_1 = arith.constant 0 : i32
    return %c0_i32, %c0_i32_0 : i32, i32
  }
  func.func @transform_3(%arg0: i32) -> (i32, i32) {
    %c0_i32 = arith.constant 0 : i32
    %c0_i32_0 = arith.constant 0 : i32
    %c0_i32_1 = arith.constant 0 : i32
    return %c0_i32, %c0_i32_0 : i32, i32
  }
  func.func @transform_4(%arg0: i32) -> (i32, i32) {
    %c0_i32 = arith.constant 0 : i32
    %c0_i32_0 = arith.constant 0 : i32
    %c0_i32_1 = arith.constant 0 : i32
    return %c0_i32, %c0_i32_0 : i32, i32
  }
  func.func @transform_5(%arg0: i32) -> (i32, i32) {
    %c0_i32 = arith.constant 0 : i32
    %c0_i32_0 = arith.constant 0 : i32
    return %arg0, %c0_i32 : i32, i32
  }
  func.func @transform_6(%arg0: i32) -> (i32, i32) {
    %c0_i32 = arith.constant 0 : i32
    %c0_i32_0 = arith.constant 0 : i32
    %c0_i32_1 = arith.constant 0 : i32
    return %c0_i32, %c0_i32_0 : i32, i32
  }
  func.func @transform_7(%arg0: i32) -> (i32, i32) {
    %c0_i32 = arith.constant 0 : i32
    %c0_i32_0 = arith.constant 0 : i32
    %c0_i32_1 = arith.constant 0 : i32
    return %c0_i32, %c0_i32_0 : i32, i32
  }
}

module attributes {stable_mosaic.version = 11 : i64} {
  func.func @residual_out_kernel(%arg0: i32, %arg1: memref<32x128xf32, #tpu.memory_space<vmem>>, %arg2: memref<1x128xf32, #tpu.memory_space<vmem>>, %arg3: memref<1x128xf32, #tpu.memory_space<vmem>>, %arg4: memref<32x128xf32, #tpu.memory_space<vmem>>, %arg5: memref<1x128xf32, #tpu.memory_space<vmem>>, %arg6: memref<1x128xf32, #tpu.memory_space<vmem>>, %arg7: memref<32x128xf32, #tpu.memory_space<vmem>>) attributes {dimension_semantics = [#tpu.dimension_semantics<parallel>], iteration_bounds = array<i64: 1>, scalar_prefetch = 0 : i64, scratch_operands = 0 : i64, tpu.core_type = #tpu.core_type<tc>, window_params = [{transform_indices = @transform_0, window_bounds = array<i64: 32, 128>}, {pipeline_mode = #tpu.pipeline_mode<synchronous>, transform_indices = @transform_1, window_bounds = array<i64: 1, 128>}, {pipeline_mode = #tpu.pipeline_mode<synchronous>, transform_indices = @transform_2, window_bounds = array<i64: 1, 128>}, {transform_indices = @transform_3, window_bounds = array<i64: 32, 128>}, {pipeline_mode = #tpu.pipeline_mode<synchronous>, transform_indices = @transform_4, window_bounds = array<i64: 1, 128>}, {pipeline_mode = #tpu.pipeline_mode<synchronous>, transform_indices = @transform_5, window_bounds = array<i64: 1, 128>}, {transform_indices = @transform_6, window_bounds = array<i64: 32, 128>}]} {
    %c0 = arith.constant 0 : index
    %c0_0 = arith.constant 0 : index
    %0 = vector.load %arg1[%c0, %c0_0] : memref<32x128xf32, #tpu.memory_space<vmem>>, vector<32x128xf32>
    %c0_1 = arith.constant 0 : index
    %c0_2 = arith.constant 0 : index
    %1 = vector.load %arg2[%c0_1, %c0_2] : memref<1x128xf32, #tpu.memory_space<vmem>>, vector<1x128xf32>
    %2 = vector.broadcast %1 : vector<1x128xf32> to vector<32x128xf32>
    %3 = arith.mulf %0, %2 : vector<32x128xf32>
    %c0_3 = arith.constant 0 : index
    %c0_4 = arith.constant 0 : index
    %4 = vector.load %arg3[%c0_3, %c0_4] : memref<1x128xf32, #tpu.memory_space<vmem>>, vector<1x128xf32>
    %5 = vector.broadcast %4 : vector<1x128xf32> to vector<32x128xf32>
    %6 = arith.addf %3, %5 : vector<32x128xf32>
    %c0_5 = arith.constant 0 : index
    %c0_6 = arith.constant 0 : index
    %7 = vector.load %arg4[%c0_5, %c0_6] : memref<32x128xf32, #tpu.memory_space<vmem>>, vector<32x128xf32>
    %c0_7 = arith.constant 0 : index
    %c0_8 = arith.constant 0 : index
    %8 = vector.load %arg5[%c0_7, %c0_8] : memref<1x128xf32, #tpu.memory_space<vmem>>, vector<1x128xf32>
    %9 = vector.broadcast %8 : vector<1x128xf32> to vector<32x128xf32>
    %10 = arith.mulf %7, %9 : vector<32x128xf32>
    %c0_9 = arith.constant 0 : index
    %c0_10 = arith.constant 0 : index
    %11 = vector.load %arg6[%c0_9, %c0_10] : memref<1x128xf32, #tpu.memory_space<vmem>>, vector<1x128xf32>
    %12 = vector.broadcast %11 : vector<1x128xf32> to vector<32x128xf32>
    %13 = arith.addf %10, %12 : vector<32x128xf32>
    %14 = arith.addf %6, %13 : vector<32x128xf32>
    %cst = arith.constant 0.000000e+00 : f32
    %15 = vector.broadcast %cst : f32 to vector<32x128xf32>
    %16 = arith.maximumf %14, %15 : vector<32x128xf32>
    %c0_11 = arith.constant 0 : index
    %c0_12 = arith.constant 0 : index
    %17 = vector.load %arg7[%c0_11, %c0_12] : memref<32x128xf32, #tpu.memory_space<vmem>>, vector<32x128xf32>
    tpu.vector_store %arg7[%c0_11, %c0_12], %16 {strides = array<i32>} : memref<32x128xf32, #tpu.memory_space<vmem>>, vector<32x128xf32>,
    return
  }
  func.func @transform_0(%arg0: i32) -> (i32, i32) {
    %c0_i32 = arith.constant 0 : i32
    %c0_i32_0 = arith.constant 0 : i32
    return %arg0, %c0_i32 : i32, i32
  }
  func.func @transform_1(%arg0: i32) -> (i32, i32) {
    %c0_i32 = arith.constant 0 : i32
    %c0_i32_0 = arith.constant 0 : i32
    %c0_i32_1 = arith.constant 0 : i32
    return %c0_i32, %c0_i32_0 : i32, i32
  }
  func.func @transform_2(%arg0: i32) -> (i32, i32) {
    %c0_i32 = arith.constant 0 : i32
    %c0_i32_0 = arith.constant 0 : i32
    %c0_i32_1 = arith.constant 0 : i32
    return %c0_i32, %c0_i32_0 : i32, i32
  }
  func.func @transform_3(%arg0: i32) -> (i32, i32) {
    %c0_i32 = arith.constant 0 : i32
    %c0_i32_0 = arith.constant 0 : i32
    return %arg0, %c0_i32 : i32, i32
  }
  func.func @transform_4(%arg0: i32) -> (i32, i32) {
    %c0_i32 = arith.constant 0 : i32
    %c0_i32_0 = arith.constant 0 : i32
    %c0_i32_1 = arith.constant 0 : i32
    return %c0_i32, %c0_i32_0 : i32, i32
  }
  func.func @transform_5(%arg0: i32) -> (i32, i32) {
    %c0_i32 = arith.constant 0 : i32
    %c0_i32_0 = arith.constant 0 : i32
    %c0_i32_1 = arith.constant 0 : i32
    return %c0_i32, %c0_i32_0 : i32, i32
  }
  func.func @transform_6(%arg0: i32) -> (i32, i32) {
    %c0_i32 = arith.constant 0 : i32
    %c0_i32_0 = arith.constant 0 : i32
    return %arg0, %c0_i32 : i32, i32
  }
}

module attributes {stable_mosaic.version = 11 : i64} {
  func.func @conv_mm_kernel(%arg0: i32, %arg1: memref<512x2xf32, #tpu.memory_space<vmem>>, %arg2: memref<2x8xf32, #tpu.memory_space<vmem>>, %arg3: memref<1x8xf32, #tpu.memory_space<vmem>>, %arg4: memref<1x2xf32, #tpu.memory_space<vmem>>, %arg5: memref<1x2xf32, #tpu.memory_space<vmem>>, %arg6: memref<512x8xf32, #tpu.memory_space<vmem>>, %arg7: memref<1x8xf32, #tpu.memory_space<vmem>>, %arg8: memref<1x8xf32, #tpu.memory_space<vmem>>) attributes {dimension_semantics = [#tpu.dimension_semantics<arbitrary>], iteration_bounds = array<i64: 1>, scalar_prefetch = 0 : i64, scratch_operands = 0 : i64, tpu.core_type = #tpu.core_type<tc>, window_params = [{transform_indices = @transform_0, window_bounds = array<i64: 512, 2>}, {pipeline_mode = #tpu.pipeline_mode<synchronous>, transform_indices = @transform_1, window_bounds = array<i64: 2, 8>}, {pipeline_mode = #tpu.pipeline_mode<synchronous>, transform_indices = @transform_2, window_bounds = array<i64: 1, 8>}, {pipeline_mode = #tpu.pipeline_mode<synchronous>, transform_indices = @transform_3, window_bounds = array<i64: 1, 2>}, {pipeline_mode = #tpu.pipeline_mode<synchronous>, transform_indices = @transform_4, window_bounds = array<i64: 1, 2>}, {transform_indices = @transform_5, window_bounds = array<i64: 512, 8>}, {pipeline_mode = #tpu.pipeline_mode<synchronous>, transform_indices = @transform_6, window_bounds = array<i64: 1, 8>}, {pipeline_mode = #tpu.pipeline_mode<synchronous>, transform_indices = @transform_7, window_bounds = array<i64: 1, 8>}]} {
    %c0 = arith.constant 0 : index
    %c0_0 = arith.constant 0 : index
    %0 = vector.load %arg1[%c0, %c0_0] : memref<512x2xf32, #tpu.memory_space<vmem>>, vector<512x2xf32>
    %c0_1 = arith.constant 0 : index
    %c0_2 = arith.constant 0 : index
    %1 = vector.load %arg4[%c0_1, %c0_2] : memref<1x2xf32, #tpu.memory_space<vmem>>, vector<1x2xf32>
    %2 = vector.broadcast %1 : vector<1x2xf32> to vector<512x2xf32>
    %3 = arith.mulf %0, %2 : vector<512x2xf32>
    %c0_3 = arith.constant 0 : index
    %c0_4 = arith.constant 0 : index
    %4 = vector.load %arg5[%c0_3, %c0_4] : memref<1x2xf32, #tpu.memory_space<vmem>>, vector<1x2xf32>
    %5 = vector.broadcast %4 : vector<1x2xf32> to vector<512x2xf32>
    %6 = arith.addf %3, %5 : vector<512x2xf32>
    %cst = arith.constant 0.000000e+00 : f32
    %7 = vector.broadcast %cst : f32 to vector<512x2xf32>
    %8 = arith.maximumf %6, %7 : vector<512x2xf32>
    %c0_5 = arith.constant 0 : index
    %c0_6 = arith.constant 0 : index
    %9 = vector.load %arg2[%c0_5, %c0_6] : memref<2x8xf32, #tpu.memory_space<vmem>>, vector<2x8xf32>
    %cst_7 = arith.constant dense<0.000000e+00> : vector<512x8xf32>
    %10 = tpu.matmul %8, %9, %cst_7 {dimension_numbers = #tpu.dot_dimension_numbers<[1], [0], [0], [1], [0, 0, 1, 1], [], []>} : vector<512x2xf32>, vector<2x8xf32>, vector<512x8xf32> -> vector<512x8xf32>
    %c0_8 = arith.constant 0 : index
    %c0_9 = arith.constant 0 : index
    %11 = vector.load %arg3[%c0_8, %c0_9] : memref<1x8xf32, #tpu.memory_space<vmem>>, vector<1x8xf32>
    %12 = vector.broadcast %11 : vector<1x8xf32> to vector<512x8xf32>
    %13 = arith.addf %10, %12 : vector<512x8xf32>
    %c0_10 = arith.constant 0 : index
    %c0_11 = arith.constant 0 : index
    %14 = vector.load %arg6[%c0_10, %c0_11] : memref<512x8xf32, #tpu.memory_space<vmem>>, vector<512x8xf32>
    tpu.vector_store %arg6[%c0_10, %c0_11], %13 {strides = array<i32>} : memref<512x8xf32, #tpu.memory_space<vmem>>, vector<512x8xf32>,
    %c0_i32 = arith.constant 0 : i32
    %15 = arith.cmpi eq, %arg0, %c0_i32 : i32
    %16 = arith.extui %15 : i1 to i32
    %c0_i32_12 = arith.constant 0 : i32
    %17 = arith.cmpi ne, %16, %c0_i32_12 : i32
    scf.if %17 {
      %cst_23 = arith.constant 0.000000e+00 : f32
      %29 = vector.broadcast %cst_23 : f32 to vector<1x8xf32>
      %c0_24 = arith.constant 0 : index
      %c0_25 = arith.constant 0 : index
      %30 = vector.load %arg7[%c0_24, %c0_25] : memref<1x8xf32, #tpu.memory_space<vmem>>, vector<1x8xf32>
      tpu.vector_store %arg7[%c0_24, %c0_25], %29 {strides = array<i32>} : memref<1x8xf32, #tpu.memory_space<vmem>>, vector<1x8xf32>,
      %cst_26 = arith.constant 0.000000e+00 : f32
      %31 = vector.broadcast %cst_26 : f32 to vector<1x8xf32>
      %c0_27 = arith.constant 0 : index
      %c0_28 = arith.constant 0 : index
      %32 = vector.load %arg8[%c0_27, %c0_28] : memref<1x8xf32, #tpu.memory_space<vmem>>, vector<1x8xf32>
      tpu.vector_store %arg8[%c0_27, %c0_28], %31 {strides = array<i32>} : memref<1x8xf32, #tpu.memory_space<vmem>>, vector<1x8xf32>,
    } else {
    }
    %c0_13 = arith.constant 0 : index
    %c0_14 = arith.constant 0 : index
    %18 = vector.load %arg7[%c0_13, %c0_14] : memref<1x8xf32, #tpu.memory_space<vmem>>, vector<1x8xf32>
    %cst_15 = arith.constant dense<0.000000e+00> : vector<8xf32>
    %19 = vector.multi_reduction <add>, %13, %cst_15 [0] : vector<512x8xf32> to vector<8xf32>
    %20 = vector.shape_cast %19 : vector<8xf32> to vector<1x8xf32>
    %21 = arith.addf %18, %20 : vector<1x8xf32>
    %c0_16 = arith.constant 0 : index
    %c0_17 = arith.constant 0 : index
    %22 = vector.load %arg7[%c0_16, %c0_17] : memref<1x8xf32, #tpu.memory_space<vmem>>, vector<1x8xf32>
    tpu.vector_store %arg7[%c0_16, %c0_17], %21 {strides = array<i32>} : memref<1x8xf32, #tpu.memory_space<vmem>>, vector<1x8xf32>,
    %c0_18 = arith.constant 0 : index
    %c0_19 = arith.constant 0 : index
    %23 = vector.load %arg8[%c0_18, %c0_19] : memref<1x8xf32, #tpu.memory_space<vmem>>, vector<1x8xf32>
    %24 = arith.mulf %13, %13 : vector<512x8xf32>
    %cst_20 = arith.constant dense<0.000000e+00> : vector<8xf32>
    %25 = vector.multi_reduction <add>, %24, %cst_20 [0] : vector<512x8xf32> to vector<8xf32>
    %26 = vector.shape_cast %25 : vector<8xf32> to vector<1x8xf32>
    %27 = arith.addf %23, %26 : vector<1x8xf32>
    %c0_21 = arith.constant 0 : index
    %c0_22 = arith.constant 0 : index
    %28 = vector.load %arg8[%c0_21, %c0_22] : memref<1x8xf32, #tpu.memory_space<vmem>>, vector<1x8xf32>
    tpu.vector_store %arg8[%c0_21, %c0_22], %27 {strides = array<i32>} : memref<1x8xf32, #tpu.memory_space<vmem>>, vector<1x8xf32>,
    return
  }
  func.func @transform_0(%arg0: i32) -> (i32, i32) {
    %c0_i32 = arith.constant 0 : i32
    %c0_i32_0 = arith.constant 0 : i32
    return %arg0, %c0_i32 : i32, i32
  }
  func.func @transform_1(%arg0: i32) -> (i32, i32) {
    %c0_i32 = arith.constant 0 : i32
    %c0_i32_0 = arith.constant 0 : i32
    %c0_i32_1 = arith.constant 0 : i32
    return %c0_i32, %c0_i32_0 : i32, i32
  }
  func.func @transform_2(%arg0: i32) -> (i32, i32) {
    %c0_i32 = arith.constant 0 : i32
    %c0_i32_0 = arith.constant 0 : i32
    %c0_i32_1 = arith.constant 0 : i32
    return %c0_i32, %c0_i32_0 : i32, i32
  }
  func.func @transform_3(%arg0: i32) -> (i32, i32) {
    %c0_i32 = arith.constant 0 : i32
    %c0_i32_0 = arith.constant 0 : i32
    %c0_i32_1 = arith.constant 0 : i32
    return %c0_i32, %c0_i32_0 : i32, i32
  }
  func.func @transform_4(%arg0: i32) -> (i32, i32) {
    %c0_i32 = arith.constant 0 : i32
    %c0_i32_0 = arith.constant 0 : i32
    %c0_i32_1 = arith.constant 0 : i32
    return %c0_i32, %c0_i32_0 : i32, i32
  }
  func.func @transform_5(%arg0: i32) -> (i32, i32) {
    %c0_i32 = arith.constant 0 : i32
    %c0_i32_0 = arith.constant 0 : i32
    return %arg0, %c0_i32 : i32, i32
  }
  func.func @transform_6(%arg0: i32) -> (i32, i32) {
    %c0_i32 = arith.constant 0 : i32
    %c0_i32_0 = arith.constant 0 : i32
    %c0_i32_1 = arith.constant 0 : i32
    return %c0_i32, %c0_i32_0 : i32, i32
  }
  func.func @transform_7(%arg0: i32) -> (i32, i32) {
    %c0_i32 = arith.constant 0 : i32
    %c0_i32_0 = arith.constant 0 : i32
    %c0_i32_1 = arith.constant 0 : i32
    return %c0_i32, %c0_i32_0 : i32, i32
  }
}

module attributes {stable_mosaic.version = 11 : i64} {
  func.func @residual_out_kernel(%arg0: i32, %arg1: memref<32x128xf32, #tpu.memory_space<vmem>>, %arg2: memref<1x128xf32, #tpu.memory_space<vmem>>, %arg3: memref<1x128xf32, #tpu.memory_space<vmem>>, %arg4: memref<32x128xf32, #tpu.memory_space<vmem>>, %arg5: memref<1x128xf32, #tpu.memory_space<vmem>>, %arg6: memref<1x128xf32, #tpu.memory_space<vmem>>, %arg7: memref<32x128xf32, #tpu.memory_space<vmem>>) attributes {dimension_semantics = [#tpu.dimension_semantics<parallel>], iteration_bounds = array<i64: 1>, scalar_prefetch = 0 : i64, scratch_operands = 0 : i64, tpu.core_type = #tpu.core_type<tc>, window_params = [{transform_indices = @transform_0, window_bounds = array<i64: 32, 128>}, {pipeline_mode = #tpu.pipeline_mode<synchronous>, transform_indices = @transform_1, window_bounds = array<i64: 1, 128>}, {pipeline_mode = #tpu.pipeline_mode<synchronous>, transform_indices = @transform_2, window_bounds = array<i64: 1, 128>}, {transform_indices = @transform_3, window_bounds = array<i64: 32, 128>}, {pipeline_mode = #tpu.pipeline_mode<synchronous>, transform_indices = @transform_4, window_bounds = array<i64: 1, 128>}, {pipeline_mode = #tpu.pipeline_mode<synchronous>, transform_indices = @transform_5, window_bounds = array<i64: 1, 128>}, {transform_indices = @transform_6, window_bounds = array<i64: 32, 128>}]} {
    %c0 = arith.constant 0 : index
    %c0_0 = arith.constant 0 : index
    %0 = vector.load %arg1[%c0, %c0_0] : memref<32x128xf32, #tpu.memory_space<vmem>>, vector<32x128xf32>
    %c0_1 = arith.constant 0 : index
    %c0_2 = arith.constant 0 : index
    %1 = vector.load %arg2[%c0_1, %c0_2] : memref<1x128xf32, #tpu.memory_space<vmem>>, vector<1x128xf32>
    %2 = vector.broadcast %1 : vector<1x128xf32> to vector<32x128xf32>
    %3 = arith.mulf %0, %2 : vector<32x128xf32>
    %c0_3 = arith.constant 0 : index
    %c0_4 = arith.constant 0 : index
    %4 = vector.load %arg3[%c0_3, %c0_4] : memref<1x128xf32, #tpu.memory_space<vmem>>, vector<1x128xf32>
    %5 = vector.broadcast %4 : vector<1x128xf32> to vector<32x128xf32>
    %6 = arith.addf %3, %5 : vector<32x128xf32>
    %c0_5 = arith.constant 0 : index
    %c0_6 = arith.constant 0 : index
    %7 = vector.load %arg4[%c0_5, %c0_6] : memref<32x128xf32, #tpu.memory_space<vmem>>, vector<32x128xf32>
    %8 = arith.addf %6, %7 : vector<32x128xf32>
    %cst = arith.constant 0.000000e+00 : f32
    %9 = vector.broadcast %cst : f32 to vector<32x128xf32>
    %10 = arith.maximumf %8, %9 : vector<32x128xf32>
    %c0_7 = arith.constant 0 : index
    %c0_8 = arith.constant 0 : index
    %11 = vector.load %arg7[%c0_7, %c0_8] : memref<32x128xf32, #tpu.memory_space<vmem>>, vector<32x128xf32>
    tpu.vector_store %arg7[%c0_7, %c0_8], %10 {strides = array<i32>} : memref<32x128xf32, #tpu.memory_space<vmem>>, vector<32x128xf32>,
    return
  }
  func.func @transform_0(%arg0: i32) -> (i32, i32) {
    %c0_i32 = arith.constant 0 : i32
    %c0_i32_0 = arith.constant 0 : i32
    return %arg0, %c0_i32 : i32, i32
  }
  func.func @transform_1(%arg0: i32) -> (i32, i32) {
    %c0_i32 = arith.constant 0 : i32
    %c0_i32_0 = arith.constant 0 : i32
    %c0_i32_1 = arith.constant 0 : i32
    return %c0_i32, %c0_i32_0 : i32, i32
  }
  func.func @transform_2(%arg0: i32) -> (i32, i32) {
    %c0_i32 = arith.constant 0 : i32
    %c0_i32_0 = arith.constant 0 : i32
    %c0_i32_1 = arith.constant 0 : i32
    return %c0_i32, %c0_i32_0 : i32, i32
  }
  func.func @transform_3(%arg0: i32) -> (i32, i32) {
    %c0_i32 = arith.constant 0 : i32
    %c0_i32_0 = arith.constant 0 : i32
    return %arg0, %c0_i32 : i32, i32
  }
  func.func @transform_4(%arg0: i32) -> (i32, i32) {
    %c0_i32 = arith.constant 0 : i32
    %c0_i32_0 = arith.constant 0 : i32
    %c0_i32_1 = arith.constant 0 : i32
    return %c0_i32, %c0_i32_0 : i32, i32
  }
  func.func @transform_5(%arg0: i32) -> (i32, i32) {
    %c0_i32 = arith.constant 0 : i32
    %c0_i32_0 = arith.constant 0 : i32
    %c0_i32_1 = arith.constant 0 : i32
    return %c0_i32, %c0_i32_0 : i32, i32
  }
  func.func @transform_6(%arg0: i32) -> (i32, i32) {
    %c0_i32 = arith.constant 0 : i32
    %c0_i32_0 = arith.constant 0 : i32
    return %arg0, %c0_i32 : i32, i32
  }
}

</mosaic_0001>

<llo_original>
// kernel: tile.100
$region0: #{tile.100}
  #allocation0 [shape = 's32[1]{0}', space=sflag, size = 0x4, scoped, tag = 'scoped memory for tile.100']
  %s0 = inlined_call_operand.vmem [shape: f32[14], index: 0, kind: input, shape index: {}]
  %s1 = inlined_call_operand.vmem [shape: f32[64,14], index: 1, kind: output, shape index: {}]
  // Predicated region
  $region2: #{tile.100} parent=0 // pred_check
    _
  $region3: #{tile.100} parent=0 // pred_check_branch
    %3 = sbr.rel (0) target = $region5
  $region4: #{tile.100} parent=0 // pred_region
    _
  $region5: #{tile.100} parent=0 // pred_fallthru
    _
  %v4 = vld [vmem:[%s0] ss:$0 sm:$0xff]
  %5 = vst [vmem:[%s1] sm:$0xff] %v4
  %s6 = scalar_lea.vmem %s1, 8
  %7 = vst [vmem:[%s6] sm:$0xff] %v4
  %s8 = scalar_lea.vmem %s1, 16
  %9 = vst [vmem:[%s8] sm:$0xff] %v4
  %s10 = scalar_lea.vmem %s1, 24
  %11 = vst [vmem:[%s10] sm:$0xff] %v4
  %s12 = scalar_lea.vmem %s1, 32
  %13 = vst [vmem:[%s12] sm:$0xff] %v4
  %s14 = scalar_lea.vmem %s1, 40
  %15 = vst [vmem:[%s14] sm:$0xff] %v4
  %s16 = scalar_lea.vmem %s1, 48
  %17 = vst [vmem:[%s16] sm:$0xff] %v4
  %s18 = scalar_lea.vmem %s1, 56
  %19 = vst [vmem:[%s18] sm:$0xff] %v4

// kernel: tile.101
$region0: #{tile.101}
  %s0 = inlined_call_operand.vmem [shape: f32[64,14], index: 0, kind: input, shape index: {}]
  %s1 = inlined_call_operand.vmem [shape: f32[1,896], index: 1, kind: output, shape index: {}]
  $region1: #{tile.101} parent=0
    #allocation0 [shape = 'u8[28672]{0}', space=vmem, size = 0x7000, scoped, tag = 'scoped mem for output reshape']
    %v2 = vld [vmem:[%s0] sm:$0x1]
    %vm3 = vcmask 113664
    %4 = vst.msk [vmem:[#allocation0] sm:$0x1] %vm3, %v2
    %s5 = scalar_lea.vmem %s0, 9
    %v6 = vld [vmem:[%s5] sm:$0x1]
    %s7 = scalar_lea.vmem %s0, 9
    %v8 = vld [vmem:[%s7] sm:$0x1]
    %vm9 = vcmask 15360
    %v10 = vsel %vm9, %v8, %v6
    %11 = vrot.lane.b32.xlu0 %v10, 126
    %v12 = vpop.permute.xlu0 %11
    %vm13 = vcmask 97280
    %s14 = scalar_lea.vmem [#allocation0], 8
    %15 = vst.msk [vmem:[%s14] sm:$0x1] %vm13, %v12
    %vm16 = vcmask 1048560
    %17 = vst.msk [vmem:[#allocation0] sm:$0x1] %vm16, %v12
    %s18 = scalar_lea.vmem %s0, 18
    %v19 = vld [vmem:[%s18] sm:$0x1]
    %s20 = scalar_lea.vmem %s0, 18
    %v21 = vld [vmem:[%s20] sm:$0x1]
    %vm22 = vcmask 31744
    %v23 = vsel %vm22, %v21, %v19
    %24 = vrot.lane.b32.xlu0 %v23, 124
    %v25 = vpop.permute.xlu0 %24
    %vm26 = vcmask 80896
    %s27 = scalar_lea.vmem [#allocation0], 16
    %28 = vst.msk [vmem:[%s27] sm:$0x1] %vm26, %v25
    %vm29 = vcmask 1048544
    %s30 = scalar_lea.vmem [#allocation0], 8
    %31 = vst.msk [vmem:[%s30] sm:$0x1] %vm29, %v25
    %s32 = scalar_lea.vmem %s0, 27
    %v33 = vld [vmem:[%s32] sm:$0x1]
    %s34 = scalar_lea.vmem %s0, 27
    %v35 = vld [vmem:[%s34] sm:$0x1]
    %vm36 = vcmask 48128
    %v37 = vsel %vm36, %v35, %v33
    %38 = vrot.lane.b32.xlu0 %v37, 122
    %v39 = vpop.permute.xlu0 %38
    %vm40 = vcmask 64512
    %s41 = scalar_lea.vmem [#allocation0], 24
    %42 = vst.msk [vmem:[%s41] sm:$0x1] %vm40, %v39
    %vm43 = vcmask 1048528
    %s44 = scalar_lea.vmem [#allocation0], 16
    %45 = vst.msk [vmem:[%s44] sm:$0x1] %vm43, %v39
    %s46 = scalar_lea.vmem %s0, 36
    %v47 = vld [vmem:[%s46] sm:$0x1]
    %s48 = scalar_lea.vmem %s0, 36
    %v49 = vld [vmem:[%s48] sm:$0x1]
    %vm50 = vcmask 64512
    %v51 = vsel %vm50, %v49, %v47
    %52 = vrot.lane.b32.xlu0 %v51, 120
    %v53 = vpop.permute.xlu0 %52
    %vm54 = vcmask 48128
    %s55 = scalar_lea.vmem [#allocation0], 32
    %56 = vst.msk [vmem:[%s55] sm:$0x1] %vm54, %v53
    %vm57 = vcmask 1048512
    %s58 = scalar_lea.vmem [#allocation0], 24
    %59 = vst.msk [vmem:[%s58] sm:$0x1] %vm57, %v53
    %s60 = scalar_lea.vmem %s0, 45
    %v61 = vld [vmem:[%s60] sm:$0x1]
    %s62 = scalar_lea.vmem %s0, 45
    %v63 = vld [vmem:[%s62] sm:$0x1]
    %vm64 = vcmask 80896
    %v65 = vsel %vm64, %v63, %v61
    %66 = vrot.lane.b32.xlu0 %v65, 118
    %v67 = vpop.permute.xlu0 %66
    %vm68 = vcmask 31744
    %s69 = scalar_lea.vmem [#allocation0], 40
    %70 = vst.msk [vmem:[%s69] sm:$0x1] %vm68, %v67
    %vm71 = vcmask 1048496
    %s72 = scalar_lea.vmem [#allocation0], 32
    %73 = vst.msk [vmem:[%s72] sm:$0x1] %vm71, %v67
    %s74 = scalar_lea.vmem %s0, 54
    %v75 = vld [vmem:[%s74] sm:$0x1]
    %s76 = scalar_lea.vmem %s0, 54
    %v77 = vld [vmem:[%s76] sm:$0x1]
    %vm78 = vcmask 97280
    %v79 = vsel %vm78, %v77, %v75
    %80 = vrot.lane.b32.xlu0 %v79, 116
    %v81 = vpop.permute.xlu0 %80
    %vm82 = vcmask 15360
    %s83 = scalar_lea.vmem [#allocation0], 48
    %84 = vst.msk [vmem:[%s83] sm:$0x1] %vm82, %v81
    %vm85 = vcmask 1048480
    %s86 = scalar_lea.vmem [#allocation0], 40
    %87 = vst.msk [vmem:[%s86] sm:$0x1] %vm85, %v81
    %s88 = scalar_lea.vmem %s0, 63
    %v89 = vld [vmem:[%s88] sm:$0x1]
    %90 = vrot.lane.b32.xlu0 %v89, 114
    %v91 = vpop.permute.xlu0 %90
    %vm92 = vcmask 1048464
    %s93 = scalar_lea.vmem [#allocation0], 48
    %94 = vst.msk [vmem:[%s93] sm:$0x1] %vm92, %v91
    %s95 = scalar_lea.vmem %s0, 8
    %v96 = vld [vmem:[%s95] sm:$0x1]
    %97 = vrot.lane.b32.xlu0 %v96, 112
    %v98 = vpop.permute.xlu0 %97
    %vm99 = vcmask 1032064
    %100 = vst.msk [vmem:[#allocation0] sm:$0x1] %vm99, %v98
    %s101 = scalar_lea.vmem %s0, 17
    %v102 = vld [vmem:[%s101] sm:$0x1]
    %103 = vrot.lane.b32.xlu0 %v102, 110
    %v104 = vpop.permute.xlu0 %103
    %vm105 = vcmask 1015664
    %s106 = scalar_lea.vmem [#allocation0], 8
    %107 = vst.msk [vmem:[%s106] sm:$0x1] %vm105, %v104
    %s108 = scalar_lea.vmem %s0, 26
    %v109 = vld [vmem:[%s108] sm:$0x1]
    %110 = vrot.lane.b32.xlu0 %v109, 108
    %v111 = vpop.permute.xlu0 %110
    %vm112 = vcmask 999264
    %s113 = scalar_lea.vmem [#allocation0], 16
    %114 = vst.msk [vmem:[%s113] sm:$0x1] %vm112, %v111
    %s115 = scalar_lea.vmem %s0, 35
    %v116 = vld [vmem:[%s115] sm:$0x1]
    %117 = vrot.lane.b32.xlu0 %v116, 106
    %v118 = vpop.permute.xlu0 %117
    %vm119 = vcmask 982864
    %s120 = scalar_lea.vmem [#allocation0], 24
    %121 = vst.msk [vmem:[%s120] sm:$0x1] %vm119, %v118
    %s122 = scalar_lea.vmem %s0, 44
    %v123 = vld [vmem:[%s122] sm:$0x1]
    %124 = vrot.lane.b32.xlu0 %v123, 104
    %v125 = vpop.permute.xlu0 %124
    %vm126 = vcmask 966464
    %s127 = scalar_lea.vmem [#allocation0], 32
    %128 = vst.msk [vmem:[%s127] sm:$0x1] %vm126, %v125
    %s129 = scalar_lea.vmem %s0, 53
    %v130 = vld [vmem:[%s129] sm:$0x1]
    %131 = vrot.lane.b32.xlu0 %v130, 102
    %v132 = vpop.permute.xlu0 %131
    %vm133 = vcmask 950064
    %s134 = scalar_lea.vmem [#allocation0], 40
    %135 = vst.msk [vmem:[%s134] sm:$0x1] %vm133, %v132
    %s136 = scalar_lea.vmem %s0, 62
    %v137 = vld [vmem:[%s136] sm:$0x1]
    %138 = vrot.lane.b32.xlu0 %v137, 100
    %v139 = vpop.permute.xlu0 %138
    %vm140 = vcmask 933664
    %s141 = scalar_lea.vmem [#allocation0], 48
    %142 = vst.msk [vmem:[%s141] sm:$0x1] %vm140, %v139
    %s143 = scalar_lea.vmem %s0, 7
    %v144 = vld [vmem:[%s143] sm:$0x1]
    %145 = vrot.lane.b32.xlu0 %v144, 98
    %v146 = vpop.permute.xlu0 %145
    %vm147 = vcmask 917264
    %148 = vst.msk [vmem:[#allocation0] sm:$0x1] %vm147, %v146
    %s149 = scalar_lea.vmem %s0, 16
    %v150 = vld [vmem:[%s149] sm:$0x1]
    %151 = vrot.lane.b32.xlu0 %v150, 96
    %v152 = vpop.permute.xlu0 %151
    %vm153 = vcmask 900864
    %s154 = scalar_lea.vmem [#allocation0], 8
    %155 = vst.msk [vmem:[%s154] sm:$0x1] %vm153, %v152
    %s156 = scalar_lea.vmem %s0, 25
    %v157 = vld [vmem:[%s156] sm:$0x1]
    %158 = vrot.lane.b32.xlu0 %v157, 94
    %v159 = vpop.permute.xlu0 %158
    %vm160 = vcmask 884464
    %s161 = scalar_lea.vmem [#allocation0], 16
    %162 = vst.msk [vmem:[%s161] sm:$0x1] %vm160, %v159
    %s163 = scalar_lea.vmem %s0, 34
    %v164 = vld [vmem:[%s163] sm:$0x1]
    %165 = vrot.lane.b32.xlu0 %v164, 92
    %v166 = vpop.permute.xlu0 %165
    %vm167 = vcmask 868064
    %s168 = scalar_lea.vmem [#allocation0], 24
    %169 = vst.msk [vmem:[%s168] sm:$0x1] %vm167, %v166
    %s170 = scalar_lea.vmem %s0, 43
    %v171 = vld [vmem:[%s170] sm:$0x1]
    %172 = vrot.lane.b32.xlu0 %v171, 90
    %v173 = vpop.permute.xlu0 %172
    %vm174 = vcmask 851664
    %s175 = scalar_lea.vmem [#allocation0], 32
    %176 = vst.msk [vmem:[%s175] sm:$0x1] %vm174, %v173
    %s177 = scalar_lea.vmem %s0, 52
    %v178 = vld [vmem:[%s177] sm:$0x1]
    %179 = vrot.lane.b32.xlu0 %v178, 88
    %v180 = vpop.permute.xlu0 %179
    %vm181 = vcmask 835264
    %s182 = scalar_lea.vmem [#allocation0], 40
    %183 = vst.msk [vmem:[%s182] sm:$0x1] %vm181, %v180
    %s184 = scalar_lea.vmem %s0, 61
    %v185 = vld [vmem:[%s184] sm:$0x1]
    %186 = vrot.lane.b32.xlu0 %v185, 86
    %v187 = vpop.permute.xlu0 %186
    %vm188 = vcmask 818864
    %s189 = scalar_lea.vmem [#allocation0], 48
    %190 = vst.msk [vmem:[%s189] sm:$0x1] %vm188, %v187
    %s191 = scalar_lea.vmem %s0, 6
    %v192 = vld [vmem:[%s191] sm:$0x1]
    %193 = vrot.lane.b32.xlu0 %v192, 84
    %v194 = vpop.permute.xlu0 %193
    %vm195 = vcmask 802464
    %196 = vst.msk [vmem:[#allocation0] sm:$0x1] %vm195, %v194
    %s197 = scalar_lea.vmem %s0, 15
    %v198 = vld [vmem:[%s197] sm:$0x1]
    %199 = vrot.lane.b32.xlu0 %v198, 82
    %v200 = vpop.permute.xlu0 %199
    %vm201 = vcmask 786064
    %s202 = scalar_lea.vmem [#allocation0], 8
    %203 = vst.msk [vmem:[%s202] sm:$0x1] %vm201, %v200
    %s204 = scalar_lea.vmem %s0, 24
    %v205 = vld [vmem:[%s204] sm:$0x1]
    %206 = vrot.lane.b32.xlu0 %v205, 80
    %v207 = vpop.permute.xlu0 %206
    %vm208 = vcmask 769664
    %s209 = scalar_lea.vmem [#allocation0], 16
    %210 = vst.msk [vmem:[%s209] sm:$0x1] %vm208, %v207
    %s211 = scalar_lea.vmem %s0, 33
    %v212 = vld [vmem:[%s211] sm:$0x1]
    %213 = vrot.lane.b32.xlu0 %v212, 78
    %v214 = vpop.permute.xlu0 %213
    %vm215 = vcmask 753264
    %s216 = scalar_lea.vmem [#allocation0], 24
    %217 = vst.msk [vmem:[%s216] sm:$0x1] %vm215, %v214
    %s218 = scalar_lea.vmem %s0, 42
    %v219 = vld [vmem:[%s218] sm:$0x1]
    %220 = vrot.lane.b32.xlu0 %v219, 76
    %v221 = vpop.permute.xlu0 %220
    %vm222 = vcmask 736864
    %s223 = scalar_lea.vmem [#allocation0], 32
    %224 = vst.msk [vmem:[%s223] sm:$0x1] %vm222, %v221
    %s225 = scalar_lea.vmem %s0, 51
    %v226 = vld [vmem:[%s225] sm:$0x1]
    %227 = vrot.lane.b32.xlu0 %v226, 74
    %v228 = vpop.permute.xlu0 %227
    %vm229 = vcmask 720464
    %s230 = scalar_lea.vmem [#allocation0], 40
    %231 = vst.msk [vmem:[%s230] sm:$0x1] %vm229, %v228
    %s232 = scalar_lea.vmem %s0, 60
    %v233 = vld [vmem:[%s232] sm:$0x1]
    %234 = vrot.lane.b32.xlu0 %v233, 72
    %v235 = vpop.permute.xlu0 %234
    %vm236 = vcmask 704064
    %s237 = scalar_lea.vmem [#allocation0], 48
    %238 = vst.msk [vmem:[%s237] sm:$0x1] %vm236, %v235
    %s239 = scalar_lea.vmem %s0, 5
    %v240 = vld [vmem:[%s239] sm:$0x1]
    %241 = vrot.lane.b32.xlu0 %v240, 70
    %v242 = vpop.permute.xlu0 %241
    %vm243 = vcmask 687664
    %244 = vst.msk [vmem:[#allocation0] sm:$0x1] %vm243, %v242
    %s245 = scalar_lea.vmem %s0, 14
    %v246 = vld [vmem:[%s245] sm:$0x1]
    %247 = vrot.lane.b32.xlu0 %v246, 68
    %v248 = vpop.permute.xlu0 %247
    %vm249 = vcmask 671264
    %s250 = scalar_lea.vmem [#allocation0], 8
    %251 = vst.msk [vmem:[%s250] sm:$0x1] %vm249, %v248
    %s252 = scalar_lea.vmem %s0, 23
    %v253 = vld [vmem:[%s252] sm:$0x1]
    %254 = vrot.lane.b32.xlu0 %v253, 66
    %v255 = vpop.permute.xlu0 %254
    %vm256 = vcmask 654864
    %s257 = scalar_lea.vmem [#allocation0], 16
    %258 = vst.msk [vmem:[%s257] sm:$0x1] %vm256, %v255
    %s259 = scalar_lea.vmem %s0, 32
    %v260 = vld [vmem:[%s259] sm:$0x1]
    %261 = vrot.lane.b32.xlu0 %v260, 64
    %v262 = vpop.permute.xlu0 %261
    %vm263 = vcmask 638464
    %s264 = scalar_lea.vmem [#allocation0], 24
    %265 = vst.msk [vmem:[%s264] sm:$0x1] %vm263, %v262
    %s266 = scalar_lea.vmem %s0, 41
    %v267 = vld [vmem:[%s266] sm:$0x1]
    %268 = vrot.lane.b32.xlu0 %v267, 62
    %v269 = vpop.permute.xlu0 %268
    %vm270 = vcmask 622064
    %s271 = scalar_lea.vmem [#allocation0], 32
    %272 = vst.msk [vmem:[%s271] sm:$0x1] %vm270, %v269
    %s273 = scalar_lea.vmem %s0, 50
    %v274 = vld [vmem:[%s273] sm:$0x1]
    %275 = vrot.lane.b32.xlu0 %v274, 60
    %v276 = vpop.permute.xlu0 %275
    %vm277 = vcmask 605664
    %s278 = scalar_lea.vmem [#allocation0], 40
    %279 = vst.msk [vmem:[%s278] sm:$0x1] %vm277, %v276
    %s280 = scalar_lea.vmem %s0, 59
    %v281 = vld [vmem:[%s280] sm:$0x1]
    %282 = vrot.lane.b32.xlu0 %v281, 58
    %v283 = vpop.permute.xlu0 %282
    %vm284 = vcmask 589264
    %s285 = scalar_lea.vmem [#allocation0], 48
    %286 = vst.msk [vmem:[%s285] sm:$0x1] %vm284, %v283
    %s287 = scalar_lea.vmem %s0, 4
    %v288 = vld [vmem:[%s287] sm:$0x1]
    %289 = vrot.lane.b32.xlu0 %v288, 56
    %v290 = vpop.permute.xlu0 %289
    %vm291 = vcmask 572864
    %292 = vst.msk [vmem:[#allocation0] sm:$0x1] %vm291, %v290
    %s293 = scalar_lea.vmem %s0, 13
    %v294 = vld [vmem:[%s293] sm:$0x1]
    %295 = vrot.lane.b32.xlu0 %v294, 54
    %v296 = vpop.permute.xlu0 %295
    %vm297 = vcmask 556464
    %s298 = scalar_lea.vmem [#allocation0], 8
    %299 = vst.msk [vmem:[%s298] sm:$0x1] %vm297, %v296
    %s300 = scalar_lea.vmem %s0, 22
    %v301 = vld [vmem:[%s300] sm:$0x1]
    %302 = vrot.lane.b32.xlu0 %v301, 52
    %v303 = vpop.permute.xlu0 %302
    %vm304 = vcmask 540064
    %s305 = scalar_lea.vmem [#allocation0], 16
    %306 = vst.msk [vmem:[%s305] sm:$0x1] %vm304, %v303
    %s307 = scalar_lea.vmem %s0, 31
    %v308 = vld [vmem:[%s307] sm:$0x1]
    %309 = vrot.lane.b32.xlu0 %v308, 50
    %v310 = vpop.permute.xlu0 %309
    %vm311 = vcmask 523664
    %s312 = scalar_lea.vmem [#allocation0], 24
    %313 = vst.msk [vmem:[%s312] sm:$0x1] %vm311, %v310
    %s314 = scalar_lea.vmem %s0, 40
    %v315 = vld [vmem:[%s314] sm:$0x1]
    %316 = vrot.lane.b32.xlu0 %v315, 48
    %v317 = vpop.permute.xlu0 %316
    %vm318 = vcmask 507264
    %s319 = scalar_lea.vmem [#allocation0], 32
    %320 = vst.msk [vmem:[%s319] sm:$0x1] %vm318, %v317
    %s321 = scalar_lea.vmem %s0, 49
    %v322 = vld [vmem:[%s321] sm:$0x1]
    %323 = vrot.lane.b32.xlu0 %v322, 46
    %v324 = vpop.permute.xlu0 %323
    %vm325 = vcmask 490864
    %s326 = scalar_lea.vmem [#allocation0], 40
    %327 = vst.msk [vmem:[%s326] sm:$0x1] %vm325, %v324
    %s328 = scalar_lea.vmem %s0, 58
    %v329 = vld [vmem:[%s328] sm:$0x1]
    %330 = vrot.lane.b32.xlu0 %v329, 44
    %v331 = vpop.permute.xlu0 %330
    %vm332 = vcmask 474464
    %s333 = scalar_lea.vmem [#allocation0], 48
    %334 = vst.msk [vmem:[%s333] sm:$0x1] %vm332, %v331
    %s335 = scalar_lea.vmem %s0, 3
    %v336 = vld [vmem:[%s335] sm:$0x1]
    %337 = vrot.lane.b32.xlu0 %v336, 42
    %v338 = vpop.permute.xlu0 %337
    %vm339 = vcmask 458064
    %340 = vst.msk [vmem:[#allocation0] sm:$0x1] %vm339, %v338
    %s341 = scalar_lea.vmem %s0, 12
    %v342 = vld [vmem:[%s341] sm:$0x1]
    %343 = vrot.lane.b32.xlu0 %v342, 40
    %v344 = vpop.permute.xlu0 %343
    %vm345 = vcmask 441664
    %s346 = scalar_lea.vmem [#allocation0], 8
    %347 = vst.msk [vmem:[%s346] sm:$0x1] %vm345, %v344
    %s348 = scalar_lea.vmem %s0, 21
    %v349 = vld [vmem:[%s348] sm:$0x1]
    %350 = vrot.lane.b32.xlu0 %v349, 38
    %v351 = vpop.permute.xlu0 %350
    %vm352 = vcmask 425264
    %s353 = scalar_lea.vmem [#allocation0], 16
    %354 = vst.msk [vmem:[%s353] sm:$0x1] %vm352, %v351
    %s355 = scalar_lea.vmem %s0, 30
    %v356 = vld [vmem:[%s355] sm:$0x1]
    %357 = vrot.lane.b32.xlu0 %v356, 36
    %v358 = vpop.permute.xlu0 %357
    %vm359 = vcmask 408864
    %s360 = scalar_lea.vmem [#allocation0], 24
    %361 = vst.msk [vmem:[%s360] sm:$0x1] %vm359, %v358
    %s362 = scalar_lea.vmem %s0, 39
    %v363 = vld [vmem:[%s362] sm:$0x1]
    %364 = vrot.lane.b32.xlu0 %v363, 34
    %v365 = vpop.permute.xlu0 %364
    %vm366 = vcmask 392464
    %s367 = scalar_lea.vmem [#allocation0], 32
    %368 = vst.msk [vmem:[%s367] sm:$0x1] %vm366, %v365
    %s369 = scalar_lea.vmem %s0, 48
    %v370 = vld [vmem:[%s369] sm:$0x1]
    %371 = vrot.lane.b32.xlu0 %v370, 32
    %v372 = vpop.permute.xlu0 %371
    %vm373 = vcmask 376064
    %s374 = scalar_lea.vmem [#allocation0], 40
    %375 = vst.msk [vmem:[%s374] sm:$0x1] %vm373, %v372
    %s376 = scalar_lea.vmem %s0, 57
    %v377 = vld [vmem:[%s376] sm:$0x1]
    %378 = vrot.lane.b32.xlu0 %v377, 30
    %v379 = vpop.permute.xlu0 %378
    %vm380 = vcmask 359664
    %s381 = scalar_lea.vmem [#allocation0], 48
    %382 = vst.msk [vmem:[%s381] sm:$0x1] %vm380, %v379
    %s383 = scalar_lea.vmem %s0, 2
    %v384 = vld [vmem:[%s383] sm:$0x1]
    %385 = vrot.lane.b32.xlu0 %v384, 28
    %v386 = vpop.permute.xlu0 %385
    %vm387 = vcmask 343264
    %388 = vst.msk [vmem:[#allocation0] sm:$0x1] %vm387, %v386
    %s389 = scalar_lea.vmem %s0, 11
    %v390 = vld [vmem:[%s389] sm:$0x1]
    %391 = vrot.lane.b32.xlu0 %v390, 26
    %v392 = vpop.permute.xlu0 %391
    %vm393 = vcmask 326864
    %s394 = scalar_lea.vmem [#allocation0], 8
    %395 = vst.msk [vmem:[%s394] sm:$0x1] %vm393, %v392
    %s396 = scalar_lea.vmem %s0, 20
    %v397 = vld [vmem:[%s396] sm:$0x1]
    %398 = vrot.lane.b32.xlu0 %v397, 24
    %v399 = vpop.permute.xlu0 %398
    %vm400 = vcmask 310464
    %s401 = scalar_lea.vmem [#allocation0], 16
    %402 = vst.msk [vmem:[%s401] sm:$0x1] %vm400, %v399
    %s403 = scalar_lea.vmem %s0, 29
    %v404 = vld [vmem:[%s403] sm:$0x1]
    %405 = vrot.lane.b32.xlu0 %v404, 22
    %v406 = vpop.permute.xlu0 %405
    %vm407 = vcmask 294064
    %s408 = scalar_lea.vmem [#allocation0], 24
    %409 = vst.msk [vmem:[%s408] sm:$0x1] %vm407, %v406
    %s410 = scalar_lea.vmem %s0, 38
    %v411 = vld [vmem:[%s410] sm:$0x1]
    %412 = vrot.lane.b32.xlu0 %v411, 20
    %v413 = vpop.permute.xlu0 %412
    %vm414 = vcmask 277664
    %s415 = scalar_lea.vmem [#allocation0], 32
    %416 = vst.msk [vmem:[%s415] sm:$0x1] %vm414, %v413
    %s417 = scalar_lea.vmem %s0, 47
    %v418 = vld [vmem:[%s417] sm:$0x1]
    %419 = vrot.lane.b32.xlu0 %v418, 18
    %v420 = vpop.permute.xlu0 %419
    %vm421 = vcmask 261264
    %s422 = scalar_lea.vmem [#allocation0], 40
    %423 = vst.msk [vmem:[%s422] sm:$0x1] %vm421, %v420
    %s424 = scalar_lea.vmem %s0, 56
    %v425 = vld [vmem:[%s424] sm:$0x1]
    %426 = vrot.lane.b32.xlu0 %v425, 16
    %v427 = vpop.permute.xlu0 %426
    %vm428 = vcmask 244864
    %s429 = scalar_lea.vmem [#allocation0], 48
    %430 = vst.msk [vmem:[%s429] sm:$0x1] %vm428, %v427
    %s431 = scalar_lea.vmem %s0, 1
    %v432 = vld [vmem:[%s431] sm:$0x1]
    %433 = vrot.lane.b32.xlu0 %v432, 14
    %v434 = vpop.permute.xlu0 %433
    %vm435 = vcmask 228464
    %436 = vst.msk [vmem:[#allocation0] sm:$0x1] %vm435, %v434
    %s437 = scalar_lea.vmem %s0, 10
    %v438 = vld [vmem:[%s437] sm:$0x1]
    %439 = vrot.lane.b32.xlu0 %v438, 12
    %v440 = vpop.permute.xlu0 %439
    %vm441 = vcmask 212064
    %s442 = scalar_lea.vmem [#allocation0], 8
    %443 = vst.msk [vmem:[%s442] sm:$0x1] %vm441, %v440
    %s444 = scalar_lea.vmem %s0, 19
    %v445 = vld [vmem:[%s444] sm:$0x1]
    %446 = vrot.lane.b32.xlu0 %v445, 10
    %v447 = vpop.permute.xlu0 %446
    %vm448 = vcmask 195664
    %s449 = scalar_lea.vmem [#allocation0], 16
    %450 = vst.msk [vmem:[%s449] sm:$0x1] %vm448, %v447
    %s451 = scalar_lea.vmem %s0, 28
    %v452 = vld [vmem:[%s451] sm:$0x1]
    %453 = vrot.lane.b32.xlu0 %v452, 8
    %v454 = vpop.permute.xlu0 %453
    %vm455 = vcmask 179264
    %s456 = scalar_lea.vmem [#allocation0], 24
    %457 = vst.msk [vmem:[%s456] sm:$0x1] %vm455, %v454
    %s458 = scalar_lea.vmem %s0, 37
    %v459 = vld [vmem:[%s458] sm:$0x1]
    %460 = vrot.lane.b32.xlu0 %v459, 6
    %v461 = vpop.permute.xlu0 %460
    %vm462 = vcmask 162864
    %s463 = scalar_lea.vmem [#allocation0], 32
    %464 = vst.msk [vmem:[%s463] sm:$0x1] %vm462, %v461
    %s465 = scalar_lea.vmem %s0, 46
    %v466 = vld [vmem:[%s465] sm:$0x1]
    %467 = vrot.lane.b32.xlu0 %v466, 4
    %v468 = vpop.permute.xlu0 %467
    %vm469 = vcmask 146464
    %s470 = scalar_lea.vmem [#allocation0], 40
    %471 = vst.msk [vmem:[%s470] sm:$0x1] %vm469, %v468
    %s472 = scalar_lea.vmem %s0, 55
    %v473 = vld [vmem:[%s472] sm:$0x1]
    %474 = vrot.lane.b32.xlu0 %v473, 2
    %v475 = vpop.permute.xlu0 %474
    %vm476 = vcmask 130064
    %s477 = scalar_lea.vmem [#allocation0], 48
    %478 = vst.msk [vmem:[%s477] sm:$0x1] %vm476, %v475
    %s480 = sshll.u32 1, 1
    %s481 = ssub.s32 %s480, 1
    %v483 = vld [vmem:[#allocation0] sm:%s481]
    %s484 = sshll.u32 1, 1
    %s485 = ssub.s32 %s484, 1
    %486 = vst [vmem:[%s1] sm:%s485] %v483
    %s487 = scalar_lea.vmem [#allocation0], 8
    %v488 = vld [vmem:[%s487] sm:%s481]
    %s489 = sshll.u32 1, 1
    %s490 = ssub.s32 %s489, 1
    %s491 = scalar_lea.vmem %s1, 1
    %492 = vst [vmem:[%s491] sm:%s490] %v488
    %s493 = scalar_lea.vmem [#allocation0], 16
    %v494 = vld [vmem:[%s493] sm:%s481]
    %s495 = sshll.u32 1, 1
    %s496 = ssub.s32 %s495, 1
    %s497 = smul.addr 1, 2
    %s498 = scalar_lea.vmem %s1, %s497
    %499 = vst [vmem:[%s498] sm:%s496] %v494
    %s500 = scalar_lea.vmem [#allocation0], 24
    %v501 = vld [vmem:[%s500] sm:%s481]
    %s502 = sshll.u32 1, 1
    %s503 = ssub.s32 %s502, 1
    %s504 = smul.addr 1, 3
    %s505 = scalar_lea.vmem %s1, %s504
    %506 = vst [vmem:[%s505] sm:%s503] %v501
    %s507 = scalar_lea.vmem [#allocation0], 32
    %v508 = vld [vmem:[%s507] sm:%s481]
    %s509 = sshll.u32 1, 1
    %s510 = ssub.s32 %s509, 1
    %s511 = smul.addr 1, 4
    %s512 = scalar_lea.vmem %s1, %s511
    %513 = vst [vmem:[%s512] sm:%s510] %v508
    %s514 = scalar_lea.vmem [#allocation0], 40
    %v515 = vld [vmem:[%s514] sm:%s481]
    %s516 = sshll.u32 1, 1
    %s517 = ssub.s32 %s516, 1
    %s518 = smul.addr 1, 5
    %s519 = scalar_lea.vmem %s1, %s518
    %520 = vst [vmem:[%s519] sm:%s517] %v515
    %s521 = scalar_lea.vmem [#allocation0], 48
    %v522 = vld [vmem:[%s521] sm:%s481]
    %s523 = sshll.u32 1, 1
    %s524 = ssub.s32 %s523, 1
    %s525 = smul.addr 1, 6
    %s526 = scalar_lea.vmem %s1, %s525
    %527 = vst [vmem:[%s526] sm:%s524] %v522

// kernel: _lambda_.19
$region0: #{_lambda_.19}
  #allocation0 [shape = 'u32[]', space=smem, size = 0x4, offset = 0x4, fixed_abs, tag = 'smem constant byte address 0x4 - core index']
  #allocation1 [shape = 'u32[144,128]{1,0:T(1,128)}', space=vmem, size = 0x12000, scoped, tag = 'internal scratch']
  %s0 = inlined_call_operand.vmem [shape: f32[16,896], index: 0, kind: input, shape index: {}]
  %s1 = inlined_call_operand.vmem [shape: f32[1,896], index: 1, kind: input, shape index: {}]
  %s2 = inlined_call_operand.vmem [shape: f32[1,896], index: 2, kind: input, shape index: {}]
  %s3 = inlined_call_operand.vmem [shape: f32[16,896], index: 3, kind: output, shape index: {}]
  %s4 = sld [smem:[#allocation0]]
  $region22: #{_lambda_.19} parent=0
    _
  %s6 = ssub.s32 1, %s4
  %s7 = scalar_select 0, %s6, %s4
  // Predicated region
  $region2: #{_lambda_.19} parent=0 // pred_check
    _
  $region3: #{_lambda_.19} parent=0 // pred_check_branch
    %9 = sbr.rel (0) target = $region5
  $region4: #{_lambda_.19} parent=0 // pred_region
    _
  $region5: #{_lambda_.19} parent=0 // pred_fallthru
    _
  // Predicated region
  $region6: #{_lambda_.19} parent=0 // pred_check
    _
  $region7: #{_lambda_.19} parent=0 // pred_check_branch
    %11 = sbr.rel (0) target = $region9
  $region8: #{_lambda_.19} parent=0 // pred_region
    _
  $region9: #{_lambda_.19} parent=0 // pred_fallthru
    _
  // Predicated region
  $region10: #{_lambda_.19} parent=0 // pred_check
    _
  $region11: #{_lambda_.19} parent=0 // pred_check_branch
    %13 = sbr.rel (0) target = $region13
  $region12: #{_lambda_.19} parent=0 // pred_region
    _
  $region13: #{_lambda_.19} parent=0 // pred_fallthru
    _
  %v14 = vld [vmem:[%s0] sm:$0xff]
  %v15 = vld [vmem:[%s0 + $0x8] sm:$0xff]
  %v16 = vld [vmem:[%s0 + $0x10] sm:$0xff]
  %v17 = vld [vmem:[%s0 + $0x18] sm:$0xff]
  %v18 = vld [vmem:[%s0 + $0x20] sm:$0xff]
  %v19 = vld [vmem:[%s0 + $0x28] sm:$0xff]
  %v20 = vld [vmem:[%s0 + $0x30] sm:$0xff]
  %v21 = vld [vmem:[%s0 + $0x38] sm:$0xff]
  %v22 = vld [vmem:[%s0 + $0x40] sm:$0xff]
  %v23 = vld [vmem:[%s0 + $0x48] sm:$0xff]
  %v24 = vld [vmem:[%s0 + $0x50] sm:$0xff]
  %v25 = vld [vmem:[%s0 + $0x58] sm:$0xff]
  %v26 = vld [vmem:[%s0 + $0x60] sm:$0xff]
  %v27 = vld [vmem:[%s0 + $0x68] sm:$0xff]
  %v28 = vld [vmem:[%s1] sm:$0xff]
  %v30 = vlaneseq
  %v31 = vshrl.u32 %v30, 7
  %v32 = vsub.s32 0, %v31
  %v33 = vrot.slane %v28, %v32
  %v34 = vlaneseq
  %v35 = vshrl.u32 %v34, 7
  %v36 = vsub.s32 1, %v35
  %v37 = vrot.slane %v28, %v36
  %v38 = vlaneseq
  %v39 = vshrl.u32 %v38, 7
  %v40 = vsub.s32 2, %v39
  %v41 = vrot.slane %v28, %v40
  %v42 = vlaneseq
  %v43 = vshrl.u32 %v42, 7
  %v44 = vsub.s32 3, %v43
  %v45 = vrot.slane %v28, %v44
  %v46 = vlaneseq
  %v47 = vshrl.u32 %v46, 7
  %v48 = vsub.s32 4, %v47
  %v49 = vrot.slane %v28, %v48
  %v50 = vlaneseq
  %v51 = vshrl.u32 %v50, 7
  %v52 = vsub.s32 5, %v51
  %v53 = vrot.slane %v28, %v52
  %v54 = vlaneseq
  %v55 = vshrl.u32 %v54, 7
  %v56 = vsub.s32 6, %v55
  %v57 = vrot.slane %v28, %v56
  %v65 = vmul.f32 %v14, %v33
  %v66 = vmul.f32 %v15, %v37
  %v67 = vmul.f32 %v16, %v41
  %v68 = vmul.f32 %v17, %v45
  %v69 = vmul.f32 %v18, %v49
  %v70 = vmul.f32 %v19, %v53
  %v71 = vmul.f32 %v20, %v57
  %v72 = vmul.f32 %v21, %v33
  %v73 = vmul.f32 %v22, %v37
  %v74 = vmul.f32 %v23, %v41
  %v75 = vmul.f32 %v24, %v45
  %v76 = vmul.f32 %v25, %v49
  %v77 = vmul.f32 %v26, %v53
  %v78 = vmul.f32 %v27, %v57
  %v79 = vld [vmem:[%s2] sm:$0xff]
  %v81 = vlaneseq
  %v82 = vshrl.u32 %v81, 7
  %v83 = vsub.s32 0, %v82
  %v84 = vrot.slane %v79, %v83
  %v85 = vlaneseq
  %v86 = vshrl.u32 %v85, 7
  %v87 = vsub.s32 1, %v86
  %v88 = vrot.slane %v79, %v87
  %v89 = vlaneseq
  %v90 = vshrl.u32 %v89, 7
  %v91 = vsub.s32 2, %v90
  %v92 = vrot.slane %v79, %v91
  %v93 = vlaneseq
  %v94 = vshrl.u32 %v93, 7
  %v95 = vsub.s32 3, %v94
  %v96 = vrot.slane %v79, %v95
  %v97 = vlaneseq
  %v98 = vshrl.u32 %v97, 7
  %v99 = vsub.s32 4, %v98
  %v100 = vrot.slane %v79, %v99
  %v101 = vlaneseq
  %v102 = vshrl.u32 %v101, 7
  %v103 = vsub.s32 5, %v102
  %v104 = vrot.slane %v79, %v103
  %v105 = vlaneseq
  %v106 = vshrl.u32 %v105, 7
  %v107 = vsub.s32 6, %v106
  %v108 = vrot.slane %v79, %v107
  %v116 = vadd.f32 %v65, %v84
  %v117 = vadd.f32 %v66, %v88
  %v118 = vadd.f32 %v67, %v92
  %v119 = vadd.f32 %v68, %v96
  %v120 = vadd.f32 %v69, %v100
  %v121 = vadd.f32 %v70, %v104
  %v122 = vadd.f32 %v71, %v108
  %v123 = vadd.f32 %v72, %v84
  %v124 = vadd.f32 %v73, %v88
  %v125 = vadd.f32 %v74, %v92
  %v126 = vadd.f32 %v75, %v96
  %v127 = vadd.f32 %v76, %v100
  %v128 = vadd.f32 %v77, %v104
  %v129 = vadd.f32 %v78, %v108
  %v130 = vmax.f32 %v116, 0.0
  %v131 = vmax.f32 %v117, 0.0
  %v132 = vmax.f32 %v118, 0.0
  %v133 = vmax.f32 %v119, 0.0
  %v134 = vmax.f32 %v120, 0.0
  %v135 = vmax.f32 %v121, 0.0
  %v136 = vmax.f32 %v122, 0.0
  %v137 = vmax.f32 %v123, 0.0
  %v138 = vmax.f32 %v124, 0.0
  %v139 = vmax.f32 %v125, 0.0
  %v140 = vmax.f32 %v126, 0.0
  %v141 = vmax.f32 %v127, 0.0
  %v142 = vmax.f32 %v128, 0.0
  %v143 = vmax.f32 %v129, 0.0
  %144 = vst [vmem:[%s3] sm:$0xff] %v130
  %145 = vst [vmem:[%s3 + $0x8] sm:$0xff] %v131
  %146 = vst [vmem:[%s3 + $0x10] sm:$0xff] %v132
  %147 = vst [vmem:[%s3 + $0x18] sm:$0xff] %v133
  %148 = vst [vmem:[%s3 + $0x20] sm:$0xff] %v134
  %149 = vst [vmem:[%s3 + $0x28] sm:$0xff] %v135
  %150 = vst [vmem:[%s3 + $0x30] sm:$0xff] %v136
  %151 = vst [vmem:[%s3 + $0x38] sm:$0xff] %v137
  %152 = vst [vmem:[%s3 + $0x40] sm:$0xff] %v138
  %153 = vst [vmem:[%s3 + $0x48] sm:$0xff] %v139
  %154 = vst [vmem:[%s3 + $0x50] sm:$0xff] %v140
  %155 = vst [vmem:[%s3 + $0x58] sm:$0xff] %v141
  %156 = vst [vmem:[%s3 + $0x60] sm:$0xff] %v142
  %157 = vst [vmem:[%s3 + $0x68] sm:$0xff] %v143
  // Predicated region
  $region14: #{_lambda_.19} parent=0 // pred_check
    _
  $region15: #{_lambda_.19} parent=0 // pred_check_branch
    %159 = sbr.rel (0) target = $region17
  $region16: #{_lambda_.19} parent=0 // pred_region
    _
  $region17: #{_lambda_.19} parent=0 // pred_fallthru
    _
  // Predicated region
  $region18: #{_lambda_.19} parent=0 // pred_check
    _
  $region19: #{_lambda_.19} parent=0 // pred_check_branch
    %161 = sbr.rel (0) target = $region21
  $region20: #{_lambda_.19} parent=0 // pred_region
    _
  $region21: #{_lambda_.19} parent=0 // pred_fallthru
    _

// kernel: _lambda_.18
$region0: #{_lambda_.18}
  #allocation0 [shape = 'u32[]', space=smem, size = 0x4, offset = 0x4, fixed_abs, tag = 'smem constant byte address 0x4 - core index']
  #allocation1 [shape = 'u32[144,128]{1,0:T(1,128)}', space=vmem, size = 0x12000, scoped, tag = 'internal scratch']
  %s0 = inlined_call_operand.vmem [shape: f32[1024,36], index: 0, kind: input, shape index: {}]
  %s1 = inlined_call_operand.vmem [shape: f32[36,14], index: 1, kind: input, shape index: {}]
  %s2 = inlined_call_operand.vmem [shape: f32[1,14], index: 2, kind: input, shape index: {}]
  %s3 = inlined_call_operand.vmem [shape: f32[1,36], index: 3, kind: input, shape index: {}, may-alias: {3,4}]
  %s4 = inlined_call_operand.vmem [shape: f32[1,36], index: 4, kind: input, shape index: {}, may-alias: {3,4}]
  %s5 = inlined_call_operand.vmem [shape: f32[1024,14], index: 5, kind: output, shape index: {0}]
  %s6 = inlined_call_operand.vmem [shape: f32[1,14], index: 6, kind: output, shape index: {1}]
  %s7 = inlined_call_operand.vmem [shape: f32[1,14], index: 7, kind: output, shape index: {2}]
  %8 = xla_tuple %s5, %s6, %s7
  %s9 = sld [smem:[#allocation0]]
  $region73: #{_lambda_.18} parent=0
    _
  %s11 = ssub.s32 1, %s9
  %s12 = scalar_select 0, %s11, %s9
  loop: start=0, step=1, limit=4
  $region2: #{_lambda_.18} parent=0 // loop_pre_header
    _
  $region3: #{_lambda_.18} parent=0 // loop_header
    %s14 = sphi 0, %s18
    %p15 = scmp.ge.s32.totalorder %s14, 4
    %s24 = sphi 0, %s26
    %s27 = sphi 0, %s24
    %s28 = sphi 0, %s27
    %s44 = sphi 0, %s28
    %s48 = sphi 0, %s48
    %s50 = sphi 0, %s48
    %s51 = sphi 0, %s50
    %s65 = sphi 0, %s51
    %s69 = sphi 0, %s69
    %s71 = sphi 0, %s69
    %s72 = sphi 0, %s71
    %s86 = sphi 0, %s72
    %s90 = sphi 0, %s90
    %s92 = sphi 0, %s90
    %s93 = sphi 0, %s92
    %s107 = sphi 0, %s93
    %s111 = sphi 0, %s111
    %s113 = sphi 0, %s111
    %s114 = sphi 0, %s113
    %s128 = sphi 0, %s114
    %s134 = sphi 0, %s136
    %s137 = sphi 0, %s134
    %s138 = sphi 0, %s137
    %s154 = sphi 0, %s138
    %s158 = sphi 0, %s158
    %s160 = sphi 0, %s158
    %s161 = sphi 0, %s160
    %s175 = sphi 0, %s161
    %s179 = sphi 0, %s179
    %s181 = sphi 0, %s179
    %s182 = sphi 0, %s181
    %s196 = sphi 0, %s182
  $region4: #{_lambda_.18} parent=0 // loop_header_branch
    %17 = sbr.rel (%p15) target = $region8
  $region5: #{_lambda_.18} parent=0 // loop_body
    %s19 = ssub.s32 %s14, 1
    %s20 = ssub.s32 %s14, 2
    %s21 = sadd.s32 %s14, 1
    %s22 = ssub.s32 %s14, %s21
    %p23 = scmp.eq.s32.totalorder %s22, 0
    %s25 = sadd.s32 %s24, 1
    %s26 = scalar_select %p23, %s24, %s25
    %p29 = pneg %p23
    %p30 = scmp.eq.s32.totalorder %s14, 1
    %p31 = por %p29, %p30
    %p32 = scmp.ne.s32.totalorder %s24, %s27
    %p33 = scmp.eq.s32.totalorder %s14, 0
    %p34 = por %p32, %p33
    %p35 = scmp.ne.s32.totalorder %s24, %s27
    %p36 = scmp.eq.s32.totalorder %s19, 1
    %p37 = por %p35, %p36
    %p38 = scmp.ne.s32.totalorder %s27, %s28
    %p39 = scmp.eq.s32.totalorder %s19, 0
    %p40 = por %p38, %p39
    %p41 = scmp.ne.s32.totalorder %s27, %s28
    %p42 = scmp.eq.s32.totalorder %s20, 1
    %p43 = por %p41, %p42
    %p45 = scmp.ne.s32.totalorder %s28, %s44
    %p46 = scmp.eq.s32.totalorder %s20, 0
    %p47 = por %p45, %p46
    %s49 = sadd.s32 %s48, 1
    %p52 = scmp.eq.s32.totalorder %s14, 1
    %p53 = scmp.ne.s32.totalorder %s48, %s50
    %p54 = scmp.eq.s32.totalorder %s14, 0
    %p55 = por %p53, %p54
    %p56 = scmp.ne.s32.totalorder %s48, %s50
    %p57 = scmp.eq.s32.totalorder %s19, 1
    %p58 = por %p56, %p57
    %p59 = scmp.ne.s32.totalorder %s50, %s51
    %p60 = scmp.eq.s32.totalorder %s19, 0
    %p61 = por %p59, %p60
    %p62 = scmp.ne.s32.totalorder %s50, %s51
    %p63 = scmp.eq.s32.totalorder %s20, 1
    %p64 = por %p62, %p63
    %p66 = scmp.ne.s32.totalorder %s51, %s65
    %p67 = scmp.eq.s32.totalorder %s20, 0
    %p68 = por %p66, %p67
    %s70 = sadd.s32 %s69, 1
    %p73 = scmp.eq.s32.totalorder %s14, 1
    %p74 = scmp.ne.s32.totalorder %s69, %s71
    %p75 = scmp.eq.s32.totalorder %s14, 0
    %p76 = por %p74, %p75
    %p77 = scmp.ne.s32.totalorder %s69, %s71
    %p78 = scmp.eq.s32.totalorder %s19, 1
    %p79 = por %p77, %p78
    %p80 = scmp.ne.s32.totalorder %s71, %s72
    %p81 = scmp.eq.s32.totalorder %s19, 0
    %p82 = por %p80, %p81
    %p83 = scmp.ne.s32.totalorder %s71, %s72
    %p84 = scmp.eq.s32.totalorder %s20, 1
    %p85 = por %p83, %p84
    %p87 = scmp.ne.s32.totalorder %s72, %s86
    %p88 = scmp.eq.s32.totalorder %s20, 0
    %p89 = por %p87, %p88
    %s91 = sadd.s32 %s90, 1
    %p94 = scmp.eq.s32.totalorder %s14, 1
    %p95 = scmp.ne.s32.totalorder %s90, %s92
    %p96 = scmp.eq.s32.totalorder %s14, 0
    %p97 = por %p95, %p96
    %p98 = scmp.ne.s32.totalorder %s90, %s92
    %p99 = scmp.eq.s32.totalorder %s19, 1
    %p100 = por %p98, %p99
    %p101 = scmp.ne.s32.totalorder %s92, %s93
    %p102 = scmp.eq.s32.totalorder %s19, 0
    %p103 = por %p101, %p102
    %p104 = scmp.ne.s32.totalorder %s92, %s93
    %p105 = scmp.eq.s32.totalorder %s20, 1
    %p106 = por %p104, %p105
    %p108 = scmp.ne.s32.totalorder %s93, %s107
    %p109 = scmp.eq.s32.totalorder %s20, 0
    %p110 = por %p108, %p109
    %s112 = sadd.s32 %s111, 1
    %p115 = scmp.eq.s32.totalorder %s14, 1
    %p116 = scmp.ne.s32.totalorder %s111, %s113
    %p117 = scmp.eq.s32.totalorder %s14, 0
    %p118 = por %p116, %p117
    %p119 = scmp.ne.s32.totalorder %s111, %s113
    %p120 = scmp.eq.s32.totalorder %s19, 1
    %p121 = por %p119, %p120
    %p122 = scmp.ne.s32.totalorder %s113, %s114
    %p123 = scmp.eq.s32.totalorder %s19, 0
    %p124 = por %p122, %p123
    %p125 = scmp.ne.s32.totalorder %s113, %s114
    %p126 = scmp.eq.s32.totalorder %s20, 1
    %p127 = por %p125, %p126
    %p129 = scmp.ne.s32.totalorder %s114, %s128
    %p130 = scmp.eq.s32.totalorder %s20, 0
    %p131 = por %p129, %p130
    %s132 = ssub.s32 %s14, %s21
    %p133 = scmp.eq.s32.totalorder %s132, 0
    %s135 = sadd.s32 %s134, 1
    %s136 = scalar_select %p133, %s134, %s135
    %p139 = pneg %p133
    %p140 = scmp.eq.s32.totalorder %s14, 1
    %p141 = por %p139, %p140
    %p142 = scmp.ne.s32.totalorder %s134, %s137
    %p143 = scmp.eq.s32.totalorder %s14, 0
    %p144 = por %p142, %p143
    %p145 = scmp.ne.s32.totalorder %s134, %s137
    %p146 = scmp.eq.s32.totalorder %s19, 1
    %p147 = por %p145, %p146
    %p148 = scmp.ne.s32.totalorder %s137, %s138
    %p149 = scmp.eq.s32.totalorder %s19, 0
    %p150 = por %p148, %p149
    %p151 = scmp.ne.s32.totalorder %s137, %s138
    %p152 = scmp.eq.s32.totalorder %s20, 1
    %p153 = por %p151, %p152
    %p155 = scmp.ne.s32.totalorder %s138, %s154
    %p156 = scmp.eq.s32.totalorder %s20, 0
    %p157 = por %p155, %p156
    %s159 = sadd.s32 %s158, 1
    %p162 = scmp.eq.s32.totalorder %s14, 1
    %p163 = scmp.ne.s32.totalorder %s158, %s160
    %p164 = scmp.eq.s32.totalorder %s14, 0
    %p165 = por %p163, %p164
    %p166 = scmp.ne.s32.totalorder %s158, %s160
    %p167 = scmp.eq.s32.totalorder %s19, 1
    %p168 = por %p166, %p167
    %p169 = scmp.ne.s32.totalorder %s160, %s161
    %p170 = scmp.eq.s32.totalorder %s19, 0
    %p171 = por %p169, %p170
    %p172 = scmp.ne.s32.totalorder %s160, %s161
    %p173 = scmp.eq.s32.totalorder %s20, 1
    %p174 = por %p172, %p173
    %p176 = scmp.ne.s32.totalorder %s161, %s175
    %p177 = scmp.eq.s32.totalorder %s20, 0
    %p178 = por %p176, %p177
    %s180 = sadd.s32 %s179, 1
    %p183 = scmp.eq.s32.totalorder %s14, 1
    %p184 = scmp.ne.s32.totalorder %s179, %s181
    %p185 = scmp.eq.s32.totalorder %s14, 0
    %p186 = por %p184, %p185
    %p187 = scmp.ne.s32.totalorder %s179, %s181
    %p188 = scmp.eq.s32.totalorder %s19, 1
    %p189 = por %p187, %p188
    %p190 = scmp.ne.s32.totalorder %s181, %s182
    %p191 = scmp.eq.s32.totalorder %s19, 0
    %p192 = por %p190, %p191
    %p193 = scmp.ne.s32.totalorder %s181, %s182
    %p194 = scmp.eq.s32.totalorder %s20, 1
    %p195 = por %p193, %p194
    %p197 = scmp.ne.s32.totalorder %s182, %s196
    %p198 = scmp.eq.s32.totalorder %s20, 0
    %p199 = por %p197, %p198
    %p200 = scmp.le.s32.totalorder 1, %s14
    %p201 = scmp.lt.s32.totalorder %s14, 3
    %p202 = pnand %p200, %p201
    %p203 = pneg %p202
    // Predicated region
    $region9: #{_lambda_.18} parent=5 // pred_check
      _
    $region10: #{_lambda_.18} parent=5 // pred_check_branch
      %205 = sbr.rel (%p202) target = $region12
    $region11: #{_lambda_.18} parent=5 // pred_region
      %s206 = ssub.s32 %s14, 1
      // Predicated region
      $region13: #{_lambda_.18} parent=11 // pred_check
        %p207 = pneg %p61
      $region14: #{_lambda_.18} parent=11 // pred_check_branch
        %209 = sbr.rel (%p207) target = $region16
      $region15: #{_lambda_.18} parent=11 // pred_region
        _
      $region16: #{_lambda_.18} parent=11 // pred_fallthru
        _
      // Predicated region
      $region17: #{_lambda_.18} parent=11 // pred_check
        %p210 = pneg %p82
      $region18: #{_lambda_.18} parent=11 // pred_check_branch
        %212 = sbr.rel (%p210) target = $region20
      $region19: #{_lambda_.18} parent=11 // pred_region
        _
      $region20: #{_lambda_.18} parent=11 // pred_fallthru
        _
      // Predicated region
      $region21: #{_lambda_.18} parent=11 // pred_check
        %p213 = pneg %p103
      $region22: #{_lambda_.18} parent=11 // pred_check_branch
        %215 = sbr.rel (%p213) target = $region24
      $region23: #{_lambda_.18} parent=11 // pred_region
        _
      $region24: #{_lambda_.18} parent=11 // pred_fallthru
        _
      // Predicated region
      $region25: #{_lambda_.18} parent=11 // pred_check
        %p216 = pneg %p124
      $region26: #{_lambda_.18} parent=11 // pred_check_branch
        %218 = sbr.rel (%p216) target = $region28
      $region27: #{_lambda_.18} parent=11 // pred_region
        _
      $region28: #{_lambda_.18} parent=11 // pred_fallthru
        _
    $region12: #{_lambda_.18} parent=5 // pred_fallthru
      _
    %p219 = scmp.lt.s32.totalorder %s14, 2
    // Predicated region
    $region29: #{_lambda_.18} parent=5 // pred_check
      %p220 = pneg %p219
    $region30: #{_lambda_.18} parent=5 // pred_check_branch
      %222 = sbr.rel (%p220) target = $region32
    $region31: #{_lambda_.18} parent=5 // pred_region
      // Predicated region
      $region33: #{_lambda_.18} parent=31 // pred_check
        %p223 = pneg %p34
      $region34: #{_lambda_.18} parent=31 // pred_check_branch
        %225 = sbr.rel (%p223) target = $region36
      $region35: #{_lambda_.18} parent=31 // pred_region
        %s226 = smul.u32 64, %s14
        %p227 = scmp.lt.s32.totalorder %s226, 127
        %s228 = scalar_select %p227, %s226, 127
        %s229 = smul.addr %s228, 8
        %s230 = scalar_lea.vmem %s0, %s229
        %s231 = smul.u32 64, %s14
      $region36: #{_lambda_.18} parent=31 // pred_fallthru
        _
    $region32: #{_lambda_.18} parent=5 // pred_fallthru
      _
    %p232 = scmp.le.s32.totalorder 1, %s14
    %p233 = scmp.lt.s32.totalorder %s14, 3
    %p234 = pnand %p232, %p233
    %p235 = pneg %p234
    // Predicated region
    $region37: #{_lambda_.18} parent=5 // pred_check
      _
    $region38: #{_lambda_.18} parent=5 // pred_check_branch
      %237 = sbr.rel (%p234) target = $region40
    $region39: #{_lambda_.18} parent=5 // pred_region
      %s238 = ssub.s32 %s14, 1
      %s239 = smul.u32 64, %s19
      %p240 = scmp.lt.s32.totalorder %s239, 127
      %s241 = scalar_select %p240, %s239, 127
      %s242 = smul.addr %s241, 8
      %s243 = scalar_lea.vmem %s0, %s242
      %p244 = pneg %p40
      %p245 = pneg %p37
      %p246 = pneg %p61
      %p247 = pneg %p58
      %p248 = pneg %p82
      %p249 = pneg %p79
      %p250 = pneg %p103
      %p251 = pneg %p100
      %p252 = pneg %p124
      %p253 = pneg %p121
      %p254 = pneg %p150
      %p255 = pneg %p147
      %s256 = smul.u32 64, %s19
      %p257 = scmp.lt.s32.totalorder %s256, 127
      %s258 = scalar_select %p257, %s256, 127
      %s259 = smul.addr %s258, 8
      %s260 = scalar_lea.vmem %s5, %s259
      %p261 = pneg %p171
      %p262 = pneg %p168
      %p263 = pneg %p192
      %p264 = pneg %p189
      %s265 = smul.u32 64, %s19
      %p266 = scmp.lt.s32.totalorder %s265, 127
      %s267 = scalar_select %p266, %s265, 127
      %s268 = smul.addr %s267, 8
      %s269 = scalar_lea.vmem %s0, %s268
      %s270 = smul.u32 64, %s19
      %s271 = smul.u32 64, %s19
      %p272 = scmp.lt.s32.totalorder %s271, 127
      %s273 = scalar_select %p272, %s271, 127
      %s274 = smul.addr %s273, 8
      %s275 = scalar_lea.vmem %s5, %s274
      %s276 = smul.u32 64, %s19
      %v277 = vld [vmem:[%s269] sm:$0xff]
      %v278 = vld [vmem:[%s269 + $0x8] sm:$0xff]
      %v279 = vld [vmem:[%s269 + $0x10] sm:$0xff]
      %v280 = vld [vmem:[%s269 + $0x18] sm:$0xff]
      %v281 = vld [vmem:[%s269 + $0x20] sm:$0xff]
      %v282 = vld [vmem:[%s269 + $0x28] sm:$0xff]
      %v283 = vld [vmem:[%s269 + $0x30] sm:$0xff]
      %v284 = vld [vmem:[%s269 + $0x38] sm:$0xff]
      %v285 = vld [vmem:[%s269 + $0x40] sm:$0xff]
      %v286 = vld [vmem:[%s269 + $0x48] sm:$0xff]
      %v287 = vld [vmem:[%s269 + $0x50] sm:$0xff]
      %v288 = vld [vmem:[%s269 + $0x58] sm:$0xff]
      %v289 = vld [vmem:[%s269 + $0x60] sm:$0xff]
      %v290 = vld [vmem:[%s269 + $0x68] sm:$0xff]
      %v291 = vld [vmem:[%s269 + $0x70] sm:$0xff]
      %v292 = vld [vmem:[%s269 + $0x78] sm:$0xff]
      %v293 = vld [vmem:[%s269 + $0x80] sm:$0xff]
      %v294 = vld [vmem:[%s269 + $0x88] sm:$0xff]
      %v295 = vld [vmem:[%s269 + $0x90] sm:$0xff]
      %v296 = vld [vmem:[%s269 + $0x98] sm:$0xff]
      %v297 = vld [vmem:[%s269 + $0xa0] sm:$0xff]
      %v298 = vld [vmem:[%s269 + $0xa8] sm:$0xff]
      %v299 = vld [vmem:[%s269 + $0xb0] sm:$0xff]
      %v300 = vld [vmem:[%s269 + $0xb8] sm:$0xff]
      %v301 = vld [vmem:[%s269 + $0xc0] sm:$0xff]
      %v302 = vld [vmem:[%s269 + $0xc8] sm:$0xff]
      %v303 = vld [vmem:[%s269 + $0xd0] sm:$0xff]
      %v304 = vld [vmem:[%s269 + $0xd8] sm:$0xff]
      %v305 = vld [vmem:[%s269 + $0xe0] sm:$0xff]
      %v306 = vld [vmem:[%s269 + $0xe8] sm:$0xff]
      %v307 = vld [vmem:[%s269 + $0xf0] sm:$0xff]
      %v308 = vld [vmem:[%s269 + $0xf8] sm:$0xff]
      %v309 = vld [vmem:[%s269 + $0x100] sm:$0xff]
      %v310 = vld [vmem:[%s269 + $0x108] sm:$0xff]
      %v311 = vld [vmem:[%s269 + $0x110] sm:$0xff]
      %v312 = vld [vmem:[%s269 + $0x118] sm:$0xff]
      %v313 = vld [vmem:[%s269 + $0x120] sm:$0xff]
      %v314 = vld [vmem:[%s269 + $0x128] sm:$0xff]
      %v315 = vld [vmem:[%s269 + $0x130] sm:$0xff]
      %v316 = vld [vmem:[%s269 + $0x138] sm:$0xff]
      %v317 = vld [vmem:[%s269 + $0x140] sm:$0xff]
      %v318 = vld [vmem:[%s269 + $0x148] sm:$0xff]
      %v319 = vld [vmem:[%s269 + $0x150] sm:$0xff]
      %v320 = vld [vmem:[%s269 + $0x158] sm:$0xff]
      %v321 = vld [vmem:[%s269 + $0x160] sm:$0xff]
      %v322 = vld [vmem:[%s269 + $0x168] sm:$0xff]
      %v323 = vld [vmem:[%s269 + $0x170] sm:$0xff]
      %v324 = vld [vmem:[%s269 + $0x178] sm:$0xff]
      %v325 = vld [vmem:[%s269 + $0x180] sm:$0xff]
      %v326 = vld [vmem:[%s269 + $0x188] sm:$0xff]
      %v327 = vld [vmem:[%s269 + $0x190] sm:$0xff]
      %v328 = vld [vmem:[%s269 + $0x198] sm:$0xff]
      %v329 = vld [vmem:[%s269 + $0x1a0] sm:$0xff]
      %v330 = vld [vmem:[%s269 + $0x1a8] sm:$0xff]
      %v331 = vld [vmem:[%s269 + $0x1b0] sm:$0xff]
      %v332 = vld [vmem:[%s269 + $0x1b8] sm:$0xff]
      %v333 = vld [vmem:[%s269 + $0x1c0] sm:$0xff]
      %v334 = vld [vmem:[%s269 + $0x1c8] sm:$0xff]
      %v335 = vld [vmem:[%s269 + $0x1d0] sm:$0xff]
      %v336 = vld [vmem:[%s269 + $0x1d8] sm:$0xff]
      %v337 = vld [vmem:[%s269 + $0x1e0] sm:$0xff]
      %v338 = vld [vmem:[%s269 + $0x1e8] sm:$0xff]
      %v339 = vld [vmem:[%s269 + $0x1f0] sm:$0xff]
      %v340 = vld [vmem:[%s269 + $0x1f8] sm:$0xff]
      %v341 = vld [vmem:[%s1] sm:$0xff]
      %v342 = vld [vmem:[%s1 + $0x8] sm:$0xff]
      %v343 = vld [vmem:[%s1 + $0x10] sm:$0xff]
      %v344 = vld [vmem:[%s1 + $0x18] sm:$0xff]
      %v345 = vld [vmem:[%s1 + $0x20] sm:$0xf]
      %v346 = vld [vmem:[%s2] sm:$0x1]
      %v348 = vlaneseq
      %v349 = vshrl.u32 %v348, 7
      %v350 = vsub.s32 0, %v349
      %v351 = vrot.slane %v346, %v350
      %vm353 = vcmask 293888
      %v355 = vsel %vm353, %v277, 0
      %v358 = vsel %vm353, %v278, 0
      %v361 = vsel %vm353, %v279, 0
      %v364 = vsel %vm353, %v280, 0
      %v367 = vsel %vm353, %v281, 0
      %v370 = vsel %vm353, %v282, 0
      %v373 = vsel %vm353, %v283, 0
      %v376 = vsel %vm353, %v284, 0
      %v379 = vsel %vm353, %v285, 0
      %v382 = vsel %vm353, %v286, 0
      %v385 = vsel %vm353, %v287, 0
      %v388 = vsel %vm353, %v288, 0
      %v391 = vsel %vm353, %v289, 0
      %v394 = vsel %vm353, %v290, 0
      %v397 = vsel %vm353, %v291, 0
      %v400 = vsel %vm353, %v292, 0
      %v403 = vsel %vm353, %v293, 0
      %v406 = vsel %vm353, %v294, 0
      %v409 = vsel %vm353, %v295, 0
      %v412 = vsel %vm353, %v296, 0
      %v415 = vsel %vm353, %v297, 0
      %v418 = vsel %vm353, %v298, 0
      %v421 = vsel %vm353, %v299, 0
      %v424 = vsel %vm353, %v300, 0
      %v427 = vsel %vm353, %v301, 0
      %v430 = vsel %vm353, %v302, 0
      %v433 = vsel %vm353, %v303, 0
      %v436 = vsel %vm353, %v304, 0
      %v439 = vsel %vm353, %v305, 0
      %v442 = vsel %vm353, %v306, 0
      %v445 = vsel %vm353, %v307, 0
      %v448 = vsel %vm353, %v308, 0
      %v451 = vsel %vm353, %v309, 0
      %v454 = vsel %vm353, %v310, 0
      %v457 = vsel %vm353, %v311, 0
      %v460 = vsel %vm353, %v312, 0
      %v463 = vsel %vm353, %v313, 0
      %v466 = vsel %vm353, %v314, 0
      %v469 = vsel %vm353, %v315, 0
      %v472 = vsel %vm353, %v316, 0
      %v475 = vsel %vm353, %v317, 0
      %v478 = vsel %vm353, %v318, 0
      %v481 = vsel %vm353, %v319, 0
      %v484 = vsel %vm353, %v320, 0
      %v487 = vsel %vm353, %v321, 0
      %v490 = vsel %vm353, %v322, 0
      %v493 = vsel %vm353, %v323, 0
      %v496 = vsel %vm353, %v324, 0
      %v499 = vsel %vm353, %v325, 0
      %v502 = vsel %vm353, %v326, 0
      %v505 = vsel %vm353, %v327, 0
      %v508 = vsel %vm353, %v328, 0
      %v511 = vsel %vm353, %v329, 0
      %v514 = vsel %vm353, %v330, 0
      %v517 = vsel %vm353, %v331, 0
      %v520 = vsel %vm353, %v332, 0
      %v523 = vsel %vm353, %v333, 0
      %v526 = vsel %vm353, %v334, 0
      %v529 = vsel %vm353, %v335, 0
      %v532 = vsel %vm353, %v336, 0
      %v535 = vsel %vm353, %v337, 0
      %v538 = vsel %vm353, %v338, 0
      %v541 = vsel %vm353, %v339, 0
      %v544 = vsel %vm353, %v340, 0
      %vm546 = vcmask 1043456
      %v548 = vsel %vm546, %v345, 0
      %550 = vmatprep.subr.mxu0 0.0
      %551 = vmatpush1.msra.mxu0 0.0
      %552 = vmatprep.subr.mxu0 0.0
      %553 = vmatpush1.msra.mxu0 0.0
      %554 = vmatprep.subr.mxu0 0.0
      %555 = vmatpush1.msra.mxu0 0.0
      %556 = vmatprep.subr.mxu0 0.0
      %557 = vmatpush1.msra.mxu0 0.0
      %558 = vmatprep.subr.mxu0 0.0
      %559 = vmatpush1.msra.mxu0 0.0
      %560 = vmatprep.subr.mxu0 0.0
      %561 = vmatpush1.msra.mxu0 0.0
      %562 = vmatprep.subr.mxu0 0.0
      %563 = vmatpush1.msra.mxu0 0.0
      %564 = vmatprep.subr.mxu0 0.0
      %565 = vmatpush1.msra.mxu0 0.0
      %566 = vmatprep.subr.mxu0 0.0
      %567 = vmatpush1.msra.mxu0 0.0
      %568 = vmatprep.subr.mxu0 0.0
      %569 = vmatpush1.msra.mxu0 0.0
      %570 = vmatprep.subr.mxu0 0.0
      %571 = vmatpush1.msra.mxu0 0.0
      %572 = vmatprep.subr.mxu0 0.0
      %573 = vmatpush1.msra.mxu0 %v548
      %574 = vmatprep.subr.mxu0 0.0
      %575 = vmatpush1.msra.mxu0 %v344
      %576 = vmatprep.subr.mxu0 0.0
      %577 = vmatpush1.msra.mxu0 %v343
      %578 = vmatprep.subr.mxu0 0.0
      %579 = vmatpush1.msra.mxu0 %v342
      %580 = vmatprep.subr.mxu0 0.0
      %581 = vmatpush1.msra.mxu0 %v341
      %582 = vmatprep.subr.mxu0 0.0
      %583 = vmatpush2.msra.mxu0 0.0
      %584 = vmatprep.subr.mxu0 0.0
      %585 = vmatpush2.msra.mxu0 0.0
      %586 = vmatprep.subr.mxu0 0.0
      %587 = vmatpush2.msra.mxu0 0.0
      %588 = vmatprep.subr.mxu0 0.0
      %589 = vmatpush2.msra.mxu0 0.0
      %590 = vmatprep.subr.mxu0 0.0
      %591 = vmatpush2.msra.mxu0 0.0
      %592 = vmatprep.subr.mxu0 0.0
      %593 = vmatpush2.msra.mxu0 0.0
      %594 = vmatprep.subr.mxu0 0.0
      %595 = vmatpush2.msra.mxu0 0.0
      %596 = vmatprep.subr.mxu0 0.0
      %597 = vmatpush2.msra.mxu0 0.0
      %598 = vmatprep.subr.mxu0 0.0
      %599 = vmatpush2.msra.mxu0 0.0
      %600 = vmatprep.subr.mxu0 0.0
      %601 = vmatpush2.msra.mxu0 0.0
      %602 = vmatprep.subr.mxu0 0.0
      %603 = vmatpush2.msra.mxu0 0.0
      %604 = vmatprep.subr.mxu0 0.0
      %605 = vmatpush2.msra.mxu0 0.0
      %606 = vmatprep.subr.mxu0 0.0
      %607 = vmatpush2.msra.mxu0 0.0
      %608 = vmatprep.subr.mxu0 0.0
      %609 = vmatpush2.msra.mxu0 0.0
      %610 = vmatprep.subr.mxu0 0.0
      %611 = vmatpush2.msra.mxu0 0.0
      %612 = vmatprep.subr.mxu0 0.0
      %613 = vmatpush2.msra.mxu0 0.0
      %614 = vmatprep.mubr.f32.mxu0 0.0
      %615 = vmatmul.mubr.f32.gmra.mxu0 %v355
      %v616 = vpop.f32.mrf.mxu0
      %v617 = vadd.f32 %v351, %v616
      %v618 = vpop.f32.mrf.mxu0
      %619 = vmatprep.mubr.f32.mxu0 0.0
      %620 = vmatmul.mubr.f32.gmra.mxu0 %v358
      %v621 = vpop.f32.mrf.mxu0
      %v622 = vadd.f32 %v351, %v621
      %v623 = vpop.f32.mrf.mxu0
      %624 = vmatprep.mubr.f32.mxu0 0.0
      %625 = vmatmul.mubr.f32.gmra.mxu0 %v361
      %v626 = vpop.f32.mrf.mxu0
      %v627 = vadd.f32 %v351, %v626
      %v628 = vpop.f32.mrf.mxu0
      %629 = vmatprep.mubr.f32.mxu0 0.0
      %630 = vmatmul.mubr.f32.gmra.mxu0 %v364
      %v631 = vpop.f32.mrf.mxu0
      %v632 = vadd.f32 %v351, %v631
      %v633 = vpop.f32.mrf.mxu0
      %634 = vmatprep.mubr.f32.mxu0 0.0
      %635 = vmatmul.mubr.f32.gmra.mxu0 %v367
      %v636 = vpop.f32.mrf.mxu0
      %v637 = vadd.f32 %v351, %v636
      %v638 = vpop.f32.mrf.mxu0
      %639 = vmatprep.mubr.f32.mxu0 0.0
      %640 = vmatmul.mubr.f32.gmra.mxu0 %v370
      %v641 = vpop.f32.mrf.mxu0
      %v642 = vadd.f32 %v351, %v641
      %v643 = vpop.f32.mrf.mxu0
      %644 = vmatprep.mubr.f32.mxu0 0.0
      %645 = vmatmul.mubr.f32.gmra.mxu0 %v373
      %v646 = vpop.f32.mrf.mxu0
      %v647 = vadd.f32 %v351, %v646
      %v648 = vpop.f32.mrf.mxu0
      %649 = vmatprep.mubr.f32.mxu0 0.0
      %650 = vmatmul.mubr.f32.gmra.mxu0 %v376
      %v651 = vpop.f32.mrf.mxu0
      %v652 = vadd.f32 %v351, %v651
      %v653 = vpop.f32.mrf.mxu0
      %654 = vmatprep.mubr.f32.mxu0 0.0
      %655 = vmatmul.mubr.f32.gmra.mxu0 %v379
      %v656 = vpop.f32.mrf.mxu0
      %v657 = vadd.f32 %v351, %v656
      %v658 = vpop.f32.mrf.mxu0
      %659 = vmatprep.mubr.f32.mxu0 0.0
      %660 = vmatmul.mubr.f32.gmra.mxu0 %v382
      %v661 = vpop.f32.mrf.mxu0
      %v662 = vadd.f32 %v351, %v661
      %v663 = vpop.f32.mrf.mxu0
      %664 = vmatprep.mubr.f32.mxu0 0.0
      %665 = vmatmul.mubr.f32.gmra.mxu0 %v385
      %v666 = vpop.f32.mrf.mxu0
      %v667 = vadd.f32 %v351, %v666
      %v668 = vpop.f32.mrf.mxu0
      %669 = vmatprep.mubr.f32.mxu0 0.0
      %670 = vmatmul.mubr.f32.gmra.mxu0 %v388
      %v671 = vpop.f32.mrf.mxu0
      %v672 = vadd.f32 %v351, %v671
      %v673 = vpop.f32.mrf.mxu0
      %674 = vmatprep.mubr.f32.mxu0 0.0
      %675 = vmatmul.mubr.f32.gmra.mxu0 %v391
      %v676 = vpop.f32.mrf.mxu0
      %v677 = vadd.f32 %v351, %v676
      %v678 = vpop.f32.mrf.mxu0
      %679 = vmatprep.mubr.f32.mxu0 0.0
      %680 = vmatmul.mubr.f32.gmra.mxu0 %v394
      %v681 = vpop.f32.mrf.mxu0
      %v682 = vadd.f32 %v351, %v681
      %v683 = vpop.f32.mrf.mxu0
      %684 = vmatprep.mubr.f32.mxu0 0.0
      %685 = vmatmul.mubr.f32.gmra.mxu0 %v397
      %v686 = vpop.f32.mrf.mxu0
      %v687 = vadd.f32 %v351, %v686
      %v688 = vpop.f32.mrf.mxu0
      %689 = vmatprep.mubr.f32.mxu0 0.0
      %690 = vmatmul.mubr.f32.gmra.mxu0 %v400
      %v691 = vpop.f32.mrf.mxu0
      %v692 = vadd.f32 %v351, %v691
      %v693 = vpop.f32.mrf.mxu0
      %694 = vmatprep.mubr.f32.mxu0 0.0
      %695 = vmatmul.mubr.f32.gmra.mxu0 %v403
      %v696 = vpop.f32.mrf.mxu0
      %v697 = vadd.f32 %v351, %v696
      %v698 = vpop.f32.mrf.mxu0
      %699 = vmatprep.mubr.f32.mxu0 0.0
      %700 = vmatmul.mubr.f32.gmra.mxu0 %v406
      %v701 = vpop.f32.mrf.mxu0
      %v702 = vadd.f32 %v351, %v701
      %v703 = vpop.f32.mrf.mxu0
      %704 = vmatprep.mubr.f32.mxu0 0.0
      %705 = vmatmul.mubr.f32.gmra.mxu0 %v409
      %v706 = vpop.f32.mrf.mxu0
      %v707 = vadd.f32 %v351, %v706
      %v708 = vpop.f32.mrf.mxu0
      %709 = vmatprep.mubr.f32.mxu0 0.0
      %710 = vmatmul.mubr.f32.gmra.mxu0 %v412
      %v711 = vpop.f32.mrf.mxu0
      %v712 = vadd.f32 %v351, %v711
      %v713 = vpop.f32.mrf.mxu0
      %714 = vmatprep.mubr.f32.mxu0 0.0
      %715 = vmatmul.mubr.f32.gmra.mxu0 %v415
      %v716 = vpop.f32.mrf.mxu0
      %v717 = vadd.f32 %v351, %v716
      %v718 = vpop.f32.mrf.mxu0
      %719 = vmatprep.mubr.f32.mxu0 0.0
      %720 = vmatmul.mubr.f32.gmra.mxu0 %v418
      %v721 = vpop.f32.mrf.mxu0
      %v722 = vadd.f32 %v351, %v721
      %v723 = vpop.f32.mrf.mxu0
      %724 = vmatprep.mubr.f32.mxu0 0.0
      %725 = vmatmul.mubr.f32.gmra.mxu0 %v421
      %v726 = vpop.f32.mrf.mxu0
      %v727 = vadd.f32 %v351, %v726
      %v728 = vpop.f32.mrf.mxu0
      %729 = vmatprep.mubr.f32.mxu0 0.0
      %730 = vmatmul.mubr.f32.gmra.mxu0 %v424
      %v731 = vpop.f32.mrf.mxu0
      %v732 = vadd.f32 %v351, %v731
      %v733 = vpop.f32.mrf.mxu0
      %734 = vmatprep.mubr.f32.mxu0 0.0
      %735 = vmatmul.mubr.f32.gmra.mxu0 %v427
      %v736 = vpop.f32.mrf.mxu0
      %v737 = vadd.f32 %v351, %v736
      %v738 = vpop.f32.mrf.mxu0
      %739 = vmatprep.mubr.f32.mxu0 0.0
      %740 = vmatmul.mubr.f32.gmra.mxu0 %v430
      %v741 = vpop.f32.mrf.mxu0
      %v742 = vadd.f32 %v351, %v741
      %v743 = vpop.f32.mrf.mxu0
      %744 = vmatprep.mubr.f32.mxu0 0.0
      %745 = vmatmul.mubr.f32.gmra.mxu0 %v433
      %v746 = vpop.f32.mrf.mxu0
      %v747 = vadd.f32 %v351, %v746
      %v748 = vpop.f32.mrf.mxu0
      %749 = vmatprep.mubr.f32.mxu0 0.0
      %750 = vmatmul.mubr.f32.gmra.mxu0 %v436
      %v751 = vpop.f32.mrf.mxu0
      %v752 = vadd.f32 %v351, %v751
      %v753 = vpop.f32.mrf.mxu0
      %754 = vmatprep.mubr.f32.mxu0 0.0
      %755 = vmatmul.mubr.f32.gmra.mxu0 %v439
      %v756 = vpop.f32.mrf.mxu0
      %v757 = vadd.f32 %v351, %v756
      %v758 = vpop.f32.mrf.mxu0
      %759 = vmatprep.mubr.f32.mxu0 0.0
      %760 = vmatmul.mubr.f32.gmra.mxu0 %v442
      %v761 = vpop.f32.mrf.mxu0
      %v762 = vadd.f32 %v351, %v761
      %v763 = vpop.f32.mrf.mxu0
      %764 = vmatprep.mubr.f32.mxu0 0.0
      %765 = vmatmul.mubr.f32.gmra.mxu0 %v445
      %v766 = vpop.f32.mrf.mxu0
      %v767 = vadd.f32 %v351, %v766
      %v768 = vpop.f32.mrf.mxu0
      %769 = vmatprep.mubr.f32.mxu0 0.0
      %770 = vmatmul.mubr.f32.gmra.mxu0 %v448
      %v771 = vpop.f32.mrf.mxu0
      %v772 = vadd.f32 %v351, %v771
      %v773 = vpop.f32.mrf.mxu0
      %774 = vmatprep.mubr.f32.mxu0 0.0
      %775 = vmatmul.mubr.f32.gmra.mxu0 %v451
      %v776 = vpop.f32.mrf.mxu0
      %v777 = vadd.f32 %v351, %v776
      %v778 = vpop.f32.mrf.mxu0
      %779 = vmatprep.mubr.f32.mxu0 0.0
      %780 = vmatmul.mubr.f32.gmra.mxu0 %v454
      %v781 = vpop.f32.mrf.mxu0
      %v782 = vadd.f32 %v351, %v781
      %v783 = vpop.f32.mrf.mxu0
      %784 = vmatprep.mubr.f32.mxu0 0.0
      %785 = vmatmul.mubr.f32.gmra.mxu0 %v457
      %v786 = vpop.f32.mrf.mxu0
      %v787 = vadd.f32 %v351, %v786
      %v788 = vpop.f32.mrf.mxu0
      %789 = vmatprep.mubr.f32.mxu0 0.0
      %790 = vmatmul.mubr.f32.gmra.mxu0 %v460
      %v791 = vpop.f32.mrf.mxu0
      %v792 = vadd.f32 %v351, %v791
      %v793 = vpop.f32.mrf.mxu0
      %794 = vmatprep.mubr.f32.mxu0 0.0
      %795 = vmatmul.mubr.f32.gmra.mxu0 %v463
      %v796 = vpop.f32.mrf.mxu0
      %v797 = vadd.f32 %v351, %v796
      %v798 = vpop.f32.mrf.mxu0
      %799 = vmatprep.mubr.f32.mxu0 0.0
      %800 = vmatmul.mubr.f32.gmra.mxu0 %v466
      %v801 = vpop.f32.mrf.mxu0
      %v802 = vadd.f32 %v351, %v801
      %v803 = vpop.f32.mrf.mxu0
      %804 = vmatprep.mubr.f32.mxu0 0.0
      %805 = vmatmul.mubr.f32.gmra.mxu0 %v469
      %v806 = vpop.f32.mrf.mxu0
      %v807 = vadd.f32 %v351, %v806
      %v808 = vpop.f32.mrf.mxu0
      %809 = vmatprep.mubr.f32.mxu0 0.0
      %810 = vmatmul.mubr.f32.gmra.mxu0 %v472
      %v811 = vpop.f32.mrf.mxu0
      %v812 = vadd.f32 %v351, %v811
      %v813 = vpop.f32.mrf.mxu0
      %814 = vmatprep.mubr.f32.mxu0 0.0
      %815 = vmatmul.mubr.f32.gmra.mxu0 %v475
      %v816 = vpop.f32.mrf.mxu0
      %v817 = vadd.f32 %v351, %v816
      %v818 = vpop.f32.mrf.mxu0
      %819 = vmatprep.mubr.f32.mxu0 0.0
      %820 = vmatmul.mubr.f32.gmra.mxu0 %v478
      %v821 = vpop.f32.mrf.mxu0
      %v822 = vadd.f32 %v351, %v821
      %v823 = vpop.f32.mrf.mxu0
      %824 = vmatprep.mubr.f32.mxu0 0.0
      %825 = vmatmul.mubr.f32.gmra.mxu0 %v481
      %v826 = vpop.f32.mrf.mxu0
      %v827 = vadd.f32 %v351, %v826
      %v828 = vpop.f32.mrf.mxu0
      %829 = vmatprep.mubr.f32.mxu0 0.0
      %830 = vmatmul.mubr.f32.gmra.mxu0 %v484
      %v831 = vpop.f32.mrf.mxu0
      %v832 = vadd.f32 %v351, %v831
      %v833 = vpop.f32.mrf.mxu0
      %834 = vmatprep.mubr.f32.mxu0 0.0
      %835 = vmatmul.mubr.f32.gmra.mxu0 %v487
      %v836 = vpop.f32.mrf.mxu0
      %v837 = vadd.f32 %v351, %v836
      %v838 = vpop.f32.mrf.mxu0
      %839 = vmatprep.mubr.f32.mxu0 0.0
      %840 = vmatmul.mubr.f32.gmra.mxu0 %v490
      %v841 = vpop.f32.mrf.mxu0
      %v842 = vadd.f32 %v351, %v841
      %v843 = vpop.f32.mrf.mxu0
      %844 = vmatprep.mubr.f32.mxu0 0.0
      %845 = vmatmul.mubr.f32.gmra.mxu0 %v493
      %v846 = vpop.f32.mrf.mxu0
      %v847 = vadd.f32 %v351, %v846
      %v848 = vpop.f32.mrf.mxu0
      %849 = vmatprep.mubr.f32.mxu0 0.0
      %850 = vmatmul.mubr.f32.gmra.mxu0 %v496
      %v851 = vpop.f32.mrf.mxu0
      %v852 = vadd.f32 %v351, %v851
      %v853 = vpop.f32.mrf.mxu0
      %854 = vmatprep.mubr.f32.mxu0 0.0
      %855 = vmatmul.mubr.f32.gmra.mxu0 %v499
      %v856 = vpop.f32.mrf.mxu0
      %v857 = vadd.f32 %v351, %v856
      %v858 = vpop.f32.mrf.mxu0
      %859 = vmatprep.mubr.f32.mxu0 0.0
      %860 = vmatmul.mubr.f32.gmra.mxu0 %v502
      %v861 = vpop.f32.mrf.mxu0
      %v862 = vadd.f32 %v351, %v861
      %v863 = vpop.f32.mrf.mxu0
      %864 = vmatprep.mubr.f32.mxu0 0.0
      %865 = vmatmul.mubr.f32.gmra.mxu0 %v505
      %v866 = vpop.f32.mrf.mxu0
      %v867 = vadd.f32 %v351, %v866
      %v868 = vpop.f32.mrf.mxu0
      %869 = vmatprep.mubr.f32.mxu0 0.0
      %870 = vmatmul.mubr.f32.gmra.mxu0 %v508
      %v871 = vpop.f32.mrf.mxu0
      %v872 = vadd.f32 %v351, %v871
      %v873 = vpop.f32.mrf.mxu0
      %874 = vmatprep.mubr.f32.mxu0 0.0
      %875 = vmatmul.mubr.f32.gmra.mxu0 %v511
      %v876 = vpop.f32.mrf.mxu0
      %v877 = vadd.f32 %v351, %v876
      %v878 = vpop.f32.mrf.mxu0
      %879 = vmatprep.mubr.f32.mxu0 0.0
      %880 = vmatmul.mubr.f32.gmra.mxu0 %v514
      %v881 = vpop.f32.mrf.mxu0
      %v882 = vadd.f32 %v351, %v881
      %v883 = vpop.f32.mrf.mxu0
      %884 = vmatprep.mubr.f32.mxu0 0.0
      %885 = vmatmul.mubr.f32.gmra.mxu0 %v517
      %v886 = vpop.f32.mrf.mxu0
      %v887 = vadd.f32 %v351, %v886
      %v888 = vpop.f32.mrf.mxu0
      %889 = vmatprep.mubr.f32.mxu0 0.0
      %890 = vmatmul.mubr.f32.gmra.mxu0 %v520
      %v891 = vpop.f32.mrf.mxu0
      %v892 = vadd.f32 %v351, %v891
      %v893 = vpop.f32.mrf.mxu0
      %894 = vmatprep.mubr.f32.mxu0 0.0
      %895 = vmatmul.mubr.f32.gmra.mxu0 %v523
      %v896 = vpop.f32.mrf.mxu0
      %v897 = vadd.f32 %v351, %v896
      %v898 = vpop.f32.mrf.mxu0
      %899 = vmatprep.mubr.f32.mxu0 0.0
      %900 = vmatmul.mubr.f32.gmra.mxu0 %v526
      %v901 = vpop.f32.mrf.mxu0
      %v902 = vadd.f32 %v351, %v901
      %v903 = vpop.f32.mrf.mxu0
      %904 = vmatprep.mubr.f32.mxu0 0.0
      %905 = vmatmul.mubr.f32.gmra.mxu0 %v529
      %v906 = vpop.f32.mrf.mxu0
      %v907 = vadd.f32 %v351, %v906
      %v908 = vpop.f32.mrf.mxu0
      %909 = vmatprep.mubr.f32.mxu0 0.0
      %910 = vmatmul.mubr.f32.gmra.mxu0 %v532
      %v911 = vpop.f32.mrf.mxu0
      %v912 = vadd.f32 %v351, %v911
      %v913 = vpop.f32.mrf.mxu0
      %914 = vmatprep.mubr.f32.mxu0 0.0
      %915 = vmatmul.mubr.f32.gmra.mxu0 %v535
      %v916 = vpop.f32.mrf.mxu0
      %v917 = vadd.f32 %v351, %v916
      %v918 = vpop.f32.mrf.mxu0
      %919 = vmatprep.mubr.f32.mxu0 0.0
      %920 = vmatmul.mubr.f32.gmra.mxu0 %v538
      %v921 = vpop.f32.mrf.mxu0
      %v922 = vadd.f32 %v351, %v921
      %v923 = vpop.f32.mrf.mxu0
      %924 = vmatprep.mubr.f32.mxu0 0.0
      %925 = vmatmul.mubr.f32.gmra.mxu0 %v541
      %v926 = vpop.f32.mrf.mxu0
      %v927 = vadd.f32 %v351, %v926
      %v928 = vpop.f32.mrf.mxu0
      %929 = vmatprep.mubr.f32.mxu0 0.0
      %930 = vmatmul.mubr.f32.gmra.mxu0 %v544
      %v931 = vpop.f32.mrf.mxu0
      %v932 = vadd.f32 %v351, %v931
      %v933 = vpop.f32.mrf.mxu0
      %934 = vdwg.mxu0
      %vm935 = vcmask 113664
      %936 = vst.msk [vmem:[%s275] sm:$0xff] %vm935, %v617
      %937 = vst.msk [vmem:[%s275 + $0x8] sm:$0xff] %vm935, %v622
      %938 = vst.msk [vmem:[%s275 + $0x10] sm:$0xff] %vm935, %v627
      %939 = vst.msk [vmem:[%s275 + $0x18] sm:$0xff] %vm935, %v632
      %940 = vst.msk [vmem:[%s275 + $0x20] sm:$0xff] %vm935, %v637
      %941 = vst.msk [vmem:[%s275 + $0x28] sm:$0xff] %vm935, %v642
      %942 = vst.msk [vmem:[%s275 + $0x30] sm:$0xff] %vm935, %v647
      %943 = vst.msk [vmem:[%s275 + $0x38] sm:$0xff] %vm935, %v652
      %944 = vst.msk [vmem:[%s275 + $0x40] sm:$0xff] %vm935, %v657
      %945 = vst.msk [vmem:[%s275 + $0x48] sm:$0xff] %vm935, %v662
      %946 = vst.msk [vmem:[%s275 + $0x50] sm:$0xff] %vm935, %v667
      %947 = vst.msk [vmem:[%s275 + $0x58] sm:$0xff] %vm935, %v672
      %948 = vst.msk [vmem:[%s275 + $0x60] sm:$0xff] %vm935, %v677
      %949 = vst.msk [vmem:[%s275 + $0x68] sm:$0xff] %vm935, %v682
      %950 = vst.msk [vmem:[%s275 + $0x70] sm:$0xff] %vm935, %v687
      %951 = vst.msk [vmem:[%s275 + $0x78] sm:$0xff] %vm935, %v692
      %952 = vst.msk [vmem:[%s275 + $0x80] sm:$0xff] %vm935, %v697
      %953 = vst.msk [vmem:[%s275 + $0x88] sm:$0xff] %vm935, %v702
      %954 = vst.msk [vmem:[%s275 + $0x90] sm:$0xff] %vm935, %v707
      %955 = vst.msk [vmem:[%s275 + $0x98] sm:$0xff] %vm935, %v712
      %956 = vst.msk [vmem:[%s275 + $0xa0] sm:$0xff] %vm935, %v717
      %957 = vst.msk [vmem:[%s275 + $0xa8] sm:$0xff] %vm935, %v722
      %958 = vst.msk [vmem:[%s275 + $0xb0] sm:$0xff] %vm935, %v727
      %959 = vst.msk [vmem:[%s275 + $0xb8] sm:$0xff] %vm935, %v732
      %960 = vst.msk [vmem:[%s275 + $0xc0] sm:$0xff] %vm935, %v737
      %961 = vst.msk [vmem:[%s275 + $0xc8] sm:$0xff] %vm935, %v742
      %962 = vst.msk [vmem:[%s275 + $0xd0] sm:$0xff] %vm935, %v747
      %963 = vst.msk [vmem:[%s275 + $0xd8] sm:$0xff] %vm935, %v752
      %964 = vst.msk [vmem:[%s275 + $0xe0] sm:$0xff] %vm935, %v757
      %965 = vst.msk [vmem:[%s275 + $0xe8] sm:$0xff] %vm935, %v762
      %966 = vst.msk [vmem:[%s275 + $0xf0] sm:$0xff] %vm935, %v767
      %967 = vst.msk [vmem:[%s275 + $0xf8] sm:$0xff] %vm935, %v772
      %968 = vst.msk [vmem:[%s275 + $0x100] sm:$0xff] %vm935, %v777
      %969 = vst.msk [vmem:[%s275 + $0x108] sm:$0xff] %vm935, %v782
      %970 = vst.msk [vmem:[%s275 + $0x110] sm:$0xff] %vm935, %v787
      %971 = vst.msk [vmem:[%s275 + $0x118] sm:$0xff] %vm935, %v792
      %972 = vst.msk [vmem:[%s275 + $0x120] sm:$0xff] %vm935, %v797
      %973 = vst.msk [vmem:[%s275 + $0x128] sm:$0xff] %vm935, %v802
      %974 = vst.msk [vmem:[%s275 + $0x130] sm:$0xff] %vm935, %v807
      %975 = vst.msk [vmem:[%s275 + $0x138] sm:$0xff] %vm935, %v812
      %976 = vst.msk [vmem:[%s275 + $0x140] sm:$0xff] %vm935, %v817
      %977 = vst.msk [vmem:[%s275 + $0x148] sm:$0xff] %vm935, %v822
      %978 = vst.msk [vmem:[%s275 + $0x150] sm:$0xff] %vm935, %v827
      %979 = vst.msk [vmem:[%s275 + $0x158] sm:$0xff] %vm935, %v832
      %980 = vst.msk [vmem:[%s275 + $0x160] sm:$0xff] %vm935, %v837
      %981 = vst.msk [vmem:[%s275 + $0x168] sm:$0xff] %vm935, %v842
      %982 = vst.msk [vmem:[%s275 + $0x170] sm:$0xff] %vm935, %v847
      %983 = vst.msk [vmem:[%s275 + $0x178] sm:$0xff] %vm935, %v852
      %984 = vst.msk [vmem:[%s275 + $0x180] sm:$0xff] %vm935, %v857
      %985 = vst.msk [vmem:[%s275 + $0x188] sm:$0xff] %vm935, %v862
      %986 = vst.msk [vmem:[%s275 + $0x190] sm:$0xff] %vm935, %v867
      %987 = vst.msk [vmem:[%s275 + $0x198] sm:$0xff] %vm935, %v872
      %988 = vst.msk [vmem:[%s275 + $0x1a0] sm:$0xff] %vm935, %v877
      %989 = vst.msk [vmem:[%s275 + $0x1a8] sm:$0xff] %vm935, %v882
      %990 = vst.msk [vmem:[%s275 + $0x1b0] sm:$0xff] %vm935, %v887
      %991 = vst.msk [vmem:[%s275 + $0x1b8] sm:$0xff] %vm935, %v892
      %992 = vst.msk [vmem:[%s275 + $0x1c0] sm:$0xff] %vm935, %v897
      %993 = vst.msk [vmem:[%s275 + $0x1c8] sm:$0xff] %vm935, %v902
      %994 = vst.msk [vmem:[%s275 + $0x1d0] sm:$0xff] %vm935, %v907
      %995 = vst.msk [vmem:[%s275 + $0x1d8] sm:$0xff] %vm935, %v912
      %996 = vst.msk [vmem:[%s275 + $0x1e0] sm:$0xff] %vm935, %v917
      %997 = vst.msk [vmem:[%s275 + $0x1e8] sm:$0xff] %vm935, %v922
      %998 = vst.msk [vmem:[%s275 + $0x1f0] sm:$0xff] %vm935, %v927
      %999 = vst.msk [vmem:[%s275 + $0x1f8] sm:$0xff] %vm935, %v932
      %p1000 = scmp.eq.s32.totalorder %s19, 0
      // Predicated region
      $region41: #{_lambda_.18} parent=39 // pred_check
        %p1001 = pneg %p1000
      $region42: #{_lambda_.18} parent=39 // pred_check_branch
        %1003 = sbr.rel (%p1001) target = $region44
      $region43: #{_lambda_.18} parent=39 // pred_region
        %vm1004 = vcmask 106496
        %1005 = vst.msk [vmem:[%s6] sm:$0x1] %vm1004, 0.0
        %1006 = vst.msk [vmem:[%s7] sm:$0x1] %vm1004, 0.0
      $region44: #{_lambda_.18} parent=39 // pred_fallthru
        _
      %v1007 = vld [vmem:[%s6] sm:$0x1]
      %v1008 = vsel %vm935, %v617, 0.0
      %v1009 = vsel %vm935, %v622, 0.0
      %v1010 = vadd.f32 %v1008, %v1009
      %v1011 = vsel %vm935, %v627, 0.0
      %v1012 = vadd.f32 %v1010, %v1011
      %v1013 = vsel %vm935, %v632, 0.0
      %v1014 = vadd.f32 %v1012, %v1013
      %v1015 = vsel %vm935, %v637, 0.0
      %v1016 = vadd.f32 %v1014, %v1015
      %v1017 = vsel %vm935, %v642, 0.0
      %v1018 = vadd.f32 %v1016, %v1017
      %v1019 = vsel %vm935, %v647, 0.0
      %v1020 = vadd.f32 %v1018, %v1019
      %v1021 = vsel %vm935, %v652, 0.0
      %v1022 = vadd.f32 %v1020, %v1021
      %v1023 = vsel %vm935, %v657, 0.0
      %v1024 = vadd.f32 %v1022, %v1023
      %v1025 = vsel %vm935, %v662, 0.0
      %v1026 = vadd.f32 %v1024, %v1025
      %v1027 = vsel %vm935, %v667, 0.0
      %v1028 = vadd.f32 %v1026, %v1027
      %v1029 = vsel %vm935, %v672, 0.0
      %v1030 = vadd.f32 %v1028, %v1029
      %v1031 = vsel %vm935, %v677, 0.0
      %v1032 = vadd.f32 %v1030, %v1031
      %v1033 = vsel %vm935, %v682, 0.0
      %v1034 = vadd.f32 %v1032, %v1033
      %v1035 = vsel %vm935, %v687, 0.0
      %v1036 = vadd.f32 %v1034, %v1035
      %v1037 = vsel %vm935, %v692, 0.0
      %v1038 = vadd.f32 %v1036, %v1037
      %v1039 = vsel %vm935, %v697, 0.0
      %v1040 = vadd.f32 %v1038, %v1039
      %v1041 = vsel %vm935, %v702, 0.0
      %v1042 = vadd.f32 %v1040, %v1041
      %v1043 = vsel %vm935, %v707, 0.0
      %v1044 = vadd.f32 %v1042, %v1043
      %v1045 = vsel %vm935, %v712, 0.0
      %v1046 = vadd.f32 %v1044, %v1045
      %v1047 = vsel %vm935, %v717, 0.0
      %v1048 = vadd.f32 %v1046, %v1047
      %v1049 = vsel %vm935, %v722, 0.0
      %v1050 = vadd.f32 %v1048, %v1049
      %v1051 = vsel %vm935, %v727, 0.0
      %v1052 = vadd.f32 %v1050, %v1051
      %v1053 = vsel %vm935, %v732, 0.0
      %v1054 = vadd.f32 %v1052, %v1053
      %v1055 = vsel %vm935, %v737, 0.0
      %v1056 = vadd.f32 %v1054, %v1055
      %v1057 = vsel %vm935, %v742, 0.0
      %v1058 = vadd.f32 %v1056, %v1057
      %v1059 = vsel %vm935, %v747, 0.0
      %v1060 = vadd.f32 %v1058, %v1059
      %v1061 = vsel %vm935, %v752, 0.0
      %v1062 = vadd.f32 %v1060, %v1061
      %v1063 = vsel %vm935, %v757, 0.0
      %v1064 = vadd.f32 %v1062, %v1063
      %v1065 = vsel %vm935, %v762, 0.0
      %v1066 = vadd.f32 %v1064, %v1065
      %v1067 = vsel %vm935, %v767, 0.0
      %v1068 = vadd.f32 %v1066, %v1067
      %v1069 = vsel %vm935, %v772, 0.0
      %v1070 = vadd.f32 %v1068, %v1069
      %v1071 = vsel %vm935, %v777, 0.0
      %v1072 = vadd.f32 %v1070, %v1071
      %v1073 = vsel %vm935, %v782, 0.0
      %v1074 = vadd.f32 %v1072, %v1073
      %v1075 = vsel %vm935, %v787, 0.0
      %v1076 = vadd.f32 %v1074, %v1075
      %v1077 = vsel %vm935, %v792, 0.0
      %v1078 = vadd.f32 %v1076, %v1077
      %v1079 = vsel %vm935, %v797, 0.0
      %v1080 = vadd.f32 %v1078, %v1079
      %v1081 = vsel %vm935, %v802, 0.0
      %v1082 = vadd.f32 %v1080, %v1081
      %v1083 = vsel %vm935, %v807, 0.0
      %v1084 = vadd.f32 %v1082, %v1083
      %v1085 = vsel %vm935, %v812, 0.0
      %v1086 = vadd.f32 %v1084, %v1085
      %v1087 = vsel %vm935, %v817, 0.0
      %v1088 = vadd.f32 %v1086, %v1087
      %v1089 = vsel %vm935, %v822, 0.0
      %v1090 = vadd.f32 %v1088, %v1089
      %v1091 = vsel %vm935, %v827, 0.0
      %v1092 = vadd.f32 %v1090, %v1091
      %v1093 = vsel %vm935, %v832, 0.0
      %v1094 = vadd.f32 %v1092, %v1093
      %v1095 = vsel %vm935, %v837, 0.0
      %v1096 = vadd.f32 %v1094, %v1095
      %v1097 = vsel %vm935, %v842, 0.0
      %v1098 = vadd.f32 %v1096, %v1097
      %v1099 = vsel %vm935, %v847, 0.0
      %v1100 = vadd.f32 %v1098, %v1099
      %v1101 = vsel %vm935, %v852, 0.0
      %v1102 = vadd.f32 %v1100, %v1101
      %v1103 = vsel %vm935, %v857, 0.0
      %v1104 = vadd.f32 %v1102, %v1103
      %v1105 = vsel %vm935, %v862, 0.0
      %v1106 = vadd.f32 %v1104, %v1105
      %v1107 = vsel %vm935, %v867, 0.0
      %v1108 = vadd.f32 %v1106, %v1107
      %v1109 = vsel %vm935, %v872, 0.0
      %v1110 = vadd.f32 %v1108, %v1109
      %v1111 = vsel %vm935, %v877, 0.0
      %v1112 = vadd.f32 %v1110, %v1111
      %v1113 = vsel %vm935, %v882, 0.0
      %v1114 = vadd.f32 %v1112, %v1113
      %v1115 = vsel %vm935, %v887, 0.0
      %v1116 = vadd.f32 %v1114, %v1115
      %v1117 = vsel %vm935, %v892, 0.0
      %v1118 = vadd.f32 %v1116, %v1117
      %v1119 = vsel %vm935, %v897, 0.0
      %v1120 = vadd.f32 %v1118, %v1119
      %v1121 = vsel %vm935, %v902, 0.0
      %v1122 = vadd.f32 %v1120, %v1121
      %v1123 = vsel %vm935, %v907, 0.0
      %v1124 = vadd.f32 %v1122, %v1123
      %v1125 = vsel %vm935, %v912, 0.0
      %v1126 = vadd.f32 %v1124, %v1125
      %v1127 = vsel %vm935, %v917, 0.0
      %v1128 = vadd.f32 %v1126, %v1127
      %v1129 = vsel %vm935, %v922, 0.0
      %v1130 = vadd.f32 %v1128, %v1129
      %v1131 = vsel %vm935, %v927, 0.0
      %v1132 = vadd.f32 %v1130, %v1131
      %v1133 = vsel %vm935, %v932, 0.0
      %v1134 = vadd.f32 %v1132, %v1133
      %v1135 = vrot.slane %v1134, 4
      %v1136 = vadd.f32 %v1134, %v1135
      %v1137 = vrot.slane %v1136, 2
      %v1138 = vadd.f32 %v1136, %v1137
      %v1139 = vrot.slane %v1138, 1
      %v1140 = vadd.f32 %v1138, %v1139
      %v1141 = vadd.f32 %v1007, %v1140
      %vm1142 = vcmask 106496
      %1143 = vst.msk [vmem:[%s6] sm:$0x1] %vm1142, %v1141
      %v1144 = vld [vmem:[%s7] sm:$0x1]
      %v1145 = vmul.f32 %v617, %v617
      %v1146 = vmul.f32 %v622, %v622
      %v1147 = vmul.f32 %v627, %v627
      %v1148 = vmul.f32 %v632, %v632
      %v1149 = vmul.f32 %v637, %v637
      %v1150 = vmul.f32 %v642, %v642
      %v1151 = vmul.f32 %v647, %v647
      %v1152 = vmul.f32 %v652, %v652
      %v1153 = vmul.f32 %v657, %v657
      %v1154 = vmul.f32 %v662, %v662
      %v1155 = vmul.f32 %v667, %v667
      %v1156 = vmul.f32 %v672, %v672
      %v1157 = vmul.f32 %v677, %v677
      %v1158 = vmul.f32 %v682, %v682
      %v1159 = vmul.f32 %v687, %v687
      %v1160 = vmul.f32 %v692, %v692
      %v1161 = vmul.f32 %v697, %v697
      %v1162 = vmul.f32 %v702, %v702
      %v1163 = vmul.f32 %v707, %v707
      %v1164 = vmul.f32 %v712, %v712
      %v1165 = vmul.f32 %v717, %v717
      %v1166 = vmul.f32 %v722, %v722
      %v1167 = vmul.f32 %v727, %v727
      %v1168 = vmul.f32 %v732, %v732
      %v1169 = vmul.f32 %v737, %v737
      %v1170 = vmul.f32 %v742, %v742
      %v1171 = vmul.f32 %v747, %v747
      %v1172 = vmul.f32 %v752, %v752
      %v1173 = vmul.f32 %v757, %v757
      %v1174 = vmul.f32 %v762, %v762
      %v1175 = vmul.f32 %v767, %v767
      %v1176 = vmul.f32 %v772, %v772
      %v1177 = vmul.f32 %v777, %v777
      %v1178 = vmul.f32 %v782, %v782
      %v1179 = vmul.f32 %v787, %v787
      %v1180 = vmul.f32 %v792, %v792
      %v1181 = vmul.f32 %v797, %v797
      %v1182 = vmul.f32 %v802, %v802
      %v1183 = vmul.f32 %v807, %v807
      %v1184 = vmul.f32 %v812, %v812
      %v1185 = vmul.f32 %v817, %v817
      %v1186 = vmul.f32 %v822, %v822
      %v1187 = vmul.f32 %v827, %v827
      %v1188 = vmul.f32 %v832, %v832
      %v1189 = vmul.f32 %v837, %v837
      %v1190 = vmul.f32 %v842, %v842
      %v1191 = vmul.f32 %v847, %v847
      %v1192 = vmul.f32 %v852, %v852
      %v1193 = vmul.f32 %v857, %v857
      %v1194 = vmul.f32 %v862, %v862
      %v1195 = vmul.f32 %v867, %v867
      %v1196 = vmul.f32 %v872, %v872
      %v1197 = vmul.f32 %v877, %v877
      %v1198 = vmul.f32 %v882, %v882
      %v1199 = vmul.f32 %v887, %v887
      %v1200 = vmul.f32 %v892, %v892
      %v1201 = vmul.f32 %v897, %v897
      %v1202 = vmul.f32 %v902, %v902
      %v1203 = vmul.f32 %v907, %v907
      %v1204 = vmul.f32 %v912, %v912
      %v1205 = vmul.f32 %v917, %v917
      %v1206 = vmul.f32 %v922, %v922
      %v1207 = vmul.f32 %v927, %v927
      %v1208 = vmul.f32 %v932, %v932
      %v1209 = vsel %vm935, %v1145, 0.0
      %v1210 = vsel %vm935, %v1146, 0.0
      %v1211 = vadd.f32 %v1209, %v1210
      %v1212 = vsel %vm935, %v1147, 0.0
      %v1213 = vadd.f32 %v1211, %v1212
      %v1214 = vsel %vm935, %v1148, 0.0
      %v1215 = vadd.f32 %v1213, %v1214
      %v1216 = vsel %vm935, %v1149, 0.0
      %v1217 = vadd.f32 %v1215, %v1216
      %v1218 = vsel %vm935, %v1150, 0.0
      %v1219 = vadd.f32 %v1217, %v1218
      %v1220 = vsel %vm935, %v1151, 0.0
      %v1221 = vadd.f32 %v1219, %v1220
      %v1222 = vsel %vm935, %v1152, 0.0
      %v1223 = vadd.f32 %v1221, %v1222
      %v1224 = vsel %vm935, %v1153, 0.0
      %v1225 = vadd.f32 %v1223, %v1224
      %v1226 = vsel %vm935, %v1154, 0.0
      %v1227 = vadd.f32 %v1225, %v1226
      %v1228 = vsel %vm935, %v1155, 0.0
      %v1229 = vadd.f32 %v1227, %v1228
      %v1230 = vsel %vm935, %v1156, 0.0
      %v1231 = vadd.f32 %v1229, %v1230
      %v1232 = vsel %vm935, %v1157, 0.0
      %v1233 = vadd.f32 %v1231, %v1232
      %v1234 = vsel %vm935, %v1158, 0.0
      %v1235 = vadd.f32 %v1233, %v1234
      %v1236 = vsel %vm935, %v1159, 0.0
      %v1237 = vadd.f32 %v1235, %v1236
      %v1238 = vsel %vm935, %v1160, 0.0
      %v1239 = vadd.f32 %v1237, %v1238
      %v1240 = vsel %vm935, %v1161, 0.0
      %v1241 = vadd.f32 %v1239, %v1240
      %v1242 = vsel %vm935, %v1162, 0.0
      %v1243 = vadd.f32 %v1241, %v1242
      %v1244 = vsel %vm935, %v1163, 0.0
      %v1245 = vadd.f32 %v1243, %v1244
      %v1246 = vsel %vm935, %v1164, 0.0
      %v1247 = vadd.f32 %v1245, %v1246
      %v1248 = vsel %vm935, %v1165, 0.0
      %v1249 = vadd.f32 %v1247, %v1248
      %v1250 = vsel %vm935, %v1166, 0.0
      %v1251 = vadd.f32 %v1249, %v1250
      %v1252 = vsel %vm935, %v1167, 0.0
      %v1253 = vadd.f32 %v1251, %v1252
      %v1254 = vsel %vm935, %v1168, 0.0
      %v1255 = vadd.f32 %v1253, %v1254
      %v1256 = vsel %vm935, %v1169, 0.0
      %v1257 = vadd.f32 %v1255, %v1256
      %v1258 = vsel %vm935, %v1170, 0.0
      %v1259 = vadd.f32 %v1257, %v1258
      %v1260 = vsel %vm935, %v1171, 0.0
      %v1261 = vadd.f32 %v1259, %v1260
      %v1262 = vsel %vm935, %v1172, 0.0
      %v1263 = vadd.f32 %v1261, %v1262
      %v1264 = vsel %vm935, %v1173, 0.0
      %v1265 = vadd.f32 %v1263, %v1264
      %v1266 = vsel %vm935, %v1174, 0.0
      %v1267 = vadd.f32 %v1265, %v1266
      %v1268 = vsel %vm935, %v1175, 0.0
      %v1269 = vadd.f32 %v1267, %v1268
      %v1270 = vsel %vm935, %v1176, 0.0
      %v1271 = vadd.f32 %v1269, %v1270
      %v1272 = vsel %vm935, %v1177, 0.0
      %v1273 = vadd.f32 %v1271, %v1272
      %v1274 = vsel %vm935, %v1178, 0.0
      %v1275 = vadd.f32 %v1273, %v1274
      %v1276 = vsel %vm935, %v1179, 0.0
      %v1277 = vadd.f32 %v1275, %v1276
      %v1278 = vsel %vm935, %v1180, 0.0
      %v1279 = vadd.f32 %v1277, %v1278
      %v1280 = vsel %vm935, %v1181, 0.0
      %v1281 = vadd.f32 %v1279, %v1280
      %v1282 = vsel %vm935, %v1182, 0.0
      %v1283 = vadd.f32 %v1281, %v1282
      %v1284 = vsel %vm935, %v1183, 0.0
      %v1285 = vadd.f32 %v1283, %v1284
      %v1286 = vsel %vm935, %v1184, 0.0
      %v1287 = vadd.f32 %v1285, %v1286
      %v1288 = vsel %vm935, %v1185, 0.0
      %v1289 = vadd.f32 %v1287, %v1288
      %v1290 = vsel %vm935, %v1186, 0.0
      %v1291 = vadd.f32 %v1289, %v1290
      %v1292 = vsel %vm935, %v1187, 0.0
      %v1293 = vadd.f32 %v1291, %v1292
      %v1294 = vsel %vm935, %v1188, 0.0
      %v1295 = vadd.f32 %v1293, %v1294
      %v1296 = vsel %vm935, %v1189, 0.0
      %v1297 = vadd.f32 %v1295, %v1296
      %v1298 = vsel %vm935, %v1190, 0.0
      %v1299 = vadd.f32 %v1297, %v1298
      %v1300 = vsel %vm935, %v1191, 0.0
      %v1301 = vadd.f32 %v1299, %v1300
      %v1302 = vsel %vm935, %v1192, 0.0
      %v1303 = vadd.f32 %v1301, %v1302
      %v1304 = vsel %vm935, %v1193, 0.0
      %v1305 = vadd.f32 %v1303, %v1304
      %v1306 = vsel %vm935, %v1194, 0.0
      %v1307 = vadd.f32 %v1305, %v1306
      %v1308 = vsel %vm935, %v1195, 0.0
      %v1309 = vadd.f32 %v1307, %v1308
      %v1310 = vsel %vm935, %v1196, 0.0
      %v1311 = vadd.f32 %v1309, %v1310
      %v1312 = vsel %vm935, %v1197, 0.0
      %v1313 = vadd.f32 %v1311, %v1312
      %v1314 = vsel %vm935, %v1198, 0.0
      %v1315 = vadd.f32 %v1313, %v1314
      %v1316 = vsel %vm935, %v1199, 0.0
      %v1317 = vadd.f32 %v1315, %v1316
      %v1318 = vsel %vm935, %v1200, 0.0
      %v1319 = vadd.f32 %v1317, %v1318
      %v1320 = vsel %vm935, %v1201, 0.0
      %v1321 = vadd.f32 %v1319, %v1320
      %v1322 = vsel %vm935, %v1202, 0.0
      %v1323 = vadd.f32 %v1321, %v1322
      %v1324 = vsel %vm935, %v1203, 0.0
      %v1325 = vadd.f32 %v1323, %v1324
      %v1326 = vsel %vm935, %v1204, 0.0
      %v1327 = vadd.f32 %v1325, %v1326
      %v1328 = vsel %vm935, %v1205, 0.0
      %v1329 = vadd.f32 %v1327, %v1328
      %v1330 = vsel %vm935, %v1206, 0.0
      %v1331 = vadd.f32 %v1329, %v1330
      %v1332 = vsel %vm935, %v1207, 0.0
      %v1333 = vadd.f32 %v1331, %v1332
      %v1334 = vsel %vm935, %v1208, 0.0
      %v1335 = vadd.f32 %v1333, %v1334
      %v1336 = vrot.slane %v1335, 4
      %v1337 = vadd.f32 %v1335, %v1336
      %v1338 = vrot.slane %v1337, 2
      %v1339 = vadd.f32 %v1337, %v1338
      %v1340 = vrot.slane %v1339, 1
      %v1341 = vadd.f32 %v1339, %v1340
      %v1342 = vadd.f32 %v1144, %v1341
      %1343 = vst.msk [vmem:[%s7] sm:$0x1] %vm1142, %v1342
      %s1344 = smul.u32 64, %s19
      %p1345 = scmp.lt.s32.totalorder %s1344, 127
      %s1346 = scalar_select %p1345, %s1344, 127
      %s1347 = smul.addr %s1346, 8
      %s1348 = scalar_lea.vmem %s5, %s1347
      // Predicated region
      $region45: #{_lambda_.18} parent=39 // pred_check
        %p1349 = pneg %p147
      $region46: #{_lambda_.18} parent=39 // pred_check_branch
        %1351 = sbr.rel (%p1349) target = $region48
      $region47: #{_lambda_.18} parent=39 // pred_region
        %s1352 = smul.u32 64, %s19
      $region48: #{_lambda_.18} parent=39 // pred_fallthru
        _
      // Predicated region
      $region49: #{_lambda_.18} parent=39 // pred_check
        %p1353 = pneg %p168
      $region50: #{_lambda_.18} parent=39 // pred_check_branch
        %1355 = sbr.rel (%p1353) target = $region52
      $region51: #{_lambda_.18} parent=39 // pred_region
        _
      $region52: #{_lambda_.18} parent=39 // pred_fallthru
        _
      // Predicated region
      $region53: #{_lambda_.18} parent=39 // pred_check
        %p1356 = pneg %p189
      $region54: #{_lambda_.18} parent=39 // pred_check_branch
        %1358 = sbr.rel (%p1356) target = $region56
      $region55: #{_lambda_.18} parent=39 // pred_region
        _
      $region56: #{_lambda_.18} parent=39 // pred_fallthru
        _
      // Predicated region
      $region57: #{_lambda_.18} parent=39 // pred_check
        %p1359 = pneg %p168
      $region58: #{_lambda_.18} parent=39 // pred_check_branch
        %1361 = sbr.rel (%p1359) target = $region60
      $region59: #{_lambda_.18} parent=39 // pred_region
        _
      $region60: #{_lambda_.18} parent=39 // pred_fallthru
        _
      // Predicated region
      $region61: #{_lambda_.18} parent=39 // pred_check
        %p1362 = pneg %p189
      $region62: #{_lambda_.18} parent=39 // pred_check_branch
        %1364 = sbr.rel (%p1362) target = $region64
      $region63: #{_lambda_.18} parent=39 // pred_region
        _
      $region64: #{_lambda_.18} parent=39 // pred_fallthru
        _
    $region40: #{_lambda_.18} parent=5 // pred_fallthru
      _
    %p1365 = scmp.le.s32.totalorder 2, %s14
    // Predicated region
    $region65: #{_lambda_.18} parent=5 // pred_check
      %p1366 = pneg %p1365
    $region66: #{_lambda_.18} parent=5 // pred_check_branch
      %1368 = sbr.rel (%p1366) target = $region68
    $region67: #{_lambda_.18} parent=5 // pred_region
      %s1369 = ssub.s32 %s14, 2
      // Predicated region
      $region69: #{_lambda_.18} parent=67 // pred_check
        %p1370 = pneg %p153
      $region70: #{_lambda_.18} parent=67 // pred_check_branch
        %1372 = sbr.rel (%p1370) target = $region72
      $region71: #{_lambda_.18} parent=67 // pred_region
        %s1373 = smul.u32 64, %s20
        %p1374 = scmp.lt.s32.totalorder %s1373, 127
        %s1375 = scalar_select %p1374, %s1373, 127
        %s1376 = smul.addr %s1375, 8
        %s1377 = scalar_lea.vmem %s5, %s1376
      $region72: #{_lambda_.18} parent=67 // pred_fallthru
        _
    $region68: #{_lambda_.18} parent=5 // pred_fallthru
      _
  $region6: #{_lambda_.18} parent=0 // loop_footer
    %s18 = sadd.s32 1, %s14
  $region7: #{_lambda_.18} parent=0 // loop_footer_branch
    %13 = sbr.rel target = $region3
  $region8: #{_lambda_.18} parent=0 // loop_exit
    _

// kernel: _lambda_.20
$region0: #{_lambda_.20}
  #allocation0 [shape = 'u32[]', space=smem, size = 0x4, offset = 0x4, fixed_abs, tag = 'smem constant byte address 0x4 - core index']
  #allocation1 [shape = 'u32[144,128]{1,0:T(1,128)}', space=vmem, size = 0x12000, scoped, tag = 'internal scratch']
  %s0 = inlined_call_operand.vmem [shape: f32[512,42], index: 0, kind: input, shape index: {}]
  %s1 = inlined_call_operand.vmem [shape: f32[42,8], index: 1, kind: input, shape index: {}]
  %s2 = inlined_call_operand.vmem [shape: f32[1,8], index: 2, kind: input, shape index: {}]
  %s3 = inlined_call_operand.vmem [shape: f32[1,42], index: 3, kind: input, shape index: {}, may-alias: {3,4}]
  %s4 = inlined_call_operand.vmem [shape: f32[1,42], index: 4, kind: input, shape index: {}, may-alias: {3,4}]
  %s5 = inlined_call_operand.vmem [shape: f32[512,8], index: 5, kind: output, shape index: {0}]
  %s6 = inlined_call_operand.vmem [shape: f32[1,8], index: 6, kind: output, shape index: {1}]
  %s7 = inlined_call_operand.vmem [shape: f32[1,8], index: 7, kind: output, shape index: {2}]
  %8 = xla_tuple %s5, %s6, %s7
  %s9 = sld [smem:[#allocation0]]
  $region50: #{_lambda_.20} parent=0
    _
  %s11 = ssub.s32 1, %s9
  %s12 = scalar_select 0, %s11, %s9
  // Predicated region
  $region2: #{_lambda_.20} parent=0 // pred_check
    _
  $region3: #{_lambda_.20} parent=0 // pred_check_branch
    %14 = sbr.rel (0) target = $region5
  $region4: #{_lambda_.20} parent=0 // pred_region
    _
  $region5: #{_lambda_.20} parent=0 // pred_fallthru
    _
  // Predicated region
  $region6: #{_lambda_.20} parent=0 // pred_check
    _
  $region7: #{_lambda_.20} parent=0 // pred_check_branch
    %16 = sbr.rel (0) target = $region9
  $region8: #{_lambda_.20} parent=0 // pred_region
    _
  $region9: #{_lambda_.20} parent=0 // pred_fallthru
    _
  // Predicated region
  $region10: #{_lambda_.20} parent=0 // pred_check
    _
  $region11: #{_lambda_.20} parent=0 // pred_check_branch
    %18 = sbr.rel (0) target = $region13
  $region12: #{_lambda_.20} parent=0 // pred_region
    _
  $region13: #{_lambda_.20} parent=0 // pred_fallthru
    _
  // Predicated region
  $region14: #{_lambda_.20} parent=0 // pred_check
    _
  $region15: #{_lambda_.20} parent=0 // pred_check_branch
    %20 = sbr.rel (0) target = $region17
  $region16: #{_lambda_.20} parent=0 // pred_region
    _
  $region17: #{_lambda_.20} parent=0 // pred_fallthru
    _
  // Predicated region
  $region18: #{_lambda_.20} parent=0 // pred_check
    _
  $region19: #{_lambda_.20} parent=0 // pred_check_branch
    %22 = sbr.rel (0) target = $region21
  $region20: #{_lambda_.20} parent=0 // pred_region
    _
  $region21: #{_lambda_.20} parent=0 // pred_fallthru
    _
  %v23 = vld [vmem:[%s0] sm:$0xff]
  %v24 = vld [vmem:[%s0 + $0x8] sm:$0xff]
  %v25 = vld [vmem:[%s0 + $0x10] sm:$0xff]
  %v26 = vld [vmem:[%s0 + $0x18] sm:$0xff]
  %v27 = vld [vmem:[%s0 + $0x20] sm:$0xff]
  %v28 = vld [vmem:[%s0 + $0x28] sm:$0xff]
  %v29 = vld [vmem:[%s0 + $0x30] sm:$0xff]
  %v30 = vld [vmem:[%s0 + $0x38] sm:$0xff]
  %v31 = vld [vmem:[%s0 + $0x40] sm:$0xff]
  %v32 = vld [vmem:[%s0 + $0x48] sm:$0xff]
  %v33 = vld [vmem:[%s0 + $0x50] sm:$0xff]
  %v34 = vld [vmem:[%s0 + $0x58] sm:$0xff]
  %v35 = vld [vmem:[%s0 + $0x60] sm:$0xff]
  %v36 = vld [vmem:[%s0 + $0x68] sm:$0xff]
  %v37 = vld [vmem:[%s0 + $0x70] sm:$0xff]
  %v38 = vld [vmem:[%s0 + $0x78] sm:$0xff]
  %v39 = vld [vmem:[%s0 + $0x80] sm:$0xff]
  %v40 = vld [vmem:[%s0 + $0x88] sm:$0xff]
  %v41 = vld [vmem:[%s0 + $0x90] sm:$0xff]
  %v42 = vld [vmem:[%s0 + $0x98] sm:$0xff]
  %v43 = vld [vmem:[%s0 + $0xa0] sm:$0xff]
  %v44 = vld [vmem:[%s0 + $0xa8] sm:$0xff]
  %v45 = vld [vmem:[%s0 + $0xb0] sm:$0xff]
  %v46 = vld [vmem:[%s0 + $0xb8] sm:$0xff]
  %v47 = vld [vmem:[%s0 + $0xc0] sm:$0xff]
  %v48 = vld [vmem:[%s0 + $0xc8] sm:$0xff]
  %v49 = vld [vmem:[%s0 + $0xd0] sm:$0xff]
  %v50 = vld [vmem:[%s0 + $0xd8] sm:$0xff]
  %v51 = vld [vmem:[%s0 + $0xe0] sm:$0xff]
  %v52 = vld [vmem:[%s0 + $0xe8] sm:$0xff]
  %v53 = vld [vmem:[%s0 + $0xf0] sm:$0xff]
  %v54 = vld [vmem:[%s0 + $0xf8] sm:$0xff]
  %v55 = vld [vmem:[%s0 + $0x100] sm:$0xff]
  %v56 = vld [vmem:[%s0 + $0x108] sm:$0xff]
  %v57 = vld [vmem:[%s0 + $0x110] sm:$0xff]
  %v58 = vld [vmem:[%s0 + $0x118] sm:$0xff]
  %v59 = vld [vmem:[%s0 + $0x120] sm:$0xff]
  %v60 = vld [vmem:[%s0 + $0x128] sm:$0xff]
  %v61 = vld [vmem:[%s0 + $0x130] sm:$0xff]
  %v62 = vld [vmem:[%s0 + $0x138] sm:$0xff]
  %v63 = vld [vmem:[%s0 + $0x140] sm:$0xff]
  %v64 = vld [vmem:[%s0 + $0x148] sm:$0xff]
  %v65 = vld [vmem:[%s0 + $0x150] sm:$0xff]
  %v66 = vld [vmem:[%s0 + $0x158] sm:$0xff]
  %v67 = vld [vmem:[%s0 + $0x160] sm:$0xff]
  %v68 = vld [vmem:[%s0 + $0x168] sm:$0xff]
  %v69 = vld [vmem:[%s0 + $0x170] sm:$0xff]
  %v70 = vld [vmem:[%s0 + $0x178] sm:$0xff]
  %v71 = vld [vmem:[%s0 + $0x180] sm:$0xff]
  %v72 = vld [vmem:[%s0 + $0x188] sm:$0xff]
  %v73 = vld [vmem:[%s0 + $0x190] sm:$0xff]
  %v74 = vld [vmem:[%s0 + $0x198] sm:$0xff]
  %v75 = vld [vmem:[%s0 + $0x1a0] sm:$0xff]
  %v76 = vld [vmem:[%s0 + $0x1a8] sm:$0xff]
  %v77 = vld [vmem:[%s0 + $0x1b0] sm:$0xff]
  %v78 = vld [vmem:[%s0 + $0x1b8] sm:$0xff]
  %v79 = vld [vmem:[%s0 + $0x1c0] sm:$0xff]
  %v80 = vld [vmem:[%s0 + $0x1c8] sm:$0xff]
  %v81 = vld [vmem:[%s0 + $0x1d0] sm:$0xff]
  %v82 = vld [vmem:[%s0 + $0x1d8] sm:$0xff]
  %v83 = vld [vmem:[%s0 + $0x1e0] sm:$0xff]
  %v84 = vld [vmem:[%s0 + $0x1e8] sm:$0xff]
  %v85 = vld [vmem:[%s0 + $0x1f0] sm:$0xff]
  %v86 = vld [vmem:[%s0 + $0x1f8] sm:$0xff]
  %v87 = vld [vmem:[%s1] sm:$0xff]
  %v88 = vld [vmem:[%s1 + $0x8] sm:$0xff]
  %v89 = vld [vmem:[%s1 + $0x10] sm:$0xff]
  %v90 = vld [vmem:[%s1 + $0x18] sm:$0xff]
  %v91 = vld [vmem:[%s1 + $0x20] sm:$0xff]
  %v92 = vld [vmem:[%s1 + $0x28] sm:$0x3]
  %v93 = vld [vmem:[%s2] sm:$0x1]
  %v95 = vlaneseq
  %v96 = vshrl.u32 %v95, 7
  %v97 = vsub.s32 0, %v96
  %v98 = vrot.slane %v93, %v97
  %vm100 = vcmask 343040
  %v102 = vsel %vm100, %v23, 0
  %v105 = vsel %vm100, %v24, 0
  %v108 = vsel %vm100, %v25, 0
  %v111 = vsel %vm100, %v26, 0
  %v114 = vsel %vm100, %v27, 0
  %v117 = vsel %vm100, %v28, 0
  %v120 = vsel %vm100, %v29, 0
  %v123 = vsel %vm100, %v30, 0
  %v126 = vsel %vm100, %v31, 0
  %v129 = vsel %vm100, %v32, 0
  %v132 = vsel %vm100, %v33, 0
  %v135 = vsel %vm100, %v34, 0
  %v138 = vsel %vm100, %v35, 0
  %v141 = vsel %vm100, %v36, 0
  %v144 = vsel %vm100, %v37, 0
  %v147 = vsel %vm100, %v38, 0
  %v150 = vsel %vm100, %v39, 0
  %v153 = vsel %vm100, %v40, 0
  %v156 = vsel %vm100, %v41, 0
  %v159 = vsel %vm100, %v42, 0
  %v162 = vsel %vm100, %v43, 0
  %v165 = vsel %vm100, %v44, 0
  %v168 = vsel %vm100, %v45, 0
  %v171 = vsel %vm100, %v46, 0
  %v174 = vsel %vm100, %v47, 0
  %v177 = vsel %vm100, %v48, 0
  %v180 = vsel %vm100, %v49, 0
  %v183 = vsel %vm100, %v50, 0
  %v186 = vsel %vm100, %v51, 0
  %v189 = vsel %vm100, %v52, 0
  %v192 = vsel %vm100, %v53, 0
  %v195 = vsel %vm100, %v54, 0
  %v198 = vsel %vm100, %v55, 0
  %v201 = vsel %vm100, %v56, 0
  %v204 = vsel %vm100, %v57, 0
  %v207 = vsel %vm100, %v58, 0
  %v210 = vsel %vm100, %v59, 0
  %v213 = vsel %vm100, %v60, 0
  %v216 = vsel %vm100, %v61, 0
  %v219 = vsel %vm100, %v62, 0
  %v222 = vsel %vm100, %v63, 0
  %v225 = vsel %vm100, %v64, 0
  %v228 = vsel %vm100, %v65, 0
  %v231 = vsel %vm100, %v66, 0
  %v234 = vsel %vm100, %v67, 0
  %v237 = vsel %vm100, %v68, 0
  %v240 = vsel %vm100, %v69, 0
  %v243 = vsel %vm100, %v70, 0
  %v246 = vsel %vm100, %v71, 0
  %v249 = vsel %vm100, %v72, 0
  %v252 = vsel %vm100, %v73, 0
  %v255 = vsel %vm100, %v74, 0
  %v258 = vsel %vm100, %v75, 0
  %v261 = vsel %vm100, %v76, 0
  %v264 = vsel %vm100, %v77, 0
  %v267 = vsel %vm100, %v78, 0
  %v270 = vsel %vm100, %v79, 0
  %v273 = vsel %vm100, %v80, 0
  %v276 = vsel %vm100, %v81, 0
  %v279 = vsel %vm100, %v82, 0
  %v282 = vsel %vm100, %v83, 0
  %v285 = vsel %vm100, %v84, 0
  %v288 = vsel %vm100, %v85, 0
  %v291 = vsel %vm100, %v86, 0
  %vm293 = vcmask 1041408
  %v295 = vsel %vm293, %v92, 0
  %297 = vmatprep.subr.mxu0 0.0
  %298 = vmatpush1.msra.mxu0 0.0
  %299 = vmatprep.subr.mxu0 0.0
  %300 = vmatpush1.msra.mxu0 0.0
  %301 = vmatprep.subr.mxu0 0.0
  %302 = vmatpush1.msra.mxu0 0.0
  %303 = vmatprep.subr.mxu0 0.0
  %304 = vmatpush1.msra.mxu0 0.0
  %305 = vmatprep.subr.mxu0 0.0
  %306 = vmatpush1.msra.mxu0 0.0
  %307 = vmatprep.subr.mxu0 0.0
  %308 = vmatpush1.msra.mxu0 0.0
  %309 = vmatprep.subr.mxu0 0.0
  %310 = vmatpush1.msra.mxu0 0.0
  %311 = vmatprep.subr.mxu0 0.0
  %312 = vmatpush1.msra.mxu0 0.0
  %313 = vmatprep.subr.mxu0 0.0
  %314 = vmatpush1.msra.mxu0 0.0
  %315 = vmatprep.subr.mxu0 0.0
  %316 = vmatpush1.msra.mxu0 0.0
  %317 = vmatprep.subr.mxu0 0.0
  %318 = vmatpush1.msra.mxu0 %v295
  %319 = vmatprep.subr.mxu0 0.0
  %320 = vmatpush1.msra.mxu0 %v91
  %321 = vmatprep.subr.mxu0 0.0
  %322 = vmatpush1.msra.mxu0 %v90
  %323 = vmatprep.subr.mxu0 0.0
  %324 = vmatpush1.msra.mxu0 %v89
  %325 = vmatprep.subr.mxu0 0.0
  %326 = vmatpush1.msra.mxu0 %v88
  %327 = vmatprep.subr.mxu0 0.0
  %328 = vmatpush1.msra.mxu0 %v87
  %329 = vmatprep.subr.mxu0 0.0
  %330 = vmatpush2.msra.mxu0 0.0
  %331 = vmatprep.subr.mxu0 0.0
  %332 = vmatpush2.msra.mxu0 0.0
  %333 = vmatprep.subr.mxu0 0.0
  %334 = vmatpush2.msra.mxu0 0.0
  %335 = vmatprep.subr.mxu0 0.0
  %336 = vmatpush2.msra.mxu0 0.0
  %337 = vmatprep.subr.mxu0 0.0
  %338 = vmatpush2.msra.mxu0 0.0
  %339 = vmatprep.subr.mxu0 0.0
  %340 = vmatpush2.msra.mxu0 0.0
  %341 = vmatprep.subr.mxu0 0.0
  %342 = vmatpush2.msra.mxu0 0.0
  %343 = vmatprep.subr.mxu0 0.0
  %344 = vmatpush2.msra.mxu0 0.0
  %345 = vmatprep.subr.mxu0 0.0
  %346 = vmatpush2.msra.mxu0 0.0
  %347 = vmatprep.subr.mxu0 0.0
  %348 = vmatpush2.msra.mxu0 0.0
  %349 = vmatprep.subr.mxu0 0.0
  %350 = vmatpush2.msra.mxu0 0.0
  %351 = vmatprep.subr.mxu0 0.0
  %352 = vmatpush2.msra.mxu0 0.0
  %353 = vmatprep.subr.mxu0 0.0
  %354 = vmatpush2.msra.mxu0 0.0
  %355 = vmatprep.subr.mxu0 0.0
  %356 = vmatpush2.msra.mxu0 0.0
  %357 = vmatprep.subr.mxu0 0.0
  %358 = vmatpush2.msra.mxu0 0.0
  %359 = vmatprep.subr.mxu0 0.0
  %360 = vmatpush2.msra.mxu0 0.0
  %361 = vmatprep.mubr.f32.mxu0 0.0
  %362 = vmatmul.mubr.f32.gmra.mxu0 %v102
  %v363 = vpop.f32.mrf.mxu0
  %v364 = vadd.f32 %v98, %v363
  %v365 = vpop.f32.mrf.mxu0
  %366 = vmatprep.mubr.f32.mxu0 0.0
  %367 = vmatmul.mubr.f32.gmra.mxu0 %v105
  %v368 = vpop.f32.mrf.mxu0
  %v369 = vadd.f32 %v98, %v368
  %v370 = vpop.f32.mrf.mxu0
  %371 = vmatprep.mubr.f32.mxu0 0.0
  %372 = vmatmul.mubr.f32.gmra.mxu0 %v108
  %v373 = vpop.f32.mrf.mxu0
  %v374 = vadd.f32 %v98, %v373
  %v375 = vpop.f32.mrf.mxu0
  %376 = vmatprep.mubr.f32.mxu0 0.0
  %377 = vmatmul.mubr.f32.gmra.mxu0 %v111
  %v378 = vpop.f32.mrf.mxu0
  %v379 = vadd.f32 %v98, %v378
  %v380 = vpop.f32.mrf.mxu0
  %381 = vmatprep.mubr.f32.mxu0 0.0
  %382 = vmatmul.mubr.f32.gmra.mxu0 %v114
  %v383 = vpop.f32.mrf.mxu0
  %v384 = vadd.f32 %v98, %v383
  %v385 = vpop.f32.mrf.mxu0
  %386 = vmatprep.mubr.f32.mxu0 0.0
  %387 = vmatmul.mubr.f32.gmra.mxu0 %v117
  %v388 = vpop.f32.mrf.mxu0
  %v389 = vadd.f32 %v98, %v388
  %v390 = vpop.f32.mrf.mxu0
  %391 = vmatprep.mubr.f32.mxu0 0.0
  %392 = vmatmul.mubr.f32.gmra.mxu0 %v120
  %v393 = vpop.f32.mrf.mxu0
  %v394 = vadd.f32 %v98, %v393
  %v395 = vpop.f32.mrf.mxu0
  %396 = vmatprep.mubr.f32.mxu0 0.0
  %397 = vmatmul.mubr.f32.gmra.mxu0 %v123
  %v398 = vpop.f32.mrf.mxu0
  %v399 = vadd.f32 %v98, %v398
  %v400 = vpop.f32.mrf.mxu0
  %401 = vmatprep.mubr.f32.mxu0 0.0
  %402 = vmatmul.mubr.f32.gmra.mxu0 %v126
  %v403 = vpop.f32.mrf.mxu0
  %v404 = vadd.f32 %v98, %v403
  %v405 = vpop.f32.mrf.mxu0
  %406 = vmatprep.mubr.f32.mxu0 0.0
  %407 = vmatmul.mubr.f32.gmra.mxu0 %v129
  %v408 = vpop.f32.mrf.mxu0
  %v409 = vadd.f32 %v98, %v408
  %v410 = vpop.f32.mrf.mxu0
  %411 = vmatprep.mubr.f32.mxu0 0.0
  %412 = vmatmul.mubr.f32.gmra.mxu0 %v132
  %v413 = vpop.f32.mrf.mxu0
  %v414 = vadd.f32 %v98, %v413
  %v415 = vpop.f32.mrf.mxu0
  %416 = vmatprep.mubr.f32.mxu0 0.0
  %417 = vmatmul.mubr.f32.gmra.mxu0 %v135
  %v418 = vpop.f32.mrf.mxu0
  %v419 = vadd.f32 %v98, %v418
  %v420 = vpop.f32.mrf.mxu0
  %421 = vmatprep.mubr.f32.mxu0 0.0
  %422 = vmatmul.mubr.f32.gmra.mxu0 %v138
  %v423 = vpop.f32.mrf.mxu0
  %v424 = vadd.f32 %v98, %v423
  %v425 = vpop.f32.mrf.mxu0
  %426 = vmatprep.mubr.f32.mxu0 0.0
  %427 = vmatmul.mubr.f32.gmra.mxu0 %v141
  %v428 = vpop.f32.mrf.mxu0
  %v429 = vadd.f32 %v98, %v428
  %v430 = vpop.f32.mrf.mxu0
  %431 = vmatprep.mubr.f32.mxu0 0.0
  %432 = vmatmul.mubr.f32.gmra.mxu0 %v144
  %v433 = vpop.f32.mrf.mxu0
  %v434 = vadd.f32 %v98, %v433
  %v435 = vpop.f32.mrf.mxu0
  %436 = vmatprep.mubr.f32.mxu0 0.0
  %437 = vmatmul.mubr.f32.gmra.mxu0 %v147
  %v438 = vpop.f32.mrf.mxu0
  %v439 = vadd.f32 %v98, %v438
  %v440 = vpop.f32.mrf.mxu0
  %441 = vmatprep.mubr.f32.mxu0 0.0
  %442 = vmatmul.mubr.f32.gmra.mxu0 %v150
  %v443 = vpop.f32.mrf.mxu0
  %v444 = vadd.f32 %v98, %v443
  %v445 = vpop.f32.mrf.mxu0
  %446 = vmatprep.mubr.f32.mxu0 0.0
  %447 = vmatmul.mubr.f32.gmra.mxu0 %v153
  %v448 = vpop.f32.mrf.mxu0
  %v449 = vadd.f32 %v98, %v448
  %v450 = vpop.f32.mrf.mxu0
  %451 = vmatprep.mubr.f32.mxu0 0.0
  %452 = vmatmul.mubr.f32.gmra.mxu0 %v156
  %v453 = vpop.f32.mrf.mxu0
  %v454 = vadd.f32 %v98, %v453
  %v455 = vpop.f32.mrf.mxu0
  %456 = vmatprep.mubr.f32.mxu0 0.0
  %457 = vmatmul.mubr.f32.gmra.mxu0 %v159
  %v458 = vpop.f32.mrf.mxu0
  %v459 = vadd.f32 %v98, %v458
  %v460 = vpop.f32.mrf.mxu0
  %461 = vmatprep.mubr.f32.mxu0 0.0
  %462 = vmatmul.mubr.f32.gmra.mxu0 %v162
  %v463 = vpop.f32.mrf.mxu0
  %v464 = vadd.f32 %v98, %v463
  %v465 = vpop.f32.mrf.mxu0
  %466 = vmatprep.mubr.f32.mxu0 0.0
  %467 = vmatmul.mubr.f32.gmra.mxu0 %v165
  %v468 = vpop.f32.mrf.mxu0
  %v469 = vadd.f32 %v98, %v468
  %v470 = vpop.f32.mrf.mxu0
  %471 = vmatprep.mubr.f32.mxu0 0.0
  %472 = vmatmul.mubr.f32.gmra.mxu0 %v168
  %v473 = vpop.f32.mrf.mxu0
  %v474 = vadd.f32 %v98, %v473
  %v475 = vpop.f32.mrf.mxu0
  %476 = vmatprep.mubr.f32.mxu0 0.0
  %477 = vmatmul.mubr.f32.gmra.mxu0 %v171
  %v478 = vpop.f32.mrf.mxu0
  %v479 = vadd.f32 %v98, %v478
  %v480 = vpop.f32.mrf.mxu0
  %481 = vmatprep.mubr.f32.mxu0 0.0
  %482 = vmatmul.mubr.f32.gmra.mxu0 %v174
  %v483 = vpop.f32.mrf.mxu0
  %v484 = vadd.f32 %v98, %v483
  %v485 = vpop.f32.mrf.mxu0
  %486 = vmatprep.mubr.f32.mxu0 0.0
  %487 = vmatmul.mubr.f32.gmra.mxu0 %v177
  %v488 = vpop.f32.mrf.mxu0
  %v489 = vadd.f32 %v98, %v488
  %v490 = vpop.f32.mrf.mxu0
  %491 = vmatprep.mubr.f32.mxu0 0.0
  %492 = vmatmul.mubr.f32.gmra.mxu0 %v180
  %v493 = vpop.f32.mrf.mxu0
  %v494 = vadd.f32 %v98, %v493
  %v495 = vpop.f32.mrf.mxu0
  %496 = vmatprep.mubr.f32.mxu0 0.0
  %497 = vmatmul.mubr.f32.gmra.mxu0 %v183
  %v498 = vpop.f32.mrf.mxu0
  %v499 = vadd.f32 %v98, %v498
  %v500 = vpop.f32.mrf.mxu0
  %501 = vmatprep.mubr.f32.mxu0 0.0
  %502 = vmatmul.mubr.f32.gmra.mxu0 %v186
  %v503 = vpop.f32.mrf.mxu0
  %v504 = vadd.f32 %v98, %v503
  %v505 = vpop.f32.mrf.mxu0
  %506 = vmatprep.mubr.f32.mxu0 0.0
  %507 = vmatmul.mubr.f32.gmra.mxu0 %v189
  %v508 = vpop.f32.mrf.mxu0
  %v509 = vadd.f32 %v98, %v508
  %v510 = vpop.f32.mrf.mxu0
  %511 = vmatprep.mubr.f32.mxu0 0.0
  %512 = vmatmul.mubr.f32.gmra.mxu0 %v192
  %v513 = vpop.f32.mrf.mxu0
  %v514 = vadd.f32 %v98, %v513
  %v515 = vpop.f32.mrf.mxu0
  %516 = vmatprep.mubr.f32.mxu0 0.0
  %517 = vmatmul.mubr.f32.gmra.mxu0 %v195
  %v518 = vpop.f32.mrf.mxu0
  %v519 = vadd.f32 %v98, %v518
  %v520 = vpop.f32.mrf.mxu0
  %521 = vmatprep.mubr.f32.mxu0 0.0
  %522 = vmatmul.mubr.f32.gmra.mxu0 %v198
  %v523 = vpop.f32.mrf.mxu0
  %v524 = vadd.f32 %v98, %v523
  %v525 = vpop.f32.mrf.mxu0
  %526 = vmatprep.mubr.f32.mxu0 0.0
  %527 = vmatmul.mubr.f32.gmra.mxu0 %v201
  %v528 = vpop.f32.mrf.mxu0
  %v529 = vadd.f32 %v98, %v528
  %v530 = vpop.f32.mrf.mxu0
  %531 = vmatprep.mubr.f32.mxu0 0.0
  %532 = vmatmul.mubr.f32.gmra.mxu0 %v204
  %v533 = vpop.f32.mrf.mxu0
  %v534 = vadd.f32 %v98, %v533
  %v535 = vpop.f32.mrf.mxu0
  %536 = vmatprep.mubr.f32.mxu0 0.0
  %537 = vmatmul.mubr.f32.gmra.mxu0 %v207
  %v538 = vpop.f32.mrf.mxu0
  %v539 = vadd.f32 %v98, %v538
  %v540 = vpop.f32.mrf.mxu0
  %541 = vmatprep.mubr.f32.mxu0 0.0
  %542 = vmatmul.mubr.f32.gmra.mxu0 %v210
  %v543 = vpop.f32.mrf.mxu0
  %v544 = vadd.f32 %v98, %v543
  %v545 = vpop.f32.mrf.mxu0
  %546 = vmatprep.mubr.f32.mxu0 0.0
  %547 = vmatmul.mubr.f32.gmra.mxu0 %v213
  %v548 = vpop.f32.mrf.mxu0
  %v549 = vadd.f32 %v98, %v548
  %v550 = vpop.f32.mrf.mxu0
  %551 = vmatprep.mubr.f32.mxu0 0.0
  %552 = vmatmul.mubr.f32.gmra.mxu0 %v216
  %v553 = vpop.f32.mrf.mxu0
  %v554 = vadd.f32 %v98, %v553
  %v555 = vpop.f32.mrf.mxu0
  %556 = vmatprep.mubr.f32.mxu0 0.0
  %557 = vmatmul.mubr.f32.gmra.mxu0 %v219
  %v558 = vpop.f32.mrf.mxu0
  %v559 = vadd.f32 %v98, %v558
  %v560 = vpop.f32.mrf.mxu0
  %561 = vmatprep.mubr.f32.mxu0 0.0
  %562 = vmatmul.mubr.f32.gmra.mxu0 %v222
  %v563 = vpop.f32.mrf.mxu0
  %v564 = vadd.f32 %v98, %v563
  %v565 = vpop.f32.mrf.mxu0
  %566 = vmatprep.mubr.f32.mxu0 0.0
  %567 = vmatmul.mubr.f32.gmra.mxu0 %v225
  %v568 = vpop.f32.mrf.mxu0
  %v569 = vadd.f32 %v98, %v568
  %v570 = vpop.f32.mrf.mxu0
  %571 = vmatprep.mubr.f32.mxu0 0.0
  %572 = vmatmul.mubr.f32.gmra.mxu0 %v228
  %v573 = vpop.f32.mrf.mxu0
  %v574 = vadd.f32 %v98, %v573
  %v575 = vpop.f32.mrf.mxu0
  %576 = vmatprep.mubr.f32.mxu0 0.0
  %577 = vmatmul.mubr.f32.gmra.mxu0 %v231
  %v578 = vpop.f32.mrf.mxu0
  %v579 = vadd.f32 %v98, %v578
  %v580 = vpop.f32.mrf.mxu0
  %581 = vmatprep.mubr.f32.mxu0 0.0
  %582 = vmatmul.mubr.f32.gmra.mxu0 %v234
  %v583 = vpop.f32.mrf.mxu0
  %v584 = vadd.f32 %v98, %v583
  %v585 = vpop.f32.mrf.mxu0
  %586 = vmatprep.mubr.f32.mxu0 0.0
  %587 = vmatmul.mubr.f32.gmra.mxu0 %v237
  %v588 = vpop.f32.mrf.mxu0
  %v589 = vadd.f32 %v98, %v588
  %v590 = vpop.f32.mrf.mxu0
  %591 = vmatprep.mubr.f32.mxu0 0.0
  %592 = vmatmul.mubr.f32.gmra.mxu0 %v240
  %v593 = vpop.f32.mrf.mxu0
  %v594 = vadd.f32 %v98, %v593
  %v595 = vpop.f32.mrf.mxu0
  %596 = vmatprep.mubr.f32.mxu0 0.0
  %597 = vmatmul.mubr.f32.gmra.mxu0 %v243
  %v598 = vpop.f32.mrf.mxu0
  %v599 = vadd.f32 %v98, %v598
  %v600 = vpop.f32.mrf.mxu0
  %601 = vmatprep.mubr.f32.mxu0 0.0
  %602 = vmatmul.mubr.f32.gmra.mxu0 %v246
  %v603 = vpop.f32.mrf.mxu0
  %v604 = vadd.f32 %v98, %v603
  %v605 = vpop.f32.mrf.mxu0
  %606 = vmatprep.mubr.f32.mxu0 0.0
  %607 = vmatmul.mubr.f32.gmra.mxu0 %v249
  %v608 = vpop.f32.mrf.mxu0
  %v609 = vadd.f32 %v98, %v608
  %v610 = vpop.f32.mrf.mxu0
  %611 = vmatprep.mubr.f32.mxu0 0.0
  %612 = vmatmul.mubr.f32.gmra.mxu0 %v252
  %v613 = vpop.f32.mrf.mxu0
  %v614 = vadd.f32 %v98, %v613
  %v615 = vpop.f32.mrf.mxu0
  %616 = vmatprep.mubr.f32.mxu0 0.0
  %617 = vmatmul.mubr.f32.gmra.mxu0 %v255
  %v618 = vpop.f32.mrf.mxu0
  %v619 = vadd.f32 %v98, %v618
  %v620 = vpop.f32.mrf.mxu0
  %621 = vmatprep.mubr.f32.mxu0 0.0
  %622 = vmatmul.mubr.f32.gmra.mxu0 %v258
  %v623 = vpop.f32.mrf.mxu0
  %v624 = vadd.f32 %v98, %v623
  %v625 = vpop.f32.mrf.mxu0
  %626 = vmatprep.mubr.f32.mxu0 0.0
  %627 = vmatmul.mubr.f32.gmra.mxu0 %v261
  %v628 = vpop.f32.mrf.mxu0
  %v629 = vadd.f32 %v98, %v628
  %v630 = vpop.f32.mrf.mxu0
  %631 = vmatprep.mubr.f32.mxu0 0.0
  %632 = vmatmul.mubr.f32.gmra.mxu0 %v264
  %v633 = vpop.f32.mrf.mxu0
  %v634 = vadd.f32 %v98, %v633
  %v635 = vpop.f32.mrf.mxu0
  %636 = vmatprep.mubr.f32.mxu0 0.0
  %637 = vmatmul.mubr.f32.gmra.mxu0 %v267
  %v638 = vpop.f32.mrf.mxu0
  %v639 = vadd.f32 %v98, %v638
  %v640 = vpop.f32.mrf.mxu0
  %641 = vmatprep.mubr.f32.mxu0 0.0
  %642 = vmatmul.mubr.f32.gmra.mxu0 %v270
  %v643 = vpop.f32.mrf.mxu0
  %v644 = vadd.f32 %v98, %v643
  %v645 = vpop.f32.mrf.mxu0
  %646 = vmatprep.mubr.f32.mxu0 0.0
  %647 = vmatmul.mubr.f32.gmra.mxu0 %v273
  %v648 = vpop.f32.mrf.mxu0
  %v649 = vadd.f32 %v98, %v648
  %v650 = vpop.f32.mrf.mxu0
  %651 = vmatprep.mubr.f32.mxu0 0.0
  %652 = vmatmul.mubr.f32.gmra.mxu0 %v276
  %v653 = vpop.f32.mrf.mxu0
  %v654 = vadd.f32 %v98, %v653
  %v655 = vpop.f32.mrf.mxu0
  %656 = vmatprep.mubr.f32.mxu0 0.0
  %657 = vmatmul.mubr.f32.gmra.mxu0 %v279
  %v658 = vpop.f32.mrf.mxu0
  %v659 = vadd.f32 %v98, %v658
  %v660 = vpop.f32.mrf.mxu0
  %661 = vmatprep.mubr.f32.mxu0 0.0
  %662 = vmatmul.mubr.f32.gmra.mxu0 %v282
  %v663 = vpop.f32.mrf.mxu0
  %v664 = vadd.f32 %v98, %v663
  %v665 = vpop.f32.mrf.mxu0
  %666 = vmatprep.mubr.f32.mxu0 0.0
  %667 = vmatmul.mubr.f32.gmra.mxu0 %v285
  %v668 = vpop.f32.mrf.mxu0
  %v669 = vadd.f32 %v98, %v668
  %v670 = vpop.f32.mrf.mxu0
  %671 = vmatprep.mubr.f32.mxu0 0.0
  %672 = vmatmul.mubr.f32.gmra.mxu0 %v288
  %v673 = vpop.f32.mrf.mxu0
  %v674 = vadd.f32 %v98, %v673
  %v675 = vpop.f32.mrf.mxu0
  %676 = vmatprep.mubr.f32.mxu0 0.0
  %677 = vmatmul.mubr.f32.gmra.mxu0 %v291
  %v678 = vpop.f32.mrf.mxu0
  %v679 = vadd.f32 %v98, %v678
  %v680 = vpop.f32.mrf.mxu0
  %681 = vdwg.mxu0
  %vm682 = vcmask 64512
  %683 = vst.msk [vmem:[%s5] sm:$0xff] %vm682, %v364
  %684 = vst.msk [vmem:[%s5 + $0x8] sm:$0xff] %vm682, %v369
  %685 = vst.msk [vmem:[%s5 + $0x10] sm:$0xff] %vm682, %v374
  %686 = vst.msk [vmem:[%s5 + $0x18] sm:$0xff] %vm682, %v379
  %687 = vst.msk [vmem:[%s5 + $0x20] sm:$0xff] %vm682, %v384
  %688 = vst.msk [vmem:[%s5 + $0x28] sm:$0xff] %vm682, %v389
  %689 = vst.msk [vmem:[%s5 + $0x30] sm:$0xff] %vm682, %v394
  %690 = vst.msk [vmem:[%s5 + $0x38] sm:$0xff] %vm682, %v399
  %691 = vst.msk [vmem:[%s5 + $0x40] sm:$0xff] %vm682, %v404
  %692 = vst.msk [vmem:[%s5 + $0x48] sm:$0xff] %vm682, %v409
  %693 = vst.msk [vmem:[%s5 + $0x50] sm:$0xff] %vm682, %v414
  %694 = vst.msk [vmem:[%s5 + $0x58] sm:$0xff] %vm682, %v419
  %695 = vst.msk [vmem:[%s5 + $0x60] sm:$0xff] %vm682, %v424
  %696 = vst.msk [vmem:[%s5 + $0x68] sm:$0xff] %vm682, %v429
  %697 = vst.msk [vmem:[%s5 + $0x70] sm:$0xff] %vm682, %v434
  %698 = vst.msk [vmem:[%s5 + $0x78] sm:$0xff] %vm682, %v439
  %699 = vst.msk [vmem:[%s5 + $0x80] sm:$0xff] %vm682, %v444
  %700 = vst.msk [vmem:[%s5 + $0x88] sm:$0xff] %vm682, %v449
  %701 = vst.msk [vmem:[%s5 + $0x90] sm:$0xff] %vm682, %v454
  %702 = vst.msk [vmem:[%s5 + $0x98] sm:$0xff] %vm682, %v459
  %703 = vst.msk [vmem:[%s5 + $0xa0] sm:$0xff] %vm682, %v464
  %704 = vst.msk [vmem:[%s5 + $0xa8] sm:$0xff] %vm682, %v469
  %705 = vst.msk [vmem:[%s5 + $0xb0] sm:$0xff] %vm682, %v474
  %706 = vst.msk [vmem:[%s5 + $0xb8] sm:$0xff] %vm682, %v479
  %707 = vst.msk [vmem:[%s5 + $0xc0] sm:$0xff] %vm682, %v484
  %708 = vst.msk [vmem:[%s5 + $0xc8] sm:$0xff] %vm682, %v489
  %709 = vst.msk [vmem:[%s5 + $0xd0] sm:$0xff] %vm682, %v494
  %710 = vst.msk [vmem:[%s5 + $0xd8] sm:$0xff] %vm682, %v499
  %711 = vst.msk [vmem:[%s5 + $0xe0] sm:$0xff] %vm682, %v504
  %712 = vst.msk [vmem:[%s5 + $0xe8] sm:$0xff] %vm682, %v509
  %713 = vst.msk [vmem:[%s5 + $0xf0] sm:$0xff] %vm682, %v514
  %714 = vst.msk [vmem:[%s5 + $0xf8] sm:$0xff] %vm682, %v519
  %715 = vst.msk [vmem:[%s5 + $0x100] sm:$0xff] %vm682, %v524
  %716 = vst.msk [vmem:[%s5 + $0x108] sm:$0xff] %vm682, %v529
  %717 = vst.msk [vmem:[%s5 + $0x110] sm:$0xff] %vm682, %v534
  %718 = vst.msk [vmem:[%s5 + $0x118] sm:$0xff] %vm682, %v539
  %719 = vst.msk [vmem:[%s5 + $0x120] sm:$0xff] %vm682, %v544
  %720 = vst.msk [vmem:[%s5 + $0x128] sm:$0xff] %vm682, %v549
  %721 = vst.msk [vmem:[%s5 + $0x130] sm:$0xff] %vm682, %v554
  %722 = vst.msk [vmem:[%s5 + $0x138] sm:$0xff] %vm682, %v559
  %723 = vst.msk [vmem:[%s5 + $0x140] sm:$0xff] %vm682, %v564
  %724 = vst.msk [vmem:[%s5 + $0x148] sm:$0xff] %vm682, %v569
  %725 = vst.msk [vmem:[%s5 + $0x150] sm:$0xff] %vm682, %v574
  %726 = vst.msk [vmem:[%s5 + $0x158] sm:$0xff] %vm682, %v579
  %727 = vst.msk [vmem:[%s5 + $0x160] sm:$0xff] %vm682, %v584
  %728 = vst.msk [vmem:[%s5 + $0x168] sm:$0xff] %vm682, %v589
  %729 = vst.msk [vmem:[%s5 + $0x170] sm:$0xff] %vm682, %v594
  %730 = vst.msk [vmem:[%s5 + $0x178] sm:$0xff] %vm682, %v599
  %731 = vst.msk [vmem:[%s5 + $0x180] sm:$0xff] %vm682, %v604
  %732 = vst.msk [vmem:[%s5 + $0x188] sm:$0xff] %vm682, %v609
  %733 = vst.msk [vmem:[%s5 + $0x190] sm:$0xff] %vm682, %v614
  %734 = vst.msk [vmem:[%s5 + $0x198] sm:$0xff] %vm682, %v619
  %735 = vst.msk [vmem:[%s5 + $0x1a0] sm:$0xff] %vm682, %v624
  %736 = vst.msk [vmem:[%s5 + $0x1a8] sm:$0xff] %vm682, %v629
  %737 = vst.msk [vmem:[%s5 + $0x1b0] sm:$0xff] %vm682, %v634
  %738 = vst.msk [vmem:[%s5 + $0x1b8] sm:$0xff] %vm682, %v639
  %739 = vst.msk [vmem:[%s5 + $0x1c0] sm:$0xff] %vm682, %v644
  %740 = vst.msk [vmem:[%s5 + $0x1c8] sm:$0xff] %vm682, %v649
  %741 = vst.msk [vmem:[%s5 + $0x1d0] sm:$0xff] %vm682, %v654
  %742 = vst.msk [vmem:[%s5 + $0x1d8] sm:$0xff] %vm682, %v659
  %743 = vst.msk [vmem:[%s5 + $0x1e0] sm:$0xff] %vm682, %v664
  %744 = vst.msk [vmem:[%s5 + $0x1e8] sm:$0xff] %vm682, %v669
  %745 = vst.msk [vmem:[%s5 + $0x1f0] sm:$0xff] %vm682, %v674
  %746 = vst.msk [vmem:[%s5 + $0x1f8] sm:$0xff] %vm682, %v679
  %p747 = scmp.eq.s32.totalorder 0, 0
  // Predicated region
  $region22: #{_lambda_.20} parent=0 // pred_check
    %p748 = pneg %p747
  $region23: #{_lambda_.20} parent=0 // pred_check_branch
    %750 = sbr.rel (%p748) target = $region25
  $region24: #{_lambda_.20} parent=0 // pred_region
    %vm751 = vcmask 57344
    %752 = vst.msk [vmem:[%s6] sm:$0x1] %vm751, 0.0
    %753 = vst.msk [vmem:[%s7] sm:$0x1] %vm751, 0.0
  $region25: #{_lambda_.20} parent=0 // pred_fallthru
    _
  %v754 = vld [vmem:[%s6] sm:$0x1]
  %v755 = vsel %vm682, %v364, 0.0
  %v756 = vsel %vm682, %v369, 0.0
  %v757 = vadd.f32 %v755, %v756
  %v758 = vsel %vm682, %v374, 0.0
  %v759 = vadd.f32 %v757, %v758
  %v760 = vsel %vm682, %v379, 0.0
  %v761 = vadd.f32 %v759, %v760
  %v762 = vsel %vm682, %v384, 0.0
  %v763 = vadd.f32 %v761, %v762
  %v764 = vsel %vm682, %v389, 0.0
  %v765 = vadd.f32 %v763, %v764
  %v766 = vsel %vm682, %v394, 0.0
  %v767 = vadd.f32 %v765, %v766
  %v768 = vsel %vm682, %v399, 0.0
  %v769 = vadd.f32 %v767, %v768
  %v770 = vsel %vm682, %v404, 0.0
  %v771 = vadd.f32 %v769, %v770
  %v772 = vsel %vm682, %v409, 0.0
  %v773 = vadd.f32 %v771, %v772
  %v774 = vsel %vm682, %v414, 0.0
  %v775 = vadd.f32 %v773, %v774
  %v776 = vsel %vm682, %v419, 0.0
  %v777 = vadd.f32 %v775, %v776
  %v778 = vsel %vm682, %v424, 0.0
  %v779 = vadd.f32 %v777, %v778
  %v780 = vsel %vm682, %v429, 0.0
  %v781 = vadd.f32 %v779, %v780
  %v782 = vsel %vm682, %v434, 0.0
  %v783 = vadd.f32 %v781, %v782
  %v784 = vsel %vm682, %v439, 0.0
  %v785 = vadd.f32 %v783, %v784
  %v786 = vsel %vm682, %v444, 0.0
  %v787 = vadd.f32 %v785, %v786
  %v788 = vsel %vm682, %v449, 0.0
  %v789 = vadd.f32 %v787, %v788
  %v790 = vsel %vm682, %v454, 0.0
  %v791 = vadd.f32 %v789, %v790
  %v792 = vsel %vm682, %v459, 0.0
  %v793 = vadd.f32 %v791, %v792
  %v794 = vsel %vm682, %v464, 0.0
  %v795 = vadd.f32 %v793, %v794
  %v796 = vsel %vm682, %v469, 0.0
  %v797 = vadd.f32 %v795, %v796
  %v798 = vsel %vm682, %v474, 0.0
  %v799 = vadd.f32 %v797, %v798
  %v800 = vsel %vm682, %v479, 0.0
  %v801 = vadd.f32 %v799, %v800
  %v802 = vsel %vm682, %v484, 0.0
  %v803 = vadd.f32 %v801, %v802
  %v804 = vsel %vm682, %v489, 0.0
  %v805 = vadd.f32 %v803, %v804
  %v806 = vsel %vm682, %v494, 0.0
  %v807 = vadd.f32 %v805, %v806
  %v808 = vsel %vm682, %v499, 0.0
  %v809 = vadd.f32 %v807, %v808
  %v810 = vsel %vm682, %v504, 0.0
  %v811 = vadd.f32 %v809, %v810
  %v812 = vsel %vm682, %v509, 0.0
  %v813 = vadd.f32 %v811, %v812
  %v814 = vsel %vm682, %v514, 0.0
  %v815 = vadd.f32 %v813, %v814
  %v816 = vsel %vm682, %v519, 0.0
  %v817 = vadd.f32 %v815, %v816
  %v818 = vsel %vm682, %v524, 0.0
  %v819 = vadd.f32 %v817, %v818
  %v820 = vsel %vm682, %v529, 0.0
  %v821 = vadd.f32 %v819, %v820
  %v822 = vsel %vm682, %v534, 0.0
  %v823 = vadd.f32 %v821, %v822
  %v824 = vsel %vm682, %v539, 0.0
  %v825 = vadd.f32 %v823, %v824
  %v826 = vsel %vm682, %v544, 0.0
  %v827 = vadd.f32 %v825, %v826
  %v828 = vsel %vm682, %v549, 0.0
  %v829 = vadd.f32 %v827, %v828
  %v830 = vsel %vm682, %v554, 0.0
  %v831 = vadd.f32 %v829, %v830
  %v832 = vsel %vm682, %v559, 0.0
  %v833 = vadd.f32 %v831, %v832
  %v834 = vsel %vm682, %v564, 0.0
  %v835 = vadd.f32 %v833, %v834
  %v836 = vsel %vm682, %v569, 0.0
  %v837 = vadd.f32 %v835, %v836
  %v838 = vsel %vm682, %v574, 0.0
  %v839 = vadd.f32 %v837, %v838
  %v840 = vsel %vm682, %v579, 0.0
  %v841 = vadd.f32 %v839, %v840
  %v842 = vsel %vm682, %v584, 0.0
  %v843 = vadd.f32 %v841, %v842
  %v844 = vsel %vm682, %v589, 0.0
  %v845 = vadd.f32 %v843, %v844
  %v846 = vsel %vm682, %v594, 0.0
  %v847 = vadd.f32 %v845, %v846
  %v848 = vsel %vm682, %v599, 0.0
  %v849 = vadd.f32 %v847, %v848
  %v850 = vsel %vm682, %v604, 0.0
  %v851 = vadd.f32 %v849, %v850
  %v852 = vsel %vm682, %v609, 0.0
  %v853 = vadd.f32 %v851, %v852
  %v854 = vsel %vm682, %v614, 0.0
  %v855 = vadd.f32 %v853, %v854
  %v856 = vsel %vm682, %v619, 0.0
  %v857 = vadd.f32 %v855, %v856
  %v858 = vsel %vm682, %v624, 0.0
  %v859 = vadd.f32 %v857, %v858
  %v860 = vsel %vm682, %v629, 0.0
  %v861 = vadd.f32 %v859, %v860
  %v862 = vsel %vm682, %v634, 0.0
  %v863 = vadd.f32 %v861, %v862
  %v864 = vsel %vm682, %v639, 0.0
  %v865 = vadd.f32 %v863, %v864
  %v866 = vsel %vm682, %v644, 0.0
  %v867 = vadd.f32 %v865, %v866
  %v868 = vsel %vm682, %v649, 0.0
  %v869 = vadd.f32 %v867, %v868
  %v870 = vsel %vm682, %v654, 0.0
  %v871 = vadd.f32 %v869, %v870
  %v872 = vsel %vm682, %v659, 0.0
  %v873 = vadd.f32 %v871, %v872
  %v874 = vsel %vm682, %v664, 0.0
  %v875 = vadd.f32 %v873, %v874
  %v876 = vsel %vm682, %v669, 0.0
  %v877 = vadd.f32 %v875, %v876
  %v878 = vsel %vm682, %v674, 0.0
  %v879 = vadd.f32 %v877, %v878
  %v880 = vsel %vm682, %v679, 0.0
  %v881 = vadd.f32 %v879, %v880
  %v882 = vrot.slane %v881, 4
  %v883 = vadd.f32 %v881, %v882
  %v884 = vrot.slane %v883, 2
  %v885 = vadd.f32 %v883, %v884
  %v886 = vrot.slane %v885, 1
  %v887 = vadd.f32 %v885, %v886
  %v888 = vadd.f32 %v754, %v887
  %vm889 = vcmask 57344
  %890 = vst.msk [vmem:[%s6] sm:$0x1] %vm889, %v888
  %v891 = vld [vmem:[%s7] sm:$0x1]
  %v892 = vmul.f32 %v364, %v364
  %v893 = vmul.f32 %v369, %v369
  %v894 = vmul.f32 %v374, %v374
  %v895 = vmul.f32 %v379, %v379
  %v896 = vmul.f32 %v384, %v384
  %v897 = vmul.f32 %v389, %v389
  %v898 = vmul.f32 %v394, %v394
  %v899 = vmul.f32 %v399, %v399
  %v900 = vmul.f32 %v404, %v404
  %v901 = vmul.f32 %v409, %v409
  %v902 = vmul.f32 %v414, %v414
  %v903 = vmul.f32 %v419, %v419
  %v904 = vmul.f32 %v424, %v424
  %v905 = vmul.f32 %v429, %v429
  %v906 = vmul.f32 %v434, %v434
  %v907 = vmul.f32 %v439, %v439
  %v908 = vmul.f32 %v444, %v444
  %v909 = vmul.f32 %v449, %v449
  %v910 = vmul.f32 %v454, %v454
  %v911 = vmul.f32 %v459, %v459
  %v912 = vmul.f32 %v464, %v464
  %v913 = vmul.f32 %v469, %v469
  %v914 = vmul.f32 %v474, %v474
  %v915 = vmul.f32 %v479, %v479
  %v916 = vmul.f32 %v484, %v484
  %v917 = vmul.f32 %v489, %v489
  %v918 = vmul.f32 %v494, %v494
  %v919 = vmul.f32 %v499, %v499
  %v920 = vmul.f32 %v504, %v504
  %v921 = vmul.f32 %v509, %v509
  %v922 = vmul.f32 %v514, %v514
  %v923 = vmul.f32 %v519, %v519
  %v924 = vmul.f32 %v524, %v524
  %v925 = vmul.f32 %v529, %v529
  %v926 = vmul.f32 %v534, %v534
  %v927 = vmul.f32 %v539, %v539
  %v928 = vmul.f32 %v544, %v544
  %v929 = vmul.f32 %v549, %v549
  %v930 = vmul.f32 %v554, %v554
  %v931 = vmul.f32 %v559, %v559
  %v932 = vmul.f32 %v564, %v564
  %v933 = vmul.f32 %v569, %v569
  %v934 = vmul.f32 %v574, %v574
  %v935 = vmul.f32 %v579, %v579
  %v936 = vmul.f32 %v584, %v584
  %v937 = vmul.f32 %v589, %v589
  %v938 = vmul.f32 %v594, %v594
  %v939 = vmul.f32 %v599, %v599
  %v940 = vmul.f32 %v604, %v604
  %v941 = vmul.f32 %v609, %v609
  %v942 = vmul.f32 %v614, %v614
  %v943 = vmul.f32 %v619, %v619
  %v944 = vmul.f32 %v624, %v624
  %v945 = vmul.f32 %v629, %v629
  %v946 = vmul.f32 %v634, %v634
  %v947 = vmul.f32 %v639, %v639
  %v948 = vmul.f32 %v644, %v644
  %v949 = vmul.f32 %v649, %v649
  %v950 = vmul.f32 %v654, %v654
  %v951 = vmul.f32 %v659, %v659
  %v952 = vmul.f32 %v664, %v664
  %v953 = vmul.f32 %v669, %v669
  %v954 = vmul.f32 %v674, %v674
  %v955 = vmul.f32 %v679, %v679
  %v956 = vsel %vm682, %v892, 0.0
  %v957 = vsel %vm682, %v893, 0.0
  %v958 = vadd.f32 %v956, %v957
  %v959 = vsel %vm682, %v894, 0.0
  %v960 = vadd.f32 %v958, %v959
  %v961 = vsel %vm682, %v895, 0.0
  %v962 = vadd.f32 %v960, %v961
  %v963 = vsel %vm682, %v896, 0.0
  %v964 = vadd.f32 %v962, %v963
  %v965 = vsel %vm682, %v897, 0.0
  %v966 = vadd.f32 %v964, %v965
  %v967 = vsel %vm682, %v898, 0.0
  %v968 = vadd.f32 %v966, %v967
  %v969 = vsel %vm682, %v899, 0.0
  %v970 = vadd.f32 %v968, %v969
  %v971 = vsel %vm682, %v900, 0.0
  %v972 = vadd.f32 %v970, %v971
  %v973 = vsel %vm682, %v901, 0.0
  %v974 = vadd.f32 %v972, %v973
  %v975 = vsel %vm682, %v902, 0.0
  %v976 = vadd.f32 %v974, %v975
  %v977 = vsel %vm682, %v903, 0.0
  %v978 = vadd.f32 %v976, %v977
  %v979 = vsel %vm682, %v904, 0.0
  %v980 = vadd.f32 %v978, %v979
  %v981 = vsel %vm682, %v905, 0.0
  %v982 = vadd.f32 %v980, %v981
  %v983 = vsel %vm682, %v906, 0.0
  %v984 = vadd.f32 %v982, %v983
  %v985 = vsel %vm682, %v907, 0.0
  %v986 = vadd.f32 %v984, %v985
  %v987 = vsel %vm682, %v908, 0.0
  %v988 = vadd.f32 %v986, %v987
  %v989 = vsel %vm682, %v909, 0.0
  %v990 = vadd.f32 %v988, %v989
  %v991 = vsel %vm682, %v910, 0.0
  %v992 = vadd.f32 %v990, %v991
  %v993 = vsel %vm682, %v911, 0.0
  %v994 = vadd.f32 %v992, %v993
  %v995 = vsel %vm682, %v912, 0.0
  %v996 = vadd.f32 %v994, %v995
  %v997 = vsel %vm682, %v913, 0.0
  %v998 = vadd.f32 %v996, %v997
  %v999 = vsel %vm682, %v914, 0.0
  %v1000 = vadd.f32 %v998, %v999
  %v1001 = vsel %vm682, %v915, 0.0
  %v1002 = vadd.f32 %v1000, %v1001
  %v1003 = vsel %vm682, %v916, 0.0
  %v1004 = vadd.f32 %v1002, %v1003
  %v1005 = vsel %vm682, %v917, 0.0
  %v1006 = vadd.f32 %v1004, %v1005
  %v1007 = vsel %vm682, %v918, 0.0
  %v1008 = vadd.f32 %v1006, %v1007
  %v1009 = vsel %vm682, %v919, 0.0
  %v1010 = vadd.f32 %v1008, %v1009
  %v1011 = vsel %vm682, %v920, 0.0
  %v1012 = vadd.f32 %v1010, %v1011
  %v1013 = vsel %vm682, %v921, 0.0
  %v1014 = vadd.f32 %v1012, %v1013
  %v1015 = vsel %vm682, %v922, 0.0
  %v1016 = vadd.f32 %v1014, %v1015
  %v1017 = vsel %vm682, %v923, 0.0
  %v1018 = vadd.f32 %v1016, %v1017
  %v1019 = vsel %vm682, %v924, 0.0
  %v1020 = vadd.f32 %v1018, %v1019
  %v1021 = vsel %vm682, %v925, 0.0
  %v1022 = vadd.f32 %v1020, %v1021
  %v1023 = vsel %vm682, %v926, 0.0
  %v1024 = vadd.f32 %v1022, %v1023
  %v1025 = vsel %vm682, %v927, 0.0
  %v1026 = vadd.f32 %v1024, %v1025
  %v1027 = vsel %vm682, %v928, 0.0
  %v1028 = vadd.f32 %v1026, %v1027
  %v1029 = vsel %vm682, %v929, 0.0
  %v1030 = vadd.f32 %v1028, %v1029
  %v1031 = vsel %vm682, %v930, 0.0
  %v1032 = vadd.f32 %v1030, %v1031
  %v1033 = vsel %vm682, %v931, 0.0
  %v1034 = vadd.f32 %v1032, %v1033
  %v1035 = vsel %vm682, %v932, 0.0
  %v1036 = vadd.f32 %v1034, %v1035
  %v1037 = vsel %vm682, %v933, 0.0
  %v1038 = vadd.f32 %v1036, %v1037
  %v1039 = vsel %vm682, %v934, 0.0
  %v1040 = vadd.f32 %v1038, %v1039
  %v1041 = vsel %vm682, %v935, 0.0
  %v1042 = vadd.f32 %v1040, %v1041
  %v1043 = vsel %vm682, %v936, 0.0
  %v1044 = vadd.f32 %v1042, %v1043
  %v1045 = vsel %vm682, %v937, 0.0
  %v1046 = vadd.f32 %v1044, %v1045
  %v1047 = vsel %vm682, %v938, 0.0
  %v1048 = vadd.f32 %v1046, %v1047
  %v1049 = vsel %vm682, %v939, 0.0
  %v1050 = vadd.f32 %v1048, %v1049
  %v1051 = vsel %vm682, %v940, 0.0
  %v1052 = vadd.f32 %v1050, %v1051
  %v1053 = vsel %vm682, %v941, 0.0
  %v1054 = vadd.f32 %v1052, %v1053
  %v1055 = vsel %vm682, %v942, 0.0
  %v1056 = vadd.f32 %v1054, %v1055
  %v1057 = vsel %vm682, %v943, 0.0
  %v1058 = vadd.f32 %v1056, %v1057
  %v1059 = vsel %vm682, %v944, 0.0
  %v1060 = vadd.f32 %v1058, %v1059
  %v1061 = vsel %vm682, %v945, 0.0
  %v1062 = vadd.f32 %v1060, %v1061
  %v1063 = vsel %vm682, %v946, 0.0
  %v1064 = vadd.f32 %v1062, %v1063
  %v1065 = vsel %vm682, %v947, 0.0
  %v1066 = vadd.f32 %v1064, %v1065
  %v1067 = vsel %vm682, %v948, 0.0
  %v1068 = vadd.f32 %v1066, %v1067
  %v1069 = vsel %vm682, %v949, 0.0
  %v1070 = vadd.f32 %v1068, %v1069
  %v1071 = vsel %vm682, %v950, 0.0
  %v1072 = vadd.f32 %v1070, %v1071
  %v1073 = vsel %vm682, %v951, 0.0
  %v1074 = vadd.f32 %v1072, %v1073
  %v1075 = vsel %vm682, %v952, 0.0
  %v1076 = vadd.f32 %v1074, %v1075
  %v1077 = vsel %vm682, %v953, 0.0
  %v1078 = vadd.f32 %v1076, %v1077
  %v1079 = vsel %vm682, %v954, 0.0
  %v1080 = vadd.f32 %v1078, %v1079
  %v1081 = vsel %vm682, %v955, 0.0
  %v1082 = vadd.f32 %v1080, %v1081
  %v1083 = vrot.slane %v1082, 4
  %v1084 = vadd.f32 %v1082, %v1083
  %v1085 = vrot.slane %v1084, 2
  %v1086 = vadd.f32 %v1084, %v1085
  %v1087 = vrot.slane %v1086, 1
  %v1088 = vadd.f32 %v1086, %v1087
  %v1089 = vadd.f32 %v891, %v1088
  %1090 = vst.msk [vmem:[%s7] sm:$0x1] %vm889, %v1089
  // Predicated region
  $region26: #{_lambda_.20} parent=0 // pred_check
    _
  $region27: #{_lambda_.20} parent=0 // pred_check_branch
    %1092 = sbr.rel (0) target = $region29
  $region28: #{_lambda_.20} parent=0 // pred_region
    _
  $region29: #{_lambda_.20} parent=0 // pred_fallthru
    _
  // Predicated region
  $region30: #{_lambda_.20} parent=0 // pred_check
    _
  $region31: #{_lambda_.20} parent=0 // pred_check_branch
    %1094 = sbr.rel (0) target = $region33
  $region32: #{_lambda_.20} parent=0 // pred_region
    _
  $region33: #{_lambda_.20} parent=0 // pred_fallthru
    _
  // Predicated region
  $region34: #{_lambda_.20} parent=0 // pred_check
    _
  $region35: #{_lambda_.20} parent=0 // pred_check_branch
    %1096 = sbr.rel (0) target = $region37
  $region36: #{_lambda_.20} parent=0 // pred_region
    _
  $region37: #{_lambda_.20} parent=0 // pred_fallthru
    _
  // Predicated region
  $region38: #{_lambda_.20} parent=0 // pred_check
    _
  $region39: #{_lambda_.20} parent=0 // pred_check_branch
    %1098 = sbr.rel (0) target = $region41
  $region40: #{_lambda_.20} parent=0 // pred_region
    _
  $region41: #{_lambda_.20} parent=0 // pred_fallthru
    _
  // Predicated region
  $region42: #{_lambda_.20} parent=0 // pred_check
    _
  $region43: #{_lambda_.20} parent=0 // pred_check_branch
    %1100 = sbr.rel (0) target = $region45
  $region44: #{_lambda_.20} parent=0 // pred_region
    _
  $region45: #{_lambda_.20} parent=0 // pred_fallthru
    _
  // Predicated region
  $region46: #{_lambda_.20} parent=0 // pred_check
    _
  $region47: #{_lambda_.20} parent=0 // pred_check_branch
    %1102 = sbr.rel (0) target = $region49
  $region48: #{_lambda_.20} parent=0 // pred_region
    _
  $region49: #{_lambda_.20} parent=0 // pred_fallthru
    _

// kernel: tile.105
$region0: #{tile.105}
  #allocation0 [shape = 's32[1]{0}', space=sflag, size = 0x4, scoped, tag = 'scoped memory for tile.105']
  %s0 = inlined_call_operand.vmem [shape: f32[8], index: 0, kind: input, shape index: {}]
  %s1 = inlined_call_operand.vmem [shape: f32[16,8], index: 1, kind: output, shape index: {}]
  // Predicated region
  $region2: #{tile.105} parent=0 // pred_check
    _
  $region3: #{tile.105} parent=0 // pred_check_branch
    %3 = sbr.rel (0) target = $region5
  $region4: #{tile.105} parent=0 // pred_region
    _
  $region5: #{tile.105} parent=0 // pred_fallthru
    _
  %v4 = vld [vmem:[%s0] ss:$0 sm:$0xff]
  %5 = vst [vmem:[%s1] sm:$0xff] %v4
  %s6 = scalar_lea.vmem %s1, 8
  %7 = vst [vmem:[%s6] sm:$0xff] %v4

// kernel: tile.106
$region0: #{tile.106}
  %s0 = inlined_call_operand.vmem [shape: f32[16,8], index: 0, kind: input, shape index: {}]
  %s1 = inlined_call_operand.vmem [shape: f32[1,128], index: 1, kind: output, shape index: {}]
  $region1: #{tile.106} parent=0
    #allocation0 [shape = 'u8[4096]{0}', space=vmem, size = 0x1000, scoped, tag = 'scoped mem for output reshape']
    %v2 = vld [vmem:[%s0] sm:$0x1]
    %vm3 = vcmask 64512
    %4 = vst.msk [vmem:[#allocation0] sm:$0x1] %vm3, %v2
    %s5 = scalar_lea.vmem %s0, 15
    %v6 = vld [vmem:[%s5] sm:$0x1]
    %7 = vrot.lane.b32.xlu0 %v6, 120
    %v8 = vpop.permute.xlu0 %7
    %vm9 = vcmask 1048512
    %10 = vst.msk [vmem:[#allocation0] sm:$0x1] %vm9, %v8
    %s11 = scalar_lea.vmem %s0, 14
    %v12 = vld [vmem:[%s11] sm:$0x1]
    %13 = vrot.lane.b32.xlu0 %v12, 112
    %v14 = vpop.permute.xlu0 %13
    %vm15 = vcmask 982912
    %16 = vst.msk [vmem:[#allocation0] sm:$0x1] %vm15, %v14
    %s17 = scalar_lea.vmem %s0, 13
    %v18 = vld [vmem:[%s17] sm:$0x1]
    %19 = vrot.lane.b32.xlu0 %v18, 104
    %v20 = vpop.permute.xlu0 %19
    %vm21 = vcmask 917312
    %22 = vst.msk [vmem:[#allocation0] sm:$0x1] %vm21, %v20
    %s23 = scalar_lea.vmem %s0, 12
    %v24 = vld [vmem:[%s23] sm:$0x1]
    %25 = vrot.lane.b32.xlu0 %v24, 96
    %v26 = vpop.permute.xlu0 %25
    %vm27 = vcmask 851712
    %28 = vst.msk [vmem:[#allocation0] sm:$0x1] %vm27, %v26
    %s29 = scalar_lea.vmem %s0, 11
    %v30 = vld [vmem:[%s29] sm:$0x1]
    %31 = vrot.lane.b32.xlu0 %v30, 88
    %v32 = vpop.permute.xlu0 %31
    %vm33 = vcmask 786112
    %34 = vst.msk [vmem:[#allocation0] sm:$0x1] %vm33, %v32
    %s35 = scalar_lea.vmem %s0, 10
    %v36 = vld [vmem:[%s35] sm:$0x1]
    %37 = vrot.lane.b32.xlu0 %v36, 80
    %v38 = vpop.permute.xlu0 %37
    %vm39 = vcmask 720512
    %40 = vst.msk [vmem:[#allocation0] sm:$0x1] %vm39, %v38
    %s41 = scalar_lea.vmem %s0, 9
    %v42 = vld [vmem:[%s41] sm:$0x1]
    %43 = vrot.lane.b32.xlu0 %v42, 72
    %v44 = vpop.permute.xlu0 %43
    %vm45 = vcmask 654912
    %46 = vst.msk [vmem:[#allocation0] sm:$0x1] %vm45, %v44
    %s47 = scalar_lea.vmem %s0, 8
    %v48 = vld [vmem:[%s47] sm:$0x1]
    %49 = vrot.lane.b32.xlu0 %v48, 64
    %v50 = vpop.permute.xlu0 %49
    %vm51 = vcmask 589312
    %52 = vst.msk [vmem:[#allocation0] sm:$0x1] %vm51, %v50
    %s53 = scalar_lea.vmem %s0, 7
    %v54 = vld [vmem:[%s53] sm:$0x1]
    %55 = vrot.lane.b32.xlu0 %v54, 56
    %v56 = vpop.permute.xlu0 %55
    %vm57 = vcmask 523712
    %58 = vst.msk [vmem:[#allocation0] sm:$0x1] %vm57, %v56
    %s59 = scalar_lea.vmem %s0, 6
    %v60 = vld [vmem:[%s59] sm:$0x1]
    %61 = vrot.lane.b32.xlu0 %v60, 48
    %v62 = vpop.permute.xlu0 %61
    %vm63 = vcmask 458112
    %64 = vst.msk [vmem:[#allocation0] sm:$0x1] %vm63, %v62
    %s65 = scalar_lea.vmem %s0, 5
    %v66 = vld [vmem:[%s65] sm:$0x1]
    %67 = vrot.lane.b32.xlu0 %v66, 40
    %v68 = vpop.permute.xlu0 %67
    %vm69 = vcmask 392512
    %70 = vst.msk [vmem:[#allocation0] sm:$0x1] %vm69, %v68
    %s71 = scalar_lea.vmem %s0, 4
    %v72 = vld [vmem:[%s71] sm:$0x1]
    %73 = vrot.lane.b32.xlu0 %v72, 32
    %v74 = vpop.permute.xlu0 %73
    %vm75 = vcmask 326912
    %76 = vst.msk [vmem:[#allocation0] sm:$0x1] %vm75, %v74
    %s77 = scalar_lea.vmem %s0, 3
    %v78 = vld [vmem:[%s77] sm:$0x1]
    %79 = vrot.lane.b32.xlu0 %v78, 24
    %v80 = vpop.permute.xlu0 %79
    %vm81 = vcmask 261312
    %82 = vst.msk [vmem:[#allocation0] sm:$0x1] %vm81, %v80
    %s83 = scalar_lea.vmem %s0, 2
    %v84 = vld [vmem:[%s83] sm:$0x1]
    %85 = vrot.lane.b32.xlu0 %v84, 16
    %v86 = vpop.permute.xlu0 %85
    %vm87 = vcmask 195712
    %88 = vst.msk [vmem:[#allocation0] sm:$0x1] %vm87, %v86
    %s89 = scalar_lea.vmem %s0, 1
    %v90 = vld [vmem:[%s89] sm:$0x1]
    %91 = vrot.lane.b32.xlu0 %v90, 8
    %v92 = vpop.permute.xlu0 %91
    %vm93 = vcmask 130112
    %94 = vst.msk [vmem:[#allocation0] sm:$0x1] %vm93, %v92
    %s96 = sshll.u32 1, 1
    %s97 = ssub.s32 %s96, 1
    %v99 = vld [vmem:[#allocation0] sm:%s97]
    %s100 = sshll.u32 1, 1
    %s101 = ssub.s32 %s100, 1
    %102 = vst [vmem:[%s1] sm:%s101] %v99

// kernel: _lambda_.21
$region0: #{_lambda_.21}
  #allocation0 [shape = 'u32[]', space=smem, size = 0x4, offset = 0x4, fixed_abs, tag = 'smem constant byte address 0x4 - core index']
  #allocation1 [shape = 'u32[144,128]{1,0:T(1,128)}', space=vmem, size = 0x12000, scoped, tag = 'internal scratch']
  %s0 = inlined_call_operand.vmem [shape: f32[32,128], index: 0, kind: input, shape index: {}]
  %s1 = inlined_call_operand.vmem [shape: f32[1,128], index: 1, kind: input, shape index: {}]
  %s2 = inlined_call_operand.vmem [shape: f32[1,128], index: 2, kind: input, shape index: {}]
  %s3 = inlined_call_operand.vmem [shape: f32[32,128], index: 3, kind: output, shape index: {}]
  %s4 = sld [smem:[#allocation0]]
  $region22: #{_lambda_.21} parent=0
    _
  %s6 = ssub.s32 1, %s4
  %s7 = scalar_select 0, %s6, %s4
  // Predicated region
  $region2: #{_lambda_.21} parent=0 // pred_check
    _
  $region3: #{_lambda_.21} parent=0 // pred_check_branch
    %9 = sbr.rel (0) target = $region5
  $region4: #{_lambda_.21} parent=0 // pred_region
    _
  $region5: #{_lambda_.21} parent=0 // pred_fallthru
    _
  // Predicated region
  $region6: #{_lambda_.21} parent=0 // pred_check
    _
  $region7: #{_lambda_.21} parent=0 // pred_check_branch
    %11 = sbr.rel (0) target = $region9
  $region8: #{_lambda_.21} parent=0 // pred_region
    _
  $region9: #{_lambda_.21} parent=0 // pred_fallthru
    _
  // Predicated region
  $region10: #{_lambda_.21} parent=0 // pred_check
    _
  $region11: #{_lambda_.21} parent=0 // pred_check_branch
    %13 = sbr.rel (0) target = $region13
  $region12: #{_lambda_.21} parent=0 // pred_region
    _
  $region13: #{_lambda_.21} parent=0 // pred_fallthru
    _
  %v14 = vld [vmem:[%s0] sm:$0xff]
  %v15 = vld [vmem:[%s0 + $0x8] sm:$0xff]
  %v16 = vld [vmem:[%s0 + $0x10] sm:$0xff]
  %v17 = vld [vmem:[%s0 + $0x18] sm:$0xff]
  %v18 = vld [vmem:[%s1] sm:$0x1]
  %v20 = vlaneseq
  %v21 = vshrl.u32 %v20, 7
  %v22 = vsub.s32 0, %v21
  %v23 = vrot.slane %v18, %v22
  %v25 = vmul.f32 %v14, %v23
  %v26 = vmul.f32 %v15, %v23
  %v27 = vmul.f32 %v16, %v23
  %v28 = vmul.f32 %v17, %v23
  %v29 = vld [vmem:[%s2] sm:$0x1]
  %v31 = vlaneseq
  %v32 = vshrl.u32 %v31, 7
  %v33 = vsub.s32 0, %v32
  %v34 = vrot.slane %v29, %v33
  %v36 = vadd.f32 %v25, %v34
  %v37 = vadd.f32 %v26, %v34
  %v38 = vadd.f32 %v27, %v34
  %v39 = vadd.f32 %v28, %v34
  %v40 = vmax.f32 %v36, 0.0
  %v41 = vmax.f32 %v37, 0.0
  %v42 = vmax.f32 %v38, 0.0
  %v43 = vmax.f32 %v39, 0.0
  %44 = vst [vmem:[%s3] sm:$0xff] %v40
  %45 = vst [vmem:[%s3 + $0x8] sm:$0xff] %v41
  %46 = vst [vmem:[%s3 + $0x10] sm:$0xff] %v42
  %47 = vst [vmem:[%s3 + $0x18] sm:$0xff] %v43
  // Predicated region
  $region14: #{_lambda_.21} parent=0 // pred_check
    _
  $region15: #{_lambda_.21} parent=0 // pred_check_branch
    %49 = sbr.rel (0) target = $region17
  $region16: #{_lambda_.21} parent=0 // pred_region
    _
  $region17: #{_lambda_.21} parent=0 // pred_fallthru
    _
  // Predicated region
  $region18: #{_lambda_.21} parent=0 // pred_check
    _
  $region19: #{_lambda_.21} parent=0 // pred_check_branch
    %51 = sbr.rel (0) target = $region21
  $region20: #{_lambda_.21} parent=0 // pred_region
    _
  $region21: #{_lambda_.21} parent=0 // pred_fallthru
    _

// kernel: _lambda_.22
$region0: #{_lambda_.22}
  #allocation0 [shape = 'u32[]', space=smem, size = 0x4, offset = 0x4, fixed_abs, tag = 'smem constant byte address 0x4 - core index']
  #allocation1 [shape = 'u32[144,128]{1,0:T(1,128)}', space=vmem, size = 0x12000, scoped, tag = 'internal scratch']
  %s0 = inlined_call_operand.vmem [shape: f32[512,72], index: 0, kind: input, shape index: {}]
  %s1 = inlined_call_operand.vmem [shape: f32[72,18], index: 1, kind: input, shape index: {}]
  %s2 = inlined_call_operand.vmem [shape: f32[1,18], index: 2, kind: input, shape index: {}]
  %s3 = inlined_call_operand.vmem [shape: f32[1,72], index: 3, kind: input, shape index: {}, may-alias: {3,4}]
  %s4 = inlined_call_operand.vmem [shape: f32[1,72], index: 4, kind: input, shape index: {}, may-alias: {3,4}]
  %s5 = inlined_call_operand.vmem [shape: f32[512,18], index: 5, kind: output, shape index: {0}]
  %s6 = inlined_call_operand.vmem [shape: f32[1,18], index: 6, kind: output, shape index: {1}]
  %s7 = inlined_call_operand.vmem [shape: f32[1,18], index: 7, kind: output, shape index: {2}]
  %8 = xla_tuple %s5, %s6, %s7
  %s9 = sld [smem:[#allocation0]]
  $region50: #{_lambda_.22} parent=0
    _
  %s11 = ssub.s32 1, %s9
  %s12 = scalar_select 0, %s11, %s9
  // Predicated region
  $region2: #{_lambda_.22} parent=0 // pred_check
    _
  $region3: #{_lambda_.22} parent=0 // pred_check_branch
    %14 = sbr.rel (0) target = $region5
  $region4: #{_lambda_.22} parent=0 // pred_region
    _
  $region5: #{_lambda_.22} parent=0 // pred_fallthru
    _
  // Predicated region
  $region6: #{_lambda_.22} parent=0 // pred_check
    _
  $region7: #{_lambda_.22} parent=0 // pred_check_branch
    %16 = sbr.rel (0) target = $region9
  $region8: #{_lambda_.22} parent=0 // pred_region
    _
  $region9: #{_lambda_.22} parent=0 // pred_fallthru
    _
  // Predicated region
  $region10: #{_lambda_.22} parent=0 // pred_check
    _
  $region11: #{_lambda_.22} parent=0 // pred_check_branch
    %18 = sbr.rel (0) target = $region13
  $region12: #{_lambda_.22} parent=0 // pred_region
    _
  $region13: #{_lambda_.22} parent=0 // pred_fallthru
    _
  // Predicated region
  $region14: #{_lambda_.22} parent=0 // pred_check
    _
  $region15: #{_lambda_.22} parent=0 // pred_check_branch
    %20 = sbr.rel (0) target = $region17
  $region16: #{_lambda_.22} parent=0 // pred_region
    _
  $region17: #{_lambda_.22} parent=0 // pred_fallthru
    _
  // Predicated region
  $region18: #{_lambda_.22} parent=0 // pred_check
    _
  $region19: #{_lambda_.22} parent=0 // pred_check_branch
    %22 = sbr.rel (0) target = $region21
  $region20: #{_lambda_.22} parent=0 // pred_region
    _
  $region21: #{_lambda_.22} parent=0 // pred_fallthru
    _
  %v23 = vld [vmem:[%s0] sm:$0xff]
  %v24 = vld [vmem:[%s0 + $0x8] sm:$0xff]
  %v25 = vld [vmem:[%s0 + $0x10] sm:$0xff]
  %v26 = vld [vmem:[%s0 + $0x18] sm:$0xff]
  %v27 = vld [vmem:[%s0 + $0x20] sm:$0xff]
  %v28 = vld [vmem:[%s0 + $0x28] sm:$0xff]
  %v29 = vld [vmem:[%s0 + $0x30] sm:$0xff]
  %v30 = vld [vmem:[%s0 + $0x38] sm:$0xff]
  %v31 = vld [vmem:[%s0 + $0x40] sm:$0xff]
  %v32 = vld [vmem:[%s0 + $0x48] sm:$0xff]
  %v33 = vld [vmem:[%s0 + $0x50] sm:$0xff]
  %v34 = vld [vmem:[%s0 + $0x58] sm:$0xff]
  %v35 = vld [vmem:[%s0 + $0x60] sm:$0xff]
  %v36 = vld [vmem:[%s0 + $0x68] sm:$0xff]
  %v37 = vld [vmem:[%s0 + $0x70] sm:$0xff]
  %v38 = vld [vmem:[%s0 + $0x78] sm:$0xff]
  %v39 = vld [vmem:[%s0 + $0x80] sm:$0xff]
  %v40 = vld [vmem:[%s0 + $0x88] sm:$0xff]
  %v41 = vld [vmem:[%s0 + $0x90] sm:$0xff]
  %v42 = vld [vmem:[%s0 + $0x98] sm:$0xff]
  %v43 = vld [vmem:[%s0 + $0xa0] sm:$0xff]
  %v44 = vld [vmem:[%s0 + $0xa8] sm:$0xff]
  %v45 = vld [vmem:[%s0 + $0xb0] sm:$0xff]
  %v46 = vld [vmem:[%s0 + $0xb8] sm:$0xff]
  %v47 = vld [vmem:[%s0 + $0xc0] sm:$0xff]
  %v48 = vld [vmem:[%s0 + $0xc8] sm:$0xff]
  %v49 = vld [vmem:[%s0 + $0xd0] sm:$0xff]
  %v50 = vld [vmem:[%s0 + $0xd8] sm:$0xff]
  %v51 = vld [vmem:[%s0 + $0xe0] sm:$0xff]
  %v52 = vld [vmem:[%s0 + $0xe8] sm:$0xff]
  %v53 = vld [vmem:[%s0 + $0xf0] sm:$0xff]
  %v54 = vld [vmem:[%s0 + $0xf8] sm:$0xff]
  %v55 = vld [vmem:[%s0 + $0x100] sm:$0xff]
  %v56 = vld [vmem:[%s0 + $0x108] sm:$0xff]
  %v57 = vld [vmem:[%s0 + $0x110] sm:$0xff]
  %v58 = vld [vmem:[%s0 + $0x118] sm:$0xff]
  %v59 = vld [vmem:[%s0 + $0x120] sm:$0xff]
  %v60 = vld [vmem:[%s0 + $0x128] sm:$0xff]
  %v61 = vld [vmem:[%s0 + $0x130] sm:$0xff]
  %v62 = vld [vmem:[%s0 + $0x138] sm:$0xff]
  %v63 = vld [vmem:[%s0 + $0x140] sm:$0xff]
  %v64 = vld [vmem:[%s0 + $0x148] sm:$0xff]
  %v65 = vld [vmem:[%s0 + $0x150] sm:$0xff]
  %v66 = vld [vmem:[%s0 + $0x158] sm:$0xff]
  %v67 = vld [vmem:[%s0 + $0x160] sm:$0xff]
  %v68 = vld [vmem:[%s0 + $0x168] sm:$0xff]
  %v69 = vld [vmem:[%s0 + $0x170] sm:$0xff]
  %v70 = vld [vmem:[%s0 + $0x178] sm:$0xff]
  %v71 = vld [vmem:[%s0 + $0x180] sm:$0xff]
  %v72 = vld [vmem:[%s0 + $0x188] sm:$0xff]
  %v73 = vld [vmem:[%s0 + $0x190] sm:$0xff]
  %v74 = vld [vmem:[%s0 + $0x198] sm:$0xff]
  %v75 = vld [vmem:[%s0 + $0x1a0] sm:$0xff]
  %v76 = vld [vmem:[%s0 + $0x1a8] sm:$0xff]
  %v77 = vld [vmem:[%s0 + $0x1b0] sm:$0xff]
  %v78 = vld [vmem:[%s0 + $0x1b8] sm:$0xff]
  %v79 = vld [vmem:[%s0 + $0x1c0] sm:$0xff]
  %v80 = vld [vmem:[%s0 + $0x1c8] sm:$0xff]
  %v81 = vld [vmem:[%s0 + $0x1d0] sm:$0xff]
  %v82 = vld [vmem:[%s0 + $0x1d8] sm:$0xff]
  %v83 = vld [vmem:[%s0 + $0x1e0] sm:$0xff]
  %v84 = vld [vmem:[%s0 + $0x1e8] sm:$0xff]
  %v85 = vld [vmem:[%s0 + $0x1f0] sm:$0xff]
  %v86 = vld [vmem:[%s0 + $0x1f8] sm:$0xff]
  %v87 = vld [vmem:[%s1] sm:$0xff]
  %v88 = vld [vmem:[%s1 + $0x8] sm:$0xff]
  %v89 = vld [vmem:[%s1 + $0x10] sm:$0xff]
  %v90 = vld [vmem:[%s1 + $0x18] sm:$0xff]
  %v91 = vld [vmem:[%s1 + $0x20] sm:$0xff]
  %v92 = vld [vmem:[%s1 + $0x28] sm:$0xff]
  %v93 = vld [vmem:[%s1 + $0x30] sm:$0xff]
  %v94 = vld [vmem:[%s1 + $0x38] sm:$0xff]
  %v95 = vld [vmem:[%s1 + $0x40] sm:$0xff]
  %v96 = vld [vmem:[%s2] sm:$0x1]
  %v98 = vlaneseq
  %v99 = vshrl.u32 %v98, 7
  %v100 = vsub.s32 0, %v99
  %v101 = vrot.slane %v96, %v100
  %vm103 = vcmask 588800
  %v105 = vsel %vm103, %v23, 0
  %v108 = vsel %vm103, %v24, 0
  %v111 = vsel %vm103, %v25, 0
  %v114 = vsel %vm103, %v26, 0
  %v117 = vsel %vm103, %v27, 0
  %v120 = vsel %vm103, %v28, 0
  %v123 = vsel %vm103, %v29, 0
  %v126 = vsel %vm103, %v30, 0
  %v129 = vsel %vm103, %v31, 0
  %v132 = vsel %vm103, %v32, 0
  %v135 = vsel %vm103, %v33, 0
  %v138 = vsel %vm103, %v34, 0
  %v141 = vsel %vm103, %v35, 0
  %v144 = vsel %vm103, %v36, 0
  %v147 = vsel %vm103, %v37, 0
  %v150 = vsel %vm103, %v38, 0
  %v153 = vsel %vm103, %v39, 0
  %v156 = vsel %vm103, %v40, 0
  %v159 = vsel %vm103, %v41, 0
  %v162 = vsel %vm103, %v42, 0
  %v165 = vsel %vm103, %v43, 0
  %v168 = vsel %vm103, %v44, 0
  %v171 = vsel %vm103, %v45, 0
  %v174 = vsel %vm103, %v46, 0
  %v177 = vsel %vm103, %v47, 0
  %v180 = vsel %vm103, %v48, 0
  %v183 = vsel %vm103, %v49, 0
  %v186 = vsel %vm103, %v50, 0
  %v189 = vsel %vm103, %v51, 0
  %v192 = vsel %vm103, %v52, 0
  %v195 = vsel %vm103, %v53, 0
  %v198 = vsel %vm103, %v54, 0
  %v201 = vsel %vm103, %v55, 0
  %v204 = vsel %vm103, %v56, 0
  %v207 = vsel %vm103, %v57, 0
  %v210 = vsel %vm103, %v58, 0
  %v213 = vsel %vm103, %v59, 0
  %v216 = vsel %vm103, %v60, 0
  %v219 = vsel %vm103, %v61, 0
  %v222 = vsel %vm103, %v62, 0
  %v225 = vsel %vm103, %v63, 0
  %v228 = vsel %vm103, %v64, 0
  %v231 = vsel %vm103, %v65, 0
  %v234 = vsel %vm103, %v66, 0
  %v237 = vsel %vm103, %v67, 0
  %v240 = vsel %vm103, %v68, 0
  %v243 = vsel %vm103, %v69, 0
  %v246 = vsel %vm103, %v70, 0
  %v249 = vsel %vm103, %v71, 0
  %v252 = vsel %vm103, %v72, 0
  %v255 = vsel %vm103, %v73, 0
  %v258 = vsel %vm103, %v74, 0
  %v261 = vsel %vm103, %v75, 0
  %v264 = vsel %vm103, %v76, 0
  %v267 = vsel %vm103, %v77, 0
  %v270 = vsel %vm103, %v78, 0
  %v273 = vsel %vm103, %v79, 0
  %v276 = vsel %vm103, %v80, 0
  %v279 = vsel %vm103, %v81, 0
  %v282 = vsel %vm103, %v82, 0
  %v285 = vsel %vm103, %v83, 0
  %v288 = vsel %vm103, %v84, 0
  %v291 = vsel %vm103, %v85, 0
  %v294 = vsel %vm103, %v86, 0
  %296 = vmatprep.subr.mxu0 0.0
  %297 = vmatpush1.msra.mxu0 0.0
  %298 = vmatprep.subr.mxu0 0.0
  %299 = vmatpush1.msra.mxu0 0.0
  %300 = vmatprep.subr.mxu0 0.0
  %301 = vmatpush1.msra.mxu0 0.0
  %302 = vmatprep.subr.mxu0 0.0
  %303 = vmatpush1.msra.mxu0 0.0
  %304 = vmatprep.subr.mxu0 0.0
  %305 = vmatpush1.msra.mxu0 0.0
  %306 = vmatprep.subr.mxu0 0.0
  %307 = vmatpush1.msra.mxu0 0.0
  %308 = vmatprep.subr.mxu0 0.0
  %309 = vmatpush1.msra.mxu0 0.0
  %310 = vmatprep.subr.mxu0 0.0
  %311 = vmatpush1.msra.mxu0 %v95
  %312 = vmatprep.subr.mxu0 0.0
  %313 = vmatpush1.msra.mxu0 %v94
  %314 = vmatprep.subr.mxu0 0.0
  %315 = vmatpush1.msra.mxu0 %v93
  %316 = vmatprep.subr.mxu0 0.0
  %317 = vmatpush1.msra.mxu0 %v92
  %318 = vmatprep.subr.mxu0 0.0
  %319 = vmatpush1.msra.mxu0 %v91
  %320 = vmatprep.subr.mxu0 0.0
  %321 = vmatpush1.msra.mxu0 %v90
  %322 = vmatprep.subr.mxu0 0.0
  %323 = vmatpush1.msra.mxu0 %v89
  %324 = vmatprep.subr.mxu0 0.0
  %325 = vmatpush1.msra.mxu0 %v88
  %326 = vmatprep.subr.mxu0 0.0
  %327 = vmatpush1.msra.mxu0 %v87
  %328 = vmatprep.subr.mxu0 0.0
  %329 = vmatpush2.msra.mxu0 0.0
  %330 = vmatprep.subr.mxu0 0.0
  %331 = vmatpush2.msra.mxu0 0.0
  %332 = vmatprep.subr.mxu0 0.0
  %333 = vmatpush2.msra.mxu0 0.0
  %334 = vmatprep.subr.mxu0 0.0
  %335 = vmatpush2.msra.mxu0 0.0
  %336 = vmatprep.subr.mxu0 0.0
  %337 = vmatpush2.msra.mxu0 0.0
  %338 = vmatprep.subr.mxu0 0.0
  %339 = vmatpush2.msra.mxu0 0.0
  %340 = vmatprep.subr.mxu0 0.0
  %341 = vmatpush2.msra.mxu0 0.0
  %342 = vmatprep.subr.mxu0 0.0
  %343 = vmatpush2.msra.mxu0 0.0
  %344 = vmatprep.subr.mxu0 0.0
  %345 = vmatpush2.msra.mxu0 0.0
  %346 = vmatprep.subr.mxu0 0.0
  %347 = vmatpush2.msra.mxu0 0.0
  %348 = vmatprep.subr.mxu0 0.0
  %349 = vmatpush2.msra.mxu0 0.0
  %350 = vmatprep.subr.mxu0 0.0
  %351 = vmatpush2.msra.mxu0 0.0
  %352 = vmatprep.subr.mxu0 0.0
  %353 = vmatpush2.msra.mxu0 0.0
  %354 = vmatprep.subr.mxu0 0.0
  %355 = vmatpush2.msra.mxu0 0.0
  %356 = vmatprep.subr.mxu0 0.0
  %357 = vmatpush2.msra.mxu0 0.0
  %358 = vmatprep.subr.mxu0 0.0
  %359 = vmatpush2.msra.mxu0 0.0
  %360 = vmatprep.mubr.f32.mxu0 0.0
  %361 = vmatmul.mubr.f32.gmra.mxu0 %v105
  %v362 = vpop.f32.mrf.mxu0
  %v363 = vadd.f32 %v101, %v362
  %v364 = vpop.f32.mrf.mxu0
  %365 = vmatprep.mubr.f32.mxu0 0.0
  %366 = vmatmul.mubr.f32.gmra.mxu0 %v108
  %v367 = vpop.f32.mrf.mxu0
  %v368 = vadd.f32 %v101, %v367
  %v369 = vpop.f32.mrf.mxu0
  %370 = vmatprep.mubr.f32.mxu0 0.0
  %371 = vmatmul.mubr.f32.gmra.mxu0 %v111
  %v372 = vpop.f32.mrf.mxu0
  %v373 = vadd.f32 %v101, %v372
  %v374 = vpop.f32.mrf.mxu0
  %375 = vmatprep.mubr.f32.mxu0 0.0
  %376 = vmatmul.mubr.f32.gmra.mxu0 %v114
  %v377 = vpop.f32.mrf.mxu0
  %v378 = vadd.f32 %v101, %v377
  %v379 = vpop.f32.mrf.mxu0
  %380 = vmatprep.mubr.f32.mxu0 0.0
  %381 = vmatmul.mubr.f32.gmra.mxu0 %v117
  %v382 = vpop.f32.mrf.mxu0
  %v383 = vadd.f32 %v101, %v382
  %v384 = vpop.f32.mrf.mxu0
  %385 = vmatprep.mubr.f32.mxu0 0.0
  %386 = vmatmul.mubr.f32.gmra.mxu0 %v120
  %v387 = vpop.f32.mrf.mxu0
  %v388 = vadd.f32 %v101, %v387
  %v389 = vpop.f32.mrf.mxu0
  %390 = vmatprep.mubr.f32.mxu0 0.0
  %391 = vmatmul.mubr.f32.gmra.mxu0 %v123
  %v392 = vpop.f32.mrf.mxu0
  %v393 = vadd.f32 %v101, %v392
  %v394 = vpop.f32.mrf.mxu0
  %395 = vmatprep.mubr.f32.mxu0 0.0
  %396 = vmatmul.mubr.f32.gmra.mxu0 %v126
  %v397 = vpop.f32.mrf.mxu0
  %v398 = vadd.f32 %v101, %v397
  %v399 = vpop.f32.mrf.mxu0
  %400 = vmatprep.mubr.f32.mxu0 0.0
  %401 = vmatmul.mubr.f32.gmra.mxu0 %v129
  %v402 = vpop.f32.mrf.mxu0
  %v403 = vadd.f32 %v101, %v402
  %v404 = vpop.f32.mrf.mxu0
  %405 = vmatprep.mubr.f32.mxu0 0.0
  %406 = vmatmul.mubr.f32.gmra.mxu0 %v132
  %v407 = vpop.f32.mrf.mxu0
  %v408 = vadd.f32 %v101, %v407
  %v409 = vpop.f32.mrf.mxu0
  %410 = vmatprep.mubr.f32.mxu0 0.0
  %411 = vmatmul.mubr.f32.gmra.mxu0 %v135
  %v412 = vpop.f32.mrf.mxu0
  %v413 = vadd.f32 %v101, %v412
  %v414 = vpop.f32.mrf.mxu0
  %415 = vmatprep.mubr.f32.mxu0 0.0
  %416 = vmatmul.mubr.f32.gmra.mxu0 %v138
  %v417 = vpop.f32.mrf.mxu0
  %v418 = vadd.f32 %v101, %v417
  %v419 = vpop.f32.mrf.mxu0
  %420 = vmatprep.mubr.f32.mxu0 0.0
  %421 = vmatmul.mubr.f32.gmra.mxu0 %v141
  %v422 = vpop.f32.mrf.mxu0
  %v423 = vadd.f32 %v101, %v422
  %v424 = vpop.f32.mrf.mxu0
  %425 = vmatprep.mubr.f32.mxu0 0.0
  %426 = vmatmul.mubr.f32.gmra.mxu0 %v144
  %v427 = vpop.f32.mrf.mxu0
  %v428 = vadd.f32 %v101, %v427
  %v429 = vpop.f32.mrf.mxu0
  %430 = vmatprep.mubr.f32.mxu0 0.0
  %431 = vmatmul.mubr.f32.gmra.mxu0 %v147
  %v432 = vpop.f32.mrf.mxu0
  %v433 = vadd.f32 %v101, %v432
  %v434 = vpop.f32.mrf.mxu0
  %435 = vmatprep.mubr.f32.mxu0 0.0
  %436 = vmatmul.mubr.f32.gmra.mxu0 %v150
  %v437 = vpop.f32.mrf.mxu0
  %v438 = vadd.f32 %v101, %v437
  %v439 = vpop.f32.mrf.mxu0
  %440 = vmatprep.mubr.f32.mxu0 0.0
  %441 = vmatmul.mubr.f32.gmra.mxu0 %v153
  %v442 = vpop.f32.mrf.mxu0
  %v443 = vadd.f32 %v101, %v442
  %v444 = vpop.f32.mrf.mxu0
  %445 = vmatprep.mubr.f32.mxu0 0.0
  %446 = vmatmul.mubr.f32.gmra.mxu0 %v156
  %v447 = vpop.f32.mrf.mxu0
  %v448 = vadd.f32 %v101, %v447
  %v449 = vpop.f32.mrf.mxu0
  %450 = vmatprep.mubr.f32.mxu0 0.0
  %451 = vmatmul.mubr.f32.gmra.mxu0 %v159
  %v452 = vpop.f32.mrf.mxu0
  %v453 = vadd.f32 %v101, %v452
  %v454 = vpop.f32.mrf.mxu0
  %455 = vmatprep.mubr.f32.mxu0 0.0
  %456 = vmatmul.mubr.f32.gmra.mxu0 %v162
  %v457 = vpop.f32.mrf.mxu0
  %v458 = vadd.f32 %v101, %v457
  %v459 = vpop.f32.mrf.mxu0
  %460 = vmatprep.mubr.f32.mxu0 0.0
  %461 = vmatmul.mubr.f32.gmra.mxu0 %v165
  %v462 = vpop.f32.mrf.mxu0
  %v463 = vadd.f32 %v101, %v462
  %v464 = vpop.f32.mrf.mxu0
  %465 = vmatprep.mubr.f32.mxu0 0.0
  %466 = vmatmul.mubr.f32.gmra.mxu0 %v168
  %v467 = vpop.f32.mrf.mxu0
  %v468 = vadd.f32 %v101, %v467
  %v469 = vpop.f32.mrf.mxu0
  %470 = vmatprep.mubr.f32.mxu0 0.0
  %471 = vmatmul.mubr.f32.gmra.mxu0 %v171
  %v472 = vpop.f32.mrf.mxu0
  %v473 = vadd.f32 %v101, %v472
  %v474 = vpop.f32.mrf.mxu0
  %475 = vmatprep.mubr.f32.mxu0 0.0
  %476 = vmatmul.mubr.f32.gmra.mxu0 %v174
  %v477 = vpop.f32.mrf.mxu0
  %v478 = vadd.f32 %v101, %v477
  %v479 = vpop.f32.mrf.mxu0
  %480 = vmatprep.mubr.f32.mxu0 0.0
  %481 = vmatmul.mubr.f32.gmra.mxu0 %v177
  %v482 = vpop.f32.mrf.mxu0
  %v483 = vadd.f32 %v101, %v482
  %v484 = vpop.f32.mrf.mxu0
  %485 = vmatprep.mubr.f32.mxu0 0.0
  %486 = vmatmul.mubr.f32.gmra.mxu0 %v180
  %v487 = vpop.f32.mrf.mxu0
  %v488 = vadd.f32 %v101, %v487
  %v489 = vpop.f32.mrf.mxu0
  %490 = vmatprep.mubr.f32.mxu0 0.0
  %491 = vmatmul.mubr.f32.gmra.mxu0 %v183
  %v492 = vpop.f32.mrf.mxu0
  %v493 = vadd.f32 %v101, %v492
  %v494 = vpop.f32.mrf.mxu0
  %495 = vmatprep.mubr.f32.mxu0 0.0
  %496 = vmatmul.mubr.f32.gmra.mxu0 %v186
  %v497 = vpop.f32.mrf.mxu0
  %v498 = vadd.f32 %v101, %v497
  %v499 = vpop.f32.mrf.mxu0
  %500 = vmatprep.mubr.f32.mxu0 0.0
  %501 = vmatmul.mubr.f32.gmra.mxu0 %v189
  %v502 = vpop.f32.mrf.mxu0
  %v503 = vadd.f32 %v101, %v502
  %v504 = vpop.f32.mrf.mxu0
  %505 = vmatprep.mubr.f32.mxu0 0.0
  %506 = vmatmul.mubr.f32.gmra.mxu0 %v192
  %v507 = vpop.f32.mrf.mxu0
  %v508 = vadd.f32 %v101, %v507
  %v509 = vpop.f32.mrf.mxu0
  %510 = vmatprep.mubr.f32.mxu0 0.0
  %511 = vmatmul.mubr.f32.gmra.mxu0 %v195
  %v512 = vpop.f32.mrf.mxu0
  %v513 = vadd.f32 %v101, %v512
  %v514 = vpop.f32.mrf.mxu0
  %515 = vmatprep.mubr.f32.mxu0 0.0
  %516 = vmatmul.mubr.f32.gmra.mxu0 %v198
  %v517 = vpop.f32.mrf.mxu0
  %v518 = vadd.f32 %v101, %v517
  %v519 = vpop.f32.mrf.mxu0
  %520 = vmatprep.mubr.f32.mxu0 0.0
  %521 = vmatmul.mubr.f32.gmra.mxu0 %v201
  %v522 = vpop.f32.mrf.mxu0
  %v523 = vadd.f32 %v101, %v522
  %v524 = vpop.f32.mrf.mxu0
  %525 = vmatprep.mubr.f32.mxu0 0.0
  %526 = vmatmul.mubr.f32.gmra.mxu0 %v204
  %v527 = vpop.f32.mrf.mxu0
  %v528 = vadd.f32 %v101, %v527
  %v529 = vpop.f32.mrf.mxu0
  %530 = vmatprep.mubr.f32.mxu0 0.0
  %531 = vmatmul.mubr.f32.gmra.mxu0 %v207
  %v532 = vpop.f32.mrf.mxu0
  %v533 = vadd.f32 %v101, %v532
  %v534 = vpop.f32.mrf.mxu0
  %535 = vmatprep.mubr.f32.mxu0 0.0
  %536 = vmatmul.mubr.f32.gmra.mxu0 %v210
  %v537 = vpop.f32.mrf.mxu0
  %v538 = vadd.f32 %v101, %v537
  %v539 = vpop.f32.mrf.mxu0
  %540 = vmatprep.mubr.f32.mxu0 0.0
  %541 = vmatmul.mubr.f32.gmra.mxu0 %v213
  %v542 = vpop.f32.mrf.mxu0
  %v543 = vadd.f32 %v101, %v542
  %v544 = vpop.f32.mrf.mxu0
  %545 = vmatprep.mubr.f32.mxu0 0.0
  %546 = vmatmul.mubr.f32.gmra.mxu0 %v216
  %v547 = vpop.f32.mrf.mxu0
  %v548 = vadd.f32 %v101, %v547
  %v549 = vpop.f32.mrf.mxu0
  %550 = vmatprep.mubr.f32.mxu0 0.0
  %551 = vmatmul.mubr.f32.gmra.mxu0 %v219
  %v552 = vpop.f32.mrf.mxu0
  %v553 = vadd.f32 %v101, %v552
  %v554 = vpop.f32.mrf.mxu0
  %555 = vmatprep.mubr.f32.mxu0 0.0
  %556 = vmatmul.mubr.f32.gmra.mxu0 %v222
  %v557 = vpop.f32.mrf.mxu0
  %v558 = vadd.f32 %v101, %v557
  %v559 = vpop.f32.mrf.mxu0
  %560 = vmatprep.mubr.f32.mxu0 0.0
  %561 = vmatmul.mubr.f32.gmra.mxu0 %v225
  %v562 = vpop.f32.mrf.mxu0
  %v563 = vadd.f32 %v101, %v562
  %v564 = vpop.f32.mrf.mxu0
  %565 = vmatprep.mubr.f32.mxu0 0.0
  %566 = vmatmul.mubr.f32.gmra.mxu0 %v228
  %v567 = vpop.f32.mrf.mxu0
  %v568 = vadd.f32 %v101, %v567
  %v569 = vpop.f32.mrf.mxu0
  %570 = vmatprep.mubr.f32.mxu0 0.0
  %571 = vmatmul.mubr.f32.gmra.mxu0 %v231
  %v572 = vpop.f32.mrf.mxu0
  %v573 = vadd.f32 %v101, %v572
  %v574 = vpop.f32.mrf.mxu0
  %575 = vmatprep.mubr.f32.mxu0 0.0
  %576 = vmatmul.mubr.f32.gmra.mxu0 %v234
  %v577 = vpop.f32.mrf.mxu0
  %v578 = vadd.f32 %v101, %v577
  %v579 = vpop.f32.mrf.mxu0
  %580 = vmatprep.mubr.f32.mxu0 0.0
  %581 = vmatmul.mubr.f32.gmra.mxu0 %v237
  %v582 = vpop.f32.mrf.mxu0
  %v583 = vadd.f32 %v101, %v582
  %v584 = vpop.f32.mrf.mxu0
  %585 = vmatprep.mubr.f32.mxu0 0.0
  %586 = vmatmul.mubr.f32.gmra.mxu0 %v240
  %v587 = vpop.f32.mrf.mxu0
  %v588 = vadd.f32 %v101, %v587
  %v589 = vpop.f32.mrf.mxu0
  %590 = vmatprep.mubr.f32.mxu0 0.0
  %591 = vmatmul.mubr.f32.gmra.mxu0 %v243
  %v592 = vpop.f32.mrf.mxu0
  %v593 = vadd.f32 %v101, %v592
  %v594 = vpop.f32.mrf.mxu0
  %595 = vmatprep.mubr.f32.mxu0 0.0
  %596 = vmatmul.mubr.f32.gmra.mxu0 %v246
  %v597 = vpop.f32.mrf.mxu0
  %v598 = vadd.f32 %v101, %v597
  %v599 = vpop.f32.mrf.mxu0
  %600 = vmatprep.mubr.f32.mxu0 0.0
  %601 = vmatmul.mubr.f32.gmra.mxu0 %v249
  %v602 = vpop.f32.mrf.mxu0
  %v603 = vadd.f32 %v101, %v602
  %v604 = vpop.f32.mrf.mxu0
  %605 = vmatprep.mubr.f32.mxu0 0.0
  %606 = vmatmul.mubr.f32.gmra.mxu0 %v252
  %v607 = vpop.f32.mrf.mxu0
  %v608 = vadd.f32 %v101, %v607
  %v609 = vpop.f32.mrf.mxu0
  %610 = vmatprep.mubr.f32.mxu0 0.0
  %611 = vmatmul.mubr.f32.gmra.mxu0 %v255
  %v612 = vpop.f32.mrf.mxu0
  %v613 = vadd.f32 %v101, %v612
  %v614 = vpop.f32.mrf.mxu0
  %615 = vmatprep.mubr.f32.mxu0 0.0
  %616 = vmatmul.mubr.f32.gmra.mxu0 %v258
  %v617 = vpop.f32.mrf.mxu0
  %v618 = vadd.f32 %v101, %v617
  %v619 = vpop.f32.mrf.mxu0
  %620 = vmatprep.mubr.f32.mxu0 0.0
  %621 = vmatmul.mubr.f32.gmra.mxu0 %v261
  %v622 = vpop.f32.mrf.mxu0
  %v623 = vadd.f32 %v101, %v622
  %v624 = vpop.f32.mrf.mxu0
  %625 = vmatprep.mubr.f32.mxu0 0.0
  %626 = vmatmul.mubr.f32.gmra.mxu0 %v264
  %v627 = vpop.f32.mrf.mxu0
  %v628 = vadd.f32 %v101, %v627
  %v629 = vpop.f32.mrf.mxu0
  %630 = vmatprep.mubr.f32.mxu0 0.0
  %631 = vmatmul.mubr.f32.gmra.mxu0 %v267
  %v632 = vpop.f32.mrf.mxu0
  %v633 = vadd.f32 %v101, %v632
  %v634 = vpop.f32.mrf.mxu0
  %635 = vmatprep.mubr.f32.mxu0 0.0
  %636 = vmatmul.mubr.f32.gmra.mxu0 %v270
  %v637 = vpop.f32.mrf.mxu0
  %v638 = vadd.f32 %v101, %v637
  %v639 = vpop.f32.mrf.mxu0
  %640 = vmatprep.mubr.f32.mxu0 0.0
  %641 = vmatmul.mubr.f32.gmra.mxu0 %v273
  %v642 = vpop.f32.mrf.mxu0
  %v643 = vadd.f32 %v101, %v642
  %v644 = vpop.f32.mrf.mxu0
  %645 = vmatprep.mubr.f32.mxu0 0.0
  %646 = vmatmul.mubr.f32.gmra.mxu0 %v276
  %v647 = vpop.f32.mrf.mxu0
  %v648 = vadd.f32 %v101, %v647
  %v649 = vpop.f32.mrf.mxu0
  %650 = vmatprep.mubr.f32.mxu0 0.0
  %651 = vmatmul.mubr.f32.gmra.mxu0 %v279
  %v652 = vpop.f32.mrf.mxu0
  %v653 = vadd.f32 %v101, %v652
  %v654 = vpop.f32.mrf.mxu0
  %655 = vmatprep.mubr.f32.mxu0 0.0
  %656 = vmatmul.mubr.f32.gmra.mxu0 %v282
  %v657 = vpop.f32.mrf.mxu0
  %v658 = vadd.f32 %v101, %v657
  %v659 = vpop.f32.mrf.mxu0
  %660 = vmatprep.mubr.f32.mxu0 0.0
  %661 = vmatmul.mubr.f32.gmra.mxu0 %v285
  %v662 = vpop.f32.mrf.mxu0
  %v663 = vadd.f32 %v101, %v662
  %v664 = vpop.f32.mrf.mxu0
  %665 = vmatprep.mubr.f32.mxu0 0.0
  %666 = vmatmul.mubr.f32.gmra.mxu0 %v288
  %v667 = vpop.f32.mrf.mxu0
  %v668 = vadd.f32 %v101, %v667
  %v669 = vpop.f32.mrf.mxu0
  %670 = vmatprep.mubr.f32.mxu0 0.0
  %671 = vmatmul.mubr.f32.gmra.mxu0 %v291
  %v672 = vpop.f32.mrf.mxu0
  %v673 = vadd.f32 %v101, %v672
  %v674 = vpop.f32.mrf.mxu0
  %675 = vmatprep.mubr.f32.mxu0 0.0
  %676 = vmatmul.mubr.f32.gmra.mxu0 %v294
  %v677 = vpop.f32.mrf.mxu0
  %v678 = vadd.f32 %v101, %v677
  %v679 = vpop.f32.mrf.mxu0
  %680 = vdwg.mxu0
  %vm681 = vcmask 146432
  %682 = vst.msk [vmem:[%s5] sm:$0xff] %vm681, %v363
  %683 = vst.msk [vmem:[%s5 + $0x8] sm:$0xff] %vm681, %v368
  %684 = vst.msk [vmem:[%s5 + $0x10] sm:$0xff] %vm681, %v373
  %685 = vst.msk [vmem:[%s5 + $0x18] sm:$0xff] %vm681, %v378
  %686 = vst.msk [vmem:[%s5 + $0x20] sm:$0xff] %vm681, %v383
  %687 = vst.msk [vmem:[%s5 + $0x28] sm:$0xff] %vm681, %v388
  %688 = vst.msk [vmem:[%s5 + $0x30] sm:$0xff] %vm681, %v393
  %689 = vst.msk [vmem:[%s5 + $0x38] sm:$0xff] %vm681, %v398
  %690 = vst.msk [vmem:[%s5 + $0x40] sm:$0xff] %vm681, %v403
  %691 = vst.msk [vmem:[%s5 + $0x48] sm:$0xff] %vm681, %v408
  %692 = vst.msk [vmem:[%s5 + $0x50] sm:$0xff] %vm681, %v413
  %693 = vst.msk [vmem:[%s5 + $0x58] sm:$0xff] %vm681, %v418
  %694 = vst.msk [vmem:[%s5 + $0x60] sm:$0xff] %vm681, %v423
  %695 = vst.msk [vmem:[%s5 + $0x68] sm:$0xff] %vm681, %v428
  %696 = vst.msk [vmem:[%s5 + $0x70] sm:$0xff] %vm681, %v433
  %697 = vst.msk [vmem:[%s5 + $0x78] sm:$0xff] %vm681, %v438
  %698 = vst.msk [vmem:[%s5 + $0x80] sm:$0xff] %vm681, %v443
  %699 = vst.msk [vmem:[%s5 + $0x88] sm:$0xff] %vm681, %v448
  %700 = vst.msk [vmem:[%s5 + $0x90] sm:$0xff] %vm681, %v453
  %701 = vst.msk [vmem:[%s5 + $0x98] sm:$0xff] %vm681, %v458
  %702 = vst.msk [vmem:[%s5 + $0xa0] sm:$0xff] %vm681, %v463
  %703 = vst.msk [vmem:[%s5 + $0xa8] sm:$0xff] %vm681, %v468
  %704 = vst.msk [vmem:[%s5 + $0xb0] sm:$0xff] %vm681, %v473
  %705 = vst.msk [vmem:[%s5 + $0xb8] sm:$0xff] %vm681, %v478
  %706 = vst.msk [vmem:[%s5 + $0xc0] sm:$0xff] %vm681, %v483
  %707 = vst.msk [vmem:[%s5 + $0xc8] sm:$0xff] %vm681, %v488
  %708 = vst.msk [vmem:[%s5 + $0xd0] sm:$0xff] %vm681, %v493
  %709 = vst.msk [vmem:[%s5 + $0xd8] sm:$0xff] %vm681, %v498
  %710 = vst.msk [vmem:[%s5 + $0xe0] sm:$0xff] %vm681, %v503
  %711 = vst.msk [vmem:[%s5 + $0xe8] sm:$0xff] %vm681, %v508
  %712 = vst.msk [vmem:[%s5 + $0xf0] sm:$0xff] %vm681, %v513
  %713 = vst.msk [vmem:[%s5 + $0xf8] sm:$0xff] %vm681, %v518
  %714 = vst.msk [vmem:[%s5 + $0x100] sm:$0xff] %vm681, %v523
  %715 = vst.msk [vmem:[%s5 + $0x108] sm:$0xff] %vm681, %v528
  %716 = vst.msk [vmem:[%s5 + $0x110] sm:$0xff] %vm681, %v533
  %717 = vst.msk [vmem:[%s5 + $0x118] sm:$0xff] %vm681, %v538
  %718 = vst.msk [vmem:[%s5 + $0x120] sm:$0xff] %vm681, %v543
  %719 = vst.msk [vmem:[%s5 + $0x128] sm:$0xff] %vm681, %v548
  %720 = vst.msk [vmem:[%s5 + $0x130] sm:$0xff] %vm681, %v553
  %721 = vst.msk [vmem:[%s5 + $0x138] sm:$0xff] %vm681, %v558
  %722 = vst.msk [vmem:[%s5 + $0x140] sm:$0xff] %vm681, %v563
  %723 = vst.msk [vmem:[%s5 + $0x148] sm:$0xff] %vm681, %v568
  %724 = vst.msk [vmem:[%s5 + $0x150] sm:$0xff] %vm681, %v573
  %725 = vst.msk [vmem:[%s5 + $0x158] sm:$0xff] %vm681, %v578
  %726 = vst.msk [vmem:[%s5 + $0x160] sm:$0xff] %vm681, %v583
  %727 = vst.msk [vmem:[%s5 + $0x168] sm:$0xff] %vm681, %v588
  %728 = vst.msk [vmem:[%s5 + $0x170] sm:$0xff] %vm681, %v593
  %729 = vst.msk [vmem:[%s5 + $0x178] sm:$0xff] %vm681, %v598
  %730 = vst.msk [vmem:[%s5 + $0x180] sm:$0xff] %vm681, %v603
  %731 = vst.msk [vmem:[%s5 + $0x188] sm:$0xff] %vm681, %v608
  %732 = vst.msk [vmem:[%s5 + $0x190] sm:$0xff] %vm681, %v613
  %733 = vst.msk [vmem:[%s5 + $0x198] sm:$0xff] %vm681, %v618
  %734 = vst.msk [vmem:[%s5 + $0x1a0] sm:$0xff] %vm681, %v623
  %735 = vst.msk [vmem:[%s5 + $0x1a8] sm:$0xff] %vm681, %v628
  %736 = vst.msk [vmem:[%s5 + $0x1b0] sm:$0xff] %vm681, %v633
  %737 = vst.msk [vmem:[%s5 + $0x1b8] sm:$0xff] %vm681, %v638
  %738 = vst.msk [vmem:[%s5 + $0x1c0] sm:$0xff] %vm681, %v643
  %739 = vst.msk [vmem:[%s5 + $0x1c8] sm:$0xff] %vm681, %v648
  %740 = vst.msk [vmem:[%s5 + $0x1d0] sm:$0xff] %vm681, %v653
  %741 = vst.msk [vmem:[%s5 + $0x1d8] sm:$0xff] %vm681, %v658
  %742 = vst.msk [vmem:[%s5 + $0x1e0] sm:$0xff] %vm681, %v663
  %743 = vst.msk [vmem:[%s5 + $0x1e8] sm:$0xff] %vm681, %v668
  %744 = vst.msk [vmem:[%s5 + $0x1f0] sm:$0xff] %vm681, %v673
  %745 = vst.msk [vmem:[%s5 + $0x1f8] sm:$0xff] %vm681, %v678
  %p746 = scmp.eq.s32.totalorder 0, 0
  // Predicated region
  $region22: #{_lambda_.22} parent=0 // pred_check
    %p747 = pneg %p746
  $region23: #{_lambda_.22} parent=0 // pred_check_branch
    %749 = sbr.rel (%p747) target = $region25
  $region24: #{_lambda_.22} parent=0 // pred_region
    %vm750 = vcmask 139264
    %751 = vst.msk [vmem:[%s6] sm:$0x1] %vm750, 0.0
    %752 = vst.msk [vmem:[%s7] sm:$0x1] %vm750, 0.0
  $region25: #{_lambda_.22} parent=0 // pred_fallthru
    _
  %v753 = vld [vmem:[%s6] sm:$0x1]
  %v754 = vsel %vm681, %v363, 0.0
  %v755 = vsel %vm681, %v368, 0.0
  %v756 = vadd.f32 %v754, %v755
  %v757 = vsel %vm681, %v373, 0.0
  %v758 = vadd.f32 %v756, %v757
  %v759 = vsel %vm681, %v378, 0.0
  %v760 = vadd.f32 %v758, %v759
  %v761 = vsel %vm681, %v383, 0.0
  %v762 = vadd.f32 %v760, %v761
  %v763 = vsel %vm681, %v388, 0.0
  %v764 = vadd.f32 %v762, %v763
  %v765 = vsel %vm681, %v393, 0.0
  %v766 = vadd.f32 %v764, %v765
  %v767 = vsel %vm681, %v398, 0.0
  %v768 = vadd.f32 %v766, %v767
  %v769 = vsel %vm681, %v403, 0.0
  %v770 = vadd.f32 %v768, %v769
  %v771 = vsel %vm681, %v408, 0.0
  %v772 = vadd.f32 %v770, %v771
  %v773 = vsel %vm681, %v413, 0.0
  %v774 = vadd.f32 %v772, %v773
  %v775 = vsel %vm681, %v418, 0.0
  %v776 = vadd.f32 %v774, %v775
  %v777 = vsel %vm681, %v423, 0.0
  %v778 = vadd.f32 %v776, %v777
  %v779 = vsel %vm681, %v428, 0.0
  %v780 = vadd.f32 %v778, %v779
  %v781 = vsel %vm681, %v433, 0.0
  %v782 = vadd.f32 %v780, %v781
  %v783 = vsel %vm681, %v438, 0.0
  %v784 = vadd.f32 %v782, %v783
  %v785 = vsel %vm681, %v443, 0.0
  %v786 = vadd.f32 %v784, %v785
  %v787 = vsel %vm681, %v448, 0.0
  %v788 = vadd.f32 %v786, %v787
  %v789 = vsel %vm681, %v453, 0.0
  %v790 = vadd.f32 %v788, %v789
  %v791 = vsel %vm681, %v458, 0.0
  %v792 = vadd.f32 %v790, %v791
  %v793 = vsel %vm681, %v463, 0.0
  %v794 = vadd.f32 %v792, %v793
  %v795 = vsel %vm681, %v468, 0.0
  %v796 = vadd.f32 %v794, %v795
  %v797 = vsel %vm681, %v473, 0.0
  %v798 = vadd.f32 %v796, %v797
  %v799 = vsel %vm681, %v478, 0.0
  %v800 = vadd.f32 %v798, %v799
  %v801 = vsel %vm681, %v483, 0.0
  %v802 = vadd.f32 %v800, %v801
  %v803 = vsel %vm681, %v488, 0.0
  %v804 = vadd.f32 %v802, %v803
  %v805 = vsel %vm681, %v493, 0.0
  %v806 = vadd.f32 %v804, %v805
  %v807 = vsel %vm681, %v498, 0.0
  %v808 = vadd.f32 %v806, %v807
  %v809 = vsel %vm681, %v503, 0.0
  %v810 = vadd.f32 %v808, %v809
  %v811 = vsel %vm681, %v508, 0.0
  %v812 = vadd.f32 %v810, %v811
  %v813 = vsel %vm681, %v513, 0.0
  %v814 = vadd.f32 %v812, %v813
  %v815 = vsel %vm681, %v518, 0.0
  %v816 = vadd.f32 %v814, %v815
  %v817 = vsel %vm681, %v523, 0.0
  %v818 = vadd.f32 %v816, %v817
  %v819 = vsel %vm681, %v528, 0.0
  %v820 = vadd.f32 %v818, %v819
  %v821 = vsel %vm681, %v533, 0.0
  %v822 = vadd.f32 %v820, %v821
  %v823 = vsel %vm681, %v538, 0.0
  %v824 = vadd.f32 %v822, %v823
  %v825 = vsel %vm681, %v543, 0.0
  %v826 = vadd.f32 %v824, %v825
  %v827 = vsel %vm681, %v548, 0.0
  %v828 = vadd.f32 %v826, %v827
  %v829 = vsel %vm681, %v553, 0.0
  %v830 = vadd.f32 %v828, %v829
  %v831 = vsel %vm681, %v558, 0.0
  %v832 = vadd.f32 %v830, %v831
  %v833 = vsel %vm681, %v563, 0.0
  %v834 = vadd.f32 %v832, %v833
  %v835 = vsel %vm681, %v568, 0.0
  %v836 = vadd.f32 %v834, %v835
  %v837 = vsel %vm681, %v573, 0.0
  %v838 = vadd.f32 %v836, %v837
  %v839 = vsel %vm681, %v578, 0.0
  %v840 = vadd.f32 %v838, %v839
  %v841 = vsel %vm681, %v583, 0.0
  %v842 = vadd.f32 %v840, %v841
  %v843 = vsel %vm681, %v588, 0.0
  %v844 = vadd.f32 %v842, %v843
  %v845 = vsel %vm681, %v593, 0.0
  %v846 = vadd.f32 %v844, %v845
  %v847 = vsel %vm681, %v598, 0.0
  %v848 = vadd.f32 %v846, %v847
  %v849 = vsel %vm681, %v603, 0.0
  %v850 = vadd.f32 %v848, %v849
  %v851 = vsel %vm681, %v608, 0.0
  %v852 = vadd.f32 %v850, %v851
  %v853 = vsel %vm681, %v613, 0.0
  %v854 = vadd.f32 %v852, %v853
  %v855 = vsel %vm681, %v618, 0.0
  %v856 = vadd.f32 %v854, %v855
  %v857 = vsel %vm681, %v623, 0.0
  %v858 = vadd.f32 %v856, %v857
  %v859 = vsel %vm681, %v628, 0.0
  %v860 = vadd.f32 %v858, %v859
  %v861 = vsel %vm681, %v633, 0.0
  %v862 = vadd.f32 %v860, %v861
  %v863 = vsel %vm681, %v638, 0.0
  %v864 = vadd.f32 %v862, %v863
  %v865 = vsel %vm681, %v643, 0.0
  %v866 = vadd.f32 %v864, %v865
  %v867 = vsel %vm681, %v648, 0.0
  %v868 = vadd.f32 %v866, %v867
  %v869 = vsel %vm681, %v653, 0.0
  %v870 = vadd.f32 %v868, %v869
  %v871 = vsel %vm681, %v658, 0.0
  %v872 = vadd.f32 %v870, %v871
  %v873 = vsel %vm681, %v663, 0.0
  %v874 = vadd.f32 %v872, %v873
  %v875 = vsel %vm681, %v668, 0.0
  %v876 = vadd.f32 %v874, %v875
  %v877 = vsel %vm681, %v673, 0.0
  %v878 = vadd.f32 %v876, %v877
  %v879 = vsel %vm681, %v678, 0.0
  %v880 = vadd.f32 %v878, %v879
  %v881 = vrot.slane %v880, 4
  %v882 = vadd.f32 %v880, %v881
  %v883 = vrot.slane %v882, 2
  %v884 = vadd.f32 %v882, %v883
  %v885 = vrot.slane %v884, 1
  %v886 = vadd.f32 %v884, %v885
  %v887 = vadd.f32 %v753, %v886
  %vm888 = vcmask 139264
  %889 = vst.msk [vmem:[%s6] sm:$0x1] %vm888, %v887
  %v890 = vld [vmem:[%s7] sm:$0x1]
  %v891 = vmul.f32 %v363, %v363
  %v892 = vmul.f32 %v368, %v368
  %v893 = vmul.f32 %v373, %v373
  %v894 = vmul.f32 %v378, %v378
  %v895 = vmul.f32 %v383, %v383
  %v896 = vmul.f32 %v388, %v388
  %v897 = vmul.f32 %v393, %v393
  %v898 = vmul.f32 %v398, %v398
  %v899 = vmul.f32 %v403, %v403
  %v900 = vmul.f32 %v408, %v408
  %v901 = vmul.f32 %v413, %v413
  %v902 = vmul.f32 %v418, %v418
  %v903 = vmul.f32 %v423, %v423
  %v904 = vmul.f32 %v428, %v428
  %v905 = vmul.f32 %v433, %v433
  %v906 = vmul.f32 %v438, %v438
  %v907 = vmul.f32 %v443, %v443
  %v908 = vmul.f32 %v448, %v448
  %v909 = vmul.f32 %v453, %v453
  %v910 = vmul.f32 %v458, %v458
  %v911 = vmul.f32 %v463, %v463
  %v912 = vmul.f32 %v468, %v468
  %v913 = vmul.f32 %v473, %v473
  %v914 = vmul.f32 %v478, %v478
  %v915 = vmul.f32 %v483, %v483
  %v916 = vmul.f32 %v488, %v488
  %v917 = vmul.f32 %v493, %v493
  %v918 = vmul.f32 %v498, %v498
  %v919 = vmul.f32 %v503, %v503
  %v920 = vmul.f32 %v508, %v508
  %v921 = vmul.f32 %v513, %v513
  %v922 = vmul.f32 %v518, %v518
  %v923 = vmul.f32 %v523, %v523
  %v924 = vmul.f32 %v528, %v528
  %v925 = vmul.f32 %v533, %v533
  %v926 = vmul.f32 %v538, %v538
  %v927 = vmul.f32 %v543, %v543
  %v928 = vmul.f32 %v548, %v548
  %v929 = vmul.f32 %v553, %v553
  %v930 = vmul.f32 %v558, %v558
  %v931 = vmul.f32 %v563, %v563
  %v932 = vmul.f32 %v568, %v568
  %v933 = vmul.f32 %v573, %v573
  %v934 = vmul.f32 %v578, %v578
  %v935 = vmul.f32 %v583, %v583
  %v936 = vmul.f32 %v588, %v588
  %v937 = vmul.f32 %v593, %v593
  %v938 = vmul.f32 %v598, %v598
  %v939 = vmul.f32 %v603, %v603
  %v940 = vmul.f32 %v608, %v608
  %v941 = vmul.f32 %v613, %v613
  %v942 = vmul.f32 %v618, %v618
  %v943 = vmul.f32 %v623, %v623
  %v944 = vmul.f32 %v628, %v628
  %v945 = vmul.f32 %v633, %v633
  %v946 = vmul.f32 %v638, %v638
  %v947 = vmul.f32 %v643, %v643
  %v948 = vmul.f32 %v648, %v648
  %v949 = vmul.f32 %v653, %v653
  %v950 = vmul.f32 %v658, %v658
  %v951 = vmul.f32 %v663, %v663
  %v952 = vmul.f32 %v668, %v668
  %v953 = vmul.f32 %v673, %v673
  %v954 = vmul.f32 %v678, %v678
  %v955 = vsel %vm681, %v891, 0.0
  %v956 = vsel %vm681, %v892, 0.0
  %v957 = vadd.f32 %v955, %v956
  %v958 = vsel %vm681, %v893, 0.0
  %v959 = vadd.f32 %v957, %v958
  %v960 = vsel %vm681, %v894, 0.0
  %v961 = vadd.f32 %v959, %v960
  %v962 = vsel %vm681, %v895, 0.0
  %v963 = vadd.f32 %v961, %v962
  %v964 = vsel %vm681, %v896, 0.0
  %v965 = vadd.f32 %v963, %v964
  %v966 = vsel %vm681, %v897, 0.0
  %v967 = vadd.f32 %v965, %v966
  %v968 = vsel %vm681, %v898, 0.0
  %v969 = vadd.f32 %v967, %v968
  %v970 = vsel %vm681, %v899, 0.0
  %v971 = vadd.f32 %v969, %v970
  %v972 = vsel %vm681, %v900, 0.0
  %v973 = vadd.f32 %v971, %v972
  %v974 = vsel %vm681, %v901, 0.0
  %v975 = vadd.f32 %v973, %v974
  %v976 = vsel %vm681, %v902, 0.0
  %v977 = vadd.f32 %v975, %v976
  %v978 = vsel %vm681, %v903, 0.0
  %v979 = vadd.f32 %v977, %v978
  %v980 = vsel %vm681, %v904, 0.0
  %v981 = vadd.f32 %v979, %v980
  %v982 = vsel %vm681, %v905, 0.0
  %v983 = vadd.f32 %v981, %v982
  %v984 = vsel %vm681, %v906, 0.0
  %v985 = vadd.f32 %v983, %v984
  %v986 = vsel %vm681, %v907, 0.0
  %v987 = vadd.f32 %v985, %v986
  %v988 = vsel %vm681, %v908, 0.0
  %v989 = vadd.f32 %v987, %v988
  %v990 = vsel %vm681, %v909, 0.0
  %v991 = vadd.f32 %v989, %v990
  %v992 = vsel %vm681, %v910, 0.0
  %v993 = vadd.f32 %v991, %v992
  %v994 = vsel %vm681, %v911, 0.0
  %v995 = vadd.f32 %v993, %v994
  %v996 = vsel %vm681, %v912, 0.0
  %v997 = vadd.f32 %v995, %v996
  %v998 = vsel %vm681, %v913, 0.0
  %v999 = vadd.f32 %v997, %v998
  %v1000 = vsel %vm681, %v914, 0.0
  %v1001 = vadd.f32 %v999, %v1000
  %v1002 = vsel %vm681, %v915, 0.0
  %v1003 = vadd.f32 %v1001, %v1002
  %v1004 = vsel %vm681, %v916, 0.0
  %v1005 = vadd.f32 %v1003, %v1004
  %v1006 = vsel %vm681, %v917, 0.0
  %v1007 = vadd.f32 %v1005, %v1006
  %v1008 = vsel %vm681, %v918, 0.0
  %v1009 = vadd.f32 %v1007, %v1008
  %v1010 = vsel %vm681, %v919, 0.0
  %v1011 = vadd.f32 %v1009, %v1010
  %v1012 = vsel %vm681, %v920, 0.0
  %v1013 = vadd.f32 %v1011, %v1012
  %v1014 = vsel %vm681, %v921, 0.0
  %v1015 = vadd.f32 %v1013, %v1014
  %v1016 = vsel %vm681, %v922, 0.0
  %v1017 = vadd.f32 %v1015, %v1016
  %v1018 = vsel %vm681, %v923, 0.0
  %v1019 = vadd.f32 %v1017, %v1018
  %v1020 = vsel %vm681, %v924, 0.0
  %v1021 = vadd.f32 %v1019, %v1020
  %v1022 = vsel %vm681, %v925, 0.0
  %v1023 = vadd.f32 %v1021, %v1022
  %v1024 = vsel %vm681, %v926, 0.0
  %v1025 = vadd.f32 %v1023, %v1024
  %v1026 = vsel %vm681, %v927, 0.0
  %v1027 = vadd.f32 %v1025, %v1026
  %v1028 = vsel %vm681, %v928, 0.0
  %v1029 = vadd.f32 %v1027, %v1028
  %v1030 = vsel %vm681, %v929, 0.0
  %v1031 = vadd.f32 %v1029, %v1030
  %v1032 = vsel %vm681, %v930, 0.0
  %v1033 = vadd.f32 %v1031, %v1032
  %v1034 = vsel %vm681, %v931, 0.0
  %v1035 = vadd.f32 %v1033, %v1034
  %v1036 = vsel %vm681, %v932, 0.0
  %v1037 = vadd.f32 %v1035, %v1036
  %v1038 = vsel %vm681, %v933, 0.0
  %v1039 = vadd.f32 %v1037, %v1038
  %v1040 = vsel %vm681, %v934, 0.0
  %v1041 = vadd.f32 %v1039, %v1040
  %v1042 = vsel %vm681, %v935, 0.0
  %v1043 = vadd.f32 %v1041, %v1042
  %v1044 = vsel %vm681, %v936, 0.0
  %v1045 = vadd.f32 %v1043, %v1044
  %v1046 = vsel %vm681, %v937, 0.0
  %v1047 = vadd.f32 %v1045, %v1046
  %v1048 = vsel %vm681, %v938, 0.0
  %v1049 = vadd.f32 %v1047, %v1048
  %v1050 = vsel %vm681, %v939, 0.0
  %v1051 = vadd.f32 %v1049, %v1050
  %v1052 = vsel %vm681, %v940, 0.0
  %v1053 = vadd.f32 %v1051, %v1052
  %v1054 = vsel %vm681, %v941, 0.0
  %v1055 = vadd.f32 %v1053, %v1054
  %v1056 = vsel %vm681, %v942, 0.0
  %v1057 = vadd.f32 %v1055, %v1056
  %v1058 = vsel %vm681, %v943, 0.0
  %v1059 = vadd.f32 %v1057, %v1058
  %v1060 = vsel %vm681, %v944, 0.0
  %v1061 = vadd.f32 %v1059, %v1060
  %v1062 = vsel %vm681, %v945, 0.0
  %v1063 = vadd.f32 %v1061, %v1062
  %v1064 = vsel %vm681, %v946, 0.0
  %v1065 = vadd.f32 %v1063, %v1064
  %v1066 = vsel %vm681, %v947, 0.0
  %v1067 = vadd.f32 %v1065, %v1066
  %v1068 = vsel %vm681, %v948, 0.0
  %v1069 = vadd.f32 %v1067, %v1068
  %v1070 = vsel %vm681, %v949, 0.0
  %v1071 = vadd.f32 %v1069, %v1070
  %v1072 = vsel %vm681, %v950, 0.0
  %v1073 = vadd.f32 %v1071, %v1072
  %v1074 = vsel %vm681, %v951, 0.0
  %v1075 = vadd.f32 %v1073, %v1074
  %v1076 = vsel %vm681, %v952, 0.0
  %v1077 = vadd.f32 %v1075, %v1076
  %v1078 = vsel %vm681, %v953, 0.0
  %v1079 = vadd.f32 %v1077, %v1078
  %v1080 = vsel %vm681, %v954, 0.0
  %v1081 = vadd.f32 %v1079, %v1080
  %v1082 = vrot.slane %v1081, 4
  %v1083 = vadd.f32 %v1081, %v1082
  %v1084 = vrot.slane %v1083, 2
  %v1085 = vadd.f32 %v1083, %v1084
  %v1086 = vrot.slane %v1085, 1
  %v1087 = vadd.f32 %v1085, %v1086
  %v1088 = vadd.f32 %v890, %v1087
  %1089 = vst.msk [vmem:[%s7] sm:$0x1] %vm888, %v1088
  // Predicated region
  $region26: #{_lambda_.22} parent=0 // pred_check
    _
  $region27: #{_lambda_.22} parent=0 // pred_check_branch
    %1091 = sbr.rel (0) target = $region29
  $region28: #{_lambda_.22} parent=0 // pred_region
    _
  $region29: #{_lambda_.22} parent=0 // pred_fallthru
    _
  // Predicated region
  $region30: #{_lambda_.22} parent=0 // pred_check
    _
  $region31: #{_lambda_.22} parent=0 // pred_check_branch
    %1093 = sbr.rel (0) target = $region33
  $region32: #{_lambda_.22} parent=0 // pred_region
    _
  $region33: #{_lambda_.22} parent=0 // pred_fallthru
    _
  // Predicated region
  $region34: #{_lambda_.22} parent=0 // pred_check
    _
  $region35: #{_lambda_.22} parent=0 // pred_check_branch
    %1095 = sbr.rel (0) target = $region37
  $region36: #{_lambda_.22} parent=0 // pred_region
    _
  $region37: #{_lambda_.22} parent=0 // pred_fallthru
    _
  // Predicated region
  $region38: #{_lambda_.22} parent=0 // pred_check
    _
  $region39: #{_lambda_.22} parent=0 // pred_check_branch
    %1097 = sbr.rel (0) target = $region41
  $region40: #{_lambda_.22} parent=0 // pred_region
    _
  $region41: #{_lambda_.22} parent=0 // pred_fallthru
    _
  // Predicated region
  $region42: #{_lambda_.22} parent=0 // pred_check
    _
  $region43: #{_lambda_.22} parent=0 // pred_check_branch
    %1099 = sbr.rel (0) target = $region45
  $region44: #{_lambda_.22} parent=0 // pred_region
    _
  $region45: #{_lambda_.22} parent=0 // pred_fallthru
    _
  // Predicated region
  $region46: #{_lambda_.22} parent=0 // pred_check
    _
  $region47: #{_lambda_.22} parent=0 // pred_check_branch
    %1101 = sbr.rel (0) target = $region49
  $region48: #{_lambda_.22} parent=0 // pred_region
    _
  $region49: #{_lambda_.22} parent=0 // pred_fallthru
    _

// kernel: tile.115
$region0: #{tile.115}
  #allocation0 [shape = 's32[1]{0}', space=sflag, size = 0x4, scoped, tag = 'scoped memory for tile.115']
  %s0 = inlined_call_operand.vmem [shape: f32[18], index: 0, kind: input, shape index: {}]
  %s1 = inlined_call_operand.vmem [shape: f32[64,18], index: 1, kind: output, shape index: {}]
  // Predicated region
  $region2: #{tile.115} parent=0 // pred_check
    _
  $region3: #{tile.115} parent=0 // pred_check_branch
    %3 = sbr.rel (0) target = $region5
  $region4: #{tile.115} parent=0 // pred_region
    _
  $region5: #{tile.115} parent=0 // pred_fallthru
    _
  %v4 = vld [vmem:[%s0] ss:$0 sm:$0xff]
  %5 = vst [vmem:[%s1] sm:$0xff] %v4
  %s6 = scalar_lea.vmem %s1, 8
  %7 = vst [vmem:[%s6] sm:$0xff] %v4
  %s8 = scalar_lea.vmem %s1, 16
  %9 = vst [vmem:[%s8] sm:$0xff] %v4
  %s10 = scalar_lea.vmem %s1, 24
  %11 = vst [vmem:[%s10] sm:$0xff] %v4
  %s12 = scalar_lea.vmem %s1, 32
  %13 = vst [vmem:[%s12] sm:$0xff] %v4
  %s14 = scalar_lea.vmem %s1, 40
  %15 = vst [vmem:[%s14] sm:$0xff] %v4
  %s16 = scalar_lea.vmem %s1, 48
  %17 = vst [vmem:[%s16] sm:$0xff] %v4
  %s18 = scalar_lea.vmem %s1, 56
  %19 = vst [vmem:[%s18] sm:$0xff] %v4

// kernel: tile.116
$region0: #{tile.116}
  %s0 = inlined_call_operand.vmem [shape: f32[64,18], index: 0, kind: input, shape index: {}]
  %s1 = inlined_call_operand.vmem [shape: f32[1,1152], index: 1, kind: output, shape index: {}]
  $region1: #{tile.116} parent=0
    #allocation0 [shape = 'u8[36864]{0}', space=vmem, size = 0x9000, scoped, tag = 'scoped mem for output reshape']
    %v2 = vld [vmem:[%s0] sm:$0x1]
    %vm3 = vcmask 146432
    %4 = vst.msk [vmem:[#allocation0] sm:$0x1] %vm3, %v2
    %s5 = scalar_lea.vmem %s0, 7
    %v6 = vld [vmem:[%s5] sm:$0x1]
    %s7 = scalar_lea.vmem %s0, 7
    %v8 = vld [vmem:[%s7] sm:$0x1]
    %vm9 = vcmask 15360
    %v10 = vsel %vm9, %v8, %v6
    %11 = vrot.lane.b32.xlu0 %v10, 126
    %v12 = vpop.permute.xlu0 %11
    %vm13 = vcmask 130048
    %s14 = scalar_lea.vmem [#allocation0], 8
    %15 = vst.msk [vmem:[%s14] sm:$0x1] %vm13, %v12
    %vm16 = vcmask 1048560
    %17 = vst.msk [vmem:[#allocation0] sm:$0x1] %vm16, %v12
    %s18 = scalar_lea.vmem %s0, 14
    %v19 = vld [vmem:[%s18] sm:$0x1]
    %s20 = scalar_lea.vmem %s0, 14
    %v21 = vld [vmem:[%s20] sm:$0x1]
    %vm22 = vcmask 31744
    %v23 = vsel %vm22, %v21, %v19
    %24 = vrot.lane.b32.xlu0 %v23, 124
    %v25 = vpop.permute.xlu0 %24
    %vm26 = vcmask 113664
    %s27 = scalar_lea.vmem [#allocation0], 16
    %28 = vst.msk [vmem:[%s27] sm:$0x1] %vm26, %v25
    %vm29 = vcmask 1048544
    %s30 = scalar_lea.vmem [#allocation0], 8
    %31 = vst.msk [vmem:[%s30] sm:$0x1] %vm29, %v25
    %s32 = scalar_lea.vmem %s0, 21
    %v33 = vld [vmem:[%s32] sm:$0x1]
    %s34 = scalar_lea.vmem %s0, 21
    %v35 = vld [vmem:[%s34] sm:$0x1]
    %vm36 = vcmask 48128
    %v37 = vsel %vm36, %v35, %v33
    %38 = vrot.lane.b32.xlu0 %v37, 122
    %v39 = vpop.permute.xlu0 %38
    %vm40 = vcmask 97280
    %s41 = scalar_lea.vmem [#allocation0], 24
    %42 = vst.msk [vmem:[%s41] sm:$0x1] %vm40, %v39
    %vm43 = vcmask 1048528
    %s44 = scalar_lea.vmem [#allocation0], 16
    %45 = vst.msk [vmem:[%s44] sm:$0x1] %vm43, %v39
    %s46 = scalar_lea.vmem %s0, 28
    %v47 = vld [vmem:[%s46] sm:$0x1]
    %s48 = scalar_lea.vmem %s0, 28
    %v49 = vld [vmem:[%s48] sm:$0x1]
    %vm50 = vcmask 64512
    %v51 = vsel %vm50, %v49, %v47
    %52 = vrot.lane.b32.xlu0 %v51, 120
    %v53 = vpop.permute.xlu0 %52
    %vm54 = vcmask 80896
    %s55 = scalar_lea.vmem [#allocation0], 32
    %56 = vst.msk [vmem:[%s55] sm:$0x1] %vm54, %v53
    %vm57 = vcmask 1048512
    %s58 = scalar_lea.vmem [#allocation0], 24
    %59 = vst.msk [vmem:[%s58] sm:$0x1] %vm57, %v53
    %s60 = scalar_lea.vmem %s0, 35
    %v61 = vld [vmem:[%s60] sm:$0x1]
    %s62 = scalar_lea.vmem %s0, 35
    %v63 = vld [vmem:[%s62] sm:$0x1]
    %vm64 = vcmask 80896
    %v65 = vsel %vm64, %v63, %v61
    %66 = vrot.lane.b32.xlu0 %v65, 118
    %v67 = vpop.permute.xlu0 %66
    %vm68 = vcmask 64512
    %s69 = scalar_lea.vmem [#allocation0], 40
    %70 = vst.msk [vmem:[%s69] sm:$0x1] %vm68, %v67
    %vm71 = vcmask 1048496
    %s72 = scalar_lea.vmem [#allocation0], 32
    %73 = vst.msk [vmem:[%s72] sm:$0x1] %vm71, %v67
    %s74 = scalar_lea.vmem %s0, 42
    %v75 = vld [vmem:[%s74] sm:$0x1]
    %s76 = scalar_lea.vmem %s0, 42
    %v77 = vld [vmem:[%s76] sm:$0x1]
    %vm78 = vcmask 97280
    %v79 = vsel %vm78, %v77, %v75
    %80 = vrot.lane.b32.xlu0 %v79, 116
    %v81 = vpop.permute.xlu0 %80
    %vm82 = vcmask 48128
    %s83 = scalar_lea.vmem [#allocation0], 48
    %84 = vst.msk [vmem:[%s83] sm:$0x1] %vm82, %v81
    %vm85 = vcmask 1048480
    %s86 = scalar_lea.vmem [#allocation0], 40
    %87 = vst.msk [vmem:[%s86] sm:$0x1] %vm85, %v81
    %s88 = scalar_lea.vmem %s0, 49
    %v89 = vld [vmem:[%s88] sm:$0x1]
    %s90 = scalar_lea.vmem %s0, 49
    %v91 = vld [vmem:[%s90] sm:$0x1]
    %vm92 = vcmask 113664
    %v93 = vsel %vm92, %v91, %v89
    %94 = vrot.lane.b32.xlu0 %v93, 114
    %v95 = vpop.permute.xlu0 %94
    %vm96 = vcmask 31744
    %s97 = scalar_lea.vmem [#allocation0], 56
    %98 = vst.msk [vmem:[%s97] sm:$0x1] %vm96, %v95
    %vm99 = vcmask 1048464
    %s100 = scalar_lea.vmem [#allocation0], 48
    %101 = vst.msk [vmem:[%s100] sm:$0x1] %vm99, %v95
    %s102 = scalar_lea.vmem %s0, 56
    %v103 = vld [vmem:[%s102] sm:$0x1]
    %s104 = scalar_lea.vmem %s0, 56
    %v105 = vld [vmem:[%s104] sm:$0x1]
    %vm106 = vcmask 130048
    %v107 = vsel %vm106, %v105, %v103
    %108 = vrot.lane.b32.xlu0 %v107, 112
    %v109 = vpop.permute.xlu0 %108
    %vm110 = vcmask 15360
    %s111 = scalar_lea.vmem [#allocation0], 64
    %112 = vst.msk [vmem:[%s111] sm:$0x1] %vm110, %v109
    %vm113 = vcmask 1048448
    %s114 = scalar_lea.vmem [#allocation0], 56
    %115 = vst.msk [vmem:[%s114] sm:$0x1] %vm113, %v109
    %s116 = scalar_lea.vmem %s0, 63
    %v117 = vld [vmem:[%s116] sm:$0x1]
    %118 = vrot.lane.b32.xlu0 %v117, 110
    %v119 = vpop.permute.xlu0 %118
    %vm120 = vcmask 1048432
    %s121 = scalar_lea.vmem [#allocation0], 64
    %122 = vst.msk [vmem:[%s121] sm:$0x1] %vm120, %v119
    %s123 = scalar_lea.vmem %s0, 6
    %v124 = vld [vmem:[%s123] sm:$0x1]
    %125 = vrot.lane.b32.xlu0 %v124, 108
    %v126 = vpop.permute.xlu0 %125
    %vm127 = vcmask 1032032
    %128 = vst.msk [vmem:[#allocation0] sm:$0x1] %vm127, %v126
    %s129 = scalar_lea.vmem %s0, 13
    %v130 = vld [vmem:[%s129] sm:$0x1]
    %131 = vrot.lane.b32.xlu0 %v130, 106
    %v132 = vpop.permute.xlu0 %131
    %vm133 = vcmask 1015632
    %s134 = scalar_lea.vmem [#allocation0], 8
    %135 = vst.msk [vmem:[%s134] sm:$0x1] %vm133, %v132
    %s136 = scalar_lea.vmem %s0, 20
    %v137 = vld [vmem:[%s136] sm:$0x1]
    %138 = vrot.lane.b32.xlu0 %v137, 104
    %v139 = vpop.permute.xlu0 %138
    %vm140 = vcmask 999232
    %s141 = scalar_lea.vmem [#allocation0], 16
    %142 = vst.msk [vmem:[%s141] sm:$0x1] %vm140, %v139
    %s143 = scalar_lea.vmem %s0, 27
    %v144 = vld [vmem:[%s143] sm:$0x1]
    %145 = vrot.lane.b32.xlu0 %v144, 102
    %v146 = vpop.permute.xlu0 %145
    %vm147 = vcmask 982832
    %s148 = scalar_lea.vmem [#allocation0], 24
    %149 = vst.msk [vmem:[%s148] sm:$0x1] %vm147, %v146
    %s150 = scalar_lea.vmem %s0, 34
    %v151 = vld [vmem:[%s150] sm:$0x1]
    %152 = vrot.lane.b32.xlu0 %v151, 100
    %v153 = vpop.permute.xlu0 %152
    %vm154 = vcmask 966432
    %s155 = scalar_lea.vmem [#allocation0], 32
    %156 = vst.msk [vmem:[%s155] sm:$0x1] %vm154, %v153
    %s157 = scalar_lea.vmem %s0, 41
    %v158 = vld [vmem:[%s157] sm:$0x1]
    %159 = vrot.lane.b32.xlu0 %v158, 98
    %v160 = vpop.permute.xlu0 %159
    %vm161 = vcmask 950032
    %s162 = scalar_lea.vmem [#allocation0], 40
    %163 = vst.msk [vmem:[%s162] sm:$0x1] %vm161, %v160
    %s164 = scalar_lea.vmem %s0, 48
    %v165 = vld [vmem:[%s164] sm:$0x1]
    %166 = vrot.lane.b32.xlu0 %v165, 96
    %v167 = vpop.permute.xlu0 %166
    %vm168 = vcmask 933632
    %s169 = scalar_lea.vmem [#allocation0], 48
    %170 = vst.msk [vmem:[%s169] sm:$0x1] %vm168, %v167
    %s171 = scalar_lea.vmem %s0, 55
    %v172 = vld [vmem:[%s171] sm:$0x1]
    %173 = vrot.lane.b32.xlu0 %v172, 94
    %v174 = vpop.permute.xlu0 %173
    %vm175 = vcmask 917232
    %s176 = scalar_lea.vmem [#allocation0], 56
    %177 = vst.msk [vmem:[%s176] sm:$0x1] %vm175, %v174
    %s178 = scalar_lea.vmem %s0, 62
    %v179 = vld [vmem:[%s178] sm:$0x1]
    %180 = vrot.lane.b32.xlu0 %v179, 92
    %v181 = vpop.permute.xlu0 %180
    %vm182 = vcmask 900832
    %s183 = scalar_lea.vmem [#allocation0], 64
    %184 = vst.msk [vmem:[%s183] sm:$0x1] %vm182, %v181
    %s185 = scalar_lea.vmem %s0, 5
    %v186 = vld [vmem:[%s185] sm:$0x1]
    %187 = vrot.lane.b32.xlu0 %v186, 90
    %v188 = vpop.permute.xlu0 %187
    %vm189 = vcmask 884432
    %190 = vst.msk [vmem:[#allocation0] sm:$0x1] %vm189, %v188
    %s191 = scalar_lea.vmem %s0, 12
    %v192 = vld [vmem:[%s191] sm:$0x1]
    %193 = vrot.lane.b32.xlu0 %v192, 88
    %v194 = vpop.permute.xlu0 %193
    %vm195 = vcmask 868032
    %s196 = scalar_lea.vmem [#allocation0], 8
    %197 = vst.msk [vmem:[%s196] sm:$0x1] %vm195, %v194
    %s198 = scalar_lea.vmem %s0, 19
    %v199 = vld [vmem:[%s198] sm:$0x1]
    %200 = vrot.lane.b32.xlu0 %v199, 86
    %v201 = vpop.permute.xlu0 %200
    %vm202 = vcmask 851632
    %s203 = scalar_lea.vmem [#allocation0], 16
    %204 = vst.msk [vmem:[%s203] sm:$0x1] %vm202, %v201
    %s205 = scalar_lea.vmem %s0, 26
    %v206 = vld [vmem:[%s205] sm:$0x1]
    %207 = vrot.lane.b32.xlu0 %v206, 84
    %v208 = vpop.permute.xlu0 %207
    %vm209 = vcmask 835232
    %s210 = scalar_lea.vmem [#allocation0], 24
    %211 = vst.msk [vmem:[%s210] sm:$0x1] %vm209, %v208
    %s212 = scalar_lea.vmem %s0, 33
    %v213 = vld [vmem:[%s212] sm:$0x1]
    %214 = vrot.lane.b32.xlu0 %v213, 82
    %v215 = vpop.permute.xlu0 %214
    %vm216 = vcmask 818832
    %s217 = scalar_lea.vmem [#allocation0], 32
    %218 = vst.msk [vmem:[%s217] sm:$0x1] %vm216, %v215
    %s219 = scalar_lea.vmem %s0, 40
    %v220 = vld [vmem:[%s219] sm:$0x1]
    %221 = vrot.lane.b32.xlu0 %v220, 80
    %v222 = vpop.permute.xlu0 %221
    %vm223 = vcmask 802432
    %s224 = scalar_lea.vmem [#allocation0], 40
    %225 = vst.msk [vmem:[%s224] sm:$0x1] %vm223, %v222
    %s226 = scalar_lea.vmem %s0, 47
    %v227 = vld [vmem:[%s226] sm:$0x1]
    %228 = vrot.lane.b32.xlu0 %v227, 78
    %v229 = vpop.permute.xlu0 %228
    %vm230 = vcmask 786032
    %s231 = scalar_lea.vmem [#allocation0], 48
    %232 = vst.msk [vmem:[%s231] sm:$0x1] %vm230, %v229
    %s233 = scalar_lea.vmem %s0, 54
    %v234 = vld [vmem:[%s233] sm:$0x1]
    %235 = vrot.lane.b32.xlu0 %v234, 76
    %v236 = vpop.permute.xlu0 %235
    %vm237 = vcmask 769632
    %s238 = scalar_lea.vmem [#allocation0], 56
    %239 = vst.msk [vmem:[%s238] sm:$0x1] %vm237, %v236
    %s240 = scalar_lea.vmem %s0, 61
    %v241 = vld [vmem:[%s240] sm:$0x1]
    %242 = vrot.lane.b32.xlu0 %v241, 74
    %v243 = vpop.permute.xlu0 %242
    %vm244 = vcmask 753232
    %s245 = scalar_lea.vmem [#allocation0], 64
    %246 = vst.msk [vmem:[%s245] sm:$0x1] %vm244, %v243
    %s247 = scalar_lea.vmem %s0, 4
    %v248 = vld [vmem:[%s247] sm:$0x1]
    %249 = vrot.lane.b32.xlu0 %v248, 72
    %v250 = vpop.permute.xlu0 %249
    %vm251 = vcmask 736832
    %252 = vst.msk [vmem:[#allocation0] sm:$0x1] %vm251, %v250
    %s253 = scalar_lea.vmem %s0, 11
    %v254 = vld [vmem:[%s253] sm:$0x1]
    %255 = vrot.lane.b32.xlu0 %v254, 70
    %v256 = vpop.permute.xlu0 %255
    %vm257 = vcmask 720432
    %s258 = scalar_lea.vmem [#allocation0], 8
    %259 = vst.msk [vmem:[%s258] sm:$0x1] %vm257, %v256
    %s260 = scalar_lea.vmem %s0, 18
    %v261 = vld [vmem:[%s260] sm:$0x1]
    %262 = vrot.lane.b32.xlu0 %v261, 68
    %v263 = vpop.permute.xlu0 %262
    %vm264 = vcmask 704032
    %s265 = scalar_lea.vmem [#allocation0], 16
    %266 = vst.msk [vmem:[%s265] sm:$0x1] %vm264, %v263
    %s267 = scalar_lea.vmem %s0, 25
    %v268 = vld [vmem:[%s267] sm:$0x1]
    %269 = vrot.lane.b32.xlu0 %v268, 66
    %v270 = vpop.permute.xlu0 %269
    %vm271 = vcmask 687632
    %s272 = scalar_lea.vmem [#allocation0], 24
    %273 = vst.msk [vmem:[%s272] sm:$0x1] %vm271, %v270
    %s274 = scalar_lea.vmem %s0, 32
    %v275 = vld [vmem:[%s274] sm:$0x1]
    %276 = vrot.lane.b32.xlu0 %v275, 64
    %v277 = vpop.permute.xlu0 %276
    %vm278 = vcmask 671232
    %s279 = scalar_lea.vmem [#allocation0], 32
    %280 = vst.msk [vmem:[%s279] sm:$0x1] %vm278, %v277
    %s281 = scalar_lea.vmem %s0, 39
    %v282 = vld [vmem:[%s281] sm:$0x1]
    %283 = vrot.lane.b32.xlu0 %v282, 62
    %v284 = vpop.permute.xlu0 %283
    %vm285 = vcmask 654832
    %s286 = scalar_lea.vmem [#allocation0], 40
    %287 = vst.msk [vmem:[%s286] sm:$0x1] %vm285, %v284
    %s288 = scalar_lea.vmem %s0, 46
    %v289 = vld [vmem:[%s288] sm:$0x1]
    %290 = vrot.lane.b32.xlu0 %v289, 60
    %v291 = vpop.permute.xlu0 %290
    %vm292 = vcmask 638432
    %s293 = scalar_lea.vmem [#allocation0], 48
    %294 = vst.msk [vmem:[%s293] sm:$0x1] %vm292, %v291
    %s295 = scalar_lea.vmem %s0, 53
    %v296 = vld [vmem:[%s295] sm:$0x1]
    %297 = vrot.lane.b32.xlu0 %v296, 58
    %v298 = vpop.permute.xlu0 %297
    %vm299 = vcmask 622032
    %s300 = scalar_lea.vmem [#allocation0], 56
    %301 = vst.msk [vmem:[%s300] sm:$0x1] %vm299, %v298
    %s302 = scalar_lea.vmem %s0, 60
    %v303 = vld [vmem:[%s302] sm:$0x1]
    %304 = vrot.lane.b32.xlu0 %v303, 56
    %v305 = vpop.permute.xlu0 %304
    %vm306 = vcmask 605632
    %s307 = scalar_lea.vmem [#allocation0], 64
    %308 = vst.msk [vmem:[%s307] sm:$0x1] %vm306, %v305
    %s309 = scalar_lea.vmem %s0, 3
    %v310 = vld [vmem:[%s309] sm:$0x1]
    %311 = vrot.lane.b32.xlu0 %v310, 54
    %v312 = vpop.permute.xlu0 %311
    %vm313 = vcmask 589232
    %314 = vst.msk [vmem:[#allocation0] sm:$0x1] %vm313, %v312
    %s315 = scalar_lea.vmem %s0, 10
    %v316 = vld [vmem:[%s315] sm:$0x1]
    %317 = vrot.lane.b32.xlu0 %v316, 52
    %v318 = vpop.permute.xlu0 %317
    %vm319 = vcmask 572832
    %s320 = scalar_lea.vmem [#allocation0], 8
    %321 = vst.msk [vmem:[%s320] sm:$0x1] %vm319, %v318
    %s322 = scalar_lea.vmem %s0, 17
    %v323 = vld [vmem:[%s322] sm:$0x1]
    %324 = vrot.lane.b32.xlu0 %v323, 50
    %v325 = vpop.permute.xlu0 %324
    %vm326 = vcmask 556432
    %s327 = scalar_lea.vmem [#allocation0], 16
    %328 = vst.msk [vmem:[%s327] sm:$0x1] %vm326, %v325
    %s329 = scalar_lea.vmem %s0, 24
    %v330 = vld [vmem:[%s329] sm:$0x1]
    %331 = vrot.lane.b32.xlu0 %v330, 48
    %v332 = vpop.permute.xlu0 %331
    %vm333 = vcmask 540032
    %s334 = scalar_lea.vmem [#allocation0], 24
    %335 = vst.msk [vmem:[%s334] sm:$0x1] %vm333, %v332
    %s336 = scalar_lea.vmem %s0, 31
    %v337 = vld [vmem:[%s336] sm:$0x1]
    %338 = vrot.lane.b32.xlu0 %v337, 46
    %v339 = vpop.permute.xlu0 %338
    %vm340 = vcmask 523632
    %s341 = scalar_lea.vmem [#allocation0], 32
    %342 = vst.msk [vmem:[%s341] sm:$0x1] %vm340, %v339
    %s343 = scalar_lea.vmem %s0, 38
    %v344 = vld [vmem:[%s343] sm:$0x1]
    %345 = vrot.lane.b32.xlu0 %v344, 44
    %v346 = vpop.permute.xlu0 %345
    %vm347 = vcmask 507232
    %s348 = scalar_lea.vmem [#allocation0], 40
    %349 = vst.msk [vmem:[%s348] sm:$0x1] %vm347, %v346
    %s350 = scalar_lea.vmem %s0, 45
    %v351 = vld [vmem:[%s350] sm:$0x1]
    %352 = vrot.lane.b32.xlu0 %v351, 42
    %v353 = vpop.permute.xlu0 %352
    %vm354 = vcmask 490832
    %s355 = scalar_lea.vmem [#allocation0], 48
    %356 = vst.msk [vmem:[%s355] sm:$0x1] %vm354, %v353
    %s357 = scalar_lea.vmem %s0, 52
    %v358 = vld [vmem:[%s357] sm:$0x1]
    %359 = vrot.lane.b32.xlu0 %v358, 40
    %v360 = vpop.permute.xlu0 %359
    %vm361 = vcmask 474432
    %s362 = scalar_lea.vmem [#allocation0], 56
    %363 = vst.msk [vmem:[%s362] sm:$0x1] %vm361, %v360
    %s364 = scalar_lea.vmem %s0, 59
    %v365 = vld [vmem:[%s364] sm:$0x1]
    %366 = vrot.lane.b32.xlu0 %v365, 38
    %v367 = vpop.permute.xlu0 %366
    %vm368 = vcmask 458032
    %s369 = scalar_lea.vmem [#allocation0], 64
    %370 = vst.msk [vmem:[%s369] sm:$0x1] %vm368, %v367
    %s371 = scalar_lea.vmem %s0, 2
    %v372 = vld [vmem:[%s371] sm:$0x1]
    %373 = vrot.lane.b32.xlu0 %v372, 36
    %v374 = vpop.permute.xlu0 %373
    %vm375 = vcmask 441632
    %376 = vst.msk [vmem:[#allocation0] sm:$0x1] %vm375, %v374
    %s377 = scalar_lea.vmem %s0, 9
    %v378 = vld [vmem:[%s377] sm:$0x1]
    %379 = vrot.lane.b32.xlu0 %v378, 34
    %v380 = vpop.permute.xlu0 %379
    %vm381 = vcmask 425232
    %s382 = scalar_lea.vmem [#allocation0], 8
    %383 = vst.msk [vmem:[%s382] sm:$0x1] %vm381, %v380
    %s384 = scalar_lea.vmem %s0, 16
    %v385 = vld [vmem:[%s384] sm:$0x1]
    %386 = vrot.lane.b32.xlu0 %v385, 32
    %v387 = vpop.permute.xlu0 %386
    %vm388 = vcmask 408832
    %s389 = scalar_lea.vmem [#allocation0], 16
    %390 = vst.msk [vmem:[%s389] sm:$0x1] %vm388, %v387
    %s391 = scalar_lea.vmem %s0, 23
    %v392 = vld [vmem:[%s391] sm:$0x1]
    %393 = vrot.lane.b32.xlu0 %v392, 30
    %v394 = vpop.permute.xlu0 %393
    %vm395 = vcmask 392432
    %s396 = scalar_lea.vmem [#allocation0], 24
    %397 = vst.msk [vmem:[%s396] sm:$0x1] %vm395, %v394
    %s398 = scalar_lea.vmem %s0, 30
    %v399 = vld [vmem:[%s398] sm:$0x1]
    %400 = vrot.lane.b32.xlu0 %v399, 28
    %v401 = vpop.permute.xlu0 %400
    %vm402 = vcmask 376032
    %s403 = scalar_lea.vmem [#allocation0], 32
    %404 = vst.msk [vmem:[%s403] sm:$0x1] %vm402, %v401
    %s405 = scalar_lea.vmem %s0, 37
    %v406 = vld [vmem:[%s405] sm:$0x1]
    %407 = vrot.lane.b32.xlu0 %v406, 26
    %v408 = vpop.permute.xlu0 %407
    %vm409 = vcmask 359632
    %s410 = scalar_lea.vmem [#allocation0], 40
    %411 = vst.msk [vmem:[%s410] sm:$0x1] %vm409, %v408
    %s412 = scalar_lea.vmem %s0, 44
    %v413 = vld [vmem:[%s412] sm:$0x1]
    %414 = vrot.lane.b32.xlu0 %v413, 24
    %v415 = vpop.permute.xlu0 %414
    %vm416 = vcmask 343232
    %s417 = scalar_lea.vmem [#allocation0], 48
    %418 = vst.msk [vmem:[%s417] sm:$0x1] %vm416, %v415
    %s419 = scalar_lea.vmem %s0, 51
    %v420 = vld [vmem:[%s419] sm:$0x1]
    %421 = vrot.lane.b32.xlu0 %v420, 22
    %v422 = vpop.permute.xlu0 %421
    %vm423 = vcmask 326832
    %s424 = scalar_lea.vmem [#allocation0], 56
    %425 = vst.msk [vmem:[%s424] sm:$0x1] %vm423, %v422
    %s426 = scalar_lea.vmem %s0, 58
    %v427 = vld [vmem:[%s426] sm:$0x1]
    %428 = vrot.lane.b32.xlu0 %v427, 20
    %v429 = vpop.permute.xlu0 %428
    %vm430 = vcmask 310432
    %s431 = scalar_lea.vmem [#allocation0], 64
    %432 = vst.msk [vmem:[%s431] sm:$0x1] %vm430, %v429
    %s433 = scalar_lea.vmem %s0, 1
    %v434 = vld [vmem:[%s433] sm:$0x1]
    %435 = vrot.lane.b32.xlu0 %v434, 18
    %v436 = vpop.permute.xlu0 %435
    %vm437 = vcmask 294032
    %438 = vst.msk [vmem:[#allocation0] sm:$0x1] %vm437, %v436
    %s439 = scalar_lea.vmem %s0, 8
    %v440 = vld [vmem:[%s439] sm:$0x1]
    %441 = vrot.lane.b32.xlu0 %v440, 16
    %v442 = vpop.permute.xlu0 %441
    %vm443 = vcmask 277632
    %s444 = scalar_lea.vmem [#allocation0], 8
    %445 = vst.msk [vmem:[%s444] sm:$0x1] %vm443, %v442
    %s446 = scalar_lea.vmem %s0, 15
    %v447 = vld [vmem:[%s446] sm:$0x1]
    %448 = vrot.lane.b32.xlu0 %v447, 14
    %v449 = vpop.permute.xlu0 %448
    %vm450 = vcmask 261232
    %s451 = scalar_lea.vmem [#allocation0], 16
    %452 = vst.msk [vmem:[%s451] sm:$0x1] %vm450, %v449
    %s453 = scalar_lea.vmem %s0, 22
    %v454 = vld [vmem:[%s453] sm:$0x1]
    %455 = vrot.lane.b32.xlu0 %v454, 12
    %v456 = vpop.permute.xlu0 %455
    %vm457 = vcmask 244832
    %s458 = scalar_lea.vmem [#allocation0], 24
    %459 = vst.msk [vmem:[%s458] sm:$0x1] %vm457, %v456
    %s460 = scalar_lea.vmem %s0, 29
    %v461 = vld [vmem:[%s460] sm:$0x1]
    %462 = vrot.lane.b32.xlu0 %v461, 10
    %v463 = vpop.permute.xlu0 %462
    %vm464 = vcmask 228432
    %s465 = scalar_lea.vmem [#allocation0], 32
    %466 = vst.msk [vmem:[%s465] sm:$0x1] %vm464, %v463
    %s467 = scalar_lea.vmem %s0, 36
    %v468 = vld [vmem:[%s467] sm:$0x1]
    %469 = vrot.lane.b32.xlu0 %v468, 8
    %v470 = vpop.permute.xlu0 %469
    %vm471 = vcmask 212032
    %s472 = scalar_lea.vmem [#allocation0], 40
    %473 = vst.msk [vmem:[%s472] sm:$0x1] %vm471, %v470
    %s474 = scalar_lea.vmem %s0, 43
    %v475 = vld [vmem:[%s474] sm:$0x1]
    %476 = vrot.lane.b32.xlu0 %v475, 6
    %v477 = vpop.permute.xlu0 %476
    %vm478 = vcmask 195632
    %s479 = scalar_lea.vmem [#allocation0], 48
    %480 = vst.msk [vmem:[%s479] sm:$0x1] %vm478, %v477
    %s481 = scalar_lea.vmem %s0, 50
    %v482 = vld [vmem:[%s481] sm:$0x1]
    %483 = vrot.lane.b32.xlu0 %v482, 4
    %v484 = vpop.permute.xlu0 %483
    %vm485 = vcmask 179232
    %s486 = scalar_lea.vmem [#allocation0], 56
    %487 = vst.msk [vmem:[%s486] sm:$0x1] %vm485, %v484
    %s488 = scalar_lea.vmem %s0, 57
    %v489 = vld [vmem:[%s488] sm:$0x1]
    %490 = vrot.lane.b32.xlu0 %v489, 2
    %v491 = vpop.permute.xlu0 %490
    %vm492 = vcmask 162832
    %s493 = scalar_lea.vmem [#allocation0], 64
    %494 = vst.msk [vmem:[%s493] sm:$0x1] %vm492, %v491
    %s496 = sshll.u32 1, 1
    %s497 = ssub.s32 %s496, 1
    %v499 = vld [vmem:[#allocation0] sm:%s497]
    %s500 = sshll.u32 1, 1
    %s501 = ssub.s32 %s500, 1
    %502 = vst [vmem:[%s1] sm:%s501] %v499
    %s503 = scalar_lea.vmem [#allocation0], 8
    %v504 = vld [vmem:[%s503] sm:%s497]
    %s505 = sshll.u32 1, 1
    %s506 = ssub.s32 %s505, 1
    %s507 = scalar_lea.vmem %s1, 1
    %508 = vst [vmem:[%s507] sm:%s506] %v504
    %s509 = scalar_lea.vmem [#allocation0], 16
    %v510 = vld [vmem:[%s509] sm:%s497]
    %s511 = sshll.u32 1, 1
    %s512 = ssub.s32 %s511, 1
    %s513 = smul.addr 1, 2
    %s514 = scalar_lea.vmem %s1, %s513
    %515 = vst [vmem:[%s514] sm:%s512] %v510
    %s516 = scalar_lea.vmem [#allocation0], 24
    %v517 = vld [vmem:[%s516] sm:%s497]
    %s518 = sshll.u32 1, 1
    %s519 = ssub.s32 %s518, 1
    %s520 = smul.addr 1, 3
    %s521 = scalar_lea.vmem %s1, %s520
    %522 = vst [vmem:[%s521] sm:%s519] %v517
    %s523 = scalar_lea.vmem [#allocation0], 32
    %v524 = vld [vmem:[%s523] sm:%s497]
    %s525 = sshll.u32 1, 1
    %s526 = ssub.s32 %s525, 1
    %s527 = smul.addr 1, 4
    %s528 = scalar_lea.vmem %s1, %s527
    %529 = vst [vmem:[%s528] sm:%s526] %v524
    %s530 = scalar_lea.vmem [#allocation0], 40
    %v531 = vld [vmem:[%s530] sm:%s497]
    %s532 = sshll.u32 1, 1
    %s533 = ssub.s32 %s532, 1
    %s534 = smul.addr 1, 5
    %s535 = scalar_lea.vmem %s1, %s534
    %536 = vst [vmem:[%s535] sm:%s533] %v531
    %s537 = scalar_lea.vmem [#allocation0], 48
    %v538 = vld [vmem:[%s537] sm:%s497]
    %s539 = sshll.u32 1, 1
    %s540 = ssub.s32 %s539, 1
    %s541 = smul.addr 1, 6
    %s542 = scalar_lea.vmem %s1, %s541
    %543 = vst [vmem:[%s542] sm:%s540] %v538
    %s544 = scalar_lea.vmem [#allocation0], 56
    %v545 = vld [vmem:[%s544] sm:%s497]
    %s546 = sshll.u32 1, 1
    %s547 = ssub.s32 %s546, 1
    %s548 = smul.addr 1, 7
    %s549 = scalar_lea.vmem %s1, %s548
    %550 = vst [vmem:[%s549] sm:%s547] %v545
    %s551 = scalar_lea.vmem [#allocation0], 64
    %v552 = vld [vmem:[%s551] sm:%s497]
    %s553 = sshll.u32 1, 1
    %s554 = ssub.s32 %s553, 1
    %s555 = smul.addr 1, 8
    %s556 = scalar_lea.vmem %s1, %s555
    %557 = vst [vmem:[%s556] sm:%s554] %v552

// kernel: _lambda_.23
$region0: #{_lambda_.23}
  #allocation0 [shape = 'u32[]', space=smem, size = 0x4, offset = 0x4, fixed_abs, tag = 'smem constant byte address 0x4 - core index']
  #allocation1 [shape = 'u32[144,128]{1,0:T(1,128)}', space=vmem, size = 0x12000, scoped, tag = 'internal scratch']
  %s0 = inlined_call_operand.vmem [shape: f32[8,1152], index: 0, kind: input, shape index: {}]
  %s1 = inlined_call_operand.vmem [shape: f32[1,1152], index: 1, kind: input, shape index: {}]
  %s2 = inlined_call_operand.vmem [shape: f32[1,1152], index: 2, kind: input, shape index: {}]
  %s3 = inlined_call_operand.vmem [shape: f32[8,1152], index: 3, kind: output, shape index: {}]
  %s4 = sld [smem:[#allocation0]]
  $region22: #{_lambda_.23} parent=0
    _
  %s6 = ssub.s32 1, %s4
  %s7 = scalar_select 0, %s6, %s4
  // Predicated region
  $region2: #{_lambda_.23} parent=0 // pred_check
    _
  $region3: #{_lambda_.23} parent=0 // pred_check_branch
    %9 = sbr.rel (0) target = $region5
  $region4: #{_lambda_.23} parent=0 // pred_region
    _
  $region5: #{_lambda_.23} parent=0 // pred_fallthru
    _
  // Predicated region
  $region6: #{_lambda_.23} parent=0 // pred_check
    _
  $region7: #{_lambda_.23} parent=0 // pred_check_branch
    %11 = sbr.rel (0) target = $region9
  $region8: #{_lambda_.23} parent=0 // pred_region
    _
  $region9: #{_lambda_.23} parent=0 // pred_fallthru
    _
  // Predicated region
  $region10: #{_lambda_.23} parent=0 // pred_check
    _
  $region11: #{_lambda_.23} parent=0 // pred_check_branch
    %13 = sbr.rel (0) target = $region13
  $region12: #{_lambda_.23} parent=0 // pred_region
    _
  $region13: #{_lambda_.23} parent=0 // pred_fallthru
    _
  %v14 = vld [vmem:[%s0] sm:$0xff]
  %v15 = vld [vmem:[%s0 + $0x8] sm:$0xff]
  %v16 = vld [vmem:[%s0 + $0x10] sm:$0xff]
  %v17 = vld [vmem:[%s0 + $0x18] sm:$0xff]
  %v18 = vld [vmem:[%s0 + $0x20] sm:$0xff]
  %v19 = vld [vmem:[%s0 + $0x28] sm:$0xff]
  %v20 = vld [vmem:[%s0 + $0x30] sm:$0xff]
  %v21 = vld [vmem:[%s0 + $0x38] sm:$0xff]
  %v22 = vld [vmem:[%s0 + $0x40] sm:$0xff]
  %v23 = vld [vmem:[%s1] sm:$0xff]
  %v24 = vld [vmem:[%s1 + $0x8] sm:$0x1]
  %v27 = vlaneseq
  %v28 = vshrl.u32 %v27, 7
  %v29 = vsub.s32 0, %v28
  %v30 = vrot.slane %v23, %v29
  %v31 = vlaneseq
  %v32 = vshrl.u32 %v31, 7
  %v33 = vsub.s32 1, %v32
  %v34 = vrot.slane %v23, %v33
  %v35 = vlaneseq
  %v36 = vshrl.u32 %v35, 7
  %v37 = vsub.s32 2, %v36
  %v38 = vrot.slane %v23, %v37
  %v39 = vlaneseq
  %v40 = vshrl.u32 %v39, 7
  %v41 = vsub.s32 3, %v40
  %v42 = vrot.slane %v23, %v41
  %v43 = vlaneseq
  %v44 = vshrl.u32 %v43, 7
  %v45 = vsub.s32 4, %v44
  %v46 = vrot.slane %v23, %v45
  %v47 = vlaneseq
  %v48 = vshrl.u32 %v47, 7
  %v49 = vsub.s32 5, %v48
  %v50 = vrot.slane %v23, %v49
  %v51 = vlaneseq
  %v52 = vshrl.u32 %v51, 7
  %v53 = vsub.s32 6, %v52
  %v54 = vrot.slane %v23, %v53
  %v55 = vlaneseq
  %v56 = vshrl.u32 %v55, 7
  %v57 = vsub.s32 7, %v56
  %v58 = vrot.slane %v23, %v57
  %v59 = vlaneseq
  %v60 = vshrl.u32 %v59, 7
  %v61 = vsub.s32 0, %v60
  %v62 = vrot.slane %v24, %v61
  %v72 = vmul.f32 %v14, %v30
  %v73 = vmul.f32 %v15, %v34
  %v74 = vmul.f32 %v16, %v38
  %v75 = vmul.f32 %v17, %v42
  %v76 = vmul.f32 %v18, %v46
  %v77 = vmul.f32 %v19, %v50
  %v78 = vmul.f32 %v20, %v54
  %v79 = vmul.f32 %v21, %v58
  %v80 = vmul.f32 %v22, %v62
  %v81 = vld [vmem:[%s2] sm:$0xff]
  %v82 = vld [vmem:[%s2 + $0x8] sm:$0x1]
  %v85 = vlaneseq
  %v86 = vshrl.u32 %v85, 7
  %v87 = vsub.s32 0, %v86
  %v88 = vrot.slane %v81, %v87
  %v89 = vlaneseq
  %v90 = vshrl.u32 %v89, 7
  %v91 = vsub.s32 1, %v90
  %v92 = vrot.slane %v81, %v91
  %v93 = vlaneseq
  %v94 = vshrl.u32 %v93, 7
  %v95 = vsub.s32 2, %v94
  %v96 = vrot.slane %v81, %v95
  %v97 = vlaneseq
  %v98 = vshrl.u32 %v97, 7
  %v99 = vsub.s32 3, %v98
  %v100 = vrot.slane %v81, %v99
  %v101 = vlaneseq
  %v102 = vshrl.u32 %v101, 7
  %v103 = vsub.s32 4, %v102
  %v104 = vrot.slane %v81, %v103
  %v105 = vlaneseq
  %v106 = vshrl.u32 %v105, 7
  %v107 = vsub.s32 5, %v106
  %v108 = vrot.slane %v81, %v107
  %v109 = vlaneseq
  %v110 = vshrl.u32 %v109, 7
  %v111 = vsub.s32 6, %v110
  %v112 = vrot.slane %v81, %v111
  %v113 = vlaneseq
  %v114 = vshrl.u32 %v113, 7
  %v115 = vsub.s32 7, %v114
  %v116 = vrot.slane %v81, %v115
  %v117 = vlaneseq
  %v118 = vshrl.u32 %v117, 7
  %v119 = vsub.s32 0, %v118
  %v120 = vrot.slane %v82, %v119
  %v130 = vadd.f32 %v72, %v88
  %v131 = vadd.f32 %v73, %v92
  %v132 = vadd.f32 %v74, %v96
  %v133 = vadd.f32 %v75, %v100
  %v134 = vadd.f32 %v76, %v104
  %v135 = vadd.f32 %v77, %v108
  %v136 = vadd.f32 %v78, %v112
  %v137 = vadd.f32 %v79, %v116
  %v138 = vadd.f32 %v80, %v120
  %v139 = vmax.f32 %v130, 0.0
  %v140 = vmax.f32 %v131, 0.0
  %v141 = vmax.f32 %v132, 0.0
  %v142 = vmax.f32 %v133, 0.0
  %v143 = vmax.f32 %v134, 0.0
  %v144 = vmax.f32 %v135, 0.0
  %v145 = vmax.f32 %v136, 0.0
  %v146 = vmax.f32 %v137, 0.0
  %v147 = vmax.f32 %v138, 0.0
  %148 = vst [vmem:[%s3] sm:$0xff] %v139
  %149 = vst [vmem:[%s3 + $0x8] sm:$0xff] %v140
  %150 = vst [vmem:[%s3 + $0x10] sm:$0xff] %v141
  %151 = vst [vmem:[%s3 + $0x18] sm:$0xff] %v142
  %152 = vst [vmem:[%s3 + $0x20] sm:$0xff] %v143
  %153 = vst [vmem:[%s3 + $0x28] sm:$0xff] %v144
  %154 = vst [vmem:[%s3 + $0x30] sm:$0xff] %v145
  %155 = vst [vmem:[%s3 + $0x38] sm:$0xff] %v146
  %156 = vst [vmem:[%s3 + $0x40] sm:$0xff] %v147
  // Predicated region
  $region14: #{_lambda_.23} parent=0 // pred_check
    _
  $region15: #{_lambda_.23} parent=0 // pred_check_branch
    %158 = sbr.rel (0) target = $region17
  $region16: #{_lambda_.23} parent=0 // pred_region
    _
  $region17: #{_lambda_.23} parent=0 // pred_fallthru
    _
  // Predicated region
  $region18: #{_lambda_.23} parent=0 // pred_check
    _
  $region19: #{_lambda_.23} parent=0 // pred_check_branch
    %160 = sbr.rel (0) target = $region21
  $region20: #{_lambda_.23} parent=0 // pred_region
    _
  $region21: #{_lambda_.23} parent=0 // pred_fallthru
    _

// kernel: _lambda_.24
$region0: #{_lambda_.24}
  #allocation0 [shape = 'u32[]', space=smem, size = 0x4, offset = 0x4, fixed_abs, tag = 'smem constant byte address 0x4 - core index']
  #allocation1 [shape = 'u32[144,128]{1,0:T(1,128)}', space=vmem, size = 0x12000, scoped, tag = 'internal scratch']
  %s0 = inlined_call_operand.vmem [shape: f32[512,54], index: 0, kind: input, shape index: {}]
  %s1 = inlined_call_operand.vmem [shape: f32[54,8], index: 1, kind: input, shape index: {}]
  %s2 = inlined_call_operand.vmem [shape: f32[1,8], index: 2, kind: input, shape index: {}]
  %s3 = inlined_call_operand.vmem [shape: f32[1,54], index: 3, kind: input, shape index: {}, may-alias: {3,4}]
  %s4 = inlined_call_operand.vmem [shape: f32[1,54], index: 4, kind: input, shape index: {}, may-alias: {3,4}]
  %s5 = inlined_call_operand.vmem [shape: f32[512,8], index: 5, kind: output, shape index: {0}]
  %s6 = inlined_call_operand.vmem [shape: f32[1,8], index: 6, kind: output, shape index: {1}]
  %s7 = inlined_call_operand.vmem [shape: f32[1,8], index: 7, kind: output, shape index: {2}]
  %8 = xla_tuple %s5, %s6, %s7
  %s9 = sld [smem:[#allocation0]]
  $region50: #{_lambda_.24} parent=0
    _
  %s11 = ssub.s32 1, %s9
  %s12 = scalar_select 0, %s11, %s9
  // Predicated region
  $region2: #{_lambda_.24} parent=0 // pred_check
    _
  $region3: #{_lambda_.24} parent=0 // pred_check_branch
    %14 = sbr.rel (0) target = $region5
  $region4: #{_lambda_.24} parent=0 // pred_region
    _
  $region5: #{_lambda_.24} parent=0 // pred_fallthru
    _
  // Predicated region
  $region6: #{_lambda_.24} parent=0 // pred_check
    _
  $region7: #{_lambda_.24} parent=0 // pred_check_branch
    %16 = sbr.rel (0) target = $region9
  $region8: #{_lambda_.24} parent=0 // pred_region
    _
  $region9: #{_lambda_.24} parent=0 // pred_fallthru
    _
  // Predicated region
  $region10: #{_lambda_.24} parent=0 // pred_check
    _
  $region11: #{_lambda_.24} parent=0 // pred_check_branch
    %18 = sbr.rel (0) target = $region13
  $region12: #{_lambda_.24} parent=0 // pred_region
    _
  $region13: #{_lambda_.24} parent=0 // pred_fallthru
    _
  // Predicated region
  $region14: #{_lambda_.24} parent=0 // pred_check
    _
  $region15: #{_lambda_.24} parent=0 // pred_check_branch
    %20 = sbr.rel (0) target = $region17
  $region16: #{_lambda_.24} parent=0 // pred_region
    _
  $region17: #{_lambda_.24} parent=0 // pred_fallthru
    _
  // Predicated region
  $region18: #{_lambda_.24} parent=0 // pred_check
    _
  $region19: #{_lambda_.24} parent=0 // pred_check_branch
    %22 = sbr.rel (0) target = $region21
  $region20: #{_lambda_.24} parent=0 // pred_region
    _
  $region21: #{_lambda_.24} parent=0 // pred_fallthru
    _
  %v23 = vld [vmem:[%s0] sm:$0xff]
  %v24 = vld [vmem:[%s0 + $0x8] sm:$0xff]
  %v25 = vld [vmem:[%s0 + $0x10] sm:$0xff]
  %v26 = vld [vmem:[%s0 + $0x18] sm:$0xff]
  %v27 = vld [vmem:[%s0 + $0x20] sm:$0xff]
  %v28 = vld [vmem:[%s0 + $0x28] sm:$0xff]
  %v29 = vld [vmem:[%s0 + $0x30] sm:$0xff]
  %v30 = vld [vmem:[%s0 + $0x38] sm:$0xff]
  %v31 = vld [vmem:[%s0 + $0x40] sm:$0xff]
  %v32 = vld [vmem:[%s0 + $0x48] sm:$0xff]
  %v33 = vld [vmem:[%s0 + $0x50] sm:$0xff]
  %v34 = vld [vmem:[%s0 + $0x58] sm:$0xff]
  %v35 = vld [vmem:[%s0 + $0x60] sm:$0xff]
  %v36 = vld [vmem:[%s0 + $0x68] sm:$0xff]
  %v37 = vld [vmem:[%s0 + $0x70] sm:$0xff]
  %v38 = vld [vmem:[%s0 + $0x78] sm:$0xff]
  %v39 = vld [vmem:[%s0 + $0x80] sm:$0xff]
  %v40 = vld [vmem:[%s0 + $0x88] sm:$0xff]
  %v41 = vld [vmem:[%s0 + $0x90] sm:$0xff]
  %v42 = vld [vmem:[%s0 + $0x98] sm:$0xff]
  %v43 = vld [vmem:[%s0 + $0xa0] sm:$0xff]
  %v44 = vld [vmem:[%s0 + $0xa8] sm:$0xff]
  %v45 = vld [vmem:[%s0 + $0xb0] sm:$0xff]
  %v46 = vld [vmem:[%s0 + $0xb8] sm:$0xff]
  %v47 = vld [vmem:[%s0 + $0xc0] sm:$0xff]
  %v48 = vld [vmem:[%s0 + $0xc8] sm:$0xff]
  %v49 = vld [vmem:[%s0 + $0xd0] sm:$0xff]
  %v50 = vld [vmem:[%s0 + $0xd8] sm:$0xff]
  %v51 = vld [vmem:[%s0 + $0xe0] sm:$0xff]
  %v52 = vld [vmem:[%s0 + $0xe8] sm:$0xff]
  %v53 = vld [vmem:[%s0 + $0xf0] sm:$0xff]
  %v54 = vld [vmem:[%s0 + $0xf8] sm:$0xff]
  %v55 = vld [vmem:[%s0 + $0x100] sm:$0xff]
  %v56 = vld [vmem:[%s0 + $0x108] sm:$0xff]
  %v57 = vld [vmem:[%s0 + $0x110] sm:$0xff]
  %v58 = vld [vmem:[%s0 + $0x118] sm:$0xff]
  %v59 = vld [vmem:[%s0 + $0x120] sm:$0xff]
  %v60 = vld [vmem:[%s0 + $0x128] sm:$0xff]
  %v61 = vld [vmem:[%s0 + $0x130] sm:$0xff]
  %v62 = vld [vmem:[%s0 + $0x138] sm:$0xff]
  %v63 = vld [vmem:[%s0 + $0x140] sm:$0xff]
  %v64 = vld [vmem:[%s0 + $0x148] sm:$0xff]
  %v65 = vld [vmem:[%s0 + $0x150] sm:$0xff]
  %v66 = vld [vmem:[%s0 + $0x158] sm:$0xff]
  %v67 = vld [vmem:[%s0 + $0x160] sm:$0xff]
  %v68 = vld [vmem:[%s0 + $0x168] sm:$0xff]
  %v69 = vld [vmem:[%s0 + $0x170] sm:$0xff]
  %v70 = vld [vmem:[%s0 + $0x178] sm:$0xff]
  %v71 = vld [vmem:[%s0 + $0x180] sm:$0xff]
  %v72 = vld [vmem:[%s0 + $0x188] sm:$0xff]
  %v73 = vld [vmem:[%s0 + $0x190] sm:$0xff]
  %v74 = vld [vmem:[%s0 + $0x198] sm:$0xff]
  %v75 = vld [vmem:[%s0 + $0x1a0] sm:$0xff]
  %v76 = vld [vmem:[%s0 + $0x1a8] sm:$0xff]
  %v77 = vld [vmem:[%s0 + $0x1b0] sm:$0xff]
  %v78 = vld [vmem:[%s0 + $0x1b8] sm:$0xff]
  %v79 = vld [vmem:[%s0 + $0x1c0] sm:$0xff]
  %v80 = vld [vmem:[%s0 + $0x1c8] sm:$0xff]
  %v81 = vld [vmem:[%s0 + $0x1d0] sm:$0xff]
  %v82 = vld [vmem:[%s0 + $0x1d8] sm:$0xff]
  %v83 = vld [vmem:[%s0 + $0x1e0] sm:$0xff]
  %v84 = vld [vmem:[%s0 + $0x1e8] sm:$0xff]
  %v85 = vld [vmem:[%s0 + $0x1f0] sm:$0xff]
  %v86 = vld [vmem:[%s0 + $0x1f8] sm:$0xff]
  %v87 = vld [vmem:[%s1] sm:$0xff]
  %v88 = vld [vmem:[%s1 + $0x8] sm:$0xff]
  %v89 = vld [vmem:[%s1 + $0x10] sm:$0xff]
  %v90 = vld [vmem:[%s1 + $0x18] sm:$0xff]
  %v91 = vld [vmem:[%s1 + $0x20] sm:$0xff]
  %v92 = vld [vmem:[%s1 + $0x28] sm:$0xff]
  %v93 = vld [vmem:[%s1 + $0x30] sm:$0x3f]
  %v94 = vld [vmem:[%s2] sm:$0x1]
  %v96 = vlaneseq
  %v97 = vshrl.u32 %v96, 7
  %v98 = vsub.s32 0, %v97
  %v99 = vrot.slane %v94, %v98
  %vm101 = vcmask 441344
  %v103 = vsel %vm101, %v23, 0
  %v106 = vsel %vm101, %v24, 0
  %v109 = vsel %vm101, %v25, 0
  %v112 = vsel %vm101, %v26, 0
  %v115 = vsel %vm101, %v27, 0
  %v118 = vsel %vm101, %v28, 0
  %v121 = vsel %vm101, %v29, 0
  %v124 = vsel %vm101, %v30, 0
  %v127 = vsel %vm101, %v31, 0
  %v130 = vsel %vm101, %v32, 0
  %v133 = vsel %vm101, %v33, 0
  %v136 = vsel %vm101, %v34, 0
  %v139 = vsel %vm101, %v35, 0
  %v142 = vsel %vm101, %v36, 0
  %v145 = vsel %vm101, %v37, 0
  %v148 = vsel %vm101, %v38, 0
  %v151 = vsel %vm101, %v39, 0
  %v154 = vsel %vm101, %v40, 0
  %v157 = vsel %vm101, %v41, 0
  %v160 = vsel %vm101, %v42, 0
  %v163 = vsel %vm101, %v43, 0
  %v166 = vsel %vm101, %v44, 0
  %v169 = vsel %vm101, %v45, 0
  %v172 = vsel %vm101, %v46, 0
  %v175 = vsel %vm101, %v47, 0
  %v178 = vsel %vm101, %v48, 0
  %v181 = vsel %vm101, %v49, 0
  %v184 = vsel %vm101, %v50, 0
  %v187 = vsel %vm101, %v51, 0
  %v190 = vsel %vm101, %v52, 0
  %v193 = vsel %vm101, %v53, 0
  %v196 = vsel %vm101, %v54, 0
  %v199 = vsel %vm101, %v55, 0
  %v202 = vsel %vm101, %v56, 0
  %v205 = vsel %vm101, %v57, 0
  %v208 = vsel %vm101, %v58, 0
  %v211 = vsel %vm101, %v59, 0
  %v214 = vsel %vm101, %v60, 0
  %v217 = vsel %vm101, %v61, 0
  %v220 = vsel %vm101, %v62, 0
  %v223 = vsel %vm101, %v63, 0
  %v226 = vsel %vm101, %v64, 0
  %v229 = vsel %vm101, %v65, 0
  %v232 = vsel %vm101, %v66, 0
  %v235 = vsel %vm101, %v67, 0
  %v238 = vsel %vm101, %v68, 0
  %v241 = vsel %vm101, %v69, 0
  %v244 = vsel %vm101, %v70, 0
  %v247 = vsel %vm101, %v71, 0
  %v250 = vsel %vm101, %v72, 0
  %v253 = vsel %vm101, %v73, 0
  %v256 = vsel %vm101, %v74, 0
  %v259 = vsel %vm101, %v75, 0
  %v262 = vsel %vm101, %v76, 0
  %v265 = vsel %vm101, %v77, 0
  %v268 = vsel %vm101, %v78, 0
  %v271 = vsel %vm101, %v79, 0
  %v274 = vsel %vm101, %v80, 0
  %v277 = vsel %vm101, %v81, 0
  %v280 = vsel %vm101, %v82, 0
  %v283 = vsel %vm101, %v83, 0
  %v286 = vsel %vm101, %v84, 0
  %v289 = vsel %vm101, %v85, 0
  %v292 = vsel %vm101, %v86, 0
  %vm294 = vcmask 1045504
  %v296 = vsel %vm294, %v93, 0
  %298 = vmatprep.subr.mxu0 0.0
  %299 = vmatpush1.msra.mxu0 0.0
  %300 = vmatprep.subr.mxu0 0.0
  %301 = vmatpush1.msra.mxu0 0.0
  %302 = vmatprep.subr.mxu0 0.0
  %303 = vmatpush1.msra.mxu0 0.0
  %304 = vmatprep.subr.mxu0 0.0
  %305 = vmatpush1.msra.mxu0 0.0
  %306 = vmatprep.subr.mxu0 0.0
  %307 = vmatpush1.msra.mxu0 0.0
  %308 = vmatprep.subr.mxu0 0.0
  %309 = vmatpush1.msra.mxu0 0.0
  %310 = vmatprep.subr.mxu0 0.0
  %311 = vmatpush1.msra.mxu0 0.0
  %312 = vmatprep.subr.mxu0 0.0
  %313 = vmatpush1.msra.mxu0 0.0
  %314 = vmatprep.subr.mxu0 0.0
  %315 = vmatpush1.msra.mxu0 0.0
  %316 = vmatprep.subr.mxu0 0.0
  %317 = vmatpush1.msra.mxu0 %v296
  %318 = vmatprep.subr.mxu0 0.0
  %319 = vmatpush1.msra.mxu0 %v92
  %320 = vmatprep.subr.mxu0 0.0
  %321 = vmatpush1.msra.mxu0 %v91
  %322 = vmatprep.subr.mxu0 0.0
  %323 = vmatpush1.msra.mxu0 %v90
  %324 = vmatprep.subr.mxu0 0.0
  %325 = vmatpush1.msra.mxu0 %v89
  %326 = vmatprep.subr.mxu0 0.0
  %327 = vmatpush1.msra.mxu0 %v88
  %328 = vmatprep.subr.mxu0 0.0
  %329 = vmatpush1.msra.mxu0 %v87
  %330 = vmatprep.subr.mxu0 0.0
  %331 = vmatpush2.msra.mxu0 0.0
  %332 = vmatprep.subr.mxu0 0.0
  %333 = vmatpush2.msra.mxu0 0.0
  %334 = vmatprep.subr.mxu0 0.0
  %335 = vmatpush2.msra.mxu0 0.0
  %336 = vmatprep.subr.mxu0 0.0
  %337 = vmatpush2.msra.mxu0 0.0
  %338 = vmatprep.subr.mxu0 0.0
  %339 = vmatpush2.msra.mxu0 0.0
  %340 = vmatprep.subr.mxu0 0.0
  %341 = vmatpush2.msra.mxu0 0.0
  %342 = vmatprep.subr.mxu0 0.0
  %343 = vmatpush2.msra.mxu0 0.0
  %344 = vmatprep.subr.mxu0 0.0
  %345 = vmatpush2.msra.mxu0 0.0
  %346 = vmatprep.subr.mxu0 0.0
  %347 = vmatpush2.msra.mxu0 0.0
  %348 = vmatprep.subr.mxu0 0.0
  %349 = vmatpush2.msra.mxu0 0.0
  %350 = vmatprep.subr.mxu0 0.0
  %351 = vmatpush2.msra.mxu0 0.0
  %352 = vmatprep.subr.mxu0 0.0
  %353 = vmatpush2.msra.mxu0 0.0
  %354 = vmatprep.subr.mxu0 0.0
  %355 = vmatpush2.msra.mxu0 0.0
  %356 = vmatprep.subr.mxu0 0.0
  %357 = vmatpush2.msra.mxu0 0.0
  %358 = vmatprep.subr.mxu0 0.0
  %359 = vmatpush2.msra.mxu0 0.0
  %360 = vmatprep.subr.mxu0 0.0
  %361 = vmatpush2.msra.mxu0 0.0
  %362 = vmatprep.mubr.f32.mxu0 0.0
  %363 = vmatmul.mubr.f32.gmra.mxu0 %v103
  %v364 = vpop.f32.mrf.mxu0
  %v365 = vadd.f32 %v99, %v364
  %v366 = vpop.f32.mrf.mxu0
  %367 = vmatprep.mubr.f32.mxu0 0.0
  %368 = vmatmul.mubr.f32.gmra.mxu0 %v106
  %v369 = vpop.f32.mrf.mxu0
  %v370 = vadd.f32 %v99, %v369
  %v371 = vpop.f32.mrf.mxu0
  %372 = vmatprep.mubr.f32.mxu0 0.0
  %373 = vmatmul.mubr.f32.gmra.mxu0 %v109
  %v374 = vpop.f32.mrf.mxu0
  %v375 = vadd.f32 %v99, %v374
  %v376 = vpop.f32.mrf.mxu0
  %377 = vmatprep.mubr.f32.mxu0 0.0
  %378 = vmatmul.mubr.f32.gmra.mxu0 %v112
  %v379 = vpop.f32.mrf.mxu0
  %v380 = vadd.f32 %v99, %v379
  %v381 = vpop.f32.mrf.mxu0
  %382 = vmatprep.mubr.f32.mxu0 0.0
  %383 = vmatmul.mubr.f32.gmra.mxu0 %v115
  %v384 = vpop.f32.mrf.mxu0
  %v385 = vadd.f32 %v99, %v384
  %v386 = vpop.f32.mrf.mxu0
  %387 = vmatprep.mubr.f32.mxu0 0.0
  %388 = vmatmul.mubr.f32.gmra.mxu0 %v118
  %v389 = vpop.f32.mrf.mxu0
  %v390 = vadd.f32 %v99, %v389
  %v391 = vpop.f32.mrf.mxu0
  %392 = vmatprep.mubr.f32.mxu0 0.0
  %393 = vmatmul.mubr.f32.gmra.mxu0 %v121
  %v394 = vpop.f32.mrf.mxu0
  %v395 = vadd.f32 %v99, %v394
  %v396 = vpop.f32.mrf.mxu0
  %397 = vmatprep.mubr.f32.mxu0 0.0
  %398 = vmatmul.mubr.f32.gmra.mxu0 %v124
  %v399 = vpop.f32.mrf.mxu0
  %v400 = vadd.f32 %v99, %v399
  %v401 = vpop.f32.mrf.mxu0
  %402 = vmatprep.mubr.f32.mxu0 0.0
  %403 = vmatmul.mubr.f32.gmra.mxu0 %v127
  %v404 = vpop.f32.mrf.mxu0
  %v405 = vadd.f32 %v99, %v404
  %v406 = vpop.f32.mrf.mxu0
  %407 = vmatprep.mubr.f32.mxu0 0.0
  %408 = vmatmul.mubr.f32.gmra.mxu0 %v130
  %v409 = vpop.f32.mrf.mxu0
  %v410 = vadd.f32 %v99, %v409
  %v411 = vpop.f32.mrf.mxu0
  %412 = vmatprep.mubr.f32.mxu0 0.0
  %413 = vmatmul.mubr.f32.gmra.mxu0 %v133
  %v414 = vpop.f32.mrf.mxu0
  %v415 = vadd.f32 %v99, %v414
  %v416 = vpop.f32.mrf.mxu0
  %417 = vmatprep.mubr.f32.mxu0 0.0
  %418 = vmatmul.mubr.f32.gmra.mxu0 %v136
  %v419 = vpop.f32.mrf.mxu0
  %v420 = vadd.f32 %v99, %v419
  %v421 = vpop.f32.mrf.mxu0
  %422 = vmatprep.mubr.f32.mxu0 0.0
  %423 = vmatmul.mubr.f32.gmra.mxu0 %v139
  %v424 = vpop.f32.mrf.mxu0
  %v425 = vadd.f32 %v99, %v424
  %v426 = vpop.f32.mrf.mxu0
  %427 = vmatprep.mubr.f32.mxu0 0.0
  %428 = vmatmul.mubr.f32.gmra.mxu0 %v142
  %v429 = vpop.f32.mrf.mxu0
  %v430 = vadd.f32 %v99, %v429
  %v431 = vpop.f32.mrf.mxu0
  %432 = vmatprep.mubr.f32.mxu0 0.0
  %433 = vmatmul.mubr.f32.gmra.mxu0 %v145
  %v434 = vpop.f32.mrf.mxu0
  %v435 = vadd.f32 %v99, %v434
  %v436 = vpop.f32.mrf.mxu0
  %437 = vmatprep.mubr.f32.mxu0 0.0
  %438 = vmatmul.mubr.f32.gmra.mxu0 %v148
  %v439 = vpop.f32.mrf.mxu0
  %v440 = vadd.f32 %v99, %v439
  %v441 = vpop.f32.mrf.mxu0
  %442 = vmatprep.mubr.f32.mxu0 0.0
  %443 = vmatmul.mubr.f32.gmra.mxu0 %v151
  %v444 = vpop.f32.mrf.mxu0
  %v445 = vadd.f32 %v99, %v444
  %v446 = vpop.f32.mrf.mxu0
  %447 = vmatprep.mubr.f32.mxu0 0.0
  %448 = vmatmul.mubr.f32.gmra.mxu0 %v154
  %v449 = vpop.f32.mrf.mxu0
  %v450 = vadd.f32 %v99, %v449
  %v451 = vpop.f32.mrf.mxu0
  %452 = vmatprep.mubr.f32.mxu0 0.0
  %453 = vmatmul.mubr.f32.gmra.mxu0 %v157
  %v454 = vpop.f32.mrf.mxu0
  %v455 = vadd.f32 %v99, %v454
  %v456 = vpop.f32.mrf.mxu0
  %457 = vmatprep.mubr.f32.mxu0 0.0
  %458 = vmatmul.mubr.f32.gmra.mxu0 %v160
  %v459 = vpop.f32.mrf.mxu0
  %v460 = vadd.f32 %v99, %v459
  %v461 = vpop.f32.mrf.mxu0
  %462 = vmatprep.mubr.f32.mxu0 0.0
  %463 = vmatmul.mubr.f32.gmra.mxu0 %v163
  %v464 = vpop.f32.mrf.mxu0
  %v465 = vadd.f32 %v99, %v464
  %v466 = vpop.f32.mrf.mxu0
  %467 = vmatprep.mubr.f32.mxu0 0.0
  %468 = vmatmul.mubr.f32.gmra.mxu0 %v166
  %v469 = vpop.f32.mrf.mxu0
  %v470 = vadd.f32 %v99, %v469
  %v471 = vpop.f32.mrf.mxu0
  %472 = vmatprep.mubr.f32.mxu0 0.0
  %473 = vmatmul.mubr.f32.gmra.mxu0 %v169
  %v474 = vpop.f32.mrf.mxu0
  %v475 = vadd.f32 %v99, %v474
  %v476 = vpop.f32.mrf.mxu0
  %477 = vmatprep.mubr.f32.mxu0 0.0
  %478 = vmatmul.mubr.f32.gmra.mxu0 %v172
  %v479 = vpop.f32.mrf.mxu0
  %v480 = vadd.f32 %v99, %v479
  %v481 = vpop.f32.mrf.mxu0
  %482 = vmatprep.mubr.f32.mxu0 0.0
  %483 = vmatmul.mubr.f32.gmra.mxu0 %v175
  %v484 = vpop.f32.mrf.mxu0
  %v485 = vadd.f32 %v99, %v484
  %v486 = vpop.f32.mrf.mxu0
  %487 = vmatprep.mubr.f32.mxu0 0.0
  %488 = vmatmul.mubr.f32.gmra.mxu0 %v178
  %v489 = vpop.f32.mrf.mxu0
  %v490 = vadd.f32 %v99, %v489
  %v491 = vpop.f32.mrf.mxu0
  %492 = vmatprep.mubr.f32.mxu0 0.0
  %493 = vmatmul.mubr.f32.gmra.mxu0 %v181
  %v494 = vpop.f32.mrf.mxu0
  %v495 = vadd.f32 %v99, %v494
  %v496 = vpop.f32.mrf.mxu0
  %497 = vmatprep.mubr.f32.mxu0 0.0
  %498 = vmatmul.mubr.f32.gmra.mxu0 %v184
  %v499 = vpop.f32.mrf.mxu0
  %v500 = vadd.f32 %v99, %v499
  %v501 = vpop.f32.mrf.mxu0
  %502 = vmatprep.mubr.f32.mxu0 0.0
  %503 = vmatmul.mubr.f32.gmra.mxu0 %v187
  %v504 = vpop.f32.mrf.mxu0
  %v505 = vadd.f32 %v99, %v504
  %v506 = vpop.f32.mrf.mxu0
  %507 = vmatprep.mubr.f32.mxu0 0.0
  %508 = vmatmul.mubr.f32.gmra.mxu0 %v190
  %v509 = vpop.f32.mrf.mxu0
  %v510 = vadd.f32 %v99, %v509
  %v511 = vpop.f32.mrf.mxu0
  %512 = vmatprep.mubr.f32.mxu0 0.0
  %513 = vmatmul.mubr.f32.gmra.mxu0 %v193
  %v514 = vpop.f32.mrf.mxu0
  %v515 = vadd.f32 %v99, %v514
  %v516 = vpop.f32.mrf.mxu0
  %517 = vmatprep.mubr.f32.mxu0 0.0
  %518 = vmatmul.mubr.f32.gmra.mxu0 %v196
  %v519 = vpop.f32.mrf.mxu0
  %v520 = vadd.f32 %v99, %v519
  %v521 = vpop.f32.mrf.mxu0
  %522 = vmatprep.mubr.f32.mxu0 0.0
  %523 = vmatmul.mubr.f32.gmra.mxu0 %v199
  %v524 = vpop.f32.mrf.mxu0
  %v525 = vadd.f32 %v99, %v524
  %v526 = vpop.f32.mrf.mxu0
  %527 = vmatprep.mubr.f32.mxu0 0.0
  %528 = vmatmul.mubr.f32.gmra.mxu0 %v202
  %v529 = vpop.f32.mrf.mxu0
  %v530 = vadd.f32 %v99, %v529
  %v531 = vpop.f32.mrf.mxu0
  %532 = vmatprep.mubr.f32.mxu0 0.0
  %533 = vmatmul.mubr.f32.gmra.mxu0 %v205
  %v534 = vpop.f32.mrf.mxu0
  %v535 = vadd.f32 %v99, %v534
  %v536 = vpop.f32.mrf.mxu0
  %537 = vmatprep.mubr.f32.mxu0 0.0
  %538 = vmatmul.mubr.f32.gmra.mxu0 %v208
  %v539 = vpop.f32.mrf.mxu0
  %v540 = vadd.f32 %v99, %v539
  %v541 = vpop.f32.mrf.mxu0
  %542 = vmatprep.mubr.f32.mxu0 0.0
  %543 = vmatmul.mubr.f32.gmra.mxu0 %v211
  %v544 = vpop.f32.mrf.mxu0
  %v545 = vadd.f32 %v99, %v544
  %v546 = vpop.f32.mrf.mxu0
  %547 = vmatprep.mubr.f32.mxu0 0.0
  %548 = vmatmul.mubr.f32.gmra.mxu0 %v214
  %v549 = vpop.f32.mrf.mxu0
  %v550 = vadd.f32 %v99, %v549
  %v551 = vpop.f32.mrf.mxu0
  %552 = vmatprep.mubr.f32.mxu0 0.0
  %553 = vmatmul.mubr.f32.gmra.mxu0 %v217
  %v554 = vpop.f32.mrf.mxu0
  %v555 = vadd.f32 %v99, %v554
  %v556 = vpop.f32.mrf.mxu0
  %557 = vmatprep.mubr.f32.mxu0 0.0
  %558 = vmatmul.mubr.f32.gmra.mxu0 %v220
  %v559 = vpop.f32.mrf.mxu0
  %v560 = vadd.f32 %v99, %v559
  %v561 = vpop.f32.mrf.mxu0
  %562 = vmatprep.mubr.f32.mxu0 0.0
  %563 = vmatmul.mubr.f32.gmra.mxu0 %v223
  %v564 = vpop.f32.mrf.mxu0
  %v565 = vadd.f32 %v99, %v564
  %v566 = vpop.f32.mrf.mxu0
  %567 = vmatprep.mubr.f32.mxu0 0.0
  %568 = vmatmul.mubr.f32.gmra.mxu0 %v226
  %v569 = vpop.f32.mrf.mxu0
  %v570 = vadd.f32 %v99, %v569
  %v571 = vpop.f32.mrf.mxu0
  %572 = vmatprep.mubr.f32.mxu0 0.0
  %573 = vmatmul.mubr.f32.gmra.mxu0 %v229
  %v574 = vpop.f32.mrf.mxu0
  %v575 = vadd.f32 %v99, %v574
  %v576 = vpop.f32.mrf.mxu0
  %577 = vmatprep.mubr.f32.mxu0 0.0
  %578 = vmatmul.mubr.f32.gmra.mxu0 %v232
  %v579 = vpop.f32.mrf.mxu0
  %v580 = vadd.f32 %v99, %v579
  %v581 = vpop.f32.mrf.mxu0
  %582 = vmatprep.mubr.f32.mxu0 0.0
  %583 = vmatmul.mubr.f32.gmra.mxu0 %v235
  %v584 = vpop.f32.mrf.mxu0
  %v585 = vadd.f32 %v99, %v584
  %v586 = vpop.f32.mrf.mxu0
  %587 = vmatprep.mubr.f32.mxu0 0.0
  %588 = vmatmul.mubr.f32.gmra.mxu0 %v238
  %v589 = vpop.f32.mrf.mxu0
  %v590 = vadd.f32 %v99, %v589
  %v591 = vpop.f32.mrf.mxu0
  %592 = vmatprep.mubr.f32.mxu0 0.0
  %593 = vmatmul.mubr.f32.gmra.mxu0 %v241
  %v594 = vpop.f32.mrf.mxu0
  %v595 = vadd.f32 %v99, %v594
  %v596 = vpop.f32.mrf.mxu0
  %597 = vmatprep.mubr.f32.mxu0 0.0
  %598 = vmatmul.mubr.f32.gmra.mxu0 %v244
  %v599 = vpop.f32.mrf.mxu0
  %v600 = vadd.f32 %v99, %v599
  %v601 = vpop.f32.mrf.mxu0
  %602 = vmatprep.mubr.f32.mxu0 0.0
  %603 = vmatmul.mubr.f32.gmra.mxu0 %v247
  %v604 = vpop.f32.mrf.mxu0
  %v605 = vadd.f32 %v99, %v604
  %v606 = vpop.f32.mrf.mxu0
  %607 = vmatprep.mubr.f32.mxu0 0.0
  %608 = vmatmul.mubr.f32.gmra.mxu0 %v250
  %v609 = vpop.f32.mrf.mxu0
  %v610 = vadd.f32 %v99, %v609
  %v611 = vpop.f32.mrf.mxu0
  %612 = vmatprep.mubr.f32.mxu0 0.0
  %613 = vmatmul.mubr.f32.gmra.mxu0 %v253
  %v614 = vpop.f32.mrf.mxu0
  %v615 = vadd.f32 %v99, %v614
  %v616 = vpop.f32.mrf.mxu0
  %617 = vmatprep.mubr.f32.mxu0 0.0
  %618 = vmatmul.mubr.f32.gmra.mxu0 %v256
  %v619 = vpop.f32.mrf.mxu0
  %v620 = vadd.f32 %v99, %v619
  %v621 = vpop.f32.mrf.mxu0
  %622 = vmatprep.mubr.f32.mxu0 0.0
  %623 = vmatmul.mubr.f32.gmra.mxu0 %v259
  %v624 = vpop.f32.mrf.mxu0
  %v625 = vadd.f32 %v99, %v624
  %v626 = vpop.f32.mrf.mxu0
  %627 = vmatprep.mubr.f32.mxu0 0.0
  %628 = vmatmul.mubr.f32.gmra.mxu0 %v262
  %v629 = vpop.f32.mrf.mxu0
  %v630 = vadd.f32 %v99, %v629
  %v631 = vpop.f32.mrf.mxu0
  %632 = vmatprep.mubr.f32.mxu0 0.0
  %633 = vmatmul.mubr.f32.gmra.mxu0 %v265
  %v634 = vpop.f32.mrf.mxu0
  %v635 = vadd.f32 %v99, %v634
  %v636 = vpop.f32.mrf.mxu0
  %637 = vmatprep.mubr.f32.mxu0 0.0
  %638 = vmatmul.mubr.f32.gmra.mxu0 %v268
  %v639 = vpop.f32.mrf.mxu0
  %v640 = vadd.f32 %v99, %v639
  %v641 = vpop.f32.mrf.mxu0
  %642 = vmatprep.mubr.f32.mxu0 0.0
  %643 = vmatmul.mubr.f32.gmra.mxu0 %v271
  %v644 = vpop.f32.mrf.mxu0
  %v645 = vadd.f32 %v99, %v644
  %v646 = vpop.f32.mrf.mxu0
  %647 = vmatprep.mubr.f32.mxu0 0.0
  %648 = vmatmul.mubr.f32.gmra.mxu0 %v274
  %v649 = vpop.f32.mrf.mxu0
  %v650 = vadd.f32 %v99, %v649
  %v651 = vpop.f32.mrf.mxu0
  %652 = vmatprep.mubr.f32.mxu0 0.0
  %653 = vmatmul.mubr.f32.gmra.mxu0 %v277
  %v654 = vpop.f32.mrf.mxu0
  %v655 = vadd.f32 %v99, %v654
  %v656 = vpop.f32.mrf.mxu0
  %657 = vmatprep.mubr.f32.mxu0 0.0
  %658 = vmatmul.mubr.f32.gmra.mxu0 %v280
  %v659 = vpop.f32.mrf.mxu0
  %v660 = vadd.f32 %v99, %v659
  %v661 = vpop.f32.mrf.mxu0
  %662 = vmatprep.mubr.f32.mxu0 0.0
  %663 = vmatmul.mubr.f32.gmra.mxu0 %v283
  %v664 = vpop.f32.mrf.mxu0
  %v665 = vadd.f32 %v99, %v664
  %v666 = vpop.f32.mrf.mxu0
  %667 = vmatprep.mubr.f32.mxu0 0.0
  %668 = vmatmul.mubr.f32.gmra.mxu0 %v286
  %v669 = vpop.f32.mrf.mxu0
  %v670 = vadd.f32 %v99, %v669
  %v671 = vpop.f32.mrf.mxu0
  %672 = vmatprep.mubr.f32.mxu0 0.0
  %673 = vmatmul.mubr.f32.gmra.mxu0 %v289
  %v674 = vpop.f32.mrf.mxu0
  %v675 = vadd.f32 %v99, %v674
  %v676 = vpop.f32.mrf.mxu0
  %677 = vmatprep.mubr.f32.mxu0 0.0
  %678 = vmatmul.mubr.f32.gmra.mxu0 %v292
  %v679 = vpop.f32.mrf.mxu0
  %v680 = vadd.f32 %v99, %v679
  %v681 = vpop.f32.mrf.mxu0
  %682 = vdwg.mxu0
  %vm683 = vcmask 64512
  %684 = vst.msk [vmem:[%s5] sm:$0xff] %vm683, %v365
  %685 = vst.msk [vmem:[%s5 + $0x8] sm:$0xff] %vm683, %v370
  %686 = vst.msk [vmem:[%s5 + $0x10] sm:$0xff] %vm683, %v375
  %687 = vst.msk [vmem:[%s5 + $0x18] sm:$0xff] %vm683, %v380
  %688 = vst.msk [vmem:[%s5 + $0x20] sm:$0xff] %vm683, %v385
  %689 = vst.msk [vmem:[%s5 + $0x28] sm:$0xff] %vm683, %v390
  %690 = vst.msk [vmem:[%s5 + $0x30] sm:$0xff] %vm683, %v395
  %691 = vst.msk [vmem:[%s5 + $0x38] sm:$0xff] %vm683, %v400
  %692 = vst.msk [vmem:[%s5 + $0x40] sm:$0xff] %vm683, %v405
  %693 = vst.msk [vmem:[%s5 + $0x48] sm:$0xff] %vm683, %v410
  %694 = vst.msk [vmem:[%s5 + $0x50] sm:$0xff] %vm683, %v415
  %695 = vst.msk [vmem:[%s5 + $0x58] sm:$0xff] %vm683, %v420
  %696 = vst.msk [vmem:[%s5 + $0x60] sm:$0xff] %vm683, %v425
  %697 = vst.msk [vmem:[%s5 + $0x68] sm:$0xff] %vm683, %v430
  %698 = vst.msk [vmem:[%s5 + $0x70] sm:$0xff] %vm683, %v435
  %699 = vst.msk [vmem:[%s5 + $0x78] sm:$0xff] %vm683, %v440
  %700 = vst.msk [vmem:[%s5 + $0x80] sm:$0xff] %vm683, %v445
  %701 = vst.msk [vmem:[%s5 + $0x88] sm:$0xff] %vm683, %v450
  %702 = vst.msk [vmem:[%s5 + $0x90] sm:$0xff] %vm683, %v455
  %703 = vst.msk [vmem:[%s5 + $0x98] sm:$0xff] %vm683, %v460
  %704 = vst.msk [vmem:[%s5 + $0xa0] sm:$0xff] %vm683, %v465
  %705 = vst.msk [vmem:[%s5 + $0xa8] sm:$0xff] %vm683, %v470
  %706 = vst.msk [vmem:[%s5 + $0xb0] sm:$0xff] %vm683, %v475
  %707 = vst.msk [vmem:[%s5 + $0xb8] sm:$0xff] %vm683, %v480
  %708 = vst.msk [vmem:[%s5 + $0xc0] sm:$0xff] %vm683, %v485
  %709 = vst.msk [vmem:[%s5 + $0xc8] sm:$0xff] %vm683, %v490
  %710 = vst.msk [vmem:[%s5 + $0xd0] sm:$0xff] %vm683, %v495
  %711 = vst.msk [vmem:[%s5 + $0xd8] sm:$0xff] %vm683, %v500
  %712 = vst.msk [vmem:[%s5 + $0xe0] sm:$0xff] %vm683, %v505
  %713 = vst.msk [vmem:[%s5 + $0xe8] sm:$0xff] %vm683, %v510
  %714 = vst.msk [vmem:[%s5 + $0xf0] sm:$0xff] %vm683, %v515
  %715 = vst.msk [vmem:[%s5 + $0xf8] sm:$0xff] %vm683, %v520
  %716 = vst.msk [vmem:[%s5 + $0x100] sm:$0xff] %vm683, %v525
  %717 = vst.msk [vmem:[%s5 + $0x108] sm:$0xff] %vm683, %v530
  %718 = vst.msk [vmem:[%s5 + $0x110] sm:$0xff] %vm683, %v535
  %719 = vst.msk [vmem:[%s5 + $0x118] sm:$0xff] %vm683, %v540
  %720 = vst.msk [vmem:[%s5 + $0x120] sm:$0xff] %vm683, %v545
  %721 = vst.msk [vmem:[%s5 + $0x128] sm:$0xff] %vm683, %v550
  %722 = vst.msk [vmem:[%s5 + $0x130] sm:$0xff] %vm683, %v555
  %723 = vst.msk [vmem:[%s5 + $0x138] sm:$0xff] %vm683, %v560
  %724 = vst.msk [vmem:[%s5 + $0x140] sm:$0xff] %vm683, %v565
  %725 = vst.msk [vmem:[%s5 + $0x148] sm:$0xff] %vm683, %v570
  %726 = vst.msk [vmem:[%s5 + $0x150] sm:$0xff] %vm683, %v575
  %727 = vst.msk [vmem:[%s5 + $0x158] sm:$0xff] %vm683, %v580
  %728 = vst.msk [vmem:[%s5 + $0x160] sm:$0xff] %vm683, %v585
  %729 = vst.msk [vmem:[%s5 + $0x168] sm:$0xff] %vm683, %v590
  %730 = vst.msk [vmem:[%s5 + $0x170] sm:$0xff] %vm683, %v595
  %731 = vst.msk [vmem:[%s5 + $0x178] sm:$0xff] %vm683, %v600
  %732 = vst.msk [vmem:[%s5 + $0x180] sm:$0xff] %vm683, %v605
  %733 = vst.msk [vmem:[%s5 + $0x188] sm:$0xff] %vm683, %v610
  %734 = vst.msk [vmem:[%s5 + $0x190] sm:$0xff] %vm683, %v615
  %735 = vst.msk [vmem:[%s5 + $0x198] sm:$0xff] %vm683, %v620
  %736 = vst.msk [vmem:[%s5 + $0x1a0] sm:$0xff] %vm683, %v625
  %737 = vst.msk [vmem:[%s5 + $0x1a8] sm:$0xff] %vm683, %v630
  %738 = vst.msk [vmem:[%s5 + $0x1b0] sm:$0xff] %vm683, %v635
  %739 = vst.msk [vmem:[%s5 + $0x1b8] sm:$0xff] %vm683, %v640
  %740 = vst.msk [vmem:[%s5 + $0x1c0] sm:$0xff] %vm683, %v645
  %741 = vst.msk [vmem:[%s5 + $0x1c8] sm:$0xff] %vm683, %v650
  %742 = vst.msk [vmem:[%s5 + $0x1d0] sm:$0xff] %vm683, %v655
  %743 = vst.msk [vmem:[%s5 + $0x1d8] sm:$0xff] %vm683, %v660
  %744 = vst.msk [vmem:[%s5 + $0x1e0] sm:$0xff] %vm683, %v665
  %745 = vst.msk [vmem:[%s5 + $0x1e8] sm:$0xff] %vm683, %v670
  %746 = vst.msk [vmem:[%s5 + $0x1f0] sm:$0xff] %vm683, %v675
  %747 = vst.msk [vmem:[%s5 + $0x1f8] sm:$0xff] %vm683, %v680
  %p748 = scmp.eq.s32.totalorder 0, 0
  // Predicated region
  $region22: #{_lambda_.24} parent=0 // pred_check
    %p749 = pneg %p748
  $region23: #{_lambda_.24} parent=0 // pred_check_branch
    %751 = sbr.rel (%p749) target = $region25
  $region24: #{_lambda_.24} parent=0 // pred_region
    %vm752 = vcmask 57344
    %753 = vst.msk [vmem:[%s6] sm:$0x1] %vm752, 0.0
    %754 = vst.msk [vmem:[%s7] sm:$0x1] %vm752, 0.0
  $region25: #{_lambda_.24} parent=0 // pred_fallthru
    _
  %v755 = vld [vmem:[%s6] sm:$0x1]
  %v756 = vsel %vm683, %v365, 0.0
  %v757 = vsel %vm683, %v370, 0.0
  %v758 = vadd.f32 %v756, %v757
  %v759 = vsel %vm683, %v375, 0.0
  %v760 = vadd.f32 %v758, %v759
  %v761 = vsel %vm683, %v380, 0.0
  %v762 = vadd.f32 %v760, %v761
  %v763 = vsel %vm683, %v385, 0.0
  %v764 = vadd.f32 %v762, %v763
  %v765 = vsel %vm683, %v390, 0.0
  %v766 = vadd.f32 %v764, %v765
  %v767 = vsel %vm683, %v395, 0.0
  %v768 = vadd.f32 %v766, %v767
  %v769 = vsel %vm683, %v400, 0.0
  %v770 = vadd.f32 %v768, %v769
  %v771 = vsel %vm683, %v405, 0.0
  %v772 = vadd.f32 %v770, %v771
  %v773 = vsel %vm683, %v410, 0.0
  %v774 = vadd.f32 %v772, %v773
  %v775 = vsel %vm683, %v415, 0.0
  %v776 = vadd.f32 %v774, %v775
  %v777 = vsel %vm683, %v420, 0.0
  %v778 = vadd.f32 %v776, %v777
  %v779 = vsel %vm683, %v425, 0.0
  %v780 = vadd.f32 %v778, %v779
  %v781 = vsel %vm683, %v430, 0.0
  %v782 = vadd.f32 %v780, %v781
  %v783 = vsel %vm683, %v435, 0.0
  %v784 = vadd.f32 %v782, %v783
  %v785 = vsel %vm683, %v440, 0.0
  %v786 = vadd.f32 %v784, %v785
  %v787 = vsel %vm683, %v445, 0.0
  %v788 = vadd.f32 %v786, %v787
  %v789 = vsel %vm683, %v450, 0.0
  %v790 = vadd.f32 %v788, %v789
  %v791 = vsel %vm683, %v455, 0.0
  %v792 = vadd.f32 %v790, %v791
  %v793 = vsel %vm683, %v460, 0.0
  %v794 = vadd.f32 %v792, %v793
  %v795 = vsel %vm683, %v465, 0.0
  %v796 = vadd.f32 %v794, %v795
  %v797 = vsel %vm683, %v470, 0.0
  %v798 = vadd.f32 %v796, %v797
  %v799 = vsel %vm683, %v475, 0.0
  %v800 = vadd.f32 %v798, %v799
  %v801 = vsel %vm683, %v480, 0.0
  %v802 = vadd.f32 %v800, %v801
  %v803 = vsel %vm683, %v485, 0.0
  %v804 = vadd.f32 %v802, %v803
  %v805 = vsel %vm683, %v490, 0.0
  %v806 = vadd.f32 %v804, %v805
  %v807 = vsel %vm683, %v495, 0.0
  %v808 = vadd.f32 %v806, %v807
  %v809 = vsel %vm683, %v500, 0.0
  %v810 = vadd.f32 %v808, %v809
  %v811 = vsel %vm683, %v505, 0.0
  %v812 = vadd.f32 %v810, %v811
  %v813 = vsel %vm683, %v510, 0.0
  %v814 = vadd.f32 %v812, %v813
  %v815 = vsel %vm683, %v515, 0.0
  %v816 = vadd.f32 %v814, %v815
  %v817 = vsel %vm683, %v520, 0.0
  %v818 = vadd.f32 %v816, %v817
  %v819 = vsel %vm683, %v525, 0.0
  %v820 = vadd.f32 %v818, %v819
  %v821 = vsel %vm683, %v530, 0.0
  %v822 = vadd.f32 %v820, %v821
  %v823 = vsel %vm683, %v535, 0.0
  %v824 = vadd.f32 %v822, %v823
  %v825 = vsel %vm683, %v540, 0.0
  %v826 = vadd.f32 %v824, %v825
  %v827 = vsel %vm683, %v545, 0.0
  %v828 = vadd.f32 %v826, %v827
  %v829 = vsel %vm683, %v550, 0.0
  %v830 = vadd.f32 %v828, %v829
  %v831 = vsel %vm683, %v555, 0.0
  %v832 = vadd.f32 %v830, %v831
  %v833 = vsel %vm683, %v560, 0.0
  %v834 = vadd.f32 %v832, %v833
  %v835 = vsel %vm683, %v565, 0.0
  %v836 = vadd.f32 %v834, %v835
  %v837 = vsel %vm683, %v570, 0.0
  %v838 = vadd.f32 %v836, %v837
  %v839 = vsel %vm683, %v575, 0.0
  %v840 = vadd.f32 %v838, %v839
  %v841 = vsel %vm683, %v580, 0.0
  %v842 = vadd.f32 %v840, %v841
  %v843 = vsel %vm683, %v585, 0.0
  %v844 = vadd.f32 %v842, %v843
  %v845 = vsel %vm683, %v590, 0.0
  %v846 = vadd.f32 %v844, %v845
  %v847 = vsel %vm683, %v595, 0.0
  %v848 = vadd.f32 %v846, %v847
  %v849 = vsel %vm683, %v600, 0.0
  %v850 = vadd.f32 %v848, %v849
  %v851 = vsel %vm683, %v605, 0.0
  %v852 = vadd.f32 %v850, %v851
  %v853 = vsel %vm683, %v610, 0.0
  %v854 = vadd.f32 %v852, %v853
  %v855 = vsel %vm683, %v615, 0.0
  %v856 = vadd.f32 %v854, %v855
  %v857 = vsel %vm683, %v620, 0.0
  %v858 = vadd.f32 %v856, %v857
  %v859 = vsel %vm683, %v625, 0.0
  %v860 = vadd.f32 %v858, %v859
  %v861 = vsel %vm683, %v630, 0.0
  %v862 = vadd.f32 %v860, %v861
  %v863 = vsel %vm683, %v635, 0.0
  %v864 = vadd.f32 %v862, %v863
  %v865 = vsel %vm683, %v640, 0.0
  %v866 = vadd.f32 %v864, %v865
  %v867 = vsel %vm683, %v645, 0.0
  %v868 = vadd.f32 %v866, %v867
  %v869 = vsel %vm683, %v650, 0.0
  %v870 = vadd.f32 %v868, %v869
  %v871 = vsel %vm683, %v655, 0.0
  %v872 = vadd.f32 %v870, %v871
  %v873 = vsel %vm683, %v660, 0.0
  %v874 = vadd.f32 %v872, %v873
  %v875 = vsel %vm683, %v665, 0.0
  %v876 = vadd.f32 %v874, %v875
  %v877 = vsel %vm683, %v670, 0.0
  %v878 = vadd.f32 %v876, %v877
  %v879 = vsel %vm683, %v675, 0.0
  %v880 = vadd.f32 %v878, %v879
  %v881 = vsel %vm683, %v680, 0.0
  %v882 = vadd.f32 %v880, %v881
  %v883 = vrot.slane %v882, 4
  %v884 = vadd.f32 %v882, %v883
  %v885 = vrot.slane %v884, 2
  %v886 = vadd.f32 %v884, %v885
  %v887 = vrot.slane %v886, 1
  %v888 = vadd.f32 %v886, %v887
  %v889 = vadd.f32 %v755, %v888
  %vm890 = vcmask 57344
  %891 = vst.msk [vmem:[%s6] sm:$0x1] %vm890, %v889
  %v892 = vld [vmem:[%s7] sm:$0x1]
  %v893 = vmul.f32 %v365, %v365
  %v894 = vmul.f32 %v370, %v370
  %v895 = vmul.f32 %v375, %v375
  %v896 = vmul.f32 %v380, %v380
  %v897 = vmul.f32 %v385, %v385
  %v898 = vmul.f32 %v390, %v390
  %v899 = vmul.f32 %v395, %v395
  %v900 = vmul.f32 %v400, %v400
  %v901 = vmul.f32 %v405, %v405
  %v902 = vmul.f32 %v410, %v410
  %v903 = vmul.f32 %v415, %v415
  %v904 = vmul.f32 %v420, %v420
  %v905 = vmul.f32 %v425, %v425
  %v906 = vmul.f32 %v430, %v430
  %v907 = vmul.f32 %v435, %v435
  %v908 = vmul.f32 %v440, %v440
  %v909 = vmul.f32 %v445, %v445
  %v910 = vmul.f32 %v450, %v450
  %v911 = vmul.f32 %v455, %v455
  %v912 = vmul.f32 %v460, %v460
  %v913 = vmul.f32 %v465, %v465
  %v914 = vmul.f32 %v470, %v470
  %v915 = vmul.f32 %v475, %v475
  %v916 = vmul.f32 %v480, %v480
  %v917 = vmul.f32 %v485, %v485
  %v918 = vmul.f32 %v490, %v490
  %v919 = vmul.f32 %v495, %v495
  %v920 = vmul.f32 %v500, %v500
  %v921 = vmul.f32 %v505, %v505
  %v922 = vmul.f32 %v510, %v510
  %v923 = vmul.f32 %v515, %v515
  %v924 = vmul.f32 %v520, %v520
  %v925 = vmul.f32 %v525, %v525
  %v926 = vmul.f32 %v530, %v530
  %v927 = vmul.f32 %v535, %v535
  %v928 = vmul.f32 %v540, %v540
  %v929 = vmul.f32 %v545, %v545
  %v930 = vmul.f32 %v550, %v550
  %v931 = vmul.f32 %v555, %v555
  %v932 = vmul.f32 %v560, %v560
  %v933 = vmul.f32 %v565, %v565
  %v934 = vmul.f32 %v570, %v570
  %v935 = vmul.f32 %v575, %v575
  %v936 = vmul.f32 %v580, %v580
  %v937 = vmul.f32 %v585, %v585
  %v938 = vmul.f32 %v590, %v590
  %v939 = vmul.f32 %v595, %v595
  %v940 = vmul.f32 %v600, %v600
  %v941 = vmul.f32 %v605, %v605
  %v942 = vmul.f32 %v610, %v610
  %v943 = vmul.f32 %v615, %v615
  %v944 = vmul.f32 %v620, %v620
  %v945 = vmul.f32 %v625, %v625
  %v946 = vmul.f32 %v630, %v630
  %v947 = vmul.f32 %v635, %v635
  %v948 = vmul.f32 %v640, %v640
  %v949 = vmul.f32 %v645, %v645
  %v950 = vmul.f32 %v650, %v650
  %v951 = vmul.f32 %v655, %v655
  %v952 = vmul.f32 %v660, %v660
  %v953 = vmul.f32 %v665, %v665
  %v954 = vmul.f32 %v670, %v670
  %v955 = vmul.f32 %v675, %v675
  %v956 = vmul.f32 %v680, %v680
  %v957 = vsel %vm683, %v893, 0.0
  %v958 = vsel %vm683, %v894, 0.0
  %v959 = vadd.f32 %v957, %v958
  %v960 = vsel %vm683, %v895, 0.0
  %v961 = vadd.f32 %v959, %v960
  %v962 = vsel %vm683, %v896, 0.0
  %v963 = vadd.f32 %v961, %v962
  %v964 = vsel %vm683, %v897, 0.0
  %v965 = vadd.f32 %v963, %v964
  %v966 = vsel %vm683, %v898, 0.0
  %v967 = vadd.f32 %v965, %v966
  %v968 = vsel %vm683, %v899, 0.0
  %v969 = vadd.f32 %v967, %v968
  %v970 = vsel %vm683, %v900, 0.0
  %v971 = vadd.f32 %v969, %v970
  %v972 = vsel %vm683, %v901, 0.0
  %v973 = vadd.f32 %v971, %v972
  %v974 = vsel %vm683, %v902, 0.0
  %v975 = vadd.f32 %v973, %v974
  %v976 = vsel %vm683, %v903, 0.0
  %v977 = vadd.f32 %v975, %v976
  %v978 = vsel %vm683, %v904, 0.0
  %v979 = vadd.f32 %v977, %v978
  %v980 = vsel %vm683, %v905, 0.0
  %v981 = vadd.f32 %v979, %v980
  %v982 = vsel %vm683, %v906, 0.0
  %v983 = vadd.f32 %v981, %v982
  %v984 = vsel %vm683, %v907, 0.0
  %v985 = vadd.f32 %v983, %v984
  %v986 = vsel %vm683, %v908, 0.0
  %v987 = vadd.f32 %v985, %v986
  %v988 = vsel %vm683, %v909, 0.0
  %v989 = vadd.f32 %v987, %v988
  %v990 = vsel %vm683, %v910, 0.0
  %v991 = vadd.f32 %v989, %v990
  %v992 = vsel %vm683, %v911, 0.0
  %v993 = vadd.f32 %v991, %v992
  %v994 = vsel %vm683, %v912, 0.0
  %v995 = vadd.f32 %v993, %v994
  %v996 = vsel %vm683, %v913, 0.0
  %v997 = vadd.f32 %v995, %v996
  %v998 = vsel %vm683, %v914, 0.0
  %v999 = vadd.f32 %v997, %v998
  %v1000 = vsel %vm683, %v915, 0.0
  %v1001 = vadd.f32 %v999, %v1000
  %v1002 = vsel %vm683, %v916, 0.0
  %v1003 = vadd.f32 %v1001, %v1002
  %v1004 = vsel %vm683, %v917, 0.0
  %v1005 = vadd.f32 %v1003, %v1004
  %v1006 = vsel %vm683, %v918, 0.0
  %v1007 = vadd.f32 %v1005, %v1006
  %v1008 = vsel %vm683, %v919, 0.0
  %v1009 = vadd.f32 %v1007, %v1008
  %v1010 = vsel %vm683, %v920, 0.0
  %v1011 = vadd.f32 %v1009, %v1010
  %v1012 = vsel %vm683, %v921, 0.0
  %v1013 = vadd.f32 %v1011, %v1012
  %v1014 = vsel %vm683, %v922, 0.0
  %v1015 = vadd.f32 %v1013, %v1014
  %v1016 = vsel %vm683, %v923, 0.0
  %v1017 = vadd.f32 %v1015, %v1016
  %v1018 = vsel %vm683, %v924, 0.0
  %v1019 = vadd.f32 %v1017, %v1018
  %v1020 = vsel %vm683, %v925, 0.0
  %v1021 = vadd.f32 %v1019, %v1020
  %v1022 = vsel %vm683, %v926, 0.0
  %v1023 = vadd.f32 %v1021, %v1022
  %v1024 = vsel %vm683, %v927, 0.0
  %v1025 = vadd.f32 %v1023, %v1024
  %v1026 = vsel %vm683, %v928, 0.0
  %v1027 = vadd.f32 %v1025, %v1026
  %v1028 = vsel %vm683, %v929, 0.0
  %v1029 = vadd.f32 %v1027, %v1028
  %v1030 = vsel %vm683, %v930, 0.0
  %v1031 = vadd.f32 %v1029, %v1030
  %v1032 = vsel %vm683, %v931, 0.0
  %v1033 = vadd.f32 %v1031, %v1032
  %v1034 = vsel %vm683, %v932, 0.0
  %v1035 = vadd.f32 %v1033, %v1034
  %v1036 = vsel %vm683, %v933, 0.0
  %v1037 = vadd.f32 %v1035, %v1036
  %v1038 = vsel %vm683, %v934, 0.0
  %v1039 = vadd.f32 %v1037, %v1038
  %v1040 = vsel %vm683, %v935, 0.0
  %v1041 = vadd.f32 %v1039, %v1040
  %v1042 = vsel %vm683, %v936, 0.0
  %v1043 = vadd.f32 %v1041, %v1042
  %v1044 = vsel %vm683, %v937, 0.0
  %v1045 = vadd.f32 %v1043, %v1044
  %v1046 = vsel %vm683, %v938, 0.0
  %v1047 = vadd.f32 %v1045, %v1046
  %v1048 = vsel %vm683, %v939, 0.0
  %v1049 = vadd.f32 %v1047, %v1048
  %v1050 = vsel %vm683, %v940, 0.0
  %v1051 = vadd.f32 %v1049, %v1050
  %v1052 = vsel %vm683, %v941, 0.0
  %v1053 = vadd.f32 %v1051, %v1052
  %v1054 = vsel %vm683, %v942, 0.0
  %v1055 = vadd.f32 %v1053, %v1054
  %v1056 = vsel %vm683, %v943, 0.0
  %v1057 = vadd.f32 %v1055, %v1056
  %v1058 = vsel %vm683, %v944, 0.0
  %v1059 = vadd.f32 %v1057, %v1058
  %v1060 = vsel %vm683, %v945, 0.0
  %v1061 = vadd.f32 %v1059, %v1060
  %v1062 = vsel %vm683, %v946, 0.0
  %v1063 = vadd.f32 %v1061, %v1062
  %v1064 = vsel %vm683, %v947, 0.0
  %v1065 = vadd.f32 %v1063, %v1064
  %v1066 = vsel %vm683, %v948, 0.0
  %v1067 = vadd.f32 %v1065, %v1066
  %v1068 = vsel %vm683, %v949, 0.0
  %v1069 = vadd.f32 %v1067, %v1068
  %v1070 = vsel %vm683, %v950, 0.0
  %v1071 = vadd.f32 %v1069, %v1070
  %v1072 = vsel %vm683, %v951, 0.0
  %v1073 = vadd.f32 %v1071, %v1072
  %v1074 = vsel %vm683, %v952, 0.0
  %v1075 = vadd.f32 %v1073, %v1074
  %v1076 = vsel %vm683, %v953, 0.0
  %v1077 = vadd.f32 %v1075, %v1076
  %v1078 = vsel %vm683, %v954, 0.0
  %v1079 = vadd.f32 %v1077, %v1078
  %v1080 = vsel %vm683, %v955, 0.0
  %v1081 = vadd.f32 %v1079, %v1080
  %v1082 = vsel %vm683, %v956, 0.0
  %v1083 = vadd.f32 %v1081, %v1082
  %v1084 = vrot.slane %v1083, 4
  %v1085 = vadd.f32 %v1083, %v1084
  %v1086 = vrot.slane %v1085, 2
  %v1087 = vadd.f32 %v1085, %v1086
  %v1088 = vrot.slane %v1087, 1
  %v1089 = vadd.f32 %v1087, %v1088
  %v1090 = vadd.f32 %v892, %v1089
  %1091 = vst.msk [vmem:[%s7] sm:$0x1] %vm890, %v1090
  // Predicated region
  $region26: #{_lambda_.24} parent=0 // pred_check
    _
  $region27: #{_lambda_.24} parent=0 // pred_check_branch
    %1093 = sbr.rel (0) target = $region29
  $region28: #{_lambda_.24} parent=0 // pred_region
    _
  $region29: #{_lambda_.24} parent=0 // pred_fallthru
    _
  // Predicated region
  $region30: #{_lambda_.24} parent=0 // pred_check
    _
  $region31: #{_lambda_.24} parent=0 // pred_check_branch
    %1095 = sbr.rel (0) target = $region33
  $region32: #{_lambda_.24} parent=0 // pred_region
    _
  $region33: #{_lambda_.24} parent=0 // pred_fallthru
    _
  // Predicated region
  $region34: #{_lambda_.24} parent=0 // pred_check
    _
  $region35: #{_lambda_.24} parent=0 // pred_check_branch
    %1097 = sbr.rel (0) target = $region37
  $region36: #{_lambda_.24} parent=0 // pred_region
    _
  $region37: #{_lambda_.24} parent=0 // pred_fallthru
    _
  // Predicated region
  $region38: #{_lambda_.24} parent=0 // pred_check
    _
  $region39: #{_lambda_.24} parent=0 // pred_check_branch
    %1099 = sbr.rel (0) target = $region41
  $region40: #{_lambda_.24} parent=0 // pred_region
    _
  $region41: #{_lambda_.24} parent=0 // pred_fallthru
    _
  // Predicated region
  $region42: #{_lambda_.24} parent=0 // pred_check
    _
  $region43: #{_lambda_.24} parent=0 // pred_check_branch
    %1101 = sbr.rel (0) target = $region45
  $region44: #{_lambda_.24} parent=0 // pred_region
    _
  $region45: #{_lambda_.24} parent=0 // pred_fallthru
    _
  // Predicated region
  $region46: #{_lambda_.24} parent=0 // pred_check
    _
  $region47: #{_lambda_.24} parent=0 // pred_check_branch
    %1103 = sbr.rel (0) target = $region49
  $region48: #{_lambda_.24} parent=0 // pred_region
    _
  $region49: #{_lambda_.24} parent=0 // pred_fallthru
    _

// kernel: _lambda_.25
$region0: #{_lambda_.25}
  #allocation0 [shape = 'u32[]', space=smem, size = 0x4, offset = 0x4, fixed_abs, tag = 'smem constant byte address 0x4 - core index']
  #allocation1 [shape = 'u32[144,128]{1,0:T(1,128)}', space=vmem, size = 0x12000, scoped, tag = 'internal scratch']
  %s0 = inlined_call_operand.vmem [shape: f32[1024,4], index: 0, kind: input, shape index: {}]
  %s1 = inlined_call_operand.vmem [shape: f32[4,2], index: 1, kind: input, shape index: {}]
  %s2 = inlined_call_operand.vmem [shape: f32[1,2], index: 2, kind: input, shape index: {}]
  %s3 = inlined_call_operand.vmem [shape: f32[1,4], index: 3, kind: input, shape index: {}, may-alias: {3,4}]
  %s4 = inlined_call_operand.vmem [shape: f32[1,4], index: 4, kind: input, shape index: {}, may-alias: {3,4}]
  %s5 = inlined_call_operand.vmem [shape: f32[1024,2], index: 5, kind: output, shape index: {0}]
  %s6 = inlined_call_operand.vmem [shape: f32[1,2], index: 6, kind: output, shape index: {1}]
  %s7 = inlined_call_operand.vmem [shape: f32[1,2], index: 7, kind: output, shape index: {2}]
  %8 = xla_tuple %s5, %s6, %s7
  %s9 = sld [smem:[#allocation0]]
  $region73: #{_lambda_.25} parent=0
    _
  %s11 = ssub.s32 1, %s9
  %s12 = scalar_select 0, %s11, %s9
  loop: start=0, step=1, limit=4
  $region2: #{_lambda_.25} parent=0 // loop_pre_header
    _
  $region3: #{_lambda_.25} parent=0 // loop_header
    %s14 = sphi 0, %s18
    %p15 = scmp.ge.s32.totalorder %s14, 4
    %s24 = sphi 0, %s26
    %s27 = sphi 0, %s24
    %s28 = sphi 0, %s27
    %s44 = sphi 0, %s28
    %s48 = sphi 0, %s48
    %s50 = sphi 0, %s48
    %s51 = sphi 0, %s50
    %s65 = sphi 0, %s51
    %s69 = sphi 0, %s69
    %s71 = sphi 0, %s69
    %s72 = sphi 0, %s71
    %s86 = sphi 0, %s72
    %s90 = sphi 0, %s90
    %s92 = sphi 0, %s90
    %s93 = sphi 0, %s92
    %s107 = sphi 0, %s93
    %s111 = sphi 0, %s111
    %s113 = sphi 0, %s111
    %s114 = sphi 0, %s113
    %s128 = sphi 0, %s114
    %s134 = sphi 0, %s136
    %s137 = sphi 0, %s134
    %s138 = sphi 0, %s137
    %s154 = sphi 0, %s138
    %s158 = sphi 0, %s158
    %s160 = sphi 0, %s158
    %s161 = sphi 0, %s160
    %s175 = sphi 0, %s161
    %s179 = sphi 0, %s179
    %s181 = sphi 0, %s179
    %s182 = sphi 0, %s181
    %s196 = sphi 0, %s182
  $region4: #{_lambda_.25} parent=0 // loop_header_branch
    %17 = sbr.rel (%p15) target = $region8
  $region5: #{_lambda_.25} parent=0 // loop_body
    %s19 = ssub.s32 %s14, 1
    %s20 = ssub.s32 %s14, 2
    %s21 = sadd.s32 %s14, 1
    %s22 = ssub.s32 %s14, %s21
    %p23 = scmp.eq.s32.totalorder %s22, 0
    %s25 = sadd.s32 %s24, 1
    %s26 = scalar_select %p23, %s24, %s25
    %p29 = pneg %p23
    %p30 = scmp.eq.s32.totalorder %s14, 1
    %p31 = por %p29, %p30
    %p32 = scmp.ne.s32.totalorder %s24, %s27
    %p33 = scmp.eq.s32.totalorder %s14, 0
    %p34 = por %p32, %p33
    %p35 = scmp.ne.s32.totalorder %s24, %s27
    %p36 = scmp.eq.s32.totalorder %s19, 1
    %p37 = por %p35, %p36
    %p38 = scmp.ne.s32.totalorder %s27, %s28
    %p39 = scmp.eq.s32.totalorder %s19, 0
    %p40 = por %p38, %p39
    %p41 = scmp.ne.s32.totalorder %s27, %s28
    %p42 = scmp.eq.s32.totalorder %s20, 1
    %p43 = por %p41, %p42
    %p45 = scmp.ne.s32.totalorder %s28, %s44
    %p46 = scmp.eq.s32.totalorder %s20, 0
    %p47 = por %p45, %p46
    %s49 = sadd.s32 %s48, 1
    %p52 = scmp.eq.s32.totalorder %s14, 1
    %p53 = scmp.ne.s32.totalorder %s48, %s50
    %p54 = scmp.eq.s32.totalorder %s14, 0
    %p55 = por %p53, %p54
    %p56 = scmp.ne.s32.totalorder %s48, %s50
    %p57 = scmp.eq.s32.totalorder %s19, 1
    %p58 = por %p56, %p57
    %p59 = scmp.ne.s32.totalorder %s50, %s51
    %p60 = scmp.eq.s32.totalorder %s19, 0
    %p61 = por %p59, %p60
    %p62 = scmp.ne.s32.totalorder %s50, %s51
    %p63 = scmp.eq.s32.totalorder %s20, 1
    %p64 = por %p62, %p63
    %p66 = scmp.ne.s32.totalorder %s51, %s65
    %p67 = scmp.eq.s32.totalorder %s20, 0
    %p68 = por %p66, %p67
    %s70 = sadd.s32 %s69, 1
    %p73 = scmp.eq.s32.totalorder %s14, 1
    %p74 = scmp.ne.s32.totalorder %s69, %s71
    %p75 = scmp.eq.s32.totalorder %s14, 0
    %p76 = por %p74, %p75
    %p77 = scmp.ne.s32.totalorder %s69, %s71
    %p78 = scmp.eq.s32.totalorder %s19, 1
    %p79 = por %p77, %p78
    %p80 = scmp.ne.s32.totalorder %s71, %s72
    %p81 = scmp.eq.s32.totalorder %s19, 0
    %p82 = por %p80, %p81
    %p83 = scmp.ne.s32.totalorder %s71, %s72
    %p84 = scmp.eq.s32.totalorder %s20, 1
    %p85 = por %p83, %p84
    %p87 = scmp.ne.s32.totalorder %s72, %s86
    %p88 = scmp.eq.s32.totalorder %s20, 0
    %p89 = por %p87, %p88
    %s91 = sadd.s32 %s90, 1
    %p94 = scmp.eq.s32.totalorder %s14, 1
    %p95 = scmp.ne.s32.totalorder %s90, %s92
    %p96 = scmp.eq.s32.totalorder %s14, 0
    %p97 = por %p95, %p96
    %p98 = scmp.ne.s32.totalorder %s90, %s92
    %p99 = scmp.eq.s32.totalorder %s19, 1
    %p100 = por %p98, %p99
    %p101 = scmp.ne.s32.totalorder %s92, %s93
    %p102 = scmp.eq.s32.totalorder %s19, 0
    %p103 = por %p101, %p102
    %p104 = scmp.ne.s32.totalorder %s92, %s93
    %p105 = scmp.eq.s32.totalorder %s20, 1
    %p106 = por %p104, %p105
    %p108 = scmp.ne.s32.totalorder %s93, %s107
    %p109 = scmp.eq.s32.totalorder %s20, 0
    %p110 = por %p108, %p109
    %s112 = sadd.s32 %s111, 1
    %p115 = scmp.eq.s32.totalorder %s14, 1
    %p116 = scmp.ne.s32.totalorder %s111, %s113
    %p117 = scmp.eq.s32.totalorder %s14, 0
    %p118 = por %p116, %p117
    %p119 = scmp.ne.s32.totalorder %s111, %s113
    %p120 = scmp.eq.s32.totalorder %s19, 1
    %p121 = por %p119, %p120
    %p122 = scmp.ne.s32.totalorder %s113, %s114
    %p123 = scmp.eq.s32.totalorder %s19, 0
    %p124 = por %p122, %p123
    %p125 = scmp.ne.s32.totalorder %s113, %s114
    %p126 = scmp.eq.s32.totalorder %s20, 1
    %p127 = por %p125, %p126
    %p129 = scmp.ne.s32.totalorder %s114, %s128
    %p130 = scmp.eq.s32.totalorder %s20, 0
    %p131 = por %p129, %p130
    %s132 = ssub.s32 %s14, %s21
    %p133 = scmp.eq.s32.totalorder %s132, 0
    %s135 = sadd.s32 %s134, 1
    %s136 = scalar_select %p133, %s134, %s135
    %p139 = pneg %p133
    %p140 = scmp.eq.s32.totalorder %s14, 1
    %p141 = por %p139, %p140
    %p142 = scmp.ne.s32.totalorder %s134, %s137
    %p143 = scmp.eq.s32.totalorder %s14, 0
    %p144 = por %p142, %p143
    %p145 = scmp.ne.s32.totalorder %s134, %s137
    %p146 = scmp.eq.s32.totalorder %s19, 1
    %p147 = por %p145, %p146
    %p148 = scmp.ne.s32.totalorder %s137, %s138
    %p149 = scmp.eq.s32.totalorder %s19, 0
    %p150 = por %p148, %p149
    %p151 = scmp.ne.s32.totalorder %s137, %s138
    %p152 = scmp.eq.s32.totalorder %s20, 1
    %p153 = por %p151, %p152
    %p155 = scmp.ne.s32.totalorder %s138, %s154
    %p156 = scmp.eq.s32.totalorder %s20, 0
    %p157 = por %p155, %p156
    %s159 = sadd.s32 %s158, 1
    %p162 = scmp.eq.s32.totalorder %s14, 1
    %p163 = scmp.ne.s32.totalorder %s158, %s160
    %p164 = scmp.eq.s32.totalorder %s14, 0
    %p165 = por %p163, %p164
    %p166 = scmp.ne.s32.totalorder %s158, %s160
    %p167 = scmp.eq.s32.totalorder %s19, 1
    %p168 = por %p166, %p167
    %p169 = scmp.ne.s32.totalorder %s160, %s161
    %p170 = scmp.eq.s32.totalorder %s19, 0
    %p171 = por %p169, %p170
    %p172 = scmp.ne.s32.totalorder %s160, %s161
    %p173 = scmp.eq.s32.totalorder %s20, 1
    %p174 = por %p172, %p173
    %p176 = scmp.ne.s32.totalorder %s161, %s175
    %p177 = scmp.eq.s32.totalorder %s20, 0
    %p178 = por %p176, %p177
    %s180 = sadd.s32 %s179, 1
    %p183 = scmp.eq.s32.totalorder %s14, 1
    %p184 = scmp.ne.s32.totalorder %s179, %s181
    %p185 = scmp.eq.s32.totalorder %s14, 0
    %p186 = por %p184, %p185
    %p187 = scmp.ne.s32.totalorder %s179, %s181
    %p188 = scmp.eq.s32.totalorder %s19, 1
    %p189 = por %p187, %p188
    %p190 = scmp.ne.s32.totalorder %s181, %s182
    %p191 = scmp.eq.s32.totalorder %s19, 0
    %p192 = por %p190, %p191
    %p193 = scmp.ne.s32.totalorder %s181, %s182
    %p194 = scmp.eq.s32.totalorder %s20, 1
    %p195 = por %p193, %p194
    %p197 = scmp.ne.s32.totalorder %s182, %s196
    %p198 = scmp.eq.s32.totalorder %s20, 0
    %p199 = por %p197, %p198
    %p200 = scmp.le.s32.totalorder 1, %s14
    %p201 = scmp.lt.s32.totalorder %s14, 3
    %p202 = pnand %p200, %p201
    %p203 = pneg %p202
    // Predicated region
    $region9: #{_lambda_.25} parent=5 // pred_check
      _
    $region10: #{_lambda_.25} parent=5 // pred_check_branch
      %205 = sbr.rel (%p202) target = $region12
    $region11: #{_lambda_.25} parent=5 // pred_region
      %s206 = ssub.s32 %s14, 1
      // Predicated region
      $region13: #{_lambda_.25} parent=11 // pred_check
        %p207 = pneg %p61
      $region14: #{_lambda_.25} parent=11 // pred_check_branch
        %209 = sbr.rel (%p207) target = $region16
      $region15: #{_lambda_.25} parent=11 // pred_region
        _
      $region16: #{_lambda_.25} parent=11 // pred_fallthru
        _
      // Predicated region
      $region17: #{_lambda_.25} parent=11 // pred_check
        %p210 = pneg %p82
      $region18: #{_lambda_.25} parent=11 // pred_check_branch
        %212 = sbr.rel (%p210) target = $region20
      $region19: #{_lambda_.25} parent=11 // pred_region
        _
      $region20: #{_lambda_.25} parent=11 // pred_fallthru
        _
      // Predicated region
      $region21: #{_lambda_.25} parent=11 // pred_check
        %p213 = pneg %p103
      $region22: #{_lambda_.25} parent=11 // pred_check_branch
        %215 = sbr.rel (%p213) target = $region24
      $region23: #{_lambda_.25} parent=11 // pred_region
        _
      $region24: #{_lambda_.25} parent=11 // pred_fallthru
        _
      // Predicated region
      $region25: #{_lambda_.25} parent=11 // pred_check
        %p216 = pneg %p124
      $region26: #{_lambda_.25} parent=11 // pred_check_branch
        %218 = sbr.rel (%p216) target = $region28
      $region27: #{_lambda_.25} parent=11 // pred_region
        _
      $region28: #{_lambda_.25} parent=11 // pred_fallthru
        _
    $region12: #{_lambda_.25} parent=5 // pred_fallthru
      _
    %p219 = scmp.lt.s32.totalorder %s14, 2
    // Predicated region
    $region29: #{_lambda_.25} parent=5 // pred_check
      %p220 = pneg %p219
    $region30: #{_lambda_.25} parent=5 // pred_check_branch
      %222 = sbr.rel (%p220) target = $region32
    $region31: #{_lambda_.25} parent=5 // pred_region
      // Predicated region
      $region33: #{_lambda_.25} parent=31 // pred_check
        %p223 = pneg %p34
      $region34: #{_lambda_.25} parent=31 // pred_check_branch
        %225 = sbr.rel (%p223) target = $region36
      $region35: #{_lambda_.25} parent=31 // pred_region
        %s226 = smul.u32 64, %s14
        %p227 = scmp.lt.s32.totalorder %s226, 127
        %s228 = scalar_select %p227, %s226, 127
        %s229 = smul.addr %s228, 8
        %s230 = scalar_lea.vmem %s0, %s229
        %s231 = smul.u32 64, %s14
      $region36: #{_lambda_.25} parent=31 // pred_fallthru
        _
    $region32: #{_lambda_.25} parent=5 // pred_fallthru
      _
    %p232 = scmp.le.s32.totalorder 1, %s14
    %p233 = scmp.lt.s32.totalorder %s14, 3
    %p234 = pnand %p232, %p233
    %p235 = pneg %p234
    // Predicated region
    $region37: #{_lambda_.25} parent=5 // pred_check
      _
    $region38: #{_lambda_.25} parent=5 // pred_check_branch
      %237 = sbr.rel (%p234) target = $region40
    $region39: #{_lambda_.25} parent=5 // pred_region
      %s238 = ssub.s32 %s14, 1
      %s239 = smul.u32 64, %s19
      %p240 = scmp.lt.s32.totalorder %s239, 127
      %s241 = scalar_select %p240, %s239, 127
      %s242 = smul.addr %s241, 8
      %s243 = scalar_lea.vmem %s0, %s242
      %p244 = pneg %p40
      %p245 = pneg %p37
      %p246 = pneg %p61
      %p247 = pneg %p58
      %p248 = pneg %p82
      %p249 = pneg %p79
      %p250 = pneg %p103
      %p251 = pneg %p100
      %p252 = pneg %p124
      %p253 = pneg %p121
      %p254 = pneg %p150
      %p255 = pneg %p147
      %s256 = smul.u32 64, %s19
      %p257 = scmp.lt.s32.totalorder %s256, 127
      %s258 = scalar_select %p257, %s256, 127
      %s259 = smul.addr %s258, 8
      %s260 = scalar_lea.vmem %s5, %s259
      %p261 = pneg %p171
      %p262 = pneg %p168
      %p263 = pneg %p192
      %p264 = pneg %p189
      %s265 = smul.u32 64, %s19
      %p266 = scmp.lt.s32.totalorder %s265, 127
      %s267 = scalar_select %p266, %s265, 127
      %s268 = smul.addr %s267, 8
      %s269 = scalar_lea.vmem %s0, %s268
      %s270 = smul.u32 64, %s19
      %s271 = smul.u32 64, %s19
      %p272 = scmp.lt.s32.totalorder %s271, 127
      %s273 = scalar_select %p272, %s271, 127
      %s274 = smul.addr %s273, 8
      %s275 = scalar_lea.vmem %s5, %s274
      %s276 = smul.u32 64, %s19
      %v277 = vld [vmem:[%s269] sm:$0xff]
      %v278 = vld [vmem:[%s269 + $0x8] sm:$0xff]
      %v279 = vld [vmem:[%s269 + $0x10] sm:$0xff]
      %v280 = vld [vmem:[%s269 + $0x18] sm:$0xff]
      %v281 = vld [vmem:[%s269 + $0x20] sm:$0xff]
      %v282 = vld [vmem:[%s269 + $0x28] sm:$0xff]
      %v283 = vld [vmem:[%s269 + $0x30] sm:$0xff]
      %v284 = vld [vmem:[%s269 + $0x38] sm:$0xff]
      %v285 = vld [vmem:[%s269 + $0x40] sm:$0xff]
      %v286 = vld [vmem:[%s269 + $0x48] sm:$0xff]
      %v287 = vld [vmem:[%s269 + $0x50] sm:$0xff]
      %v288 = vld [vmem:[%s269 + $0x58] sm:$0xff]
      %v289 = vld [vmem:[%s269 + $0x60] sm:$0xff]
      %v290 = vld [vmem:[%s269 + $0x68] sm:$0xff]
      %v291 = vld [vmem:[%s269 + $0x70] sm:$0xff]
      %v292 = vld [vmem:[%s269 + $0x78] sm:$0xff]
      %v293 = vld [vmem:[%s269 + $0x80] sm:$0xff]
      %v294 = vld [vmem:[%s269 + $0x88] sm:$0xff]
      %v295 = vld [vmem:[%s269 + $0x90] sm:$0xff]
      %v296 = vld [vmem:[%s269 + $0x98] sm:$0xff]
      %v297 = vld [vmem:[%s269 + $0xa0] sm:$0xff]
      %v298 = vld [vmem:[%s269 + $0xa8] sm:$0xff]
      %v299 = vld [vmem:[%s269 + $0xb0] sm:$0xff]
      %v300 = vld [vmem:[%s269 + $0xb8] sm:$0xff]
      %v301 = vld [vmem:[%s269 + $0xc0] sm:$0xff]
      %v302 = vld [vmem:[%s269 + $0xc8] sm:$0xff]
      %v303 = vld [vmem:[%s269 + $0xd0] sm:$0xff]
      %v304 = vld [vmem:[%s269 + $0xd8] sm:$0xff]
      %v305 = vld [vmem:[%s269 + $0xe0] sm:$0xff]
      %v306 = vld [vmem:[%s269 + $0xe8] sm:$0xff]
      %v307 = vld [vmem:[%s269 + $0xf0] sm:$0xff]
      %v308 = vld [vmem:[%s269 + $0xf8] sm:$0xff]
      %v309 = vld [vmem:[%s269 + $0x100] sm:$0xff]
      %v310 = vld [vmem:[%s269 + $0x108] sm:$0xff]
      %v311 = vld [vmem:[%s269 + $0x110] sm:$0xff]
      %v312 = vld [vmem:[%s269 + $0x118] sm:$0xff]
      %v313 = vld [vmem:[%s269 + $0x120] sm:$0xff]
      %v314 = vld [vmem:[%s269 + $0x128] sm:$0xff]
      %v315 = vld [vmem:[%s269 + $0x130] sm:$0xff]
      %v316 = vld [vmem:[%s269 + $0x138] sm:$0xff]
      %v317 = vld [vmem:[%s269 + $0x140] sm:$0xff]
      %v318 = vld [vmem:[%s269 + $0x148] sm:$0xff]
      %v319 = vld [vmem:[%s269 + $0x150] sm:$0xff]
      %v320 = vld [vmem:[%s269 + $0x158] sm:$0xff]
      %v321 = vld [vmem:[%s269 + $0x160] sm:$0xff]
      %v322 = vld [vmem:[%s269 + $0x168] sm:$0xff]
      %v323 = vld [vmem:[%s269 + $0x170] sm:$0xff]
      %v324 = vld [vmem:[%s269 + $0x178] sm:$0xff]
      %v325 = vld [vmem:[%s269 + $0x180] sm:$0xff]
      %v326 = vld [vmem:[%s269 + $0x188] sm:$0xff]
      %v327 = vld [vmem:[%s269 + $0x190] sm:$0xff]
      %v328 = vld [vmem:[%s269 + $0x198] sm:$0xff]
      %v329 = vld [vmem:[%s269 + $0x1a0] sm:$0xff]
      %v330 = vld [vmem:[%s269 + $0x1a8] sm:$0xff]
      %v331 = vld [vmem:[%s269 + $0x1b0] sm:$0xff]
      %v332 = vld [vmem:[%s269 + $0x1b8] sm:$0xff]
      %v333 = vld [vmem:[%s269 + $0x1c0] sm:$0xff]
      %v334 = vld [vmem:[%s269 + $0x1c8] sm:$0xff]
      %v335 = vld [vmem:[%s269 + $0x1d0] sm:$0xff]
      %v336 = vld [vmem:[%s269 + $0x1d8] sm:$0xff]
      %v337 = vld [vmem:[%s269 + $0x1e0] sm:$0xff]
      %v338 = vld [vmem:[%s269 + $0x1e8] sm:$0xff]
      %v339 = vld [vmem:[%s269 + $0x1f0] sm:$0xff]
      %v340 = vld [vmem:[%s269 + $0x1f8] sm:$0xff]
      %v341 = vld [vmem:[%s1] sm:$0xf]
      %v342 = vld [vmem:[%s2] sm:$0x1]
      %v344 = vlaneseq
      %v345 = vshrl.u32 %v344, 7
      %v346 = vsub.s32 0, %v345
      %v347 = vrot.slane %v342, %v346
      %vm349 = vcmask 31744
      %v351 = vsel %vm349, %v277, 0
      %v354 = vsel %vm349, %v278, 0
      %v357 = vsel %vm349, %v279, 0
      %v360 = vsel %vm349, %v280, 0
      %v363 = vsel %vm349, %v281, 0
      %v366 = vsel %vm349, %v282, 0
      %v369 = vsel %vm349, %v283, 0
      %v372 = vsel %vm349, %v284, 0
      %v375 = vsel %vm349, %v285, 0
      %v378 = vsel %vm349, %v286, 0
      %v381 = vsel %vm349, %v287, 0
      %v384 = vsel %vm349, %v288, 0
      %v387 = vsel %vm349, %v289, 0
      %v390 = vsel %vm349, %v290, 0
      %v393 = vsel %vm349, %v291, 0
      %v396 = vsel %vm349, %v292, 0
      %v399 = vsel %vm349, %v293, 0
      %v402 = vsel %vm349, %v294, 0
      %v405 = vsel %vm349, %v295, 0
      %v408 = vsel %vm349, %v296, 0
      %v411 = vsel %vm349, %v297, 0
      %v414 = vsel %vm349, %v298, 0
      %v417 = vsel %vm349, %v299, 0
      %v420 = vsel %vm349, %v300, 0
      %v423 = vsel %vm349, %v301, 0
      %v426 = vsel %vm349, %v302, 0
      %v429 = vsel %vm349, %v303, 0
      %v432 = vsel %vm349, %v304, 0
      %v435 = vsel %vm349, %v305, 0
      %v438 = vsel %vm349, %v306, 0
      %v441 = vsel %vm349, %v307, 0
      %v444 = vsel %vm349, %v308, 0
      %v447 = vsel %vm349, %v309, 0
      %v450 = vsel %vm349, %v310, 0
      %v453 = vsel %vm349, %v311, 0
      %v456 = vsel %vm349, %v312, 0
      %v459 = vsel %vm349, %v313, 0
      %v462 = vsel %vm349, %v314, 0
      %v465 = vsel %vm349, %v315, 0
      %v468 = vsel %vm349, %v316, 0
      %v471 = vsel %vm349, %v317, 0
      %v474 = vsel %vm349, %v318, 0
      %v477 = vsel %vm349, %v319, 0
      %v480 = vsel %vm349, %v320, 0
      %v483 = vsel %vm349, %v321, 0
      %v486 = vsel %vm349, %v322, 0
      %v489 = vsel %vm349, %v323, 0
      %v492 = vsel %vm349, %v324, 0
      %v495 = vsel %vm349, %v325, 0
      %v498 = vsel %vm349, %v326, 0
      %v501 = vsel %vm349, %v327, 0
      %v504 = vsel %vm349, %v328, 0
      %v507 = vsel %vm349, %v329, 0
      %v510 = vsel %vm349, %v330, 0
      %v513 = vsel %vm349, %v331, 0
      %v516 = vsel %vm349, %v332, 0
      %v519 = vsel %vm349, %v333, 0
      %v522 = vsel %vm349, %v334, 0
      %v525 = vsel %vm349, %v335, 0
      %v528 = vsel %vm349, %v336, 0
      %v531 = vsel %vm349, %v337, 0
      %v534 = vsel %vm349, %v338, 0
      %v537 = vsel %vm349, %v339, 0
      %v540 = vsel %vm349, %v340, 0
      %vm542 = vcmask 1043456
      %v544 = vsel %vm542, %v341, 0
      %546 = vmatprep.subr.mxu0 0.0
      %547 = vmatpush1.msra.mxu0 0.0
      %548 = vmatprep.subr.mxu0 0.0
      %549 = vmatpush1.msra.mxu0 0.0
      %550 = vmatprep.subr.mxu0 0.0
      %551 = vmatpush1.msra.mxu0 0.0
      %552 = vmatprep.subr.mxu0 0.0
      %553 = vmatpush1.msra.mxu0 0.0
      %554 = vmatprep.subr.mxu0 0.0
      %555 = vmatpush1.msra.mxu0 0.0
      %556 = vmatprep.subr.mxu0 0.0
      %557 = vmatpush1.msra.mxu0 0.0
      %558 = vmatprep.subr.mxu0 0.0
      %559 = vmatpush1.msra.mxu0 0.0
      %560 = vmatprep.subr.mxu0 0.0
      %561 = vmatpush1.msra.mxu0 0.0
      %562 = vmatprep.subr.mxu0 0.0
      %563 = vmatpush1.msra.mxu0 0.0
      %564 = vmatprep.subr.mxu0 0.0
      %565 = vmatpush1.msra.mxu0 0.0
      %566 = vmatprep.subr.mxu0 0.0
      %567 = vmatpush1.msra.mxu0 0.0
      %568 = vmatprep.subr.mxu0 0.0
      %569 = vmatpush1.msra.mxu0 0.0
      %570 = vmatprep.subr.mxu0 0.0
      %571 = vmatpush1.msra.mxu0 0.0
      %572 = vmatprep.subr.mxu0 0.0
      %573 = vmatpush1.msra.mxu0 0.0
      %574 = vmatprep.subr.mxu0 0.0
      %575 = vmatpush1.msra.mxu0 0.0
      %576 = vmatprep.subr.mxu0 0.0
      %577 = vmatpush1.msra.mxu0 %v544
      %578 = vmatprep.subr.mxu0 0.0
      %579 = vmatpush2.msra.mxu0 0.0
      %580 = vmatprep.subr.mxu0 0.0
      %581 = vmatpush2.msra.mxu0 0.0
      %582 = vmatprep.subr.mxu0 0.0
      %583 = vmatpush2.msra.mxu0 0.0
      %584 = vmatprep.subr.mxu0 0.0
      %585 = vmatpush2.msra.mxu0 0.0
      %586 = vmatprep.subr.mxu0 0.0
      %587 = vmatpush2.msra.mxu0 0.0
      %588 = vmatprep.subr.mxu0 0.0
      %589 = vmatpush2.msra.mxu0 0.0
      %590 = vmatprep.subr.mxu0 0.0
      %591 = vmatpush2.msra.mxu0 0.0
      %592 = vmatprep.subr.mxu0 0.0
      %593 = vmatpush2.msra.mxu0 0.0
      %594 = vmatprep.subr.mxu0 0.0
      %595 = vmatpush2.msra.mxu0 0.0
      %596 = vmatprep.subr.mxu0 0.0
      %597 = vmatpush2.msra.mxu0 0.0
      %598 = vmatprep.subr.mxu0 0.0
      %599 = vmatpush2.msra.mxu0 0.0
      %600 = vmatprep.subr.mxu0 0.0
      %601 = vmatpush2.msra.mxu0 0.0
      %602 = vmatprep.subr.mxu0 0.0
      %603 = vmatpush2.msra.mxu0 0.0
      %604 = vmatprep.subr.mxu0 0.0
      %605 = vmatpush2.msra.mxu0 0.0
      %606 = vmatprep.subr.mxu0 0.0
      %607 = vmatpush2.msra.mxu0 0.0
      %608 = vmatprep.subr.mxu0 0.0
      %609 = vmatpush2.msra.mxu0 0.0
      %610 = vmatprep.mubr.f32.mxu0 0.0
      %611 = vmatmul.mubr.f32.gmra.mxu0 %v351
      %v612 = vpop.f32.mrf.mxu0
      %v613 = vadd.f32 %v347, %v612
      %v614 = vpop.f32.mrf.mxu0
      %615 = vmatprep.mubr.f32.mxu0 0.0
      %616 = vmatmul.mubr.f32.gmra.mxu0 %v354
      %v617 = vpop.f32.mrf.mxu0
      %v618 = vadd.f32 %v347, %v617
      %v619 = vpop.f32.mrf.mxu0
      %620 = vmatprep.mubr.f32.mxu0 0.0
      %621 = vmatmul.mubr.f32.gmra.mxu0 %v357
      %v622 = vpop.f32.mrf.mxu0
      %v623 = vadd.f32 %v347, %v622
      %v624 = vpop.f32.mrf.mxu0
      %625 = vmatprep.mubr.f32.mxu0 0.0
      %626 = vmatmul.mubr.f32.gmra.mxu0 %v360
      %v627 = vpop.f32.mrf.mxu0
      %v628 = vadd.f32 %v347, %v627
      %v629 = vpop.f32.mrf.mxu0
      %630 = vmatprep.mubr.f32.mxu0 0.0
      %631 = vmatmul.mubr.f32.gmra.mxu0 %v363
      %v632 = vpop.f32.mrf.mxu0
      %v633 = vadd.f32 %v347, %v632
      %v634 = vpop.f32.mrf.mxu0
      %635 = vmatprep.mubr.f32.mxu0 0.0
      %636 = vmatmul.mubr.f32.gmra.mxu0 %v366
      %v637 = vpop.f32.mrf.mxu0
      %v638 = vadd.f32 %v347, %v637
      %v639 = vpop.f32.mrf.mxu0
      %640 = vmatprep.mubr.f32.mxu0 0.0
      %641 = vmatmul.mubr.f32.gmra.mxu0 %v369
      %v642 = vpop.f32.mrf.mxu0
      %v643 = vadd.f32 %v347, %v642
      %v644 = vpop.f32.mrf.mxu0
      %645 = vmatprep.mubr.f32.mxu0 0.0
      %646 = vmatmul.mubr.f32.gmra.mxu0 %v372
      %v647 = vpop.f32.mrf.mxu0
      %v648 = vadd.f32 %v347, %v647
      %v649 = vpop.f32.mrf.mxu0
      %650 = vmatprep.mubr.f32.mxu0 0.0
      %651 = vmatmul.mubr.f32.gmra.mxu0 %v375
      %v652 = vpop.f32.mrf.mxu0
      %v653 = vadd.f32 %v347, %v652
      %v654 = vpop.f32.mrf.mxu0
      %655 = vmatprep.mubr.f32.mxu0 0.0
      %656 = vmatmul.mubr.f32.gmra.mxu0 %v378
      %v657 = vpop.f32.mrf.mxu0
      %v658 = vadd.f32 %v347, %v657
      %v659 = vpop.f32.mrf.mxu0
      %660 = vmatprep.mubr.f32.mxu0 0.0
      %661 = vmatmul.mubr.f32.gmra.mxu0 %v381
      %v662 = vpop.f32.mrf.mxu0
      %v663 = vadd.f32 %v347, %v662
      %v664 = vpop.f32.mrf.mxu0
      %665 = vmatprep.mubr.f32.mxu0 0.0
      %666 = vmatmul.mubr.f32.gmra.mxu0 %v384
      %v667 = vpop.f32.mrf.mxu0
      %v668 = vadd.f32 %v347, %v667
      %v669 = vpop.f32.mrf.mxu0
      %670 = vmatprep.mubr.f32.mxu0 0.0
      %671 = vmatmul.mubr.f32.gmra.mxu0 %v387
      %v672 = vpop.f32.mrf.mxu0
      %v673 = vadd.f32 %v347, %v672
      %v674 = vpop.f32.mrf.mxu0
      %675 = vmatprep.mubr.f32.mxu0 0.0
      %676 = vmatmul.mubr.f32.gmra.mxu0 %v390
      %v677 = vpop.f32.mrf.mxu0
      %v678 = vadd.f32 %v347, %v677
      %v679 = vpop.f32.mrf.mxu0
      %680 = vmatprep.mubr.f32.mxu0 0.0
      %681 = vmatmul.mubr.f32.gmra.mxu0 %v393
      %v682 = vpop.f32.mrf.mxu0
      %v683 = vadd.f32 %v347, %v682
      %v684 = vpop.f32.mrf.mxu0
      %685 = vmatprep.mubr.f32.mxu0 0.0
      %686 = vmatmul.mubr.f32.gmra.mxu0 %v396
      %v687 = vpop.f32.mrf.mxu0
      %v688 = vadd.f32 %v347, %v687
      %v689 = vpop.f32.mrf.mxu0
      %690 = vmatprep.mubr.f32.mxu0 0.0
      %691 = vmatmul.mubr.f32.gmra.mxu0 %v399
      %v692 = vpop.f32.mrf.mxu0
      %v693 = vadd.f32 %v347, %v692
      %v694 = vpop.f32.mrf.mxu0
      %695 = vmatprep.mubr.f32.mxu0 0.0
      %696 = vmatmul.mubr.f32.gmra.mxu0 %v402
      %v697 = vpop.f32.mrf.mxu0
      %v698 = vadd.f32 %v347, %v697
      %v699 = vpop.f32.mrf.mxu0
      %700 = vmatprep.mubr.f32.mxu0 0.0
      %701 = vmatmul.mubr.f32.gmra.mxu0 %v405
      %v702 = vpop.f32.mrf.mxu0
      %v703 = vadd.f32 %v347, %v702
      %v704 = vpop.f32.mrf.mxu0
      %705 = vmatprep.mubr.f32.mxu0 0.0
      %706 = vmatmul.mubr.f32.gmra.mxu0 %v408
      %v707 = vpop.f32.mrf.mxu0
      %v708 = vadd.f32 %v347, %v707
      %v709 = vpop.f32.mrf.mxu0
      %710 = vmatprep.mubr.f32.mxu0 0.0
      %711 = vmatmul.mubr.f32.gmra.mxu0 %v411
      %v712 = vpop.f32.mrf.mxu0
      %v713 = vadd.f32 %v347, %v712
      %v714 = vpop.f32.mrf.mxu0
      %715 = vmatprep.mubr.f32.mxu0 0.0
      %716 = vmatmul.mubr.f32.gmra.mxu0 %v414
      %v717 = vpop.f32.mrf.mxu0
      %v718 = vadd.f32 %v347, %v717
      %v719 = vpop.f32.mrf.mxu0
      %720 = vmatprep.mubr.f32.mxu0 0.0
      %721 = vmatmul.mubr.f32.gmra.mxu0 %v417
      %v722 = vpop.f32.mrf.mxu0
      %v723 = vadd.f32 %v347, %v722
      %v724 = vpop.f32.mrf.mxu0
      %725 = vmatprep.mubr.f32.mxu0 0.0
      %726 = vmatmul.mubr.f32.gmra.mxu0 %v420
      %v727 = vpop.f32.mrf.mxu0
      %v728 = vadd.f32 %v347, %v727
      %v729 = vpop.f32.mrf.mxu0
      %730 = vmatprep.mubr.f32.mxu0 0.0
      %731 = vmatmul.mubr.f32.gmra.mxu0 %v423
      %v732 = vpop.f32.mrf.mxu0
      %v733 = vadd.f32 %v347, %v732
      %v734 = vpop.f32.mrf.mxu0
      %735 = vmatprep.mubr.f32.mxu0 0.0
      %736 = vmatmul.mubr.f32.gmra.mxu0 %v426
      %v737 = vpop.f32.mrf.mxu0
      %v738 = vadd.f32 %v347, %v737
      %v739 = vpop.f32.mrf.mxu0
      %740 = vmatprep.mubr.f32.mxu0 0.0
      %741 = vmatmul.mubr.f32.gmra.mxu0 %v429
      %v742 = vpop.f32.mrf.mxu0
      %v743 = vadd.f32 %v347, %v742
      %v744 = vpop.f32.mrf.mxu0
      %745 = vmatprep.mubr.f32.mxu0 0.0
      %746 = vmatmul.mubr.f32.gmra.mxu0 %v432
      %v747 = vpop.f32.mrf.mxu0
      %v748 = vadd.f32 %v347, %v747
      %v749 = vpop.f32.mrf.mxu0
      %750 = vmatprep.mubr.f32.mxu0 0.0
      %751 = vmatmul.mubr.f32.gmra.mxu0 %v435
      %v752 = vpop.f32.mrf.mxu0
      %v753 = vadd.f32 %v347, %v752
      %v754 = vpop.f32.mrf.mxu0
      %755 = vmatprep.mubr.f32.mxu0 0.0
      %756 = vmatmul.mubr.f32.gmra.mxu0 %v438
      %v757 = vpop.f32.mrf.mxu0
      %v758 = vadd.f32 %v347, %v757
      %v759 = vpop.f32.mrf.mxu0
      %760 = vmatprep.mubr.f32.mxu0 0.0
      %761 = vmatmul.mubr.f32.gmra.mxu0 %v441
      %v762 = vpop.f32.mrf.mxu0
      %v763 = vadd.f32 %v347, %v762
      %v764 = vpop.f32.mrf.mxu0
      %765 = vmatprep.mubr.f32.mxu0 0.0
      %766 = vmatmul.mubr.f32.gmra.mxu0 %v444
      %v767 = vpop.f32.mrf.mxu0
      %v768 = vadd.f32 %v347, %v767
      %v769 = vpop.f32.mrf.mxu0
      %770 = vmatprep.mubr.f32.mxu0 0.0
      %771 = vmatmul.mubr.f32.gmra.mxu0 %v447
      %v772 = vpop.f32.mrf.mxu0
      %v773 = vadd.f32 %v347, %v772
      %v774 = vpop.f32.mrf.mxu0
      %775 = vmatprep.mubr.f32.mxu0 0.0
      %776 = vmatmul.mubr.f32.gmra.mxu0 %v450
      %v777 = vpop.f32.mrf.mxu0
      %v778 = vadd.f32 %v347, %v777
      %v779 = vpop.f32.mrf.mxu0
      %780 = vmatprep.mubr.f32.mxu0 0.0
      %781 = vmatmul.mubr.f32.gmra.mxu0 %v453
      %v782 = vpop.f32.mrf.mxu0
      %v783 = vadd.f32 %v347, %v782
      %v784 = vpop.f32.mrf.mxu0
      %785 = vmatprep.mubr.f32.mxu0 0.0
      %786 = vmatmul.mubr.f32.gmra.mxu0 %v456
      %v787 = vpop.f32.mrf.mxu0
      %v788 = vadd.f32 %v347, %v787
      %v789 = vpop.f32.mrf.mxu0
      %790 = vmatprep.mubr.f32.mxu0 0.0
      %791 = vmatmul.mubr.f32.gmra.mxu0 %v459
      %v792 = vpop.f32.mrf.mxu0
      %v793 = vadd.f32 %v347, %v792
      %v794 = vpop.f32.mrf.mxu0
      %795 = vmatprep.mubr.f32.mxu0 0.0
      %796 = vmatmul.mubr.f32.gmra.mxu0 %v462
      %v797 = vpop.f32.mrf.mxu0
      %v798 = vadd.f32 %v347, %v797
      %v799 = vpop.f32.mrf.mxu0
      %800 = vmatprep.mubr.f32.mxu0 0.0
      %801 = vmatmul.mubr.f32.gmra.mxu0 %v465
      %v802 = vpop.f32.mrf.mxu0
      %v803 = vadd.f32 %v347, %v802
      %v804 = vpop.f32.mrf.mxu0
      %805 = vmatprep.mubr.f32.mxu0 0.0
      %806 = vmatmul.mubr.f32.gmra.mxu0 %v468
      %v807 = vpop.f32.mrf.mxu0
      %v808 = vadd.f32 %v347, %v807
      %v809 = vpop.f32.mrf.mxu0
      %810 = vmatprep.mubr.f32.mxu0 0.0
      %811 = vmatmul.mubr.f32.gmra.mxu0 %v471
      %v812 = vpop.f32.mrf.mxu0
      %v813 = vadd.f32 %v347, %v812
      %v814 = vpop.f32.mrf.mxu0
      %815 = vmatprep.mubr.f32.mxu0 0.0
      %816 = vmatmul.mubr.f32.gmra.mxu0 %v474
      %v817 = vpop.f32.mrf.mxu0
      %v818 = vadd.f32 %v347, %v817
      %v819 = vpop.f32.mrf.mxu0
      %820 = vmatprep.mubr.f32.mxu0 0.0
      %821 = vmatmul.mubr.f32.gmra.mxu0 %v477
      %v822 = vpop.f32.mrf.mxu0
      %v823 = vadd.f32 %v347, %v822
      %v824 = vpop.f32.mrf.mxu0
      %825 = vmatprep.mubr.f32.mxu0 0.0
      %826 = vmatmul.mubr.f32.gmra.mxu0 %v480
      %v827 = vpop.f32.mrf.mxu0
      %v828 = vadd.f32 %v347, %v827
      %v829 = vpop.f32.mrf.mxu0
      %830 = vmatprep.mubr.f32.mxu0 0.0
      %831 = vmatmul.mubr.f32.gmra.mxu0 %v483
      %v832 = vpop.f32.mrf.mxu0
      %v833 = vadd.f32 %v347, %v832
      %v834 = vpop.f32.mrf.mxu0
      %835 = vmatprep.mubr.f32.mxu0 0.0
      %836 = vmatmul.mubr.f32.gmra.mxu0 %v486
      %v837 = vpop.f32.mrf.mxu0
      %v838 = vadd.f32 %v347, %v837
      %v839 = vpop.f32.mrf.mxu0
      %840 = vmatprep.mubr.f32.mxu0 0.0
      %841 = vmatmul.mubr.f32.gmra.mxu0 %v489
      %v842 = vpop.f32.mrf.mxu0
      %v843 = vadd.f32 %v347, %v842
      %v844 = vpop.f32.mrf.mxu0
      %845 = vmatprep.mubr.f32.mxu0 0.0
      %846 = vmatmul.mubr.f32.gmra.mxu0 %v492
      %v847 = vpop.f32.mrf.mxu0
      %v848 = vadd.f32 %v347, %v847
      %v849 = vpop.f32.mrf.mxu0
      %850 = vmatprep.mubr.f32.mxu0 0.0
      %851 = vmatmul.mubr.f32.gmra.mxu0 %v495
      %v852 = vpop.f32.mrf.mxu0
      %v853 = vadd.f32 %v347, %v852
      %v854 = vpop.f32.mrf.mxu0
      %855 = vmatprep.mubr.f32.mxu0 0.0
      %856 = vmatmul.mubr.f32.gmra.mxu0 %v498
      %v857 = vpop.f32.mrf.mxu0
      %v858 = vadd.f32 %v347, %v857
      %v859 = vpop.f32.mrf.mxu0
      %860 = vmatprep.mubr.f32.mxu0 0.0
      %861 = vmatmul.mubr.f32.gmra.mxu0 %v501
      %v862 = vpop.f32.mrf.mxu0
      %v863 = vadd.f32 %v347, %v862
      %v864 = vpop.f32.mrf.mxu0
      %865 = vmatprep.mubr.f32.mxu0 0.0
      %866 = vmatmul.mubr.f32.gmra.mxu0 %v504
      %v867 = vpop.f32.mrf.mxu0
      %v868 = vadd.f32 %v347, %v867
      %v869 = vpop.f32.mrf.mxu0
      %870 = vmatprep.mubr.f32.mxu0 0.0
      %871 = vmatmul.mubr.f32.gmra.mxu0 %v507
      %v872 = vpop.f32.mrf.mxu0
      %v873 = vadd.f32 %v347, %v872
      %v874 = vpop.f32.mrf.mxu0
      %875 = vmatprep.mubr.f32.mxu0 0.0
      %876 = vmatmul.mubr.f32.gmra.mxu0 %v510
      %v877 = vpop.f32.mrf.mxu0
      %v878 = vadd.f32 %v347, %v877
      %v879 = vpop.f32.mrf.mxu0
      %880 = vmatprep.mubr.f32.mxu0 0.0
      %881 = vmatmul.mubr.f32.gmra.mxu0 %v513
      %v882 = vpop.f32.mrf.mxu0
      %v883 = vadd.f32 %v347, %v882
      %v884 = vpop.f32.mrf.mxu0
      %885 = vmatprep.mubr.f32.mxu0 0.0
      %886 = vmatmul.mubr.f32.gmra.mxu0 %v516
      %v887 = vpop.f32.mrf.mxu0
      %v888 = vadd.f32 %v347, %v887
      %v889 = vpop.f32.mrf.mxu0
      %890 = vmatprep.mubr.f32.mxu0 0.0
      %891 = vmatmul.mubr.f32.gmra.mxu0 %v519
      %v892 = vpop.f32.mrf.mxu0
      %v893 = vadd.f32 %v347, %v892
      %v894 = vpop.f32.mrf.mxu0
      %895 = vmatprep.mubr.f32.mxu0 0.0
      %896 = vmatmul.mubr.f32.gmra.mxu0 %v522
      %v897 = vpop.f32.mrf.mxu0
      %v898 = vadd.f32 %v347, %v897
      %v899 = vpop.f32.mrf.mxu0
      %900 = vmatprep.mubr.f32.mxu0 0.0
      %901 = vmatmul.mubr.f32.gmra.mxu0 %v525
      %v902 = vpop.f32.mrf.mxu0
      %v903 = vadd.f32 %v347, %v902
      %v904 = vpop.f32.mrf.mxu0
      %905 = vmatprep.mubr.f32.mxu0 0.0
      %906 = vmatmul.mubr.f32.gmra.mxu0 %v528
      %v907 = vpop.f32.mrf.mxu0
      %v908 = vadd.f32 %v347, %v907
      %v909 = vpop.f32.mrf.mxu0
      %910 = vmatprep.mubr.f32.mxu0 0.0
      %911 = vmatmul.mubr.f32.gmra.mxu0 %v531
      %v912 = vpop.f32.mrf.mxu0
      %v913 = vadd.f32 %v347, %v912
      %v914 = vpop.f32.mrf.mxu0
      %915 = vmatprep.mubr.f32.mxu0 0.0
      %916 = vmatmul.mubr.f32.gmra.mxu0 %v534
      %v917 = vpop.f32.mrf.mxu0
      %v918 = vadd.f32 %v347, %v917
      %v919 = vpop.f32.mrf.mxu0
      %920 = vmatprep.mubr.f32.mxu0 0.0
      %921 = vmatmul.mubr.f32.gmra.mxu0 %v537
      %v922 = vpop.f32.mrf.mxu0
      %v923 = vadd.f32 %v347, %v922
      %v924 = vpop.f32.mrf.mxu0
      %925 = vmatprep.mubr.f32.mxu0 0.0
      %926 = vmatmul.mubr.f32.gmra.mxu0 %v540
      %v927 = vpop.f32.mrf.mxu0
      %v928 = vadd.f32 %v347, %v927
      %v929 = vpop.f32.mrf.mxu0
      %930 = vdwg.mxu0
      %vm931 = vcmask 15360
      %932 = vst.msk [vmem:[%s275] sm:$0xff] %vm931, %v613
      %933 = vst.msk [vmem:[%s275 + $0x8] sm:$0xff] %vm931, %v618
      %934 = vst.msk [vmem:[%s275 + $0x10] sm:$0xff] %vm931, %v623
      %935 = vst.msk [vmem:[%s275 + $0x18] sm:$0xff] %vm931, %v628
      %936 = vst.msk [vmem:[%s275 + $0x20] sm:$0xff] %vm931, %v633
      %937 = vst.msk [vmem:[%s275 + $0x28] sm:$0xff] %vm931, %v638
      %938 = vst.msk [vmem:[%s275 + $0x30] sm:$0xff] %vm931, %v643
      %939 = vst.msk [vmem:[%s275 + $0x38] sm:$0xff] %vm931, %v648
      %940 = vst.msk [vmem:[%s275 + $0x40] sm:$0xff] %vm931, %v653
      %941 = vst.msk [vmem:[%s275 + $0x48] sm:$0xff] %vm931, %v658
      %942 = vst.msk [vmem:[%s275 + $0x50] sm:$0xff] %vm931, %v663
      %943 = vst.msk [vmem:[%s275 + $0x58] sm:$0xff] %vm931, %v668
      %944 = vst.msk [vmem:[%s275 + $0x60] sm:$0xff] %vm931, %v673
      %945 = vst.msk [vmem:[%s275 + $0x68] sm:$0xff] %vm931, %v678
      %946 = vst.msk [vmem:[%s275 + $0x70] sm:$0xff] %vm931, %v683
      %947 = vst.msk [vmem:[%s275 + $0x78] sm:$0xff] %vm931, %v688
      %948 = vst.msk [vmem:[%s275 + $0x80] sm:$0xff] %vm931, %v693
      %949 = vst.msk [vmem:[%s275 + $0x88] sm:$0xff] %vm931, %v698
      %950 = vst.msk [vmem:[%s275 + $0x90] sm:$0xff] %vm931, %v703
      %951 = vst.msk [vmem:[%s275 + $0x98] sm:$0xff] %vm931, %v708
      %952 = vst.msk [vmem:[%s275 + $0xa0] sm:$0xff] %vm931, %v713
      %953 = vst.msk [vmem:[%s275 + $0xa8] sm:$0xff] %vm931, %v718
      %954 = vst.msk [vmem:[%s275 + $0xb0] sm:$0xff] %vm931, %v723
      %955 = vst.msk [vmem:[%s275 + $0xb8] sm:$0xff] %vm931, %v728
      %956 = vst.msk [vmem:[%s275 + $0xc0] sm:$0xff] %vm931, %v733
      %957 = vst.msk [vmem:[%s275 + $0xc8] sm:$0xff] %vm931, %v738
      %958 = vst.msk [vmem:[%s275 + $0xd0] sm:$0xff] %vm931, %v743
      %959 = vst.msk [vmem:[%s275 + $0xd8] sm:$0xff] %vm931, %v748
      %960 = vst.msk [vmem:[%s275 + $0xe0] sm:$0xff] %vm931, %v753
      %961 = vst.msk [vmem:[%s275 + $0xe8] sm:$0xff] %vm931, %v758
      %962 = vst.msk [vmem:[%s275 + $0xf0] sm:$0xff] %vm931, %v763
      %963 = vst.msk [vmem:[%s275 + $0xf8] sm:$0xff] %vm931, %v768
      %964 = vst.msk [vmem:[%s275 + $0x100] sm:$0xff] %vm931, %v773
      %965 = vst.msk [vmem:[%s275 + $0x108] sm:$0xff] %vm931, %v778
      %966 = vst.msk [vmem:[%s275 + $0x110] sm:$0xff] %vm931, %v783
      %967 = vst.msk [vmem:[%s275 + $0x118] sm:$0xff] %vm931, %v788
      %968 = vst.msk [vmem:[%s275 + $0x120] sm:$0xff] %vm931, %v793
      %969 = vst.msk [vmem:[%s275 + $0x128] sm:$0xff] %vm931, %v798
      %970 = vst.msk [vmem:[%s275 + $0x130] sm:$0xff] %vm931, %v803
      %971 = vst.msk [vmem:[%s275 + $0x138] sm:$0xff] %vm931, %v808
      %972 = vst.msk [vmem:[%s275 + $0x140] sm:$0xff] %vm931, %v813
      %973 = vst.msk [vmem:[%s275 + $0x148] sm:$0xff] %vm931, %v818
      %974 = vst.msk [vmem:[%s275 + $0x150] sm:$0xff] %vm931, %v823
      %975 = vst.msk [vmem:[%s275 + $0x158] sm:$0xff] %vm931, %v828
      %976 = vst.msk [vmem:[%s275 + $0x160] sm:$0xff] %vm931, %v833
      %977 = vst.msk [vmem:[%s275 + $0x168] sm:$0xff] %vm931, %v838
      %978 = vst.msk [vmem:[%s275 + $0x170] sm:$0xff] %vm931, %v843
      %979 = vst.msk [vmem:[%s275 + $0x178] sm:$0xff] %vm931, %v848
      %980 = vst.msk [vmem:[%s275 + $0x180] sm:$0xff] %vm931, %v853
      %981 = vst.msk [vmem:[%s275 + $0x188] sm:$0xff] %vm931, %v858
      %982 = vst.msk [vmem:[%s275 + $0x190] sm:$0xff] %vm931, %v863
      %983 = vst.msk [vmem:[%s275 + $0x198] sm:$0xff] %vm931, %v868
      %984 = vst.msk [vmem:[%s275 + $0x1a0] sm:$0xff] %vm931, %v873
      %985 = vst.msk [vmem:[%s275 + $0x1a8] sm:$0xff] %vm931, %v878
      %986 = vst.msk [vmem:[%s275 + $0x1b0] sm:$0xff] %vm931, %v883
      %987 = vst.msk [vmem:[%s275 + $0x1b8] sm:$0xff] %vm931, %v888
      %988 = vst.msk [vmem:[%s275 + $0x1c0] sm:$0xff] %vm931, %v893
      %989 = vst.msk [vmem:[%s275 + $0x1c8] sm:$0xff] %vm931, %v898
      %990 = vst.msk [vmem:[%s275 + $0x1d0] sm:$0xff] %vm931, %v903
      %991 = vst.msk [vmem:[%s275 + $0x1d8] sm:$0xff] %vm931, %v908
      %992 = vst.msk [vmem:[%s275 + $0x1e0] sm:$0xff] %vm931, %v913
      %993 = vst.msk [vmem:[%s275 + $0x1e8] sm:$0xff] %vm931, %v918
      %994 = vst.msk [vmem:[%s275 + $0x1f0] sm:$0xff] %vm931, %v923
      %995 = vst.msk [vmem:[%s275 + $0x1f8] sm:$0xff] %vm931, %v928
      %p996 = scmp.eq.s32.totalorder %s19, 0
      // Predicated region
      $region41: #{_lambda_.25} parent=39 // pred_check
        %p997 = pneg %p996
      $region42: #{_lambda_.25} parent=39 // pred_check_branch
        %999 = sbr.rel (%p997) target = $region44
      $region43: #{_lambda_.25} parent=39 // pred_region
        %vm1000 = vcmask 8192
        %1001 = vst.msk [vmem:[%s6] sm:$0x1] %vm1000, 0.0
        %1002 = vst.msk [vmem:[%s7] sm:$0x1] %vm1000, 0.0
      $region44: #{_lambda_.25} parent=39 // pred_fallthru
        _
      %v1003 = vld [vmem:[%s6] sm:$0x1]
      %v1004 = vsel %vm931, %v613, 0.0
      %v1005 = vsel %vm931, %v618, 0.0
      %v1006 = vadd.f32 %v1004, %v1005
      %v1007 = vsel %vm931, %v623, 0.0
      %v1008 = vadd.f32 %v1006, %v1007
      %v1009 = vsel %vm931, %v628, 0.0
      %v1010 = vadd.f32 %v1008, %v1009
      %v1011 = vsel %vm931, %v633, 0.0
      %v1012 = vadd.f32 %v1010, %v1011
      %v1013 = vsel %vm931, %v638, 0.0
      %v1014 = vadd.f32 %v1012, %v1013
      %v1015 = vsel %vm931, %v643, 0.0
      %v1016 = vadd.f32 %v1014, %v1015
      %v1017 = vsel %vm931, %v648, 0.0
      %v1018 = vadd.f32 %v1016, %v1017
      %v1019 = vsel %vm931, %v653, 0.0
      %v1020 = vadd.f32 %v1018, %v1019
      %v1021 = vsel %vm931, %v658, 0.0
      %v1022 = vadd.f32 %v1020, %v1021
      %v1023 = vsel %vm931, %v663, 0.0
      %v1024 = vadd.f32 %v1022, %v1023
      %v1025 = vsel %vm931, %v668, 0.0
      %v1026 = vadd.f32 %v1024, %v1025
      %v1027 = vsel %vm931, %v673, 0.0
      %v1028 = vadd.f32 %v1026, %v1027
      %v1029 = vsel %vm931, %v678, 0.0
      %v1030 = vadd.f32 %v1028, %v1029
      %v1031 = vsel %vm931, %v683, 0.0
      %v1032 = vadd.f32 %v1030, %v1031
      %v1033 = vsel %vm931, %v688, 0.0
      %v1034 = vadd.f32 %v1032, %v1033
      %v1035 = vsel %vm931, %v693, 0.0
      %v1036 = vadd.f32 %v1034, %v1035
      %v1037 = vsel %vm931, %v698, 0.0
      %v1038 = vadd.f32 %v1036, %v1037
      %v1039 = vsel %vm931, %v703, 0.0
      %v1040 = vadd.f32 %v1038, %v1039
      %v1041 = vsel %vm931, %v708, 0.0
      %v1042 = vadd.f32 %v1040, %v1041
      %v1043 = vsel %vm931, %v713, 0.0
      %v1044 = vadd.f32 %v1042, %v1043
      %v1045 = vsel %vm931, %v718, 0.0
      %v1046 = vadd.f32 %v1044, %v1045
      %v1047 = vsel %vm931, %v723, 0.0
      %v1048 = vadd.f32 %v1046, %v1047
      %v1049 = vsel %vm931, %v728, 0.0
      %v1050 = vadd.f32 %v1048, %v1049
      %v1051 = vsel %vm931, %v733, 0.0
      %v1052 = vadd.f32 %v1050, %v1051
      %v1053 = vsel %vm931, %v738, 0.0
      %v1054 = vadd.f32 %v1052, %v1053
      %v1055 = vsel %vm931, %v743, 0.0
      %v1056 = vadd.f32 %v1054, %v1055
      %v1057 = vsel %vm931, %v748, 0.0
      %v1058 = vadd.f32 %v1056, %v1057
      %v1059 = vsel %vm931, %v753, 0.0
      %v1060 = vadd.f32 %v1058, %v1059
      %v1061 = vsel %vm931, %v758, 0.0
      %v1062 = vadd.f32 %v1060, %v1061
      %v1063 = vsel %vm931, %v763, 0.0
      %v1064 = vadd.f32 %v1062, %v1063
      %v1065 = vsel %vm931, %v768, 0.0
      %v1066 = vadd.f32 %v1064, %v1065
      %v1067 = vsel %vm931, %v773, 0.0
      %v1068 = vadd.f32 %v1066, %v1067
      %v1069 = vsel %vm931, %v778, 0.0
      %v1070 = vadd.f32 %v1068, %v1069
      %v1071 = vsel %vm931, %v783, 0.0
      %v1072 = vadd.f32 %v1070, %v1071
      %v1073 = vsel %vm931, %v788, 0.0
      %v1074 = vadd.f32 %v1072, %v1073
      %v1075 = vsel %vm931, %v793, 0.0
      %v1076 = vadd.f32 %v1074, %v1075
      %v1077 = vsel %vm931, %v798, 0.0
      %v1078 = vadd.f32 %v1076, %v1077
      %v1079 = vsel %vm931, %v803, 0.0
      %v1080 = vadd.f32 %v1078, %v1079
      %v1081 = vsel %vm931, %v808, 0.0
      %v1082 = vadd.f32 %v1080, %v1081
      %v1083 = vsel %vm931, %v813, 0.0
      %v1084 = vadd.f32 %v1082, %v1083
      %v1085 = vsel %vm931, %v818, 0.0
      %v1086 = vadd.f32 %v1084, %v1085
      %v1087 = vsel %vm931, %v823, 0.0
      %v1088 = vadd.f32 %v1086, %v1087
      %v1089 = vsel %vm931, %v828, 0.0
      %v1090 = vadd.f32 %v1088, %v1089
      %v1091 = vsel %vm931, %v833, 0.0
      %v1092 = vadd.f32 %v1090, %v1091
      %v1093 = vsel %vm931, %v838, 0.0
      %v1094 = vadd.f32 %v1092, %v1093
      %v1095 = vsel %vm931, %v843, 0.0
      %v1096 = vadd.f32 %v1094, %v1095
      %v1097 = vsel %vm931, %v848, 0.0
      %v1098 = vadd.f32 %v1096, %v1097
      %v1099 = vsel %vm931, %v853, 0.0
      %v1100 = vadd.f32 %v1098, %v1099
      %v1101 = vsel %vm931, %v858, 0.0
      %v1102 = vadd.f32 %v1100, %v1101
      %v1103 = vsel %vm931, %v863, 0.0
      %v1104 = vadd.f32 %v1102, %v1103
      %v1105 = vsel %vm931, %v868, 0.0
      %v1106 = vadd.f32 %v1104, %v1105
      %v1107 = vsel %vm931, %v873, 0.0
      %v1108 = vadd.f32 %v1106, %v1107
      %v1109 = vsel %vm931, %v878, 0.0
      %v1110 = vadd.f32 %v1108, %v1109
      %v1111 = vsel %vm931, %v883, 0.0
      %v1112 = vadd.f32 %v1110, %v1111
      %v1113 = vsel %vm931, %v888, 0.0
      %v1114 = vadd.f32 %v1112, %v1113
      %v1115 = vsel %vm931, %v893, 0.0
      %v1116 = vadd.f32 %v1114, %v1115
      %v1117 = vsel %vm931, %v898, 0.0
      %v1118 = vadd.f32 %v1116, %v1117
      %v1119 = vsel %vm931, %v903, 0.0
      %v1120 = vadd.f32 %v1118, %v1119
      %v1121 = vsel %vm931, %v908, 0.0
      %v1122 = vadd.f32 %v1120, %v1121
      %v1123 = vsel %vm931, %v913, 0.0
      %v1124 = vadd.f32 %v1122, %v1123
      %v1125 = vsel %vm931, %v918, 0.0
      %v1126 = vadd.f32 %v1124, %v1125
      %v1127 = vsel %vm931, %v923, 0.0
      %v1128 = vadd.f32 %v1126, %v1127
      %v1129 = vsel %vm931, %v928, 0.0
      %v1130 = vadd.f32 %v1128, %v1129
      %v1131 = vrot.slane %v1130, 4
      %v1132 = vadd.f32 %v1130, %v1131
      %v1133 = vrot.slane %v1132, 2
      %v1134 = vadd.f32 %v1132, %v1133
      %v1135 = vrot.slane %v1134, 1
      %v1136 = vadd.f32 %v1134, %v1135
      %v1137 = vadd.f32 %v1003, %v1136
      %vm1138 = vcmask 8192
      %1139 = vst.msk [vmem:[%s6] sm:$0x1] %vm1138, %v1137
      %v1140 = vld [vmem:[%s7] sm:$0x1]
      %v1141 = vmul.f32 %v613, %v613
      %v1142 = vmul.f32 %v618, %v618
      %v1143 = vmul.f32 %v623, %v623
      %v1144 = vmul.f32 %v628, %v628
      %v1145 = vmul.f32 %v633, %v633
      %v1146 = vmul.f32 %v638, %v638
      %v1147 = vmul.f32 %v643, %v643
      %v1148 = vmul.f32 %v648, %v648
      %v1149 = vmul.f32 %v653, %v653
      %v1150 = vmul.f32 %v658, %v658
      %v1151 = vmul.f32 %v663, %v663
      %v1152 = vmul.f32 %v668, %v668
      %v1153 = vmul.f32 %v673, %v673
      %v1154 = vmul.f32 %v678, %v678
      %v1155 = vmul.f32 %v683, %v683
      %v1156 = vmul.f32 %v688, %v688
      %v1157 = vmul.f32 %v693, %v693
      %v1158 = vmul.f32 %v698, %v698
      %v1159 = vmul.f32 %v703, %v703
      %v1160 = vmul.f32 %v708, %v708
      %v1161 = vmul.f32 %v713, %v713
      %v1162 = vmul.f32 %v718, %v718
      %v1163 = vmul.f32 %v723, %v723
      %v1164 = vmul.f32 %v728, %v728
      %v1165 = vmul.f32 %v733, %v733
      %v1166 = vmul.f32 %v738, %v738
      %v1167 = vmul.f32 %v743, %v743
      %v1168 = vmul.f32 %v748, %v748
      %v1169 = vmul.f32 %v753, %v753
      %v1170 = vmul.f32 %v758, %v758
      %v1171 = vmul.f32 %v763, %v763
      %v1172 = vmul.f32 %v768, %v768
      %v1173 = vmul.f32 %v773, %v773
      %v1174 = vmul.f32 %v778, %v778
      %v1175 = vmul.f32 %v783, %v783
      %v1176 = vmul.f32 %v788, %v788
      %v1177 = vmul.f32 %v793, %v793
      %v1178 = vmul.f32 %v798, %v798
      %v1179 = vmul.f32 %v803, %v803
      %v1180 = vmul.f32 %v808, %v808
      %v1181 = vmul.f32 %v813, %v813
      %v1182 = vmul.f32 %v818, %v818
      %v1183 = vmul.f32 %v823, %v823
      %v1184 = vmul.f32 %v828, %v828
      %v1185 = vmul.f32 %v833, %v833
      %v1186 = vmul.f32 %v838, %v838
      %v1187 = vmul.f32 %v843, %v843
      %v1188 = vmul.f32 %v848, %v848
      %v1189 = vmul.f32 %v853, %v853
      %v1190 = vmul.f32 %v858, %v858
      %v1191 = vmul.f32 %v863, %v863
      %v1192 = vmul.f32 %v868, %v868
      %v1193 = vmul.f32 %v873, %v873
      %v1194 = vmul.f32 %v878, %v878
      %v1195 = vmul.f32 %v883, %v883
      %v1196 = vmul.f32 %v888, %v888
      %v1197 = vmul.f32 %v893, %v893
      %v1198 = vmul.f32 %v898, %v898
      %v1199 = vmul.f32 %v903, %v903
      %v1200 = vmul.f32 %v908, %v908
      %v1201 = vmul.f32 %v913, %v913
      %v1202 = vmul.f32 %v918, %v918
      %v1203 = vmul.f32 %v923, %v923
      %v1204 = vmul.f32 %v928, %v928
      %v1205 = vsel %vm931, %v1141, 0.0
      %v1206 = vsel %vm931, %v1142, 0.0
      %v1207 = vadd.f32 %v1205, %v1206
      %v1208 = vsel %vm931, %v1143, 0.0
      %v1209 = vadd.f32 %v1207, %v1208
      %v1210 = vsel %vm931, %v1144, 0.0
      %v1211 = vadd.f32 %v1209, %v1210
      %v1212 = vsel %vm931, %v1145, 0.0
      %v1213 = vadd.f32 %v1211, %v1212
      %v1214 = vsel %vm931, %v1146, 0.0
      %v1215 = vadd.f32 %v1213, %v1214
      %v1216 = vsel %vm931, %v1147, 0.0
      %v1217 = vadd.f32 %v1215, %v1216
      %v1218 = vsel %vm931, %v1148, 0.0
      %v1219 = vadd.f32 %v1217, %v1218
      %v1220 = vsel %vm931, %v1149, 0.0
      %v1221 = vadd.f32 %v1219, %v1220
      %v1222 = vsel %vm931, %v1150, 0.0
      %v1223 = vadd.f32 %v1221, %v1222
      %v1224 = vsel %vm931, %v1151, 0.0
      %v1225 = vadd.f32 %v1223, %v1224
      %v1226 = vsel %vm931, %v1152, 0.0
      %v1227 = vadd.f32 %v1225, %v1226
      %v1228 = vsel %vm931, %v1153, 0.0
      %v1229 = vadd.f32 %v1227, %v1228
      %v1230 = vsel %vm931, %v1154, 0.0
      %v1231 = vadd.f32 %v1229, %v1230
      %v1232 = vsel %vm931, %v1155, 0.0
      %v1233 = vadd.f32 %v1231, %v1232
      %v1234 = vsel %vm931, %v1156, 0.0
      %v1235 = vadd.f32 %v1233, %v1234
      %v1236 = vsel %vm931, %v1157, 0.0
      %v1237 = vadd.f32 %v1235, %v1236
      %v1238 = vsel %vm931, %v1158, 0.0
      %v1239 = vadd.f32 %v1237, %v1238
      %v1240 = vsel %vm931, %v1159, 0.0
      %v1241 = vadd.f32 %v1239, %v1240
      %v1242 = vsel %vm931, %v1160, 0.0
      %v1243 = vadd.f32 %v1241, %v1242
      %v1244 = vsel %vm931, %v1161, 0.0
      %v1245 = vadd.f32 %v1243, %v1244
      %v1246 = vsel %vm931, %v1162, 0.0
      %v1247 = vadd.f32 %v1245, %v1246
      %v1248 = vsel %vm931, %v1163, 0.0
      %v1249 = vadd.f32 %v1247, %v1248
      %v1250 = vsel %vm931, %v1164, 0.0
      %v1251 = vadd.f32 %v1249, %v1250
      %v1252 = vsel %vm931, %v1165, 0.0
      %v1253 = vadd.f32 %v1251, %v1252
      %v1254 = vsel %vm931, %v1166, 0.0
      %v1255 = vadd.f32 %v1253, %v1254
      %v1256 = vsel %vm931, %v1167, 0.0
      %v1257 = vadd.f32 %v1255, %v1256
      %v1258 = vsel %vm931, %v1168, 0.0
      %v1259 = vadd.f32 %v1257, %v1258
      %v1260 = vsel %vm931, %v1169, 0.0
      %v1261 = vadd.f32 %v1259, %v1260
      %v1262 = vsel %vm931, %v1170, 0.0
      %v1263 = vadd.f32 %v1261, %v1262
      %v1264 = vsel %vm931, %v1171, 0.0
      %v1265 = vadd.f32 %v1263, %v1264
      %v1266 = vsel %vm931, %v1172, 0.0
      %v1267 = vadd.f32 %v1265, %v1266
      %v1268 = vsel %vm931, %v1173, 0.0
      %v1269 = vadd.f32 %v1267, %v1268
      %v1270 = vsel %vm931, %v1174, 0.0
      %v1271 = vadd.f32 %v1269, %v1270
      %v1272 = vsel %vm931, %v1175, 0.0
      %v1273 = vadd.f32 %v1271, %v1272
      %v1274 = vsel %vm931, %v1176, 0.0
      %v1275 = vadd.f32 %v1273, %v1274
      %v1276 = vsel %vm931, %v1177, 0.0
      %v1277 = vadd.f32 %v1275, %v1276
      %v1278 = vsel %vm931, %v1178, 0.0
      %v1279 = vadd.f32 %v1277, %v1278
      %v1280 = vsel %vm931, %v1179, 0.0
      %v1281 = vadd.f32 %v1279, %v1280
      %v1282 = vsel %vm931, %v1180, 0.0
      %v1283 = vadd.f32 %v1281, %v1282
      %v1284 = vsel %vm931, %v1181, 0.0
      %v1285 = vadd.f32 %v1283, %v1284
      %v1286 = vsel %vm931, %v1182, 0.0
      %v1287 = vadd.f32 %v1285, %v1286
      %v1288 = vsel %vm931, %v1183, 0.0
      %v1289 = vadd.f32 %v1287, %v1288
      %v1290 = vsel %vm931, %v1184, 0.0
      %v1291 = vadd.f32 %v1289, %v1290
      %v1292 = vsel %vm931, %v1185, 0.0
      %v1293 = vadd.f32 %v1291, %v1292
      %v1294 = vsel %vm931, %v1186, 0.0
      %v1295 = vadd.f32 %v1293, %v1294
      %v1296 = vsel %vm931, %v1187, 0.0
      %v1297 = vadd.f32 %v1295, %v1296
      %v1298 = vsel %vm931, %v1188, 0.0
      %v1299 = vadd.f32 %v1297, %v1298
      %v1300 = vsel %vm931, %v1189, 0.0
      %v1301 = vadd.f32 %v1299, %v1300
      %v1302 = vsel %vm931, %v1190, 0.0
      %v1303 = vadd.f32 %v1301, %v1302
      %v1304 = vsel %vm931, %v1191, 0.0
      %v1305 = vadd.f32 %v1303, %v1304
      %v1306 = vsel %vm931, %v1192, 0.0
      %v1307 = vadd.f32 %v1305, %v1306
      %v1308 = vsel %vm931, %v1193, 0.0
      %v1309 = vadd.f32 %v1307, %v1308
      %v1310 = vsel %vm931, %v1194, 0.0
      %v1311 = vadd.f32 %v1309, %v1310
      %v1312 = vsel %vm931, %v1195, 0.0
      %v1313 = vadd.f32 %v1311, %v1312
      %v1314 = vsel %vm931, %v1196, 0.0
      %v1315 = vadd.f32 %v1313, %v1314
      %v1316 = vsel %vm931, %v1197, 0.0
      %v1317 = vadd.f32 %v1315, %v1316
      %v1318 = vsel %vm931, %v1198, 0.0
      %v1319 = vadd.f32 %v1317, %v1318
      %v1320 = vsel %vm931, %v1199, 0.0
      %v1321 = vadd.f32 %v1319, %v1320
      %v1322 = vsel %vm931, %v1200, 0.0
      %v1323 = vadd.f32 %v1321, %v1322
      %v1324 = vsel %vm931, %v1201, 0.0
      %v1325 = vadd.f32 %v1323, %v1324
      %v1326 = vsel %vm931, %v1202, 0.0
      %v1327 = vadd.f32 %v1325, %v1326
      %v1328 = vsel %vm931, %v1203, 0.0
      %v1329 = vadd.f32 %v1327, %v1328
      %v1330 = vsel %vm931, %v1204, 0.0
      %v1331 = vadd.f32 %v1329, %v1330
      %v1332 = vrot.slane %v1331, 4
      %v1333 = vadd.f32 %v1331, %v1332
      %v1334 = vrot.slane %v1333, 2
      %v1335 = vadd.f32 %v1333, %v1334
      %v1336 = vrot.slane %v1335, 1
      %v1337 = vadd.f32 %v1335, %v1336
      %v1338 = vadd.f32 %v1140, %v1337
      %1339 = vst.msk [vmem:[%s7] sm:$0x1] %vm1138, %v1338
      %s1340 = smul.u32 64, %s19
      %p1341 = scmp.lt.s32.totalorder %s1340, 127
      %s1342 = scalar_select %p1341, %s1340, 127
      %s1343 = smul.addr %s1342, 8
      %s1344 = scalar_lea.vmem %s5, %s1343
      // Predicated region
      $region45: #{_lambda_.25} parent=39 // pred_check
        %p1345 = pneg %p147
      $region46: #{_lambda_.25} parent=39 // pred_check_branch
        %1347 = sbr.rel (%p1345) target = $region48
      $region47: #{_lambda_.25} parent=39 // pred_region
        %s1348 = smul.u32 64, %s19
      $region48: #{_lambda_.25} parent=39 // pred_fallthru
        _
      // Predicated region
      $region49: #{_lambda_.25} parent=39 // pred_check
        %p1349 = pneg %p168
      $region50: #{_lambda_.25} parent=39 // pred_check_branch
        %1351 = sbr.rel (%p1349) target = $region52
      $region51: #{_lambda_.25} parent=39 // pred_region
        _
      $region52: #{_lambda_.25} parent=39 // pred_fallthru
        _
      // Predicated region
      $region53: #{_lambda_.25} parent=39 // pred_check
        %p1352 = pneg %p189
      $region54: #{_lambda_.25} parent=39 // pred_check_branch
        %1354 = sbr.rel (%p1352) target = $region56
      $region55: #{_lambda_.25} parent=39 // pred_region
        _
      $region56: #{_lambda_.25} parent=39 // pred_fallthru
        _
      // Predicated region
      $region57: #{_lambda_.25} parent=39 // pred_check
        %p1355 = pneg %p168
      $region58: #{_lambda_.25} parent=39 // pred_check_branch
        %1357 = sbr.rel (%p1355) target = $region60
      $region59: #{_lambda_.25} parent=39 // pred_region
        _
      $region60: #{_lambda_.25} parent=39 // pred_fallthru
        _
      // Predicated region
      $region61: #{_lambda_.25} parent=39 // pred_check
        %p1358 = pneg %p189
      $region62: #{_lambda_.25} parent=39 // pred_check_branch
        %1360 = sbr.rel (%p1358) target = $region64
      $region63: #{_lambda_.25} parent=39 // pred_region
        _
      $region64: #{_lambda_.25} parent=39 // pred_fallthru
        _
    $region40: #{_lambda_.25} parent=5 // pred_fallthru
      _
    %p1361 = scmp.le.s32.totalorder 2, %s14
    // Predicated region
    $region65: #{_lambda_.25} parent=5 // pred_check
      %p1362 = pneg %p1361
    $region66: #{_lambda_.25} parent=5 // pred_check_branch
      %1364 = sbr.rel (%p1362) target = $region68
    $region67: #{_lambda_.25} parent=5 // pred_region
      %s1365 = ssub.s32 %s14, 2
      // Predicated region
      $region69: #{_lambda_.25} parent=67 // pred_check
        %p1366 = pneg %p153
      $region70: #{_lambda_.25} parent=67 // pred_check_branch
        %1368 = sbr.rel (%p1366) target = $region72
      $region71: #{_lambda_.25} parent=67 // pred_region
        %s1369 = smul.u32 64, %s20
        %p1370 = scmp.lt.s32.totalorder %s1369, 127
        %s1371 = scalar_select %p1370, %s1369, 127
        %s1372 = smul.addr %s1371, 8
        %s1373 = scalar_lea.vmem %s5, %s1372
      $region72: #{_lambda_.25} parent=67 // pred_fallthru
        _
    $region68: #{_lambda_.25} parent=5 // pred_fallthru
      _
  $region6: #{_lambda_.25} parent=0 // loop_footer
    %s18 = sadd.s32 1, %s14
  $region7: #{_lambda_.25} parent=0 // loop_footer_branch
    %13 = sbr.rel target = $region3
  $region8: #{_lambda_.25} parent=0 // loop_exit
    _

// kernel: _lambda_.27
$region0: #{_lambda_.27}
  #allocation0 [shape = 'u32[]', space=smem, size = 0x4, offset = 0x4, fixed_abs, tag = 'smem constant byte address 0x4 - core index']
  #allocation1 [shape = 'u32[144,128]{1,0:T(1,128)}', space=vmem, size = 0x12000, scoped, tag = 'internal scratch']
  %s0 = inlined_call_operand.vmem [shape: f32[32,128], index: 0, kind: input, shape index: {}]
  %s1 = inlined_call_operand.vmem [shape: f32[1,128], index: 1, kind: input, shape index: {}]
  %s2 = inlined_call_operand.vmem [shape: f32[1,128], index: 2, kind: input, shape index: {}]
  %s3 = inlined_call_operand.vmem [shape: f32[32,128], index: 3, kind: input, shape index: {}]
  %s4 = inlined_call_operand.vmem [shape: f32[1,128], index: 4, kind: input, shape index: {}]
  %s5 = inlined_call_operand.vmem [shape: f32[1,128], index: 5, kind: input, shape index: {}]
  %s6 = inlined_call_operand.vmem [shape: f32[32,128], index: 6, kind: output, shape index: {}]
  %s7 = sld [smem:[#allocation0]]
  $region34: #{_lambda_.27} parent=0
    _
  %s9 = ssub.s32 1, %s7
  %s10 = scalar_select 0, %s9, %s7
  // Predicated region
  $region2: #{_lambda_.27} parent=0 // pred_check
    _
  $region3: #{_lambda_.27} parent=0 // pred_check_branch
    %12 = sbr.rel (0) target = $region5
  $region4: #{_lambda_.27} parent=0 // pred_region
    _
  $region5: #{_lambda_.27} parent=0 // pred_fallthru
    _
  // Predicated region
  $region6: #{_lambda_.27} parent=0 // pred_check
    _
  $region7: #{_lambda_.27} parent=0 // pred_check_branch
    %14 = sbr.rel (0) target = $region9
  $region8: #{_lambda_.27} parent=0 // pred_region
    _
  $region9: #{_lambda_.27} parent=0 // pred_fallthru
    _
  // Predicated region
  $region10: #{_lambda_.27} parent=0 // pred_check
    _
  $region11: #{_lambda_.27} parent=0 // pred_check_branch
    %16 = sbr.rel (0) target = $region13
  $region12: #{_lambda_.27} parent=0 // pred_region
    _
  $region13: #{_lambda_.27} parent=0 // pred_fallthru
    _
  // Predicated region
  $region14: #{_lambda_.27} parent=0 // pred_check
    _
  $region15: #{_lambda_.27} parent=0 // pred_check_branch
    %18 = sbr.rel (0) target = $region17
  $region16: #{_lambda_.27} parent=0 // pred_region
    _
  $region17: #{_lambda_.27} parent=0 // pred_fallthru
    _
  // Predicated region
  $region18: #{_lambda_.27} parent=0 // pred_check
    _
  $region19: #{_lambda_.27} parent=0 // pred_check_branch
    %20 = sbr.rel (0) target = $region21
  $region20: #{_lambda_.27} parent=0 // pred_region
    _
  $region21: #{_lambda_.27} parent=0 // pred_fallthru
    _
  // Predicated region
  $region22: #{_lambda_.27} parent=0 // pred_check
    _
  $region23: #{_lambda_.27} parent=0 // pred_check_branch
    %22 = sbr.rel (0) target = $region25
  $region24: #{_lambda_.27} parent=0 // pred_region
    _
  $region25: #{_lambda_.27} parent=0 // pred_fallthru
    _
  %v23 = vld [vmem:[%s0] sm:$0xff]
  %v24 = vld [vmem:[%s0 + $0x8] sm:$0xff]
  %v25 = vld [vmem:[%s0 + $0x10] sm:$0xff]
  %v26 = vld [vmem:[%s0 + $0x18] sm:$0xff]
  %v27 = vld [vmem:[%s1] sm:$0x1]
  %v29 = vlaneseq
  %v30 = vshrl.u32 %v29, 7
  %v31 = vsub.s32 0, %v30
  %v32 = vrot.slane %v27, %v31
  %v34 = vmul.f32 %v23, %v32
  %v35 = vmul.f32 %v24, %v32
  %v36 = vmul.f32 %v25, %v32
  %v37 = vmul.f32 %v26, %v32
  %v38 = vld [vmem:[%s2] sm:$0x1]
  %v40 = vlaneseq
  %v41 = vshrl.u32 %v40, 7
  %v42 = vsub.s32 0, %v41
  %v43 = vrot.slane %v38, %v42
  %v45 = vadd.f32 %v34, %v43
  %v46 = vadd.f32 %v35, %v43
  %v47 = vadd.f32 %v36, %v43
  %v48 = vadd.f32 %v37, %v43
  %v49 = vld [vmem:[%s3] sm:$0xff]
  %v50 = vld [vmem:[%s3 + $0x8] sm:$0xff]
  %v51 = vld [vmem:[%s3 + $0x10] sm:$0xff]
  %v52 = vld [vmem:[%s3 + $0x18] sm:$0xff]
  %v53 = vld [vmem:[%s4] sm:$0x1]
  %v55 = vlaneseq
  %v56 = vshrl.u32 %v55, 7
  %v57 = vsub.s32 0, %v56
  %v58 = vrot.slane %v53, %v57
  %v60 = vmul.f32 %v49, %v58
  %v61 = vmul.f32 %v50, %v58
  %v62 = vmul.f32 %v51, %v58
  %v63 = vmul.f32 %v52, %v58
  %v64 = vld [vmem:[%s5] sm:$0x1]
  %v66 = vlaneseq
  %v67 = vshrl.u32 %v66, 7
  %v68 = vsub.s32 0, %v67
  %v69 = vrot.slane %v64, %v68
  %v71 = vadd.f32 %v60, %v69
  %v72 = vadd.f32 %v61, %v69
  %v73 = vadd.f32 %v62, %v69
  %v74 = vadd.f32 %v63, %v69
  %v75 = vadd.f32 %v45, %v71
  %v76 = vadd.f32 %v46, %v72
  %v77 = vadd.f32 %v47, %v73
  %v78 = vadd.f32 %v48, %v74
  %v79 = vmax.f32 %v75, 0.0
  %v80 = vmax.f32 %v76, 0.0
  %v81 = vmax.f32 %v77, 0.0
  %v82 = vmax.f32 %v78, 0.0
  %83 = vst [vmem:[%s6] sm:$0xff] %v79
  %84 = vst [vmem:[%s6 + $0x8] sm:$0xff] %v80
  %85 = vst [vmem:[%s6 + $0x10] sm:$0xff] %v81
  %86 = vst [vmem:[%s6 + $0x18] sm:$0xff] %v82
  // Predicated region
  $region26: #{_lambda_.27} parent=0 // pred_check
    _
  $region27: #{_lambda_.27} parent=0 // pred_check_branch
    %88 = sbr.rel (0) target = $region29
  $region28: #{_lambda_.27} parent=0 // pred_region
    _
  $region29: #{_lambda_.27} parent=0 // pred_fallthru
    _
  // Predicated region
  $region30: #{_lambda_.27} parent=0 // pred_check
    _
  $region31: #{_lambda_.27} parent=0 // pred_check_branch
    %90 = sbr.rel (0) target = $region33
  $region32: #{_lambda_.27} parent=0 // pred_region
    _
  $region33: #{_lambda_.27} parent=0 // pred_fallthru
    _

// kernel: _lambda_.35
$region0: #{_lambda_.35}
  #allocation0 [shape = 'u32[]', space=smem, size = 0x4, offset = 0x4, fixed_abs, tag = 'smem constant byte address 0x4 - core index']
  #allocation1 [shape = 'u32[144,128]{1,0:T(1,128)}', space=vmem, size = 0x12000, scoped, tag = 'internal scratch']
  %s0 = inlined_call_operand.vmem [shape: f32[32,128], index: 0, kind: input, shape index: {}]
  %s1 = inlined_call_operand.vmem [shape: f32[1,128], index: 1, kind: input, shape index: {}]
  %s2 = inlined_call_operand.vmem [shape: f32[1,128], index: 2, kind: input, shape index: {}]
  %s3 = inlined_call_operand.vmem [shape: f32[32,128], index: 3, kind: input, shape index: {}]
  %s4 = inlined_call_operand.vmem [shape: f32[1,128], index: 4, kind: input, shape index: {}, may-alias: {4,5}]
  %s5 = inlined_call_operand.vmem [shape: f32[1,128], index: 5, kind: input, shape index: {}, may-alias: {4,5}]
  %s6 = inlined_call_operand.vmem [shape: f32[32,128], index: 6, kind: output, shape index: {}]
  %s7 = sld [smem:[#allocation0]]
  $region34: #{_lambda_.35} parent=0
    _
  %s9 = ssub.s32 1, %s7
  %s10 = scalar_select 0, %s9, %s7
  // Predicated region
  $region2: #{_lambda_.35} parent=0 // pred_check
    _
  $region3: #{_lambda_.35} parent=0 // pred_check_branch
    %12 = sbr.rel (0) target = $region5
  $region4: #{_lambda_.35} parent=0 // pred_region
    _
  $region5: #{_lambda_.35} parent=0 // pred_fallthru
    _
  // Predicated region
  $region6: #{_lambda_.35} parent=0 // pred_check
    _
  $region7: #{_lambda_.35} parent=0 // pred_check_branch
    %14 = sbr.rel (0) target = $region9
  $region8: #{_lambda_.35} parent=0 // pred_region
    _
  $region9: #{_lambda_.35} parent=0 // pred_fallthru
    _
  // Predicated region
  $region10: #{_lambda_.35} parent=0 // pred_check
    _
  $region11: #{_lambda_.35} parent=0 // pred_check_branch
    %16 = sbr.rel (0) target = $region13
  $region12: #{_lambda_.35} parent=0 // pred_region
    _
  $region13: #{_lambda_.35} parent=0 // pred_fallthru
    _
  // Predicated region
  $region14: #{_lambda_.35} parent=0 // pred_check
    _
  $region15: #{_lambda_.35} parent=0 // pred_check_branch
    %18 = sbr.rel (0) target = $region17
  $region16: #{_lambda_.35} parent=0 // pred_region
    _
  $region17: #{_lambda_.35} parent=0 // pred_fallthru
    _
  // Predicated region
  $region18: #{_lambda_.35} parent=0 // pred_check
    _
  $region19: #{_lambda_.35} parent=0 // pred_check_branch
    %20 = sbr.rel (0) target = $region21
  $region20: #{_lambda_.35} parent=0 // pred_region
    _
  $region21: #{_lambda_.35} parent=0 // pred_fallthru
    _
  // Predicated region
  $region22: #{_lambda_.35} parent=0 // pred_check
    _
  $region23: #{_lambda_.35} parent=0 // pred_check_branch
    %22 = sbr.rel (0) target = $region25
  $region24: #{_lambda_.35} parent=0 // pred_region
    _
  $region25: #{_lambda_.35} parent=0 // pred_fallthru
    _
  %v23 = vld [vmem:[%s0] sm:$0xff]
  %v24 = vld [vmem:[%s0 + $0x8] sm:$0xff]
  %v25 = vld [vmem:[%s0 + $0x10] sm:$0xff]
  %v26 = vld [vmem:[%s0 + $0x18] sm:$0xff]
  %v27 = vld [vmem:[%s1] sm:$0x1]
  %v29 = vlaneseq
  %v30 = vshrl.u32 %v29, 7
  %v31 = vsub.s32 0, %v30
  %v32 = vrot.slane %v27, %v31
  %v34 = vmul.f32 %v23, %v32
  %v35 = vmul.f32 %v24, %v32
  %v36 = vmul.f32 %v25, %v32
  %v37 = vmul.f32 %v26, %v32
  %v38 = vld [vmem:[%s2] sm:$0x1]
  %v40 = vlaneseq
  %v41 = vshrl.u32 %v40, 7
  %v42 = vsub.s32 0, %v41
  %v43 = vrot.slane %v38, %v42
  %v45 = vadd.f32 %v34, %v43
  %v46 = vadd.f32 %v35, %v43
  %v47 = vadd.f32 %v36, %v43
  %v48 = vadd.f32 %v37, %v43
  %v49 = vld [vmem:[%s3] sm:$0xff]
  %v50 = vld [vmem:[%s3 + $0x8] sm:$0xff]
  %v51 = vld [vmem:[%s3 + $0x10] sm:$0xff]
  %v52 = vld [vmem:[%s3 + $0x18] sm:$0xff]
  %v53 = vadd.f32 %v45, %v49
  %v54 = vadd.f32 %v46, %v50
  %v55 = vadd.f32 %v47, %v51
  %v56 = vadd.f32 %v48, %v52
  %v57 = vmax.f32 %v53, 0.0
  %v58 = vmax.f32 %v54, 0.0
  %v59 = vmax.f32 %v55, 0.0
  %v60 = vmax.f32 %v56, 0.0
  %61 = vst [vmem:[%s6] sm:$0xff] %v57
  %62 = vst [vmem:[%s6 + $0x8] sm:$0xff] %v58
  %63 = vst [vmem:[%s6 + $0x10] sm:$0xff] %v59
  %64 = vst [vmem:[%s6 + $0x18] sm:$0xff] %v60
  // Predicated region
  $region26: #{_lambda_.35} parent=0 // pred_check
    _
  $region27: #{_lambda_.35} parent=0 // pred_check_branch
    %66 = sbr.rel (0) target = $region29
  $region28: #{_lambda_.35} parent=0 // pred_region
    _
  $region29: #{_lambda_.35} parent=0 // pred_fallthru
    _
  // Predicated region
  $region30: #{_lambda_.35} parent=0 // pred_check
    _
  $region31: #{_lambda_.35} parent=0 // pred_check_branch
    %68 = sbr.rel (0) target = $region33
  $region32: #{_lambda_.35} parent=0 // pred_region
    _
  $region33: #{_lambda_.35} parent=0 // pred_fallthru
    _

// kernel: _lambda_.26
$region0: #{_lambda_.26}
  #allocation0 [shape = 'u32[]', space=smem, size = 0x4, offset = 0x4, fixed_abs, tag = 'smem constant byte address 0x4 - core index']
  #allocation1 [shape = 'u32[144,128]{1,0:T(1,128)}', space=vmem, size = 0x12000, scoped, tag = 'internal scratch']
  %s0 = inlined_call_operand.vmem [shape: f32[512,2], index: 0, kind: input, shape index: {}]
  %s1 = inlined_call_operand.vmem [shape: f32[2,8], index: 1, kind: input, shape index: {}]
  %s2 = inlined_call_operand.vmem [shape: f32[1,8], index: 2, kind: input, shape index: {}]
  %s3 = inlined_call_operand.vmem [shape: f32[1,2], index: 3, kind: input, shape index: {}]
  %s4 = inlined_call_operand.vmem [shape: f32[1,2], index: 4, kind: input, shape index: {}]
  %s5 = inlined_call_operand.vmem [shape: f32[512,8], index: 5, kind: output, shape index: {0}]
  %s6 = inlined_call_operand.vmem [shape: f32[1,8], index: 6, kind: output, shape index: {1}]
  %s7 = inlined_call_operand.vmem [shape: f32[1,8], index: 7, kind: output, shape index: {2}]
  %8 = xla_tuple %s5, %s6, %s7
  %s9 = sld [smem:[#allocation0]]
  $region50: #{_lambda_.26} parent=0
    _
  %s11 = ssub.s32 1, %s9
  %s12 = scalar_select 0, %s11, %s9
  // Predicated region
  $region2: #{_lambda_.26} parent=0 // pred_check
    _
  $region3: #{_lambda_.26} parent=0 // pred_check_branch
    %14 = sbr.rel (0) target = $region5
  $region4: #{_lambda_.26} parent=0 // pred_region
    _
  $region5: #{_lambda_.26} parent=0 // pred_fallthru
    _
  // Predicated region
  $region6: #{_lambda_.26} parent=0 // pred_check
    _
  $region7: #{_lambda_.26} parent=0 // pred_check_branch
    %16 = sbr.rel (0) target = $region9
  $region8: #{_lambda_.26} parent=0 // pred_region
    _
  $region9: #{_lambda_.26} parent=0 // pred_fallthru
    _
  // Predicated region
  $region10: #{_lambda_.26} parent=0 // pred_check
    _
  $region11: #{_lambda_.26} parent=0 // pred_check_branch
    %18 = sbr.rel (0) target = $region13
  $region12: #{_lambda_.26} parent=0 // pred_region
    _
  $region13: #{_lambda_.26} parent=0 // pred_fallthru
    _
  // Predicated region
  $region14: #{_lambda_.26} parent=0 // pred_check
    _
  $region15: #{_lambda_.26} parent=0 // pred_check_branch
    %20 = sbr.rel (0) target = $region17
  $region16: #{_lambda_.26} parent=0 // pred_region
    _
  $region17: #{_lambda_.26} parent=0 // pred_fallthru
    _
  // Predicated region
  $region18: #{_lambda_.26} parent=0 // pred_check
    _
  $region19: #{_lambda_.26} parent=0 // pred_check_branch
    %22 = sbr.rel (0) target = $region21
  $region20: #{_lambda_.26} parent=0 // pred_region
    _
  $region21: #{_lambda_.26} parent=0 // pred_fallthru
    _
  %v23 = vld [vmem:[%s0] sm:$0xff]
  %v24 = vld [vmem:[%s0 + $0x8] sm:$0xff]
  %v25 = vld [vmem:[%s0 + $0x10] sm:$0xff]
  %v26 = vld [vmem:[%s0 + $0x18] sm:$0xff]
  %v27 = vld [vmem:[%s0 + $0x20] sm:$0xff]
  %v28 = vld [vmem:[%s0 + $0x28] sm:$0xff]
  %v29 = vld [vmem:[%s0 + $0x30] sm:$0xff]
  %v30 = vld [vmem:[%s0 + $0x38] sm:$0xff]
  %v31 = vld [vmem:[%s0 + $0x40] sm:$0xff]
  %v32 = vld [vmem:[%s0 + $0x48] sm:$0xff]
  %v33 = vld [vmem:[%s0 + $0x50] sm:$0xff]
  %v34 = vld [vmem:[%s0 + $0x58] sm:$0xff]
  %v35 = vld [vmem:[%s0 + $0x60] sm:$0xff]
  %v36 = vld [vmem:[%s0 + $0x68] sm:$0xff]
  %v37 = vld [vmem:[%s0 + $0x70] sm:$0xff]
  %v38 = vld [vmem:[%s0 + $0x78] sm:$0xff]
  %v39 = vld [vmem:[%s0 + $0x80] sm:$0xff]
  %v40 = vld [vmem:[%s0 + $0x88] sm:$0xff]
  %v41 = vld [vmem:[%s0 + $0x90] sm:$0xff]
  %v42 = vld [vmem:[%s0 + $0x98] sm:$0xff]
  %v43 = vld [vmem:[%s0 + $0xa0] sm:$0xff]
  %v44 = vld [vmem:[%s0 + $0xa8] sm:$0xff]
  %v45 = vld [vmem:[%s0 + $0xb0] sm:$0xff]
  %v46 = vld [vmem:[%s0 + $0xb8] sm:$0xff]
  %v47 = vld [vmem:[%s0 + $0xc0] sm:$0xff]
  %v48 = vld [vmem:[%s0 + $0xc8] sm:$0xff]
  %v49 = vld [vmem:[%s0 + $0xd0] sm:$0xff]
  %v50 = vld [vmem:[%s0 + $0xd8] sm:$0xff]
  %v51 = vld [vmem:[%s0 + $0xe0] sm:$0xff]
  %v52 = vld [vmem:[%s0 + $0xe8] sm:$0xff]
  %v53 = vld [vmem:[%s0 + $0xf0] sm:$0xff]
  %v54 = vld [vmem:[%s0 + $0xf8] sm:$0xff]
  %v55 = vld [vmem:[%s0 + $0x100] sm:$0xff]
  %v56 = vld [vmem:[%s0 + $0x108] sm:$0xff]
  %v57 = vld [vmem:[%s0 + $0x110] sm:$0xff]
  %v58 = vld [vmem:[%s0 + $0x118] sm:$0xff]
  %v59 = vld [vmem:[%s0 + $0x120] sm:$0xff]
  %v60 = vld [vmem:[%s0 + $0x128] sm:$0xff]
  %v61 = vld [vmem:[%s0 + $0x130] sm:$0xff]
  %v62 = vld [vmem:[%s0 + $0x138] sm:$0xff]
  %v63 = vld [vmem:[%s0 + $0x140] sm:$0xff]
  %v64 = vld [vmem:[%s0 + $0x148] sm:$0xff]
  %v65 = vld [vmem:[%s0 + $0x150] sm:$0xff]
  %v66 = vld [vmem:[%s0 + $0x158] sm:$0xff]
  %v67 = vld [vmem:[%s0 + $0x160] sm:$0xff]
  %v68 = vld [vmem:[%s0 + $0x168] sm:$0xff]
  %v69 = vld [vmem:[%s0 + $0x170] sm:$0xff]
  %v70 = vld [vmem:[%s0 + $0x178] sm:$0xff]
  %v71 = vld [vmem:[%s0 + $0x180] sm:$0xff]
  %v72 = vld [vmem:[%s0 + $0x188] sm:$0xff]
  %v73 = vld [vmem:[%s0 + $0x190] sm:$0xff]
  %v74 = vld [vmem:[%s0 + $0x198] sm:$0xff]
  %v75 = vld [vmem:[%s0 + $0x1a0] sm:$0xff]
  %v76 = vld [vmem:[%s0 + $0x1a8] sm:$0xff]
  %v77 = vld [vmem:[%s0 + $0x1b0] sm:$0xff]
  %v78 = vld [vmem:[%s0 + $0x1b8] sm:$0xff]
  %v79 = vld [vmem:[%s0 + $0x1c0] sm:$0xff]
  %v80 = vld [vmem:[%s0 + $0x1c8] sm:$0xff]
  %v81 = vld [vmem:[%s0 + $0x1d0] sm:$0xff]
  %v82 = vld [vmem:[%s0 + $0x1d8] sm:$0xff]
  %v83 = vld [vmem:[%s0 + $0x1e0] sm:$0xff]
  %v84 = vld [vmem:[%s0 + $0x1e8] sm:$0xff]
  %v85 = vld [vmem:[%s0 + $0x1f0] sm:$0xff]
  %v86 = vld [vmem:[%s0 + $0x1f8] sm:$0xff]
  %v87 = vld [vmem:[%s3] sm:$0x1]
  %v89 = vlaneseq
  %v90 = vshrl.u32 %v89, 7
  %v91 = vsub.s32 0, %v90
  %v92 = vrot.slane %v87, %v91
  %v94 = vmul.f32 %v23, %v92
  %v95 = vmul.f32 %v24, %v92
  %v96 = vmul.f32 %v25, %v92
  %v97 = vmul.f32 %v26, %v92
  %v98 = vmul.f32 %v27, %v92
  %v99 = vmul.f32 %v28, %v92
  %v100 = vmul.f32 %v29, %v92
  %v101 = vmul.f32 %v30, %v92
  %v102 = vmul.f32 %v31, %v92
  %v103 = vmul.f32 %v32, %v92
  %v104 = vmul.f32 %v33, %v92
  %v105 = vmul.f32 %v34, %v92
  %v106 = vmul.f32 %v35, %v92
  %v107 = vmul.f32 %v36, %v92
  %v108 = vmul.f32 %v37, %v92
  %v109 = vmul.f32 %v38, %v92
  %v110 = vmul.f32 %v39, %v92
  %v111 = vmul.f32 %v40, %v92
  %v112 = vmul.f32 %v41, %v92
  %v113 = vmul.f32 %v42, %v92
  %v114 = vmul.f32 %v43, %v92
  %v115 = vmul.f32 %v44, %v92
  %v116 = vmul.f32 %v45, %v92
  %v117 = vmul.f32 %v46, %v92
  %v118 = vmul.f32 %v47, %v92
  %v119 = vmul.f32 %v48, %v92
  %v120 = vmul.f32 %v49, %v92
  %v121 = vmul.f32 %v50, %v92
  %v122 = vmul.f32 %v51, %v92
  %v123 = vmul.f32 %v52, %v92
  %v124 = vmul.f32 %v53, %v92
  %v125 = vmul.f32 %v54, %v92
  %v126 = vmul.f32 %v55, %v92
  %v127 = vmul.f32 %v56, %v92
  %v128 = vmul.f32 %v57, %v92
  %v129 = vmul.f32 %v58, %v92
  %v130 = vmul.f32 %v59, %v92
  %v131 = vmul.f32 %v60, %v92
  %v132 = vmul.f32 %v61, %v92
  %v133 = vmul.f32 %v62, %v92
  %v134 = vmul.f32 %v63, %v92
  %v135 = vmul.f32 %v64, %v92
  %v136 = vmul.f32 %v65, %v92
  %v137 = vmul.f32 %v66, %v92
  %v138 = vmul.f32 %v67, %v92
  %v139 = vmul.f32 %v68, %v92
  %v140 = vmul.f32 %v69, %v92
  %v141 = vmul.f32 %v70, %v92
  %v142 = vmul.f32 %v71, %v92
  %v143 = vmul.f32 %v72, %v92
  %v144 = vmul.f32 %v73, %v92
  %v145 = vmul.f32 %v74, %v92
  %v146 = vmul.f32 %v75, %v92
  %v147 = vmul.f32 %v76, %v92
  %v148 = vmul.f32 %v77, %v92
  %v149 = vmul.f32 %v78, %v92
  %v150 = vmul.f32 %v79, %v92
  %v151 = vmul.f32 %v80, %v92
  %v152 = vmul.f32 %v81, %v92
  %v153 = vmul.f32 %v82, %v92
  %v154 = vmul.f32 %v83, %v92
  %v155 = vmul.f32 %v84, %v92
  %v156 = vmul.f32 %v85, %v92
  %v157 = vmul.f32 %v86, %v92
  %v158 = vld [vmem:[%s4] sm:$0x1]
  %v160 = vlaneseq
  %v161 = vshrl.u32 %v160, 7
  %v162 = vsub.s32 0, %v161
  %v163 = vrot.slane %v158, %v162
  %v165 = vadd.f32 %v94, %v163
  %v166 = vadd.f32 %v95, %v163
  %v167 = vadd.f32 %v96, %v163
  %v168 = vadd.f32 %v97, %v163
  %v169 = vadd.f32 %v98, %v163
  %v170 = vadd.f32 %v99, %v163
  %v171 = vadd.f32 %v100, %v163
  %v172 = vadd.f32 %v101, %v163
  %v173 = vadd.f32 %v102, %v163
  %v174 = vadd.f32 %v103, %v163
  %v175 = vadd.f32 %v104, %v163
  %v176 = vadd.f32 %v105, %v163
  %v177 = vadd.f32 %v106, %v163
  %v178 = vadd.f32 %v107, %v163
  %v179 = vadd.f32 %v108, %v163
  %v180 = vadd.f32 %v109, %v163
  %v181 = vadd.f32 %v110, %v163
  %v182 = vadd.f32 %v111, %v163
  %v183 = vadd.f32 %v112, %v163
  %v184 = vadd.f32 %v113, %v163
  %v185 = vadd.f32 %v114, %v163
  %v186 = vadd.f32 %v115, %v163
  %v187 = vadd.f32 %v116, %v163
  %v188 = vadd.f32 %v117, %v163
  %v189 = vadd.f32 %v118, %v163
  %v190 = vadd.f32 %v119, %v163
  %v191 = vadd.f32 %v120, %v163
  %v192 = vadd.f32 %v121, %v163
  %v193 = vadd.f32 %v122, %v163
  %v194 = vadd.f32 %v123, %v163
  %v195 = vadd.f32 %v124, %v163
  %v196 = vadd.f32 %v125, %v163
  %v197 = vadd.f32 %v126, %v163
  %v198 = vadd.f32 %v127, %v163
  %v199 = vadd.f32 %v128, %v163
  %v200 = vadd.f32 %v129, %v163
  %v201 = vadd.f32 %v130, %v163
  %v202 = vadd.f32 %v131, %v163
  %v203 = vadd.f32 %v132, %v163
  %v204 = vadd.f32 %v133, %v163
  %v205 = vadd.f32 %v134, %v163
  %v206 = vadd.f32 %v135, %v163
  %v207 = vadd.f32 %v136, %v163
  %v208 = vadd.f32 %v137, %v163
  %v209 = vadd.f32 %v138, %v163
  %v210 = vadd.f32 %v139, %v163
  %v211 = vadd.f32 %v140, %v163
  %v212 = vadd.f32 %v141, %v163
  %v213 = vadd.f32 %v142, %v163
  %v214 = vadd.f32 %v143, %v163
  %v215 = vadd.f32 %v144, %v163
  %v216 = vadd.f32 %v145, %v163
  %v217 = vadd.f32 %v146, %v163
  %v218 = vadd.f32 %v147, %v163
  %v219 = vadd.f32 %v148, %v163
  %v220 = vadd.f32 %v149, %v163
  %v221 = vadd.f32 %v150, %v163
  %v222 = vadd.f32 %v151, %v163
  %v223 = vadd.f32 %v152, %v163
  %v224 = vadd.f32 %v153, %v163
  %v225 = vadd.f32 %v154, %v163
  %v226 = vadd.f32 %v155, %v163
  %v227 = vadd.f32 %v156, %v163
  %v228 = vadd.f32 %v157, %v163
  %v229 = vmax.f32 %v165, 0.0
  %v230 = vmax.f32 %v166, 0.0
  %v231 = vmax.f32 %v167, 0.0
  %v232 = vmax.f32 %v168, 0.0
  %v233 = vmax.f32 %v169, 0.0
  %v234 = vmax.f32 %v170, 0.0
  %v235 = vmax.f32 %v171, 0.0
  %v236 = vmax.f32 %v172, 0.0
  %v237 = vmax.f32 %v173, 0.0
  %v238 = vmax.f32 %v174, 0.0
  %v239 = vmax.f32 %v175, 0.0
  %v240 = vmax.f32 %v176, 0.0
  %v241 = vmax.f32 %v177, 0.0
  %v242 = vmax.f32 %v178, 0.0
  %v243 = vmax.f32 %v179, 0.0
  %v244 = vmax.f32 %v180, 0.0
  %v245 = vmax.f32 %v181, 0.0
  %v246 = vmax.f32 %v182, 0.0
  %v247 = vmax.f32 %v183, 0.0
  %v248 = vmax.f32 %v184, 0.0
  %v249 = vmax.f32 %v185, 0.0
  %v250 = vmax.f32 %v186, 0.0
  %v251 = vmax.f32 %v187, 0.0
  %v252 = vmax.f32 %v188, 0.0
  %v253 = vmax.f32 %v189, 0.0
  %v254 = vmax.f32 %v190, 0.0
  %v255 = vmax.f32 %v191, 0.0
  %v256 = vmax.f32 %v192, 0.0
  %v257 = vmax.f32 %v193, 0.0
  %v258 = vmax.f32 %v194, 0.0
  %v259 = vmax.f32 %v195, 0.0
  %v260 = vmax.f32 %v196, 0.0
  %v261 = vmax.f32 %v197, 0.0
  %v262 = vmax.f32 %v198, 0.0
  %v263 = vmax.f32 %v199, 0.0
  %v264 = vmax.f32 %v200, 0.0
  %v265 = vmax.f32 %v201, 0.0
  %v266 = vmax.f32 %v202, 0.0
  %v267 = vmax.f32 %v203, 0.0
  %v268 = vmax.f32 %v204, 0.0
  %v269 = vmax.f32 %v205, 0.0
  %v270 = vmax.f32 %v206, 0.0
  %v271 = vmax.f32 %v207, 0.0
  %v272 = vmax.f32 %v208, 0.0
  %v273 = vmax.f32 %v209, 0.0
  %v274 = vmax.f32 %v210, 0.0
  %v275 = vmax.f32 %v211, 0.0
  %v276 = vmax.f32 %v212, 0.0
  %v277 = vmax.f32 %v213, 0.0
  %v278 = vmax.f32 %v214, 0.0
  %v279 = vmax.f32 %v215, 0.0
  %v280 = vmax.f32 %v216, 0.0
  %v281 = vmax.f32 %v217, 0.0
  %v282 = vmax.f32 %v218, 0.0
  %v283 = vmax.f32 %v219, 0.0
  %v284 = vmax.f32 %v220, 0.0
  %v285 = vmax.f32 %v221, 0.0
  %v286 = vmax.f32 %v222, 0.0
  %v287 = vmax.f32 %v223, 0.0
  %v288 = vmax.f32 %v224, 0.0
  %v289 = vmax.f32 %v225, 0.0
  %v290 = vmax.f32 %v226, 0.0
  %v291 = vmax.f32 %v227, 0.0
  %v292 = vmax.f32 %v228, 0.0
  %v293 = vld [vmem:[%s1] sm:$0x3]
  %v294 = vld [vmem:[%s2] sm:$0x1]
  %v296 = vlaneseq
  %v297 = vshrl.u32 %v296, 7
  %v298 = vsub.s32 0, %v297
  %v299 = vrot.slane %v294, %v298
  %vm301 = vcmask 15360
  %v303 = vsel %vm301, %v229, 0
  %v306 = vsel %vm301, %v230, 0
  %v309 = vsel %vm301, %v231, 0
  %v312 = vsel %vm301, %v232, 0
  %v315 = vsel %vm301, %v233, 0
  %v318 = vsel %vm301, %v234, 0
  %v321 = vsel %vm301, %v235, 0
  %v324 = vsel %vm301, %v236, 0
  %v327 = vsel %vm301, %v237, 0
  %v330 = vsel %vm301, %v238, 0
  %v333 = vsel %vm301, %v239, 0
  %v336 = vsel %vm301, %v240, 0
  %v339 = vsel %vm301, %v241, 0
  %v342 = vsel %vm301, %v242, 0
  %v345 = vsel %vm301, %v243, 0
  %v348 = vsel %vm301, %v244, 0
  %v351 = vsel %vm301, %v245, 0
  %v354 = vsel %vm301, %v246, 0
  %v357 = vsel %vm301, %v247, 0
  %v360 = vsel %vm301, %v248, 0
  %v363 = vsel %vm301, %v249, 0
  %v366 = vsel %vm301, %v250, 0
  %v369 = vsel %vm301, %v251, 0
  %v372 = vsel %vm301, %v252, 0
  %v375 = vsel %vm301, %v253, 0
  %v378 = vsel %vm301, %v254, 0
  %v381 = vsel %vm301, %v255, 0
  %v384 = vsel %vm301, %v256, 0
  %v387 = vsel %vm301, %v257, 0
  %v390 = vsel %vm301, %v258, 0
  %v393 = vsel %vm301, %v259, 0
  %v396 = vsel %vm301, %v260, 0
  %v399 = vsel %vm301, %v261, 0
  %v402 = vsel %vm301, %v262, 0
  %v405 = vsel %vm301, %v263, 0
  %v408 = vsel %vm301, %v264, 0
  %v411 = vsel %vm301, %v265, 0
  %v414 = vsel %vm301, %v266, 0
  %v417 = vsel %vm301, %v267, 0
  %v420 = vsel %vm301, %v268, 0
  %v423 = vsel %vm301, %v269, 0
  %v426 = vsel %vm301, %v270, 0
  %v429 = vsel %vm301, %v271, 0
  %v432 = vsel %vm301, %v272, 0
  %v435 = vsel %vm301, %v273, 0
  %v438 = vsel %vm301, %v274, 0
  %v441 = vsel %vm301, %v275, 0
  %v444 = vsel %vm301, %v276, 0
  %v447 = vsel %vm301, %v277, 0
  %v450 = vsel %vm301, %v278, 0
  %v453 = vsel %vm301, %v279, 0
  %v456 = vsel %vm301, %v280, 0
  %v459 = vsel %vm301, %v281, 0
  %v462 = vsel %vm301, %v282, 0
  %v465 = vsel %vm301, %v283, 0
  %v468 = vsel %vm301, %v284, 0
  %v471 = vsel %vm301, %v285, 0
  %v474 = vsel %vm301, %v286, 0
  %v477 = vsel %vm301, %v287, 0
  %v480 = vsel %vm301, %v288, 0
  %v483 = vsel %vm301, %v289, 0
  %v486 = vsel %vm301, %v290, 0
  %v489 = vsel %vm301, %v291, 0
  %v492 = vsel %vm301, %v292, 0
  %vm494 = vcmask 1041408
  %v496 = vsel %vm494, %v293, 0
  %498 = vmatprep.subr.mxu0 0.0
  %499 = vmatpush1.msra.mxu0 0.0
  %500 = vmatprep.subr.mxu0 0.0
  %501 = vmatpush1.msra.mxu0 0.0
  %502 = vmatprep.subr.mxu0 0.0
  %503 = vmatpush1.msra.mxu0 0.0
  %504 = vmatprep.subr.mxu0 0.0
  %505 = vmatpush1.msra.mxu0 0.0
  %506 = vmatprep.subr.mxu0 0.0
  %507 = vmatpush1.msra.mxu0 0.0
  %508 = vmatprep.subr.mxu0 0.0
  %509 = vmatpush1.msra.mxu0 0.0
  %510 = vmatprep.subr.mxu0 0.0
  %511 = vmatpush1.msra.mxu0 0.0
  %512 = vmatprep.subr.mxu0 0.0
  %513 = vmatpush1.msra.mxu0 0.0
  %514 = vmatprep.subr.mxu0 0.0
  %515 = vmatpush1.msra.mxu0 0.0
  %516 = vmatprep.subr.mxu0 0.0
  %517 = vmatpush1.msra.mxu0 0.0
  %518 = vmatprep.subr.mxu0 0.0
  %519 = vmatpush1.msra.mxu0 0.0
  %520 = vmatprep.subr.mxu0 0.0
  %521 = vmatpush1.msra.mxu0 0.0
  %522 = vmatprep.subr.mxu0 0.0
  %523 = vmatpush1.msra.mxu0 0.0
  %524 = vmatprep.subr.mxu0 0.0
  %525 = vmatpush1.msra.mxu0 0.0
  %526 = vmatprep.subr.mxu0 0.0
  %527 = vmatpush1.msra.mxu0 0.0
  %528 = vmatprep.subr.mxu0 0.0
  %529 = vmatpush1.msra.mxu0 %v496
  %530 = vmatprep.subr.mxu0 0.0
  %531 = vmatpush2.msra.mxu0 0.0
  %532 = vmatprep.subr.mxu0 0.0
  %533 = vmatpush2.msra.mxu0 0.0
  %534 = vmatprep.subr.mxu0 0.0
  %535 = vmatpush2.msra.mxu0 0.0
  %536 = vmatprep.subr.mxu0 0.0
  %537 = vmatpush2.msra.mxu0 0.0
  %538 = vmatprep.subr.mxu0 0.0
  %539 = vmatpush2.msra.mxu0 0.0
  %540 = vmatprep.subr.mxu0 0.0
  %541 = vmatpush2.msra.mxu0 0.0
  %542 = vmatprep.subr.mxu0 0.0
  %543 = vmatpush2.msra.mxu0 0.0
  %544 = vmatprep.subr.mxu0 0.0
  %545 = vmatpush2.msra.mxu0 0.0
  %546 = vmatprep.subr.mxu0 0.0
  %547 = vmatpush2.msra.mxu0 0.0
  %548 = vmatprep.subr.mxu0 0.0
  %549 = vmatpush2.msra.mxu0 0.0
  %550 = vmatprep.subr.mxu0 0.0
  %551 = vmatpush2.msra.mxu0 0.0
  %552 = vmatprep.subr.mxu0 0.0
  %553 = vmatpush2.msra.mxu0 0.0
  %554 = vmatprep.subr.mxu0 0.0
  %555 = vmatpush2.msra.mxu0 0.0
  %556 = vmatprep.subr.mxu0 0.0
  %557 = vmatpush2.msra.mxu0 0.0
  %558 = vmatprep.subr.mxu0 0.0
  %559 = vmatpush2.msra.mxu0 0.0
  %560 = vmatprep.subr.mxu0 0.0
  %561 = vmatpush2.msra.mxu0 0.0
  %562 = vmatprep.mubr.f32.mxu0 0.0
  %563 = vmatmul.mubr.f32.gmra.mxu0 %v303
  %v564 = vpop.f32.mrf.mxu0
  %v565 = vadd.f32 %v299, %v564
  %v566 = vpop.f32.mrf.mxu0
  %567 = vmatprep.mubr.f32.mxu0 0.0
  %568 = vmatmul.mubr.f32.gmra.mxu0 %v306
  %v569 = vpop.f32.mrf.mxu0
  %v570 = vadd.f32 %v299, %v569
  %v571 = vpop.f32.mrf.mxu0
  %572 = vmatprep.mubr.f32.mxu0 0.0
  %573 = vmatmul.mubr.f32.gmra.mxu0 %v309
  %v574 = vpop.f32.mrf.mxu0
  %v575 = vadd.f32 %v299, %v574
  %v576 = vpop.f32.mrf.mxu0
  %577 = vmatprep.mubr.f32.mxu0 0.0
  %578 = vmatmul.mubr.f32.gmra.mxu0 %v312
  %v579 = vpop.f32.mrf.mxu0
  %v580 = vadd.f32 %v299, %v579
  %v581 = vpop.f32.mrf.mxu0
  %582 = vmatprep.mubr.f32.mxu0 0.0
  %583 = vmatmul.mubr.f32.gmra.mxu0 %v315
  %v584 = vpop.f32.mrf.mxu0
  %v585 = vadd.f32 %v299, %v584
  %v586 = vpop.f32.mrf.mxu0
  %587 = vmatprep.mubr.f32.mxu0 0.0
  %588 = vmatmul.mubr.f32.gmra.mxu0 %v318
  %v589 = vpop.f32.mrf.mxu0
  %v590 = vadd.f32 %v299, %v589
  %v591 = vpop.f32.mrf.mxu0
  %592 = vmatprep.mubr.f32.mxu0 0.0
  %593 = vmatmul.mubr.f32.gmra.mxu0 %v321
  %v594 = vpop.f32.mrf.mxu0
  %v595 = vadd.f32 %v299, %v594
  %v596 = vpop.f32.mrf.mxu0
  %597 = vmatprep.mubr.f32.mxu0 0.0
  %598 = vmatmul.mubr.f32.gmra.mxu0 %v324
  %v599 = vpop.f32.mrf.mxu0
  %v600 = vadd.f32 %v299, %v599
  %v601 = vpop.f32.mrf.mxu0
  %602 = vmatprep.mubr.f32.mxu0 0.0
  %603 = vmatmul.mubr.f32.gmra.mxu0 %v327
  %v604 = vpop.f32.mrf.mxu0
  %v605 = vadd.f32 %v299, %v604
  %v606 = vpop.f32.mrf.mxu0
  %607 = vmatprep.mubr.f32.mxu0 0.0
  %608 = vmatmul.mubr.f32.gmra.mxu0 %v330
  %v609 = vpop.f32.mrf.mxu0
  %v610 = vadd.f32 %v299, %v609
  %v611 = vpop.f32.mrf.mxu0
  %612 = vmatprep.mubr.f32.mxu0 0.0
  %613 = vmatmul.mubr.f32.gmra.mxu0 %v333
  %v614 = vpop.f32.mrf.mxu0
  %v615 = vadd.f32 %v299, %v614
  %v616 = vpop.f32.mrf.mxu0
  %617 = vmatprep.mubr.f32.mxu0 0.0
  %618 = vmatmul.mubr.f32.gmra.mxu0 %v336
  %v619 = vpop.f32.mrf.mxu0
  %v620 = vadd.f32 %v299, %v619
  %v621 = vpop.f32.mrf.mxu0
  %622 = vmatprep.mubr.f32.mxu0 0.0
  %623 = vmatmul.mubr.f32.gmra.mxu0 %v339
  %v624 = vpop.f32.mrf.mxu0
  %v625 = vadd.f32 %v299, %v624
  %v626 = vpop.f32.mrf.mxu0
  %627 = vmatprep.mubr.f32.mxu0 0.0
  %628 = vmatmul.mubr.f32.gmra.mxu0 %v342
  %v629 = vpop.f32.mrf.mxu0
  %v630 = vadd.f32 %v299, %v629
  %v631 = vpop.f32.mrf.mxu0
  %632 = vmatprep.mubr.f32.mxu0 0.0
  %633 = vmatmul.mubr.f32.gmra.mxu0 %v345
  %v634 = vpop.f32.mrf.mxu0
  %v635 = vadd.f32 %v299, %v634
  %v636 = vpop.f32.mrf.mxu0
  %637 = vmatprep.mubr.f32.mxu0 0.0
  %638 = vmatmul.mubr.f32.gmra.mxu0 %v348
  %v639 = vpop.f32.mrf.mxu0
  %v640 = vadd.f32 %v299, %v639
  %v641 = vpop.f32.mrf.mxu0
  %642 = vmatprep.mubr.f32.mxu0 0.0
  %643 = vmatmul.mubr.f32.gmra.mxu0 %v351
  %v644 = vpop.f32.mrf.mxu0
  %v645 = vadd.f32 %v299, %v644
  %v646 = vpop.f32.mrf.mxu0
  %647 = vmatprep.mubr.f32.mxu0 0.0
  %648 = vmatmul.mubr.f32.gmra.mxu0 %v354
  %v649 = vpop.f32.mrf.mxu0
  %v650 = vadd.f32 %v299, %v649
  %v651 = vpop.f32.mrf.mxu0
  %652 = vmatprep.mubr.f32.mxu0 0.0
  %653 = vmatmul.mubr.f32.gmra.mxu0 %v357
  %v654 = vpop.f32.mrf.mxu0
  %v655 = vadd.f32 %v299, %v654
  %v656 = vpop.f32.mrf.mxu0
  %657 = vmatprep.mubr.f32.mxu0 0.0
  %658 = vmatmul.mubr.f32.gmra.mxu0 %v360
  %v659 = vpop.f32.mrf.mxu0
  %v660 = vadd.f32 %v299, %v659
  %v661 = vpop.f32.mrf.mxu0
  %662 = vmatprep.mubr.f32.mxu0 0.0
  %663 = vmatmul.mubr.f32.gmra.mxu0 %v363
  %v664 = vpop.f32.mrf.mxu0
  %v665 = vadd.f32 %v299, %v664
  %v666 = vpop.f32.mrf.mxu0
  %667 = vmatprep.mubr.f32.mxu0 0.0
  %668 = vmatmul.mubr.f32.gmra.mxu0 %v366
  %v669 = vpop.f32.mrf.mxu0
  %v670 = vadd.f32 %v299, %v669
  %v671 = vpop.f32.mrf.mxu0
  %672 = vmatprep.mubr.f32.mxu0 0.0
  %673 = vmatmul.mubr.f32.gmra.mxu0 %v369
  %v674 = vpop.f32.mrf.mxu0
  %v675 = vadd.f32 %v299, %v674
  %v676 = vpop.f32.mrf.mxu0
  %677 = vmatprep.mubr.f32.mxu0 0.0
  %678 = vmatmul.mubr.f32.gmra.mxu0 %v372
  %v679 = vpop.f32.mrf.mxu0
  %v680 = vadd.f32 %v299, %v679
  %v681 = vpop.f32.mrf.mxu0
  %682 = vmatprep.mubr.f32.mxu0 0.0
  %683 = vmatmul.mubr.f32.gmra.mxu0 %v375
  %v684 = vpop.f32.mrf.mxu0
  %v685 = vadd.f32 %v299, %v684
  %v686 = vpop.f32.mrf.mxu0
  %687 = vmatprep.mubr.f32.mxu0 0.0
  %688 = vmatmul.mubr.f32.gmra.mxu0 %v378
  %v689 = vpop.f32.mrf.mxu0
  %v690 = vadd.f32 %v299, %v689
  %v691 = vpop.f32.mrf.mxu0
  %692 = vmatprep.mubr.f32.mxu0 0.0
  %693 = vmatmul.mubr.f32.gmra.mxu0 %v381
  %v694 = vpop.f32.mrf.mxu0
  %v695 = vadd.f32 %v299, %v694
  %v696 = vpop.f32.mrf.mxu0
  %697 = vmatprep.mubr.f32.mxu0 0.0
  %698 = vmatmul.mubr.f32.gmra.mxu0 %v384
  %v699 = vpop.f32.mrf.mxu0
  %v700 = vadd.f32 %v299, %v699
  %v701 = vpop.f32.mrf.mxu0
  %702 = vmatprep.mubr.f32.mxu0 0.0
  %703 = vmatmul.mubr.f32.gmra.mxu0 %v387
  %v704 = vpop.f32.mrf.mxu0
  %v705 = vadd.f32 %v299, %v704
  %v706 = vpop.f32.mrf.mxu0
  %707 = vmatprep.mubr.f32.mxu0 0.0
  %708 = vmatmul.mubr.f32.gmra.mxu0 %v390
  %v709 = vpop.f32.mrf.mxu0
  %v710 = vadd.f32 %v299, %v709
  %v711 = vpop.f32.mrf.mxu0
  %712 = vmatprep.mubr.f32.mxu0 0.0
  %713 = vmatmul.mubr.f32.gmra.mxu0 %v393
  %v714 = vpop.f32.mrf.mxu0
  %v715 = vadd.f32 %v299, %v714
  %v716 = vpop.f32.mrf.mxu0
  %717 = vmatprep.mubr.f32.mxu0 0.0
  %718 = vmatmul.mubr.f32.gmra.mxu0 %v396
  %v719 = vpop.f32.mrf.mxu0
  %v720 = vadd.f32 %v299, %v719
  %v721 = vpop.f32.mrf.mxu0
  %722 = vmatprep.mubr.f32.mxu0 0.0
  %723 = vmatmul.mubr.f32.gmra.mxu0 %v399
  %v724 = vpop.f32.mrf.mxu0
  %v725 = vadd.f32 %v299, %v724
  %v726 = vpop.f32.mrf.mxu0
  %727 = vmatprep.mubr.f32.mxu0 0.0
  %728 = vmatmul.mubr.f32.gmra.mxu0 %v402
  %v729 = vpop.f32.mrf.mxu0
  %v730 = vadd.f32 %v299, %v729
  %v731 = vpop.f32.mrf.mxu0
  %732 = vmatprep.mubr.f32.mxu0 0.0
  %733 = vmatmul.mubr.f32.gmra.mxu0 %v405
  %v734 = vpop.f32.mrf.mxu0
  %v735 = vadd.f32 %v299, %v734
  %v736 = vpop.f32.mrf.mxu0
  %737 = vmatprep.mubr.f32.mxu0 0.0
  %738 = vmatmul.mubr.f32.gmra.mxu0 %v408
  %v739 = vpop.f32.mrf.mxu0
  %v740 = vadd.f32 %v299, %v739
  %v741 = vpop.f32.mrf.mxu0
  %742 = vmatprep.mubr.f32.mxu0 0.0
  %743 = vmatmul.mubr.f32.gmra.mxu0 %v411
  %v744 = vpop.f32.mrf.mxu0
  %v745 = vadd.f32 %v299, %v744
  %v746 = vpop.f32.mrf.mxu0
  %747 = vmatprep.mubr.f32.mxu0 0.0
  %748 = vmatmul.mubr.f32.gmra.mxu0 %v414
  %v749 = vpop.f32.mrf.mxu0
  %v750 = vadd.f32 %v299, %v749
  %v751 = vpop.f32.mrf.mxu0
  %752 = vmatprep.mubr.f32.mxu0 0.0
  %753 = vmatmul.mubr.f32.gmra.mxu0 %v417
  %v754 = vpop.f32.mrf.mxu0
  %v755 = vadd.f32 %v299, %v754
  %v756 = vpop.f32.mrf.mxu0
  %757 = vmatprep.mubr.f32.mxu0 0.0
  %758 = vmatmul.mubr.f32.gmra.mxu0 %v420
  %v759 = vpop.f32.mrf.mxu0
  %v760 = vadd.f32 %v299, %v759
  %v761 = vpop.f32.mrf.mxu0
  %762 = vmatprep.mubr.f32.mxu0 0.0
  %763 = vmatmul.mubr.f32.gmra.mxu0 %v423
  %v764 = vpop.f32.mrf.mxu0
  %v765 = vadd.f32 %v299, %v764
  %v766 = vpop.f32.mrf.mxu0
  %767 = vmatprep.mubr.f32.mxu0 0.0
  %768 = vmatmul.mubr.f32.gmra.mxu0 %v426
  %v769 = vpop.f32.mrf.mxu0
  %v770 = vadd.f32 %v299, %v769
  %v771 = vpop.f32.mrf.mxu0
  %772 = vmatprep.mubr.f32.mxu0 0.0
  %773 = vmatmul.mubr.f32.gmra.mxu0 %v429
  %v774 = vpop.f32.mrf.mxu0
  %v775 = vadd.f32 %v299, %v774
  %v776 = vpop.f32.mrf.mxu0
  %777 = vmatprep.mubr.f32.mxu0 0.0
  %778 = vmatmul.mubr.f32.gmra.mxu0 %v432
  %v779 = vpop.f32.mrf.mxu0
  %v780 = vadd.f32 %v299, %v779
  %v781 = vpop.f32.mrf.mxu0
  %782 = vmatprep.mubr.f32.mxu0 0.0
  %783 = vmatmul.mubr.f32.gmra.mxu0 %v435
  %v784 = vpop.f32.mrf.mxu0
  %v785 = vadd.f32 %v299, %v784
  %v786 = vpop.f32.mrf.mxu0
  %787 = vmatprep.mubr.f32.mxu0 0.0
  %788 = vmatmul.mubr.f32.gmra.mxu0 %v438
  %v789 = vpop.f32.mrf.mxu0
  %v790 = vadd.f32 %v299, %v789
  %v791 = vpop.f32.mrf.mxu0
  %792 = vmatprep.mubr.f32.mxu0 0.0
  %793 = vmatmul.mubr.f32.gmra.mxu0 %v441
  %v794 = vpop.f32.mrf.mxu0
  %v795 = vadd.f32 %v299, %v794
  %v796 = vpop.f32.mrf.mxu0
  %797 = vmatprep.mubr.f32.mxu0 0.0
  %798 = vmatmul.mubr.f32.gmra.mxu0 %v444
  %v799 = vpop.f32.mrf.mxu0
  %v800 = vadd.f32 %v299, %v799
  %v801 = vpop.f32.mrf.mxu0
  %802 = vmatprep.mubr.f32.mxu0 0.0
  %803 = vmatmul.mubr.f32.gmra.mxu0 %v447
  %v804 = vpop.f32.mrf.mxu0
  %v805 = vadd.f32 %v299, %v804
  %v806 = vpop.f32.mrf.mxu0
  %807 = vmatprep.mubr.f32.mxu0 0.0
  %808 = vmatmul.mubr.f32.gmra.mxu0 %v450
  %v809 = vpop.f32.mrf.mxu0
  %v810 = vadd.f32 %v299, %v809
  %v811 = vpop.f32.mrf.mxu0
  %812 = vmatprep.mubr.f32.mxu0 0.0
  %813 = vmatmul.mubr.f32.gmra.mxu0 %v453
  %v814 = vpop.f32.mrf.mxu0
  %v815 = vadd.f32 %v299, %v814
  %v816 = vpop.f32.mrf.mxu0
  %817 = vmatprep.mubr.f32.mxu0 0.0
  %818 = vmatmul.mubr.f32.gmra.mxu0 %v456
  %v819 = vpop.f32.mrf.mxu0
  %v820 = vadd.f32 %v299, %v819
  %v821 = vpop.f32.mrf.mxu0
  %822 = vmatprep.mubr.f32.mxu0 0.0
  %823 = vmatmul.mubr.f32.gmra.mxu0 %v459
  %v824 = vpop.f32.mrf.mxu0
  %v825 = vadd.f32 %v299, %v824
  %v826 = vpop.f32.mrf.mxu0
  %827 = vmatprep.mubr.f32.mxu0 0.0
  %828 = vmatmul.mubr.f32.gmra.mxu0 %v462
  %v829 = vpop.f32.mrf.mxu0
  %v830 = vadd.f32 %v299, %v829
  %v831 = vpop.f32.mrf.mxu0
  %832 = vmatprep.mubr.f32.mxu0 0.0
  %833 = vmatmul.mubr.f32.gmra.mxu0 %v465
  %v834 = vpop.f32.mrf.mxu0
  %v835 = vadd.f32 %v299, %v834
  %v836 = vpop.f32.mrf.mxu0
  %837 = vmatprep.mubr.f32.mxu0 0.0
  %838 = vmatmul.mubr.f32.gmra.mxu0 %v468
  %v839 = vpop.f32.mrf.mxu0
  %v840 = vadd.f32 %v299, %v839
  %v841 = vpop.f32.mrf.mxu0
  %842 = vmatprep.mubr.f32.mxu0 0.0
  %843 = vmatmul.mubr.f32.gmra.mxu0 %v471
  %v844 = vpop.f32.mrf.mxu0
  %v845 = vadd.f32 %v299, %v844
  %v846 = vpop.f32.mrf.mxu0
  %847 = vmatprep.mubr.f32.mxu0 0.0
  %848 = vmatmul.mubr.f32.gmra.mxu0 %v474
  %v849 = vpop.f32.mrf.mxu0
  %v850 = vadd.f32 %v299, %v849
  %v851 = vpop.f32.mrf.mxu0
  %852 = vmatprep.mubr.f32.mxu0 0.0
  %853 = vmatmul.mubr.f32.gmra.mxu0 %v477
  %v854 = vpop.f32.mrf.mxu0
  %v855 = vadd.f32 %v299, %v854
  %v856 = vpop.f32.mrf.mxu0
  %857 = vmatprep.mubr.f32.mxu0 0.0
  %858 = vmatmul.mubr.f32.gmra.mxu0 %v480
  %v859 = vpop.f32.mrf.mxu0
  %v860 = vadd.f32 %v299, %v859
  %v861 = vpop.f32.mrf.mxu0
  %862 = vmatprep.mubr.f32.mxu0 0.0
  %863 = vmatmul.mubr.f32.gmra.mxu0 %v483
  %v864 = vpop.f32.mrf.mxu0
  %v865 = vadd.f32 %v299, %v864
  %v866 = vpop.f32.mrf.mxu0
  %867 = vmatprep.mubr.f32.mxu0 0.0
  %868 = vmatmul.mubr.f32.gmra.mxu0 %v486
  %v869 = vpop.f32.mrf.mxu0
  %v870 = vadd.f32 %v299, %v869
  %v871 = vpop.f32.mrf.mxu0
  %872 = vmatprep.mubr.f32.mxu0 0.0
  %873 = vmatmul.mubr.f32.gmra.mxu0 %v489
  %v874 = vpop.f32.mrf.mxu0
  %v875 = vadd.f32 %v299, %v874
  %v876 = vpop.f32.mrf.mxu0
  %877 = vmatprep.mubr.f32.mxu0 0.0
  %878 = vmatmul.mubr.f32.gmra.mxu0 %v492
  %v879 = vpop.f32.mrf.mxu0
  %v880 = vadd.f32 %v299, %v879
  %v881 = vpop.f32.mrf.mxu0
  %882 = vdwg.mxu0
  %vm883 = vcmask 64512
  %884 = vst.msk [vmem:[%s5] sm:$0xff] %vm883, %v565
  %885 = vst.msk [vmem:[%s5 + $0x8] sm:$0xff] %vm883, %v570
  %886 = vst.msk [vmem:[%s5 + $0x10] sm:$0xff] %vm883, %v575
  %887 = vst.msk [vmem:[%s5 + $0x18] sm:$0xff] %vm883, %v580
  %888 = vst.msk [vmem:[%s5 + $0x20] sm:$0xff] %vm883, %v585
  %889 = vst.msk [vmem:[%s5 + $0x28] sm:$0xff] %vm883, %v590
  %890 = vst.msk [vmem:[%s5 + $0x30] sm:$0xff] %vm883, %v595
  %891 = vst.msk [vmem:[%s5 + $0x38] sm:$0xff] %vm883, %v600
  %892 = vst.msk [vmem:[%s5 + $0x40] sm:$0xff] %vm883, %v605
  %893 = vst.msk [vmem:[%s5 + $0x48] sm:$0xff] %vm883, %v610
  %894 = vst.msk [vmem:[%s5 + $0x50] sm:$0xff] %vm883, %v615
  %895 = vst.msk [vmem:[%s5 + $0x58] sm:$0xff] %vm883, %v620
  %896 = vst.msk [vmem:[%s5 + $0x60] sm:$0xff] %vm883, %v625
  %897 = vst.msk [vmem:[%s5 + $0x68] sm:$0xff] %vm883, %v630
  %898 = vst.msk [vmem:[%s5 + $0x70] sm:$0xff] %vm883, %v635
  %899 = vst.msk [vmem:[%s5 + $0x78] sm:$0xff] %vm883, %v640
  %900 = vst.msk [vmem:[%s5 + $0x80] sm:$0xff] %vm883, %v645
  %901 = vst.msk [vmem:[%s5 + $0x88] sm:$0xff] %vm883, %v650
  %902 = vst.msk [vmem:[%s5 + $0x90] sm:$0xff] %vm883, %v655
  %903 = vst.msk [vmem:[%s5 + $0x98] sm:$0xff] %vm883, %v660
  %904 = vst.msk [vmem:[%s5 + $0xa0] sm:$0xff] %vm883, %v665
  %905 = vst.msk [vmem:[%s5 + $0xa8] sm:$0xff] %vm883, %v670
  %906 = vst.msk [vmem:[%s5 + $0xb0] sm:$0xff] %vm883, %v675
  %907 = vst.msk [vmem:[%s5 + $0xb8] sm:$0xff] %vm883, %v680
  %908 = vst.msk [vmem:[%s5 + $0xc0] sm:$0xff] %vm883, %v685
  %909 = vst.msk [vmem:[%s5 + $0xc8] sm:$0xff] %vm883, %v690
  %910 = vst.msk [vmem:[%s5 + $0xd0] sm:$0xff] %vm883, %v695
  %911 = vst.msk [vmem:[%s5 + $0xd8] sm:$0xff] %vm883, %v700
  %912 = vst.msk [vmem:[%s5 + $0xe0] sm:$0xff] %vm883, %v705
  %913 = vst.msk [vmem:[%s5 + $0xe8] sm:$0xff] %vm883, %v710
  %914 = vst.msk [vmem:[%s5 + $0xf0] sm:$0xff] %vm883, %v715
  %915 = vst.msk [vmem:[%s5 + $0xf8] sm:$0xff] %vm883, %v720
  %916 = vst.msk [vmem:[%s5 + $0x100] sm:$0xff] %vm883, %v725
  %917 = vst.msk [vmem:[%s5 + $0x108] sm:$0xff] %vm883, %v730
  %918 = vst.msk [vmem:[%s5 + $0x110] sm:$0xff] %vm883, %v735
  %919 = vst.msk [vmem:[%s5 + $0x118] sm:$0xff] %vm883, %v740
  %920 = vst.msk [vmem:[%s5 + $0x120] sm:$0xff] %vm883, %v745
  %921 = vst.msk [vmem:[%s5 + $0x128] sm:$0xff] %vm883, %v750
  %922 = vst.msk [vmem:[%s5 + $0x130] sm:$0xff] %vm883, %v755
  %923 = vst.msk [vmem:[%s5 + $0x138] sm:$0xff] %vm883, %v760
  %924 = vst.msk [vmem:[%s5 + $0x140] sm:$0xff] %vm883, %v765
  %925 = vst.msk [vmem:[%s5 + $0x148] sm:$0xff] %vm883, %v770
  %926 = vst.msk [vmem:[%s5 + $0x150] sm:$0xff] %vm883, %v775
  %927 = vst.msk [vmem:[%s5 + $0x158] sm:$0xff] %vm883, %v780
  %928 = vst.msk [vmem:[%s5 + $0x160] sm:$0xff] %vm883, %v785
  %929 = vst.msk [vmem:[%s5 + $0x168] sm:$0xff] %vm883, %v790
  %930 = vst.msk [vmem:[%s5 + $0x170] sm:$0xff] %vm883, %v795
  %931 = vst.msk [vmem:[%s5 + $0x178] sm:$0xff] %vm883, %v800
  %932 = vst.msk [vmem:[%s5 + $0x180] sm:$0xff] %vm883, %v805
  %933 = vst.msk [vmem:[%s5 + $0x188] sm:$0xff] %vm883, %v810
  %934 = vst.msk [vmem:[%s5 + $0x190] sm:$0xff] %vm883, %v815
  %935 = vst.msk [vmem:[%s5 + $0x198] sm:$0xff] %vm883, %v820
  %936 = vst.msk [vmem:[%s5 + $0x1a0] sm:$0xff] %vm883, %v825
  %937 = vst.msk [vmem:[%s5 + $0x1a8] sm:$0xff] %vm883, %v830
  %938 = vst.msk [vmem:[%s5 + $0x1b0] sm:$0xff] %vm883, %v835
  %939 = vst.msk [vmem:[%s5 + $0x1b8] sm:$0xff] %vm883, %v840
  %940 = vst.msk [vmem:[%s5 + $0x1c0] sm:$0xff] %vm883, %v845
  %941 = vst.msk [vmem:[%s5 + $0x1c8] sm:$0xff] %vm883, %v850
  %942 = vst.msk [vmem:[%s5 + $0x1d0] sm:$0xff] %vm883, %v855
  %943 = vst.msk [vmem:[%s5 + $0x1d8] sm:$0xff] %vm883, %v860
  %944 = vst.msk [vmem:[%s5 + $0x1e0] sm:$0xff] %vm883, %v865
  %945 = vst.msk [vmem:[%s5 + $0x1e8] sm:$0xff] %vm883, %v870
  %946 = vst.msk [vmem:[%s5 + $0x1f0] sm:$0xff] %vm883, %v875
  %947 = vst.msk [vmem:[%s5 + $0x1f8] sm:$0xff] %vm883, %v880
  %p948 = scmp.eq.s32.totalorder 0, 0
  // Predicated region
  $region22: #{_lambda_.26} parent=0 // pred_check
    %p949 = pneg %p948
  $region23: #{_lambda_.26} parent=0 // pred_check_branch
    %951 = sbr.rel (%p949) target = $region25
  $region24: #{_lambda_.26} parent=0 // pred_region
    %vm952 = vcmask 57344
    %953 = vst.msk [vmem:[%s6] sm:$0x1] %vm952, 0.0
    %954 = vst.msk [vmem:[%s7] sm:$0x1] %vm952, 0.0
  $region25: #{_lambda_.26} parent=0 // pred_fallthru
    _
  %v955 = vld [vmem:[%s6] sm:$0x1]
  %v956 = vsel %vm883, %v565, 0.0
  %v957 = vsel %vm883, %v570, 0.0
  %v958 = vadd.f32 %v956, %v957
  %v959 = vsel %vm883, %v575, 0.0
  %v960 = vadd.f32 %v958, %v959
  %v961 = vsel %vm883, %v580, 0.0
  %v962 = vadd.f32 %v960, %v961
  %v963 = vsel %vm883, %v585, 0.0
  %v964 = vadd.f32 %v962, %v963
  %v965 = vsel %vm883, %v590, 0.0
  %v966 = vadd.f32 %v964, %v965
  %v967 = vsel %vm883, %v595, 0.0
  %v968 = vadd.f32 %v966, %v967
  %v969 = vsel %vm883, %v600, 0.0
  %v970 = vadd.f32 %v968, %v969
  %v971 = vsel %vm883, %v605, 0.0
  %v972 = vadd.f32 %v970, %v971
  %v973 = vsel %vm883, %v610, 0.0
  %v974 = vadd.f32 %v972, %v973
  %v975 = vsel %vm883, %v615, 0.0
  %v976 = vadd.f32 %v974, %v975
  %v977 = vsel %vm883, %v620, 0.0
  %v978 = vadd.f32 %v976, %v977
  %v979 = vsel %vm883, %v625, 0.0
  %v980 = vadd.f32 %v978, %v979
  %v981 = vsel %vm883, %v630, 0.0
  %v982 = vadd.f32 %v980, %v981
  %v983 = vsel %vm883, %v635, 0.0
  %v984 = vadd.f32 %v982, %v983
  %v985 = vsel %vm883, %v640, 0.0
  %v986 = vadd.f32 %v984, %v985
  %v987 = vsel %vm883, %v645, 0.0
  %v988 = vadd.f32 %v986, %v987
  %v989 = vsel %vm883, %v650, 0.0
  %v990 = vadd.f32 %v988, %v989
  %v991 = vsel %vm883, %v655, 0.0
  %v992 = vadd.f32 %v990, %v991
  %v993 = vsel %vm883, %v660, 0.0
  %v994 = vadd.f32 %v992, %v993
  %v995 = vsel %vm883, %v665, 0.0
  %v996 = vadd.f32 %v994, %v995
  %v997 = vsel %vm883, %v670, 0.0
  %v998 = vadd.f32 %v996, %v997
  %v999 = vsel %vm883, %v675, 0.0
  %v1000 = vadd.f32 %v998, %v999
  %v1001 = vsel %vm883, %v680, 0.0
  %v1002 = vadd.f32 %v1000, %v1001
  %v1003 = vsel %vm883, %v685, 0.0
  %v1004 = vadd.f32 %v1002, %v1003
  %v1005 = vsel %vm883, %v690, 0.0
  %v1006 = vadd.f32 %v1004, %v1005
  %v1007 = vsel %vm883, %v695, 0.0
  %v1008 = vadd.f32 %v1006, %v1007
  %v1009 = vsel %vm883, %v700, 0.0
  %v1010 = vadd.f32 %v1008, %v1009
  %v1011 = vsel %vm883, %v705, 0.0
  %v1012 = vadd.f32 %v1010, %v1011
  %v1013 = vsel %vm883, %v710, 0.0
  %v1014 = vadd.f32 %v1012, %v1013
  %v1015 = vsel %vm883, %v715, 0.0
  %v1016 = vadd.f32 %v1014, %v1015
  %v1017 = vsel %vm883, %v720, 0.0
  %v1018 = vadd.f32 %v1016, %v1017
  %v1019 = vsel %vm883, %v725, 0.0
  %v1020 = vadd.f32 %v1018, %v1019
  %v1021 = vsel %vm883, %v730, 0.0
  %v1022 = vadd.f32 %v1020, %v1021
  %v1023 = vsel %vm883, %v735, 0.0
  %v1024 = vadd.f32 %v1022, %v1023
  %v1025 = vsel %vm883, %v740, 0.0
  %v1026 = vadd.f32 %v1024, %v1025
  %v1027 = vsel %vm883, %v745, 0.0
  %v1028 = vadd.f32 %v1026, %v1027
  %v1029 = vsel %vm883, %v750, 0.0
  %v1030 = vadd.f32 %v1028, %v1029
  %v1031 = vsel %vm883, %v755, 0.0
  %v1032 = vadd.f32 %v1030, %v1031
  %v1033 = vsel %vm883, %v760, 0.0
  %v1034 = vadd.f32 %v1032, %v1033
  %v1035 = vsel %vm883, %v765, 0.0
  %v1036 = vadd.f32 %v1034, %v1035
  %v1037 = vsel %vm883, %v770, 0.0
  %v1038 = vadd.f32 %v1036, %v1037
  %v1039 = vsel %vm883, %v775, 0.0
  %v1040 = vadd.f32 %v1038, %v1039
  %v1041 = vsel %vm883, %v780, 0.0
  %v1042 = vadd.f32 %v1040, %v1041
  %v1043 = vsel %vm883, %v785, 0.0
  %v1044 = vadd.f32 %v1042, %v1043
  %v1045 = vsel %vm883, %v790, 0.0
  %v1046 = vadd.f32 %v1044, %v1045
  %v1047 = vsel %vm883, %v795, 0.0
  %v1048 = vadd.f32 %v1046, %v1047
  %v1049 = vsel %vm883, %v800, 0.0
  %v1050 = vadd.f32 %v1048, %v1049
  %v1051 = vsel %vm883, %v805, 0.0
  %v1052 = vadd.f32 %v1050, %v1051
  %v1053 = vsel %vm883, %v810, 0.0
  %v1054 = vadd.f32 %v1052, %v1053
  %v1055 = vsel %vm883, %v815, 0.0
  %v1056 = vadd.f32 %v1054, %v1055
  %v1057 = vsel %vm883, %v820, 0.0
  %v1058 = vadd.f32 %v1056, %v1057
  %v1059 = vsel %vm883, %v825, 0.0
  %v1060 = vadd.f32 %v1058, %v1059
  %v1061 = vsel %vm883, %v830, 0.0
  %v1062 = vadd.f32 %v1060, %v1061
  %v1063 = vsel %vm883, %v835, 0.0
  %v1064 = vadd.f32 %v1062, %v1063
  %v1065 = vsel %vm883, %v840, 0.0
  %v1066 = vadd.f32 %v1064, %v1065
  %v1067 = vsel %vm883, %v845, 0.0
  %v1068 = vadd.f32 %v1066, %v1067
  %v1069 = vsel %vm883, %v850, 0.0
  %v1070 = vadd.f32 %v1068, %v1069
  %v1071 = vsel %vm883, %v855, 0.0
  %v1072 = vadd.f32 %v1070, %v1071
  %v1073 = vsel %vm883, %v860, 0.0
  %v1074 = vadd.f32 %v1072, %v1073
  %v1075 = vsel %vm883, %v865, 0.0
  %v1076 = vadd.f32 %v1074, %v1075
  %v1077 = vsel %vm883, %v870, 0.0
  %v1078 = vadd.f32 %v1076, %v1077
  %v1079 = vsel %vm883, %v875, 0.0
  %v1080 = vadd.f32 %v1078, %v1079
  %v1081 = vsel %vm883, %v880, 0.0
  %v1082 = vadd.f32 %v1080, %v1081
  %v1083 = vrot.slane %v1082, 4
  %v1084 = vadd.f32 %v1082, %v1083
  %v1085 = vrot.slane %v1084, 2
  %v1086 = vadd.f32 %v1084, %v1085
  %v1087 = vrot.slane %v1086, 1
  %v1088 = vadd.f32 %v1086, %v1087
  %v1089 = vadd.f32 %v955, %v1088
  %vm1090 = vcmask 57344
  %1091 = vst.msk [vmem:[%s6] sm:$0x1] %vm1090, %v1089
  %v1092 = vld [vmem:[%s7] sm:$0x1]
  %v1093 = vmul.f32 %v565, %v565
  %v1094 = vmul.f32 %v570, %v570
  %v1095 = vmul.f32 %v575, %v575
  %v1096 = vmul.f32 %v580, %v580
  %v1097 = vmul.f32 %v585, %v585
  %v1098 = vmul.f32 %v590, %v590
  %v1099 = vmul.f32 %v595, %v595
  %v1100 = vmul.f32 %v600, %v600
  %v1101 = vmul.f32 %v605, %v605
  %v1102 = vmul.f32 %v610, %v610
  %v1103 = vmul.f32 %v615, %v615
  %v1104 = vmul.f32 %v620, %v620
  %v1105 = vmul.f32 %v625, %v625
  %v1106 = vmul.f32 %v630, %v630
  %v1107 = vmul.f32 %v635, %v635
  %v1108 = vmul.f32 %v640, %v640
  %v1109 = vmul.f32 %v645, %v645
  %v1110 = vmul.f32 %v650, %v650
  %v1111 = vmul.f32 %v655, %v655
  %v1112 = vmul.f32 %v660, %v660
  %v1113 = vmul.f32 %v665, %v665
  %v1114 = vmul.f32 %v670, %v670
  %v1115 = vmul.f32 %v675, %v675
  %v1116 = vmul.f32 %v680, %v680
  %v1117 = vmul.f32 %v685, %v685
  %v1118 = vmul.f32 %v690, %v690
  %v1119 = vmul.f32 %v695, %v695
  %v1120 = vmul.f32 %v700, %v700
  %v1121 = vmul.f32 %v705, %v705
  %v1122 = vmul.f32 %v710, %v710
  %v1123 = vmul.f32 %v715, %v715
  %v1124 = vmul.f32 %v720, %v720
  %v1125 = vmul.f32 %v725, %v725
  %v1126 = vmul.f32 %v730, %v730
  %v1127 = vmul.f32 %v735, %v735
  %v1128 = vmul.f32 %v740, %v740
  %v1129 = vmul.f32 %v745, %v745
  %v1130 = vmul.f32 %v750, %v750
  %v1131 = vmul.f32 %v755, %v755
  %v1132 = vmul.f32 %v760, %v760
  %v1133 = vmul.f32 %v765, %v765
  %v1134 = vmul.f32 %v770, %v770
  %v1135 = vmul.f32 %v775, %v775
  %v1136 = vmul.f32 %v780, %v780
  %v1137 = vmul.f32 %v785, %v785
  %v1138 = vmul.f32 %v790, %v790
  %v1139 = vmul.f32 %v795, %v795
  %v1140 = vmul.f32 %v800, %v800
  %v1141 = vmul.f32 %v805, %v805
  %v1142 = vmul.f32 %v810, %v810
  %v1143 = vmul.f32 %v815, %v815
  %v1144 = vmul.f32 %v820, %v820
  %v1145 = vmul.f32 %v825, %v825
  %v1146 = vmul.f32 %v830, %v830
  %v1147 = vmul.f32 %v835, %v835
  %v1148 = vmul.f32 %v840, %v840
  %v1149 = vmul.f32 %v845, %v845
  %v1150 = vmul.f32 %v850, %v850
  %v1151 = vmul.f32 %v855, %v855
  %v1152 = vmul.f32 %v860, %v860
  %v1153 = vmul.f32 %v865, %v865
  %v1154 = vmul.f32 %v870, %v870
  %v1155 = vmul.f32 %v875, %v875
  %v1156 = vmul.f32 %v880, %v880
  %v1157 = vsel %vm883, %v1093, 0.0
  %v1158 = vsel %vm883, %v1094, 0.0
  %v1159 = vadd.f32 %v1157, %v1158
  %v1160 = vsel %vm883, %v1095, 0.0
  %v1161 = vadd.f32 %v1159, %v1160
  %v1162 = vsel %vm883, %v1096, 0.0
  %v1163 = vadd.f32 %v1161, %v1162
  %v1164 = vsel %vm883, %v1097, 0.0
  %v1165 = vadd.f32 %v1163, %v1164
  %v1166 = vsel %vm883, %v1098, 0.0
  %v1167 = vadd.f32 %v1165, %v1166
  %v1168 = vsel %vm883, %v1099, 0.0
  %v1169 = vadd.f32 %v1167, %v1168
  %v1170 = vsel %vm883, %v1100, 0.0
  %v1171 = vadd.f32 %v1169, %v1170
  %v1172 = vsel %vm883, %v1101, 0.0
  %v1173 = vadd.f32 %v1171, %v1172
  %v1174 = vsel %vm883, %v1102, 0.0
  %v1175 = vadd.f32 %v1173, %v1174
  %v1176 = vsel %vm883, %v1103, 0.0
  %v1177 = vadd.f32 %v1175, %v1176
  %v1178 = vsel %vm883, %v1104, 0.0
  %v1179 = vadd.f32 %v1177, %v1178
  %v1180 = vsel %vm883, %v1105, 0.0
  %v1181 = vadd.f32 %v1179, %v1180
  %v1182 = vsel %vm883, %v1106, 0.0
  %v1183 = vadd.f32 %v1181, %v1182
  %v1184 = vsel %vm883, %v1107, 0.0
  %v1185 = vadd.f32 %v1183, %v1184
  %v1186 = vsel %vm883, %v1108, 0.0
  %v1187 = vadd.f32 %v1185, %v1186
  %v1188 = vsel %vm883, %v1109, 0.0
  %v1189 = vadd.f32 %v1187, %v1188
  %v1190 = vsel %vm883, %v1110, 0.0
  %v1191 = vadd.f32 %v1189, %v1190
  %v1192 = vsel %vm883, %v1111, 0.0
  %v1193 = vadd.f32 %v1191, %v1192
  %v1194 = vsel %vm883, %v1112, 0.0
  %v1195 = vadd.f32 %v1193, %v1194
  %v1196 = vsel %vm883, %v1113, 0.0
  %v1197 = vadd.f32 %v1195, %v1196
  %v1198 = vsel %vm883, %v1114, 0.0
  %v1199 = vadd.f32 %v1197, %v1198
  %v1200 = vsel %vm883, %v1115, 0.0
  %v1201 = vadd.f32 %v1199, %v1200
  %v1202 = vsel %vm883, %v1116, 0.0
  %v1203 = vadd.f32 %v1201, %v1202
  %v1204 = vsel %vm883, %v1117, 0.0
  %v1205 = vadd.f32 %v1203, %v1204
  %v1206 = vsel %vm883, %v1118, 0.0
  %v1207 = vadd.f32 %v1205, %v1206
  %v1208 = vsel %vm883, %v1119, 0.0
  %v1209 = vadd.f32 %v1207, %v1208
  %v1210 = vsel %vm883, %v1120, 0.0
  %v1211 = vadd.f32 %v1209, %v1210
  %v1212 = vsel %vm883, %v1121, 0.0
  %v1213 = vadd.f32 %v1211, %v1212
  %v1214 = vsel %vm883, %v1122, 0.0
  %v1215 = vadd.f32 %v1213, %v1214
  %v1216 = vsel %vm883, %v1123, 0.0
  %v1217 = vadd.f32 %v1215, %v1216
  %v1218 = vsel %vm883, %v1124, 0.0
  %v1219 = vadd.f32 %v1217, %v1218
  %v1220 = vsel %vm883, %v1125, 0.0
  %v1221 = vadd.f32 %v1219, %v1220
  %v1222 = vsel %vm883, %v1126, 0.0
  %v1223 = vadd.f32 %v1221, %v1222
  %v1224 = vsel %vm883, %v1127, 0.0
  %v1225 = vadd.f32 %v1223, %v1224
  %v1226 = vsel %vm883, %v1128, 0.0
  %v1227 = vadd.f32 %v1225, %v1226
  %v1228 = vsel %vm883, %v1129, 0.0
  %v1229 = vadd.f32 %v1227, %v1228
  %v1230 = vsel %vm883, %v1130, 0.0
  %v1231 = vadd.f32 %v1229, %v1230
  %v1232 = vsel %vm883, %v1131, 0.0
  %v1233 = vadd.f32 %v1231, %v1232
  %v1234 = vsel %vm883, %v1132, 0.0
  %v1235 = vadd.f32 %v1233, %v1234
  %v1236 = vsel %vm883, %v1133, 0.0
  %v1237 = vadd.f32 %v1235, %v1236
  %v1238 = vsel %vm883, %v1134, 0.0
  %v1239 = vadd.f32 %v1237, %v1238
  %v1240 = vsel %vm883, %v1135, 0.0
  %v1241 = vadd.f32 %v1239, %v1240
  %v1242 = vsel %vm883, %v1136, 0.0
  %v1243 = vadd.f32 %v1241, %v1242
  %v1244 = vsel %vm883, %v1137, 0.0
  %v1245 = vadd.f32 %v1243, %v1244
  %v1246 = vsel %vm883, %v1138, 0.0
  %v1247 = vadd.f32 %v1245, %v1246
  %v1248 = vsel %vm883, %v1139, 0.0
  %v1249 = vadd.f32 %v1247, %v1248
  %v1250 = vsel %vm883, %v1140, 0.0
  %v1251 = vadd.f32 %v1249, %v1250
  %v1252 = vsel %vm883, %v1141, 0.0
  %v1253 = vadd.f32 %v1251, %v1252
  %v1254 = vsel %vm883, %v1142, 0.0
  %v1255 = vadd.f32 %v1253, %v1254
  %v1256 = vsel %vm883, %v1143, 0.0
  %v1257 = vadd.f32 %v1255, %v1256
  %v1258 = vsel %vm883, %v1144, 0.0
  %v1259 = vadd.f32 %v1257, %v1258
  %v1260 = vsel %vm883, %v1145, 0.0
  %v1261 = vadd.f32 %v1259, %v1260
  %v1262 = vsel %vm883, %v1146, 0.0
  %v1263 = vadd.f32 %v1261, %v1262
  %v1264 = vsel %vm883, %v1147, 0.0
  %v1265 = vadd.f32 %v1263, %v1264
  %v1266 = vsel %vm883, %v1148, 0.0
  %v1267 = vadd.f32 %v1265, %v1266
  %v1268 = vsel %vm883, %v1149, 0.0
  %v1269 = vadd.f32 %v1267, %v1268
  %v1270 = vsel %vm883, %v1150, 0.0
  %v1271 = vadd.f32 %v1269, %v1270
  %v1272 = vsel %vm883, %v1151, 0.0
  %v1273 = vadd.f32 %v1271, %v1272
  %v1274 = vsel %vm883, %v1152, 0.0
  %v1275 = vadd.f32 %v1273, %v1274
  %v1276 = vsel %vm883, %v1153, 0.0
  %v1277 = vadd.f32 %v1275, %v1276
  %v1278 = vsel %vm883, %v1154, 0.0
  %v1279 = vadd.f32 %v1277, %v1278
  %v1280 = vsel %vm883, %v1155, 0.0
  %v1281 = vadd.f32 %v1279, %v1280
  %v1282 = vsel %vm883, %v1156, 0.0
  %v1283 = vadd.f32 %v1281, %v1282
  %v1284 = vrot.slane %v1283, 4
  %v1285 = vadd.f32 %v1283, %v1284
  %v1286 = vrot.slane %v1285, 2
  %v1287 = vadd.f32 %v1285, %v1286
  %v1288 = vrot.slane %v1287, 1
  %v1289 = vadd.f32 %v1287, %v1288
  %v1290 = vadd.f32 %v1092, %v1289
  %1291 = vst.msk [vmem:[%s7] sm:$0x1] %vm1090, %v1290
  // Predicated region
  $region26: #{_lambda_.26} parent=0 // pred_check
    _
  $region27: #{_lambda_.26} parent=0 // pred_check_branch
    %1293 = sbr.rel (0) target = $region29
  $region28: #{_lambda_.26} parent=0 // pred_region
    _
  $region29: #{_lambda_.26} parent=0 // pred_fallthru
    _
  // Predicated region
  $region30: #{_lambda_.26} parent=0 // pred_check
    _
  $region31: #{_lambda_.26} parent=0 // pred_check_branch
    %1295 = sbr.rel (0) target = $region33
  $region32: #{_lambda_.26} parent=0 // pred_region
    _
  $region33: #{_lambda_.26} parent=0 // pred_fallthru
    _
  // Predicated region
  $region34: #{_lambda_.26} parent=0 // pred_check
    _
  $region35: #{_lambda_.26} parent=0 // pred_check_branch
    %1297 = sbr.rel (0) target = $region37
  $region36: #{_lambda_.26} parent=0 // pred_region
    _
  $region37: #{_lambda_.26} parent=0 // pred_fallthru
    _
  // Predicated region
  $region38: #{_lambda_.26} parent=0 // pred_check
    _
  $region39: #{_lambda_.26} parent=0 // pred_check_branch
    %1299 = sbr.rel (0) target = $region41
  $region40: #{_lambda_.26} parent=0 // pred_region
    _
  $region41: #{_lambda_.26} parent=0 // pred_fallthru
    _
  // Predicated region
  $region42: #{_lambda_.26} parent=0 // pred_check
    _
  $region43: #{_lambda_.26} parent=0 // pred_check_branch
    %1301 = sbr.rel (0) target = $region45
  $region44: #{_lambda_.26} parent=0 // pred_region
    _
  $region45: #{_lambda_.26} parent=0 // pred_fallthru
    _
  // Predicated region
  $region46: #{_lambda_.26} parent=0 // pred_check
    _
  $region47: #{_lambda_.26} parent=0 // pred_check_branch
    %1303 = sbr.rel (0) target = $region49
  $region48: #{_lambda_.26} parent=0 // pred_region
    _
  $region49: #{_lambda_.26} parent=0 // pred_fallthru
    _

</llo_original>
